<compile_context>
chip_gen: v6e
topology: v6e:2x2x1
jax: 0.10.0
libtpu: 0.0.40
codegen_flags: <defaults>
</compile_context>

<pallas_src>
import math

import jax
import jax.numpy as jnp
from jax.experimental import pallas as pl
from jax.experimental.pallas import tpu as pltpu

EMBED_DIM = 32          # d_model (small test size; module default is 256)
NUM_HEADS = 4
NUM_LAYERS = 2
FFN_DIM = 2048          # nn.TransformerEncoderLayer default dim_feedforward
HEAD_DIM = EMBED_DIM // NUM_HEADS
LN_EPS = 1e-5
VEC_ROWS = 9            # packed (1, D) params per layer: bq bk bv bo g1 be1 b2 g2 be2


def _layer_forward(x, li, wqkv_ref, wo_ref, w1_ref, w2_ref, vd, b1v, *, bb, t, d):
    """One post-norm TransformerEncoderLayer on a (bb*t, D) f32 activation slab."""
    n = bb * t
    hd = d // NUM_HEADS
    scale = 1.0 / math.sqrt(hd)

    # Packed small params for this layer (static rows of the (9L, D) slab).
    r0 = VEC_ROWS * li
    bq = vd[r0 + 0:r0 + 1, :]
    bk = vd[r0 + 1:r0 + 2, :]
    bv = vd[r0 + 2:r0 + 3, :]
    bo = vd[r0 + 3:r0 + 4, :]
    g1 = vd[r0 + 4:r0 + 5, :]
    be1 = vd[r0 + 5:r0 + 6, :]
    b2 = vd[r0 + 6:r0 + 7, :]
    g2 = vd[r0 + 7:r0 + 8, :]
    be2 = vd[r0 + 8:r0 + 9, :]
    b1 = b1v[li:li + 1, :]

    # ---- Q/K/V projections: three (D, D) matmuls, bf16 MXU operands, f32 accumulation.
    # 1/sqrt(head_dim) is folded into q here (instead of scaling the (H*bb, t, t) scores).
    xb = x.astype(jnp.bfloat16)
    q = (jnp.dot(xb, wqkv_ref[3 * li + 0], preferred_element_type=jnp.float32) + bq) * scale
    k = jnp.dot(xb, wqkv_ref[3 * li + 1], preferred_element_type=jnp.float32) + bk
    v = jnp.dot(xb, wqkv_ref[3 * li + 2], preferred_element_type=jnp.float32) + bv

    def split_heads(m):
        # (n, D) -> (H*bb, t, hd); group index g = h*bb + b (head-major leading stack).
        m3 = m.reshape(bb, t, d)
        return jnp.concatenate(
            [m3[:, :, h * hd:(h + 1) * hd] for h in range(NUM_HEADS)], axis=0)

    qh = split_heads(q).astype(jnp.bfloat16)
    kh = split_heads(k).astype(jnp.bfloat16)
    vh = split_heads(v).astype(jnp.bfloat16)

    # Heads-batched scores + one fused softmax over the whole (H*bb, t, t) slab.
    s = jnp.einsum('gqd,gkd->gqk', qh, kh, preferred_element_type=jnp.float32)
    s = s - jnp.max(s, axis=-1, keepdims=True)
    p = jnp.exp(s)
    p = p * pl.reciprocal(jnp.sum(p, axis=-1, keepdims=True), approx=True)
    o = jnp.einsum('gqk,gkd->gqd', p.astype(jnp.bfloat16), vh,
                   preferred_element_type=jnp.float32)                 # (H*bb, t, hd)

    # Re-assemble heads into one (n, D) slab, then a SINGLE deep (K = D) output projection.
    om = jnp.concatenate(
        [o[h * bb:(h + 1) * bb].reshape(n, hd) for h in range(NUM_HEADS)], axis=-1)
    attn = jnp.dot(om.astype(jnp.bfloat16), wo_ref[li],
                   preferred_element_type=jnp.float32) + bo

    # Residual + LayerNorm1 (post-norm), f32.
    x1 = x + attn
    mu = jnp.mean(x1, axis=-1, keepdims=True)
    var = jnp.mean((x1 - mu) ** 2, axis=-1, keepdims=True)
    x1 = (x1 - mu) * jax.lax.rsqrt(var + LN_EPS) * g1 + be1

    # Feed-forward (ReLU), bf16 MXU operands, f32 elementwise.
    hdn = jnp.dot(x1.astype(jnp.bfloat16), w1_ref[li],
                  preferred_element_type=jnp.float32) + b1
    hdn = jnp.maximum(hdn, 0.0)
    ff = jnp.dot(hdn.astype(jnp.bfloat16), w2_ref[li],
                 preferred_element_type=jnp.float32) + b2

    # Residual + LayerNorm2.
    x2 = x1 + ff
    mu2 = jnp.mean(x2, axis=-1, keepdims=True)
    var2 = jnp.mean((x2 - mu2) ** 2, axis=-1, keepdims=True)
    return (x2 - mu2) * jax.lax.rsqrt(var2 + LN_EPS) * g2 + be2


def _make_kernel(bb, t, d, num_layers):
    def kernel(x_ref, wqkv_ref, wo_ref, w1_ref, w2_ref, vecd_ref, b1_ref, o_ref):
        x = x_ref[...].astype(jnp.float32)        # (bb*t, D)
        vd = vecd_ref[...]                        # (9L, D) f32 packed small params
        b1v = b1_ref[...]                         # (L, F) f32 FFN first biases
        for li in range(num_layers):              # both layers fused: no HBM round trip
            x = _layer_forward(x, li, wqkv_ref, wo_ref, w1_ref, w2_ref, vd, b1v,
                               bb=bb, t=t, d=d)
        o_ref[...] = x.astype(o_ref.dtype)
    return kernel


def _num_batch_blocks(B, T):
    """2-way 'parallel' batch split only on multi-TensorCore parts (v7x) and only when each
    half still feeds the MXU >= 256 rows; otherwise one block (grid of 1) on v5e/v6e."""
    rows_half = (B // 2) * T
    if B % 2 != 0 or rows_half < 256 or rows_half % 8 != 0:
        return 1
    cores = 1
    try:
        info = pltpu.get_tpu_info()
        for attr in ("num_cores", "core_count", "num_tensorcores", "tensorcore_count",
                     "num_cores_per_chip"):
            val = getattr(info, attr, None)
            if val is not None and int(val) > cores:
                cores = int(val)
    except Exception:
        cores = 1
    return 2 if cores >= 2 else 1


def _pack_params(layer_params):
    """Pack the per-layer params into 6 stacked operands (instead of 12 per layer).

    Matmul weights stay bf16 (MXU operands); the tiny (1, D)/(1, F) f32 params are packed
    into row slabs so each one does not get its own (8,128)-padded, double-buffered VMEM
    buffer and DMA descriptor."""
    D = layer_params[0][0].shape[0]
    wqkv_all = jnp.concatenate(
        [jnp.stack([lp[0][:, i * D:(i + 1) * D] for i in range(3)]) for lp in layer_params],
        axis=0)                                                        # (3L, D, D) bf16
    wo_all = jnp.stack([lp[2] for lp in layer_params])                 # (L, D, D)  bf16
    w1_all = jnp.stack([lp[6] for lp in layer_params])                 # (L, D, F)  bf16
    w2_all = jnp.stack([lp[8] for lp in layer_params])                 # (L, F, D)  bf16
    vecd_all = jnp.concatenate(
        [jnp.concatenate([lp[1].reshape(3, D),                         # bq, bk, bv
                          lp[3], lp[4], lp[5],                         # bo, g1, be1
                          lp[9], lp[10], lp[11]], axis=0)              # b2, g2, be2
         for lp in layer_params], axis=0)                              # (9L, D) f32
    b1_all = jnp.concatenate([lp[7] for lp in layer_params], axis=0)   # (L, F)  f32
    return wqkv_all, wo_all, w1_all, w2_all, vecd_all, b1_all


def timeseries_transformer(x, layer_params):
    """x: (B, T, D). Equivalent to the module's permute -> TransformerEncoder -> permute."""
    B, T, D = x.shape
    L = len(layer_params)
    F = layer_params[0][6].shape[1]

    nblk = _num_batch_blocks(B, T)
    bb = B // nblk

    packed = _pack_params(layer_params)
    # Fold (B, T, D) -> (B*T, D): the kernel's working layout, no in-kernel reshapes needed.
    # At the module's real config (D=256) this I/O block is already lane-dense.
    x2d = x.reshape(B * T, D)

    def _weight_spec(a):
        # Whole-array, grid-invariant block; single-buffered (no point double-buffering an
        # invariant block -> halves its VMEM footprint, matters under v7x's 64 MiB VMEM).
        return pl.BlockSpec(a.shape, lambda b, nd=a.ndim: (0,) * nd,
                            pipeline_mode=pl.Buffered(1))

    in_specs = [pl.BlockSpec((bb * T, D), lambda b: (b, 0))]
    in_specs += [_weight_spec(a) for a in packed]
    out_specs = pl.BlockSpec((bb * T, D), lambda b: (b, 0))

    # Advisory cost estimate so XLA schedules around this small fused call sensibly.
    N = B * T
    flops_per_layer = (2 * N * D * 3 * D          # q/k/v projections
                       + 4 * N * T * D            # scores + PV over all heads
                       + 2 * N * D * D            # output projection (single deep matmul)
                       + 4 * N * D * F)           # FFN (two matmuls)
    transcendentals = L * (B * NUM_HEADS * T * T + 4 * N)
    param_bytes = sum(int(a.size) * a.dtype.itemsize for a in packed)
    bytes_accessed = 2 * int(x.size) * x.dtype.itemsize + param_bytes
    cost = pl.CostEstimate(flops=int(L * flops_per_layer),
                           transcendentals=int(transcendentals),
                           bytes_accessed=int(bytes_accessed))

    out2d = pl.pallas_call(
        _make_kernel(bb, T, D, L),
        out_shape=jax.ShapeDtypeStruct((B * T, D), x.dtype),
        grid=(nblk,),
        in_specs=in_specs,
        out_specs=out_specs,
        compiler_params=pltpu.CompilerParams(
            dimension_semantics=("parallel",),
            vmem_limit_bytes=48 * 1024 * 1024),   # sized under v7x's 64 MiB VMEM ceiling
        cost_estimate=cost,
    )(x2d, *packed)
    return out2d.reshape(B, T, D)


def init_layer_params(key):
    """Deterministic synthetic parameters for one encoder layer.

    Weights are stored already transposed to (in, out) so the kernel computes x @ W
    (same math as PyTorch's x @ W.T with W stored (out, in)).  Matmul weights are kept
    in bf16 (MXU operands); biases / LayerNorm params stay f32."""
    ks = jax.random.split(key, 6)
    D, F = EMBED_DIM, FFN_DIM

    def u(k, shape, fan_in):
        bound = 1.0 / math.sqrt(fan_in)
        return jax.random.uniform(k, shape, jnp.float32, -bound, bound)

    wqkv = u(ks[0], (D, 3 * D), D).astype(jnp.bfloat16)   # in_proj_weight.T
    bqkv = jnp.zeros((1, 3 * D), jnp.float32)             # in_proj_bias
    wo = u(ks[1], (D, D), D).astype(jnp.bfloat16)         # out_proj.weight.T
    bo = jnp.zeros((1, D), jnp.float32)
    g1 = jnp.ones((1, D), jnp.float32)                    # norm1.weight
    be1 = jnp.zeros((1, D), jnp.float32)                  # norm1.bias
    w1 = u(ks[2], (D, F), D).astype(jnp.bfloat16)         # linear1.weight.T
    b1 = u(ks[3], (1, F), D)
    w2 = u(ks[4], (F, D), F).astype(jnp.bfloat16)         # linear2.weight.T
    b2 = u(ks[5], (1, D), F)
    g2 = jnp.ones((1, D), jnp.float32)                    # norm2.weight
    be2 = jnp.zeros((1, D), jnp.float32)                  # norm2.bias
    return [wqkv, bqkv, wo, bo, g1, be1, w1, b1, w2, b2, g2, be2]


# ----------------------------- pure-JAX reference -----------------------------
def _layernorm(x, g, b):
    mu = jnp.mean(x, axis=-1, keepdims=True)
    var = jnp.mean((x - mu) ** 2, axis=-1, keepdims=True)
    return (x - mu) * jax.lax.rsqrt(var + LN_EPS) * g + b


def reference_forward(x, layer_params):
    """f32 reference of the same forward (weights up-cast from their stored dtype)."""
    B, T, D = x.shape
    hd = D // NUM_HEADS
    out = x.astype(jnp.float32)
    for lp in layer_params:
        (wqkv, bqkv, wo, bo, g1, be1, w1, b1, w2, b2, g2, be2) = [
            p.astype(jnp.float32) for p in lp]
        qkv = out @ wqkv + bqkv
        q, k, v = jnp.split(qkv, 3, axis=-1)
        q = q.reshape(B, T, NUM_HEADS, hd).transpose(0, 2, 1, 3)
        k = k.reshape(B, T, NUM_HEADS, hd).transpose(0, 2, 1, 3)
        v = v.reshape(B, T, NUM_HEADS, hd).transpose(0, 2, 1, 3)
        s = jnp.einsum('bhqd,bhkd->bhqk', q, k) / math.sqrt(hd)
        p = jax.nn.softmax(s, axis=-1)
        o = jnp.einsum('bhqk,bhkd->bhqd', p, v).transpose(0, 2, 1, 3).reshape(B, T, D)
        attn = o @ wo + bo
        x1 = _layernorm(out + attn, g1, be1)
        ff = jnp.maximum(x1 @ w1 + b1, 0.0) @ w2 + b2
        out = _layernorm(x1 + ff, g2, be2)
    return out


if __name__ == "__main__":
    key = jax.random.PRNGKey(0)
    kx, k1, k2 = jax.random.split(key, 3)

    B, T = 2, 8
    x = jax.random.normal(kx, (B, T, EMBED_DIM), jnp.float32)
    layer_params = [init_layer_params(k) for k in (k1, k2)]

    out = timeseries_transformer(x, layer_params)
    out = jax.block_until_ready(out)

    assert out.shape == (B, T, EMBED_DIM), out.shape
    assert bool(jnp.all(jnp.isfinite(out)))

    # bf16 MXU operands + approx reciprocal => compare to f32 reference with loose tolerance.
    ref = reference_forward(x, layer_params)
    max_err = float(jnp.max(jnp.abs(out - ref)))
    assert max_err < 1e-1, f"max abs error vs reference: {max_err}"

    print("KERNEL_OK")
</pallas_src>

<mosaic_0001>
module attributes {stable_mosaic.version = 11 : i64} {
  func.func @kernel(%arg0: i32, %arg1: memref<16x32xf32, #tpu.memory_space<vmem>>, %arg2: memref<6x32x32xbf16, #tpu.memory_space<vmem>>, %arg3: memref<2x32x32xbf16, #tpu.memory_space<vmem>>, %arg4: memref<2x32x2048xbf16, #tpu.memory_space<vmem>>, %arg5: memref<2x2048x32xbf16, #tpu.memory_space<vmem>>, %arg6: memref<18x32xf32, #tpu.memory_space<vmem>>, %arg7: memref<2x2048xf32, #tpu.memory_space<vmem>>, %arg8: memref<16x32xf32, #tpu.memory_space<vmem>>) attributes {dimension_semantics = [#tpu.dimension_semantics<parallel>], iteration_bounds = array<i64: 1>, scalar_prefetch = 0 : i64, scratch_operands = 0 : i64, tpu.core_type = #tpu.core_type<tc>, window_params = [{transform_indices = @transform_0, window_bounds = array<i64: 16, 32>}, {pipeline_mode = #tpu.pipeline_mode<synchronous>, transform_indices = @transform_1, window_bounds = array<i64: 6, 32, 32>}, {pipeline_mode = #tpu.pipeline_mode<synchronous>, transform_indices = @transform_2, window_bounds = array<i64: 2, 32, 32>}, {pipeline_mode = #tpu.pipeline_mode<synchronous>, transform_indices = @transform_3, window_bounds = array<i64: 2, 32, 2048>}, {pipeline_mode = #tpu.pipeline_mode<synchronous>, transform_indices = @transform_4, window_bounds = array<i64: 2, 2048, 32>}, {pipeline_mode = #tpu.pipeline_mode<synchronous>, transform_indices = @transform_5, window_bounds = array<i64: 18, 32>}, {pipeline_mode = #tpu.pipeline_mode<synchronous>, transform_indices = @transform_6, window_bounds = array<i64: 2, 2048>}, {transform_indices = @transform_7, window_bounds = array<i64: 16, 32>}]} {
    %c0 = arith.constant 0 : index
    %c0_0 = arith.constant 0 : index
    %0 = vector.load %arg1[%c0, %c0_0] : memref<16x32xf32, #tpu.memory_space<vmem>>, vector<16x32xf32>
    %c0_1 = arith.constant 0 : index
    %c0_2 = arith.constant 0 : index
    %1 = vector.load %arg6[%c0_1, %c0_2] : memref<18x32xf32, #tpu.memory_space<vmem>>, vector<18x32xf32>
    %c0_3 = arith.constant 0 : index
    %c0_4 = arith.constant 0 : index
    %2 = vector.load %arg7[%c0_3, %c0_4] : memref<2x2048xf32, #tpu.memory_space<vmem>>, vector<2x2048xf32>
    %3 = vector.extract_strided_slice %1 {offsets = [0, 0], sizes = [1, 32], strides = [1, 1]} : vector<18x32xf32> to vector<1x32xf32>
    %4 = vector.extract_strided_slice %1 {offsets = [1, 0], sizes = [1, 32], strides = [1, 1]} : vector<18x32xf32> to vector<1x32xf32>
    %5 = vector.extract_strided_slice %1 {offsets = [2, 0], sizes = [1, 32], strides = [1, 1]} : vector<18x32xf32> to vector<1x32xf32>
    %6 = vector.extract_strided_slice %1 {offsets = [3, 0], sizes = [1, 32], strides = [1, 1]} : vector<18x32xf32> to vector<1x32xf32>
    %7 = vector.extract_strided_slice %1 {offsets = [4, 0], sizes = [1, 32], strides = [1, 1]} : vector<18x32xf32> to vector<1x32xf32>
    %8 = vector.extract_strided_slice %1 {offsets = [5, 0], sizes = [1, 32], strides = [1, 1]} : vector<18x32xf32> to vector<1x32xf32>
    %9 = vector.extract_strided_slice %1 {offsets = [6, 0], sizes = [1, 32], strides = [1, 1]} : vector<18x32xf32> to vector<1x32xf32>
    %10 = vector.extract_strided_slice %1 {offsets = [7, 0], sizes = [1, 32], strides = [1, 1]} : vector<18x32xf32> to vector<1x32xf32>
    %11 = vector.extract_strided_slice %1 {offsets = [8, 0], sizes = [1, 32], strides = [1, 1]} : vector<18x32xf32> to vector<1x32xf32>
    %12 = vector.extract_strided_slice %2 {offsets = [0, 0], sizes = [1, 2048], strides = [1, 1]} : vector<2x2048xf32> to vector<1x2048xf32>
    %13 = arith.truncf %0 : vector<16x32xf32> to vector<16x32xbf16>
    %c0_5 = arith.constant 0 : index
    %c0_6 = arith.constant 0 : index
    %c0_7 = arith.constant 0 : index
    %14 = vector.load %arg2[%c0_5, %c0_6, %c0_7] : memref<6x32x32xbf16, #tpu.memory_space<vmem>>, vector<1x32x32xbf16>
    %15 = vector.shape_cast %14 : vector<1x32x32xbf16> to vector<32x32xbf16>
    %cst = arith.constant dense<0.000000e+00> : vector<16x32xf32>
    %16 = tpu.matmul %13, %15, %cst {dimension_numbers = #tpu.dot_dimension_numbers<[1], [0], [0], [1], [0, 0, 1, 1], [], []>} : vector<16x32xbf16>, vector<32x32xbf16>, vector<16x32xf32> -> vector<16x32xf32>
    %17 = vector.broadcast %3 : vector<1x32xf32> to vector<16x32xf32>
    %18 = arith.addf %16, %17 : vector<16x32xf32>
    %cst_8 = arith.constant 0.353553385 : f32
    %19 = vector.broadcast %cst_8 : f32 to vector<16x32xf32>
    %20 = arith.mulf %18, %19 : vector<16x32xf32>
    %c1 = arith.constant 1 : index
    %c0_9 = arith.constant 0 : index
    %c0_10 = arith.constant 0 : index
    %21 = vector.load %arg2[%c1, %c0_9, %c0_10] : memref<6x32x32xbf16, #tpu.memory_space<vmem>>, vector<1x32x32xbf16>
    %22 = vector.shape_cast %21 : vector<1x32x32xbf16> to vector<32x32xbf16>
    %cst_11 = arith.constant dense<0.000000e+00> : vector<16x32xf32>
    %23 = tpu.matmul %13, %22, %cst_11 {dimension_numbers = #tpu.dot_dimension_numbers<[1], [0], [0], [1], [0, 0, 1, 1], [], []>} : vector<16x32xbf16>, vector<32x32xbf16>, vector<16x32xf32> -> vector<16x32xf32>
    %24 = vector.broadcast %4 : vector<1x32xf32> to vector<16x32xf32>
    %25 = arith.addf %23, %24 : vector<16x32xf32>
    %c2 = arith.constant 2 : index
    %c0_12 = arith.constant 0 : index
    %c0_13 = arith.constant 0 : index
    %26 = vector.load %arg2[%c2, %c0_12, %c0_13] : memref<6x32x32xbf16, #tpu.memory_space<vmem>>, vector<1x32x32xbf16>
    %27 = vector.shape_cast %26 : vector<1x32x32xbf16> to vector<32x32xbf16>
    %cst_14 = arith.constant dense<0.000000e+00> : vector<16x32xf32>
    %28 = tpu.matmul %13, %27, %cst_14 {dimension_numbers = #tpu.dot_dimension_numbers<[1], [0], [0], [1], [0, 0, 1, 1], [], []>} : vector<16x32xbf16>, vector<32x32xbf16>, vector<16x32xf32> -> vector<16x32xf32>
    %29 = vector.broadcast %5 : vector<1x32xf32> to vector<16x32xf32>
    %30 = arith.addf %28, %29 : vector<16x32xf32>
    %31 = vector.shape_cast %20 : vector<16x32xf32> to vector<2x8x32xf32>
    %32 = vector.extract_strided_slice %31 {offsets = [0, 0, 0], sizes = [2, 8, 8], strides = [1, 1, 1]} : vector<2x8x32xf32> to vector<2x8x8xf32>
    %33 = vector.extract_strided_slice %31 {offsets = [0, 0, 8], sizes = [2, 8, 8], strides = [1, 1, 1]} : vector<2x8x32xf32> to vector<2x8x8xf32>
    %34 = vector.extract_strided_slice %31 {offsets = [0, 0, 16], sizes = [2, 8, 8], strides = [1, 1, 1]} : vector<2x8x32xf32> to vector<2x8x8xf32>
    %35 = vector.extract_strided_slice %31 {offsets = [0, 0, 24], sizes = [2, 8, 8], strides = [1, 1, 1]} : vector<2x8x32xf32> to vector<2x8x8xf32>
    %36 = tpu.concatenate %32, %33, %34, %35 in 0 : vector<2x8x8xf32>, vector<2x8x8xf32>, vector<2x8x8xf32>, vector<2x8x8xf32> -> vector<8x8x8xf32>
    %37 = arith.truncf %36 : vector<8x8x8xf32> to vector<8x8x8xbf16>
    %38 = vector.shape_cast %25 : vector<16x32xf32> to vector<2x8x32xf32>
    %39 = vector.extract_strided_slice %38 {offsets = [0, 0, 0], sizes = [2, 8, 8], strides = [1, 1, 1]} : vector<2x8x32xf32> to vector<2x8x8xf32>
    %40 = vector.extract_strided_slice %38 {offsets = [0, 0, 8], sizes = [2, 8, 8], strides = [1, 1, 1]} : vector<2x8x32xf32> to vector<2x8x8xf32>
    %41 = vector.extract_strided_slice %38 {offsets = [0, 0, 16], sizes = [2, 8, 8], strides = [1, 1, 1]} : vector<2x8x32xf32> to vector<2x8x8xf32>
    %42 = vector.extract_strided_slice %38 {offsets = [0, 0, 24], sizes = [2, 8, 8], strides = [1, 1, 1]} : vector<2x8x32xf32> to vector<2x8x8xf32>
    %43 = tpu.concatenate %39, %40, %41, %42 in 0 : vector<2x8x8xf32>, vector<2x8x8xf32>, vector<2x8x8xf32>, vector<2x8x8xf32> -> vector<8x8x8xf32>
    %44 = arith.truncf %43 : vector<8x8x8xf32> to vector<8x8x8xbf16>
    %45 = vector.shape_cast %30 : vector<16x32xf32> to vector<2x8x32xf32>
    %46 = vector.extract_strided_slice %45 {offsets = [0, 0, 0], sizes = [2, 8, 8], strides = [1, 1, 1]} : vector<2x8x32xf32> to vector<2x8x8xf32>
    %47 = vector.extract_strided_slice %45 {offsets = [0, 0, 8], sizes = [2, 8, 8], strides = [1, 1, 1]} : vector<2x8x32xf32> to vector<2x8x8xf32>
    %48 = vector.extract_strided_slice %45 {offsets = [0, 0, 16], sizes = [2, 8, 8], strides = [1, 1, 1]} : vector<2x8x32xf32> to vector<2x8x8xf32>
    %49 = vector.extract_strided_slice %45 {offsets = [0, 0, 24], sizes = [2, 8, 8], strides = [1, 1, 1]} : vector<2x8x32xf32> to vector<2x8x8xf32>
    %50 = tpu.concatenate %46, %47, %48, %49 in 0 : vector<2x8x8xf32>, vector<2x8x8xf32>, vector<2x8x8xf32>, vector<2x8x8xf32> -> vector<8x8x8xf32>
    %51 = arith.truncf %50 : vector<8x8x8xf32> to vector<8x8x8xbf16>
    "tpu.trace_start"() <{level = 10 : i32, message = "gqd,gkd->gqk"}> : () -> ()
    %cst_15 = arith.constant dense<0.000000e+00> : vector<8x8x8xf32>
    %52 = tpu.matmul %37, %44, %cst_15 {dimension_numbers = #tpu.dot_dimension_numbers<[2], [2], [1], [1], [0, 0, 0, 1, 1, 1], [0], [0]>} : vector<8x8x8xbf16>, vector<8x8x8xbf16>, vector<8x8x8xf32> -> vector<8x8x8xf32>
    "tpu.trace_stop"() : () -> ()
    %cst_16 = arith.constant dense<0xFF800000> : vector<8x8xf32>
    %53 = vector.multi_reduction <maximumf>, %52, %cst_16 [2] : vector<8x8x8xf32> to vector<8x8xf32>
    %54 = vector.shape_cast %53 : vector<8x8xf32> to vector<8x8x1xf32>
    %55 = vector.broadcast %54 : vector<8x8x1xf32> to vector<8x8x8xf32>
    %56 = arith.subf %52, %55 : vector<8x8x8xf32>
    %57 = math.exp %56 : vector<8x8x8xf32>
    %cst_17 = arith.constant dense<0.000000e+00> : vector<8x8xf32>
    %58 = vector.multi_reduction <add>, %57, %cst_17 [2] : vector<8x8x8xf32> to vector<8x8xf32>
    %59 = vector.shape_cast %58 : vector<8x8xf32> to vector<8x8x1xf32>
    %60 = tpu.reciprocal %59 {approx = true} : vector<8x8x1xf32> -> vector<8x8x1xf32>
    %61 = vector.broadcast %60 : vector<8x8x1xf32> to vector<8x8x8xf32>
    %62 = arith.mulf %57, %61 : vector<8x8x8xf32>
    %63 = arith.truncf %62 : vector<8x8x8xf32> to vector<8x8x8xbf16>
    "tpu.trace_start"() <{level = 10 : i32, message = "gqk,gkd->gqd"}> : () -> ()
    %cst_18 = arith.constant dense<0.000000e+00> : vector<8x8x8xf32>
    %64 = tpu.matmul %63, %51, %cst_18 {dimension_numbers = #tpu.dot_dimension_numbers<[2], [1], [1], [2], [0, 0, 0, 1, 1, 2], [0], [0]>} : vector<8x8x8xbf16>, vector<8x8x8xbf16>, vector<8x8x8xf32> -> vector<8x8x8xf32>
    "tpu.trace_stop"() : () -> ()
    %65 = vector.extract_strided_slice %64 {offsets = [0, 0, 0], sizes = [2, 8, 8], strides = [1, 1, 1]} : vector<8x8x8xf32> to vector<2x8x8xf32>
    %66 = vector.shape_cast %65 : vector<2x8x8xf32> to vector<16x8xf32>
    %67 = vector.extract_strided_slice %64 {offsets = [2, 0, 0], sizes = [2, 8, 8], strides = [1, 1, 1]} : vector<8x8x8xf32> to vector<2x8x8xf32>
    %68 = vector.shape_cast %67 : vector<2x8x8xf32> to vector<16x8xf32>
    %69 = vector.extract_strided_slice %64 {offsets = [4, 0, 0], sizes = [2, 8, 8], strides = [1, 1, 1]} : vector<8x8x8xf32> to vector<2x8x8xf32>
    %70 = vector.shape_cast %69 : vector<2x8x8xf32> to vector<16x8xf32>
    %71 = vector.extract_strided_slice %64 {offsets = [6, 0, 0], sizes = [2, 8, 8], strides = [1, 1, 1]} : vector<8x8x8xf32> to vector<2x8x8xf32>
    %72 = vector.shape_cast %71 : vector<2x8x8xf32> to vector<16x8xf32>
    %73 = tpu.concatenate %66, %68, %70, %72 in 1 : vector<16x8xf32>, vector<16x8xf32>, vector<16x8xf32>, vector<16x8xf32> -> vector<16x32xf32>
    %74 = arith.truncf %73 : vector<16x32xf32> to vector<16x32xbf16>
    %c0_19 = arith.constant 0 : index
    %c0_20 = arith.constant 0 : index
    %c0_21 = arith.constant 0 : index
    %75 = vector.load %arg3[%c0_19, %c0_20, %c0_21] : memref<2x32x32xbf16, #tpu.memory_space<vmem>>, vector<1x32x32xbf16>
    %76 = vector.shape_cast %75 : vector<1x32x32xbf16> to vector<32x32xbf16>
    %cst_22 = arith.constant dense<0.000000e+00> : vector<16x32xf32>
    %77 = tpu.matmul %74, %76, %cst_22 {dimension_numbers = #tpu.dot_dimension_numbers<[1], [0], [0], [1], [0, 0, 1, 1], [], []>} : vector<16x32xbf16>, vector<32x32xbf16>, vector<16x32xf32> -> vector<16x32xf32>
    %78 = vector.broadcast %6 : vector<1x32xf32> to vector<16x32xf32>
    %79 = arith.addf %77, %78 : vector<16x32xf32>
    %80 = arith.addf %0, %79 : vector<16x32xf32>
    %cst_23 = arith.constant dense<0.000000e+00> : vector<16xf32>
    %81 = vector.multi_reduction <add>, %80, %cst_23 [1] : vector<16x32xf32> to vector<16xf32>
    %82 = vector.shape_cast %81 : vector<16xf32> to vector<16x1xf32>
    %cst_24 = arith.constant 3.200000e+01 : f32
    %83 = vector.broadcast %cst_24 : f32 to vector<16x1xf32>
    %84 = arith.divf %82, %83 : vector<16x1xf32>
    %85 = vector.broadcast %84 : vector<16x1xf32> to vector<16x32xf32>
    %86 = arith.subf %80, %85 : vector<16x32xf32>
    %87 = arith.mulf %86, %86 : vector<16x32xf32>
    %cst_25 = arith.constant dense<0.000000e+00> : vector<16xf32>
    %88 = vector.multi_reduction <add>, %87, %cst_25 [1] : vector<16x32xf32> to vector<16xf32>
    %89 = vector.shape_cast %88 : vector<16xf32> to vector<16x1xf32>
    %cst_26 = arith.constant 3.200000e+01 : f32
    %90 = vector.broadcast %cst_26 : f32 to vector<16x1xf32>
    %91 = arith.divf %89, %90 : vector<16x1xf32>
    %92 = vector.broadcast %84 : vector<16x1xf32> to vector<16x32xf32>
    %93 = arith.subf %80, %92 : vector<16x32xf32>
    %cst_27 = arith.constant 9.99999974E-6 : f32
    %94 = vector.broadcast %cst_27 : f32 to vector<16x1xf32>
    %95 = arith.addf %91, %94 : vector<16x1xf32>
    %96 = math.rsqrt %95 : vector<16x1xf32>
    %97 = vector.broadcast %96 : vector<16x1xf32> to vector<16x32xf32>
    %98 = arith.mulf %93, %97 : vector<16x32xf32>
    %99 = vector.broadcast %7 : vector<1x32xf32> to vector<16x32xf32>
    %100 = arith.mulf %98, %99 : vector<16x32xf32>
    %101 = vector.broadcast %8 : vector<1x32xf32> to vector<16x32xf32>
    %102 = arith.addf %100, %101 : vector<16x32xf32>
    %103 = arith.truncf %102 : vector<16x32xf32> to vector<16x32xbf16>
    %c0_28 = arith.constant 0 : index
    %c0_29 = arith.constant 0 : index
    %c0_30 = arith.constant 0 : index
    %104 = vector.load %arg4[%c0_28, %c0_29, %c0_30] : memref<2x32x2048xbf16, #tpu.memory_space<vmem>>, vector<1x32x2048xbf16>
    %105 = vector.shape_cast %104 : vector<1x32x2048xbf16> to vector<32x2048xbf16>
    %cst_31 = arith.constant dense<0.000000e+00> : vector<16x2048xf32>
    %106 = tpu.matmul %103, %105, %cst_31 {dimension_numbers = #tpu.dot_dimension_numbers<[1], [0], [0], [1], [0, 0, 1, 1], [], []>} : vector<16x32xbf16>, vector<32x2048xbf16>, vector<16x2048xf32> -> vector<16x2048xf32>
    %107 = vector.broadcast %12 : vector<1x2048xf32> to vector<16x2048xf32>
    %108 = arith.addf %106, %107 : vector<16x2048xf32>
    %cst_32 = arith.constant 0.000000e+00 : f32
    %109 = vector.broadcast %cst_32 : f32 to vector<16x2048xf32>
    %110 = arith.maximumf %108, %109 : vector<16x2048xf32>
    %111 = arith.truncf %110 : vector<16x2048xf32> to vector<16x2048xbf16>
    %c0_33 = arith.constant 0 : index
    %c0_34 = arith.constant 0 : index
    %c0_35 = arith.constant 0 : index
    %112 = vector.load %arg5[%c0_33, %c0_34, %c0_35] : memref<2x2048x32xbf16, #tpu.memory_space<vmem>>, vector<1x2048x32xbf16>
    %113 = vector.shape_cast %112 : vector<1x2048x32xbf16> to vector<2048x32xbf16>
    %cst_36 = arith.constant dense<0.000000e+00> : vector<16x32xf32>
    %114 = tpu.matmul %111, %113, %cst_36 {dimension_numbers = #tpu.dot_dimension_numbers<[1], [0], [0], [1], [0, 0, 1, 1], [], []>} : vector<16x2048xbf16>, vector<2048x32xbf16>, vector<16x32xf32> -> vector<16x32xf32>
    %115 = vector.broadcast %9 : vector<1x32xf32> to vector<16x32xf32>
    %116 = arith.addf %114, %115 : vector<16x32xf32>
    %117 = arith.addf %102, %116 : vector<16x32xf32>
    %cst_37 = arith.constant dense<0.000000e+00> : vector<16xf32>
    %118 = vector.multi_reduction <add>, %117, %cst_37 [1] : vector<16x32xf32> to vector<16xf32>
    %119 = vector.shape_cast %118 : vector<16xf32> to vector<16x1xf32>
    %cst_38 = arith.constant 3.200000e+01 : f32
    %120 = vector.broadcast %cst_38 : f32 to vector<16x1xf32>
    %121 = arith.divf %119, %120 : vector<16x1xf32>
    %122 = vector.broadcast %121 : vector<16x1xf32> to vector<16x32xf32>
    %123 = arith.subf %117, %122 : vector<16x32xf32>
    %124 = arith.mulf %123, %123 : vector<16x32xf32>
    %cst_39 = arith.constant dense<0.000000e+00> : vector<16xf32>
    %125 = vector.multi_reduction <add>, %124, %cst_39 [1] : vector<16x32xf32> to vector<16xf32>
    %126 = vector.shape_cast %125 : vector<16xf32> to vector<16x1xf32>
    %cst_40 = arith.constant 3.200000e+01 : f32
    %127 = vector.broadcast %cst_40 : f32 to vector<16x1xf32>
    %128 = arith.divf %126, %127 : vector<16x1xf32>
    %129 = vector.broadcast %121 : vector<16x1xf32> to vector<16x32xf32>
    %130 = arith.subf %117, %129 : vector<16x32xf32>
    %cst_41 = arith.constant 9.99999974E-6 : f32
    %131 = vector.broadcast %cst_41 : f32 to vector<16x1xf32>
    %132 = arith.addf %128, %131 : vector<16x1xf32>
    %133 = math.rsqrt %132 : vector<16x1xf32>
    %134 = vector.broadcast %133 : vector<16x1xf32> to vector<16x32xf32>
    %135 = arith.mulf %130, %134 : vector<16x32xf32>
    %136 = vector.broadcast %10 : vector<1x32xf32> to vector<16x32xf32>
    %137 = arith.mulf %135, %136 : vector<16x32xf32>
    %138 = vector.broadcast %11 : vector<1x32xf32> to vector<16x32xf32>
    %139 = arith.addf %137, %138 : vector<16x32xf32>
    %140 = vector.extract_strided_slice %1 {offsets = [9, 0], sizes = [1, 32], strides = [1, 1]} : vector<18x32xf32> to vector<1x32xf32>
    %141 = vector.extract_strided_slice %1 {offsets = [10, 0], sizes = [1, 32], strides = [1, 1]} : vector<18x32xf32> to vector<1x32xf32>
    %142 = vector.extract_strided_slice %1 {offsets = [11, 0], sizes = [1, 32], strides = [1, 1]} : vector<18x32xf32> to vector<1x32xf32>
    %143 = vector.extract_strided_slice %1 {offsets = [12, 0], sizes = [1, 32], strides = [1, 1]} : vector<18x32xf32> to vector<1x32xf32>
    %144 = vector.extract_strided_slice %1 {offsets = [13, 0], sizes = [1, 32], strides = [1, 1]} : vector<18x32xf32> to vector<1x32xf32>
    %145 = vector.extract_strided_slice %1 {offsets = [14, 0], sizes = [1, 32], strides = [1, 1]} : vector<18x32xf32> to vector<1x32xf32>
    %146 = vector.extract_strided_slice %1 {offsets = [15, 0], sizes = [1, 32], strides = [1, 1]} : vector<18x32xf32> to vector<1x32xf32>
    %147 = vector.extract_strided_slice %1 {offsets = [16, 0], sizes = [1, 32], strides = [1, 1]} : vector<18x32xf32> to vector<1x32xf32>
    %148 = vector.extract_strided_slice %1 {offsets = [17, 0], sizes = [1, 32], strides = [1, 1]} : vector<18x32xf32> to vector<1x32xf32>
    %149 = vector.extract_strided_slice %2 {offsets = [1, 0], sizes = [1, 2048], strides = [1, 1]} : vector<2x2048xf32> to vector<1x2048xf32>
    %150 = arith.truncf %139 : vector<16x32xf32> to vector<16x32xbf16>
    %c3 = arith.constant 3 : index
    %c0_42 = arith.constant 0 : index
    %c0_43 = arith.constant 0 : index
    %151 = vector.load %arg2[%c3, %c0_42, %c0_43] : memref<6x32x32xbf16, #tpu.memory_space<vmem>>, vector<1x32x32xbf16>
    %152 = vector.shape_cast %151 : vector<1x32x32xbf16> to vector<32x32xbf16>
    %cst_44 = arith.constant dense<0.000000e+00> : vector<16x32xf32>
    %153 = tpu.matmul %150, %152, %cst_44 {dimension_numbers = #tpu.dot_dimension_numbers<[1], [0], [0], [1], [0, 0, 1, 1], [], []>} : vector<16x32xbf16>, vector<32x32xbf16>, vector<16x32xf32> -> vector<16x32xf32>
    %154 = vector.broadcast %140 : vector<1x32xf32> to vector<16x32xf32>
    %155 = arith.addf %153, %154 : vector<16x32xf32>
    %cst_45 = arith.constant 0.353553385 : f32
    %156 = vector.broadcast %cst_45 : f32 to vector<16x32xf32>
    %157 = arith.mulf %155, %156 : vector<16x32xf32>
    %c4 = arith.constant 4 : index
    %c0_46 = arith.constant 0 : index
    %c0_47 = arith.constant 0 : index
    %158 = vector.load %arg2[%c4, %c0_46, %c0_47] : memref<6x32x32xbf16, #tpu.memory_space<vmem>>, vector<1x32x32xbf16>
    %159 = vector.shape_cast %158 : vector<1x32x32xbf16> to vector<32x32xbf16>
    %cst_48 = arith.constant dense<0.000000e+00> : vector<16x32xf32>
    %160 = tpu.matmul %150, %159, %cst_48 {dimension_numbers = #tpu.dot_dimension_numbers<[1], [0], [0], [1], [0, 0, 1, 1], [], []>} : vector<16x32xbf16>, vector<32x32xbf16>, vector<16x32xf32> -> vector<16x32xf32>
    %161 = vector.broadcast %141 : vector<1x32xf32> to vector<16x32xf32>
    %162 = arith.addf %160, %161 : vector<16x32xf32>
    %c5 = arith.constant 5 : index
    %c0_49 = arith.constant 0 : index
    %c0_50 = arith.constant 0 : index
    %163 = vector.load %arg2[%c5, %c0_49, %c0_50] : memref<6x32x32xbf16, #tpu.memory_space<vmem>>, vector<1x32x32xbf16>
    %164 = vector.shape_cast %163 : vector<1x32x32xbf16> to vector<32x32xbf16>
    %cst_51 = arith.constant dense<0.000000e+00> : vector<16x32xf32>
    %165 = tpu.matmul %150, %164, %cst_51 {dimension_numbers = #tpu.dot_dimension_numbers<[1], [0], [0], [1], [0, 0, 1, 1], [], []>} : vector<16x32xbf16>, vector<32x32xbf16>, vector<16x32xf32> -> vector<16x32xf32>
    %166 = vector.broadcast %142 : vector<1x32xf32> to vector<16x32xf32>
    %167 = arith.addf %165, %166 : vector<16x32xf32>
    %168 = vector.shape_cast %157 : vector<16x32xf32> to vector<2x8x32xf32>
    %169 = vector.extract_strided_slice %168 {offsets = [0, 0, 0], sizes = [2, 8, 8], strides = [1, 1, 1]} : vector<2x8x32xf32> to vector<2x8x8xf32>
    %170 = vector.extract_strided_slice %168 {offsets = [0, 0, 8], sizes = [2, 8, 8], strides = [1, 1, 1]} : vector<2x8x32xf32> to vector<2x8x8xf32>
    %171 = vector.extract_strided_slice %168 {offsets = [0, 0, 16], sizes = [2, 8, 8], strides = [1, 1, 1]} : vector<2x8x32xf32> to vector<2x8x8xf32>
    %172 = vector.extract_strided_slice %168 {offsets = [0, 0, 24], sizes = [2, 8, 8], strides = [1, 1, 1]} : vector<2x8x32xf32> to vector<2x8x8xf32>
    %173 = tpu.concatenate %169, %170, %171, %172 in 0 : vector<2x8x8xf32>, vector<2x8x8xf32>, vector<2x8x8xf32>, vector<2x8x8xf32> -> vector<8x8x8xf32>
    %174 = arith.truncf %173 : vector<8x8x8xf32> to vector<8x8x8xbf16>
    %175 = vector.shape_cast %162 : vector<16x32xf32> to vector<2x8x32xf32>
    %176 = vector.extract_strided_slice %175 {offsets = [0, 0, 0], sizes = [2, 8, 8], strides = [1, 1, 1]} : vector<2x8x32xf32> to vector<2x8x8xf32>
    %177 = vector.extract_strided_slice %175 {offsets = [0, 0, 8], sizes = [2, 8, 8], strides = [1, 1, 1]} : vector<2x8x32xf32> to vector<2x8x8xf32>
    %178 = vector.extract_strided_slice %175 {offsets = [0, 0, 16], sizes = [2, 8, 8], strides = [1, 1, 1]} : vector<2x8x32xf32> to vector<2x8x8xf32>
    %179 = vector.extract_strided_slice %175 {offsets = [0, 0, 24], sizes = [2, 8, 8], strides = [1, 1, 1]} : vector<2x8x32xf32> to vector<2x8x8xf32>
    %180 = tpu.concatenate %176, %177, %178, %179 in 0 : vector<2x8x8xf32>, vector<2x8x8xf32>, vector<2x8x8xf32>, vector<2x8x8xf32> -> vector<8x8x8xf32>
    %181 = arith.truncf %180 : vector<8x8x8xf32> to vector<8x8x8xbf16>
    %182 = vector.shape_cast %167 : vector<16x32xf32> to vector<2x8x32xf32>
    %183 = vector.extract_strided_slice %182 {offsets = [0, 0, 0], sizes = [2, 8, 8], strides = [1, 1, 1]} : vector<2x8x32xf32> to vector<2x8x8xf32>
    %184 = vector.extract_strided_slice %182 {offsets = [0, 0, 8], sizes = [2, 8, 8], strides = [1, 1, 1]} : vector<2x8x32xf32> to vector<2x8x8xf32>
    %185 = vector.extract_strided_slice %182 {offsets = [0, 0, 16], sizes = [2, 8, 8], strides = [1, 1, 1]} : vector<2x8x32xf32> to vector<2x8x8xf32>
    %186 = vector.extract_strided_slice %182 {offsets = [0, 0, 24], sizes = [2, 8, 8], strides = [1, 1, 1]} : vector<2x8x32xf32> to vector<2x8x8xf32>
    %187 = tpu.concatenate %183, %184, %185, %186 in 0 : vector<2x8x8xf32>, vector<2x8x8xf32>, vector<2x8x8xf32>, vector<2x8x8xf32> -> vector<8x8x8xf32>
    %188 = arith.truncf %187 : vector<8x8x8xf32> to vector<8x8x8xbf16>
    "tpu.trace_start"() <{level = 10 : i32, message = "gqd,gkd->gqk"}> : () -> ()
    %cst_52 = arith.constant dense<0.000000e+00> : vector<8x8x8xf32>
    %189 = tpu.matmul %174, %181, %cst_52 {dimension_numbers = #tpu.dot_dimension_numbers<[2], [2], [1], [1], [0, 0, 0, 1, 1, 1], [0], [0]>} : vector<8x8x8xbf16>, vector<8x8x8xbf16>, vector<8x8x8xf32> -> vector<8x8x8xf32>
    "tpu.trace_stop"() : () -> ()
    %cst_53 = arith.constant dense<0xFF800000> : vector<8x8xf32>
    %190 = vector.multi_reduction <maximumf>, %189, %cst_53 [2] : vector<8x8x8xf32> to vector<8x8xf32>
    %191 = vector.shape_cast %190 : vector<8x8xf32> to vector<8x8x1xf32>
    %192 = vector.broadcast %191 : vector<8x8x1xf32> to vector<8x8x8xf32>
    %193 = arith.subf %189, %192 : vector<8x8x8xf32>
    %194 = math.exp %193 : vector<8x8x8xf32>
    %cst_54 = arith.constant dense<0.000000e+00> : vector<8x8xf32>
    %195 = vector.multi_reduction <add>, %194, %cst_54 [2] : vector<8x8x8xf32> to vector<8x8xf32>
    %196 = vector.shape_cast %195 : vector<8x8xf32> to vector<8x8x1xf32>
    %197 = tpu.reciprocal %196 {approx = true} : vector<8x8x1xf32> -> vector<8x8x1xf32>
    %198 = vector.broadcast %197 : vector<8x8x1xf32> to vector<8x8x8xf32>
    %199 = arith.mulf %194, %198 : vector<8x8x8xf32>
    %200 = arith.truncf %199 : vector<8x8x8xf32> to vector<8x8x8xbf16>
    "tpu.trace_start"() <{level = 10 : i32, message = "gqk,gkd->gqd"}> : () -> ()
    %cst_55 = arith.constant dense<0.000000e+00> : vector<8x8x8xf32>
    %201 = tpu.matmul %200, %188, %cst_55 {dimension_numbers = #tpu.dot_dimension_numbers<[2], [1], [1], [2], [0, 0, 0, 1, 1, 2], [0], [0]>} : vector<8x8x8xbf16>, vector<8x8x8xbf16>, vector<8x8x8xf32> -> vector<8x8x8xf32>
    "tpu.trace_stop"() : () -> ()
    %202 = vector.extract_strided_slice %201 {offsets = [0, 0, 0], sizes = [2, 8, 8], strides = [1, 1, 1]} : vector<8x8x8xf32> to vector<2x8x8xf32>
    %203 = vector.shape_cast %202 : vector<2x8x8xf32> to vector<16x8xf32>
    %204 = vector.extract_strided_slice %201 {offsets = [2, 0, 0], sizes = [2, 8, 8], strides = [1, 1, 1]} : vector<8x8x8xf32> to vector<2x8x8xf32>
    %205 = vector.shape_cast %204 : vector<2x8x8xf32> to vector<16x8xf32>
    %206 = vector.extract_strided_slice %201 {offsets = [4, 0, 0], sizes = [2, 8, 8], strides = [1, 1, 1]} : vector<8x8x8xf32> to vector<2x8x8xf32>
    %207 = vector.shape_cast %206 : vector<2x8x8xf32> to vector<16x8xf32>
    %208 = vector.extract_strided_slice %201 {offsets = [6, 0, 0], sizes = [2, 8, 8], strides = [1, 1, 1]} : vector<8x8x8xf32> to vector<2x8x8xf32>
    %209 = vector.shape_cast %208 : vector<2x8x8xf32> to vector<16x8xf32>
    %210 = tpu.concatenate %203, %205, %207, %209 in 1 : vector<16x8xf32>, vector<16x8xf32>, vector<16x8xf32>, vector<16x8xf32> -> vector<16x32xf32>
    %211 = arith.truncf %210 : vector<16x32xf32> to vector<16x32xbf16>
    %c1_56 = arith.constant 1 : index
    %c0_57 = arith.constant 0 : index
    %c0_58 = arith.constant 0 : index
    %212 = vector.load %arg3[%c1_56, %c0_57, %c0_58] : memref<2x32x32xbf16, #tpu.memory_space<vmem>>, vector<1x32x32xbf16>
    %213 = vector.shape_cast %212 : vector<1x32x32xbf16> to vector<32x32xbf16>
    %cst_59 = arith.constant dense<0.000000e+00> : vector<16x32xf32>
    %214 = tpu.matmul %211, %213, %cst_59 {dimension_numbers = #tpu.dot_dimension_numbers<[1], [0], [0], [1], [0, 0, 1, 1], [], []>} : vector<16x32xbf16>, vector<32x32xbf16>, vector<16x32xf32> -> vector<16x32xf32>
    %215 = vector.broadcast %143 : vector<1x32xf32> to vector<16x32xf32>
    %216 = arith.addf %214, %215 : vector<16x32xf32>
    %217 = arith.addf %139, %216 : vector<16x32xf32>
    %cst_60 = arith.constant dense<0.000000e+00> : vector<16xf32>
    %218 = vector.multi_reduction <add>, %217, %cst_60 [1] : vector<16x32xf32> to vector<16xf32>
    %219 = vector.shape_cast %218 : vector<16xf32> to vector<16x1xf32>
    %cst_61 = arith.constant 3.200000e+01 : f32
    %220 = vector.broadcast %cst_61 : f32 to vector<16x1xf32>
    %221 = arith.divf %219, %220 : vector<16x1xf32>
    %222 = vector.broadcast %221 : vector<16x1xf32> to vector<16x32xf32>
    %223 = arith.subf %217, %222 : vector<16x32xf32>
    %224 = arith.mulf %223, %223 : vector<16x32xf32>
    %cst_62 = arith.constant dense<0.000000e+00> : vector<16xf32>
    %225 = vector.multi_reduction <add>, %224, %cst_62 [1] : vector<16x32xf32> to vector<16xf32>
    %226 = vector.shape_cast %225 : vector<16xf32> to vector<16x1xf32>
    %cst_63 = arith.constant 3.200000e+01 : f32
    %227 = vector.broadcast %cst_63 : f32 to vector<16x1xf32>
    %228 = arith.divf %226, %227 : vector<16x1xf32>
    %229 = vector.broadcast %221 : vector<16x1xf32> to vector<16x32xf32>
    %230 = arith.subf %217, %229 : vector<16x32xf32>
    %cst_64 = arith.constant 9.99999974E-6 : f32
    %231 = vector.broadcast %cst_64 : f32 to vector<16x1xf32>
    %232 = arith.addf %228, %231 : vector<16x1xf32>
    %233 = math.rsqrt %232 : vector<16x1xf32>
    %234 = vector.broadcast %233 : vector<16x1xf32> to vector<16x32xf32>
    %235 = arith.mulf %230, %234 : vector<16x32xf32>
    %236 = vector.broadcast %144 : vector<1x32xf32> to vector<16x32xf32>
    %237 = arith.mulf %235, %236 : vector<16x32xf32>
    %238 = vector.broadcast %145 : vector<1x32xf32> to vector<16x32xf32>
    %239 = arith.addf %237, %238 : vector<16x32xf32>
    %240 = arith.truncf %239 : vector<16x32xf32> to vector<16x32xbf16>
    %c1_65 = arith.constant 1 : index
    %c0_66 = arith.constant 0 : index
    %c0_67 = arith.constant 0 : index
    %241 = vector.load %arg4[%c1_65, %c0_66, %c0_67] : memref<2x32x2048xbf16, #tpu.memory_space<vmem>>, vector<1x32x2048xbf16>
    %242 = vector.shape_cast %241 : vector<1x32x2048xbf16> to vector<32x2048xbf16>
    %cst_68 = arith.constant dense<0.000000e+00> : vector<16x2048xf32>
    %243 = tpu.matmul %240, %242, %cst_68 {dimension_numbers = #tpu.dot_dimension_numbers<[1], [0], [0], [1], [0, 0, 1, 1], [], []>} : vector<16x32xbf16>, vector<32x2048xbf16>, vector<16x2048xf32> -> vector<16x2048xf32>
    %244 = vector.broadcast %149 : vector<1x2048xf32> to vector<16x2048xf32>
    %245 = arith.addf %243, %244 : vector<16x2048xf32>
    %cst_69 = arith.constant 0.000000e+00 : f32
    %246 = vector.broadcast %cst_69 : f32 to vector<16x2048xf32>
    %247 = arith.maximumf %245, %246 : vector<16x2048xf32>
    %248 = arith.truncf %247 : vector<16x2048xf32> to vector<16x2048xbf16>
    %c1_70 = arith.constant 1 : index
    %c0_71 = arith.constant 0 : index
    %c0_72 = arith.constant 0 : index
    %249 = vector.load %arg5[%c1_70, %c0_71, %c0_72] : memref<2x2048x32xbf16, #tpu.memory_space<vmem>>, vector<1x2048x32xbf16>
    %250 = vector.shape_cast %249 : vector<1x2048x32xbf16> to vector<2048x32xbf16>
    %cst_73 = arith.constant dense<0.000000e+00> : vector<16x32xf32>
    %251 = tpu.matmul %248, %250, %cst_73 {dimension_numbers = #tpu.dot_dimension_numbers<[1], [0], [0], [1], [0, 0, 1, 1], [], []>} : vector<16x2048xbf16>, vector<2048x32xbf16>, vector<16x32xf32> -> vector<16x32xf32>
    %252 = vector.broadcast %146 : vector<1x32xf32> to vector<16x32xf32>
    %253 = arith.addf %251, %252 : vector<16x32xf32>
    %254 = arith.addf %239, %253 : vector<16x32xf32>
    %cst_74 = arith.constant dense<0.000000e+00> : vector<16xf32>
    %255 = vector.multi_reduction <add>, %254, %cst_74 [1] : vector<16x32xf32> to vector<16xf32>
    %256 = vector.shape_cast %255 : vector<16xf32> to vector<16x1xf32>
    %cst_75 = arith.constant 3.200000e+01 : f32
    %257 = vector.broadcast %cst_75 : f32 to vector<16x1xf32>
    %258 = arith.divf %256, %257 : vector<16x1xf32>
    %259 = vector.broadcast %258 : vector<16x1xf32> to vector<16x32xf32>
    %260 = arith.subf %254, %259 : vector<16x32xf32>
    %261 = arith.mulf %260, %260 : vector<16x32xf32>
    %cst_76 = arith.constant dense<0.000000e+00> : vector<16xf32>
    %262 = vector.multi_reduction <add>, %261, %cst_76 [1] : vector<16x32xf32> to vector<16xf32>
    %263 = vector.shape_cast %262 : vector<16xf32> to vector<16x1xf32>
    %cst_77 = arith.constant 3.200000e+01 : f32
    %264 = vector.broadcast %cst_77 : f32 to vector<16x1xf32>
    %265 = arith.divf %263, %264 : vector<16x1xf32>
    %266 = vector.broadcast %258 : vector<16x1xf32> to vector<16x32xf32>
    %267 = arith.subf %254, %266 : vector<16x32xf32>
    %cst_78 = arith.constant 9.99999974E-6 : f32
    %268 = vector.broadcast %cst_78 : f32 to vector<16x1xf32>
    %269 = arith.addf %265, %268 : vector<16x1xf32>
    %270 = math.rsqrt %269 : vector<16x1xf32>
    %271 = vector.broadcast %270 : vector<16x1xf32> to vector<16x32xf32>
    %272 = arith.mulf %267, %271 : vector<16x32xf32>
    %273 = vector.broadcast %147 : vector<1x32xf32> to vector<16x32xf32>
    %274 = arith.mulf %272, %273 : vector<16x32xf32>
    %275 = vector.broadcast %148 : vector<1x32xf32> to vector<16x32xf32>
    %276 = arith.addf %274, %275 : vector<16x32xf32>
    %c0_79 = arith.constant 0 : index
    %c0_80 = arith.constant 0 : index
    %277 = vector.load %arg8[%c0_79, %c0_80] : memref<16x32xf32, #tpu.memory_space<vmem>>, vector<16x32xf32>
    tpu.vector_store %arg8[%c0_79, %c0_80], %276 {strides = array<i32>} : memref<16x32xf32, #tpu.memory_space<vmem>>, vector<16x32xf32>,
    return
  }
  func.func @transform_0(%arg0: i32) -> (i32, i32) {
    %c0_i32 = arith.constant 0 : i32
    %c0_i32_0 = arith.constant 0 : i32
    return %arg0, %c0_i32 : i32, i32
  }
  func.func @transform_1(%arg0: i32) -> (i32, i32, i32) {
    %c0_i32 = arith.constant 0 : i32
    %c0_i32_0 = arith.constant 0 : i32
    %c0_i32_1 = arith.constant 0 : i32
    %c0_i32_2 = arith.constant 0 : i32
    return %c0_i32, %c0_i32_0, %c0_i32_1 : i32, i32, i32
  }
  func.func @transform_2(%arg0: i32) -> (i32, i32, i32) {
    %c0_i32 = arith.constant 0 : i32
    %c0_i32_0 = arith.constant 0 : i32
    %c0_i32_1 = arith.constant 0 : i32
    %c0_i32_2 = arith.constant 0 : i32
    return %c0_i32, %c0_i32_0, %c0_i32_1 : i32, i32, i32
  }
  func.func @transform_3(%arg0: i32) -> (i32, i32, i32) {
    %c0_i32 = arith.constant 0 : i32
    %c0_i32_0 = arith.constant 0 : i32
    %c0_i32_1 = arith.constant 0 : i32
    %c0_i32_2 = arith.constant 0 : i32
    return %c0_i32, %c0_i32_0, %c0_i32_1 : i32, i32, i32
  }
  func.func @transform_4(%arg0: i32) -> (i32, i32, i32) {
    %c0_i32 = arith.constant 0 : i32
    %c0_i32_0 = arith.constant 0 : i32
    %c0_i32_1 = arith.constant 0 : i32
    %c0_i32_2 = arith.constant 0 : i32
    return %c0_i32, %c0_i32_0, %c0_i32_1 : i32, i32, i32
  }
  func.func @transform_5(%arg0: i32) -> (i32, i32) {
    %c0_i32 = arith.constant 0 : i32
    %c0_i32_0 = arith.constant 0 : i32
    %c0_i32_1 = arith.constant 0 : i32
    return %c0_i32, %c0_i32_0 : i32, i32
  }
  func.func @transform_6(%arg0: i32) -> (i32, i32) {
    %c0_i32 = arith.constant 0 : i32
    %c0_i32_0 = arith.constant 0 : i32
    %c0_i32_1 = arith.constant 0 : i32
    return %c0_i32, %c0_i32_0 : i32, i32
  }
  func.func @transform_7(%arg0: i32) -> (i32, i32) {
    %c0_i32 = arith.constant 0 : i32
    %c0_i32_0 = arith.constant 0 : i32
    return %arg0, %c0_i32 : i32, i32
  }
}

</mosaic_0001>

<llo_original>
// kernel: tpu_custom_call.1
$region0: #{tpu_custom_call.1}
  #allocation0 [shape = 'u32[]', space=smem, size = 0x4, offset = 0x4, fixed_abs, tag = 'smem constant byte address 0x4 - core index']
  #allocation1 [shape = 'u32[144,128]{1,0:T(1,128)}', space=vmem, size = 0x12000, scoped, tag = 'internal scratch']
  %s0 = inlined_call_operand.vmem [shape: f32[16,32], index: 0, kind: input, shape index: {}]
  %s1 = inlined_call_operand.vmem [shape: bf16[6,32,32], index: 1, kind: input, shape index: {}]
  %s2 = inlined_call_operand.vmem [shape: bf16[2,32,32], index: 2, kind: input, shape index: {}]
  %s3 = inlined_call_operand.vmem [shape: bf16[2,32,2048], index: 3, kind: input, shape index: {}]
  %s4 = inlined_call_operand.vmem [shape: bf16[2,2048,32], index: 4, kind: input, shape index: {}]
  %s5 = inlined_call_operand.vmem [shape: f32[18,32], index: 5, kind: input, shape index: {}]
  %s6 = inlined_call_operand.vmem [shape: f32[2,2048], index: 6, kind: input, shape index: {}]
  %s7 = inlined_call_operand.hbm [shape: f32[16,32], index: 7, kind: output, shape index: {}]
  %s8 = sld [smem:[#allocation0]]
  $region38: #{tpu_custom_call.1} parent=0
    _
  %s10 = ssub.s32 1, %s8
  %s11 = scalar_select 0, %s10, %s8
  $region1: #{tpu_custom_call.1} parent=0
    #allocation2 [shape = 'u8[8192]{0}', space=vmem, size = 0x2000, scoped, tag = 'output window, operand 0, single buffered']
    #allocation3 [shape = 's32[1]{0}', space=sflag, size = 0x4, scoped, tag = 'scoped memory for tpu_custom_call.1']
    %12 = vsyncpa [#allocation3], 0
    // Predicated region
    $region2: #{tpu_custom_call.1} parent=1 // pred_check
      _
    $region3: #{tpu_custom_call.1} parent=1 // pred_check_branch
      %14 = sbr.rel (0) target = $region5
    $region4: #{tpu_custom_call.1} parent=1 // pred_region
      _
    $region5: #{tpu_custom_call.1} parent=1 // pred_fallthru
      _
    // Predicated region
    $region6: #{tpu_custom_call.1} parent=1 // pred_check
      _
    $region7: #{tpu_custom_call.1} parent=1 // pred_check_branch
      %16 = sbr.rel (0) target = $region9
    $region8: #{tpu_custom_call.1} parent=1 // pred_region
      _
    $region9: #{tpu_custom_call.1} parent=1 // pred_fallthru
      _
    // Predicated region
    $region10: #{tpu_custom_call.1} parent=1 // pred_check
      _
    $region11: #{tpu_custom_call.1} parent=1 // pred_check_branch
      %18 = sbr.rel (0) target = $region13
    $region12: #{tpu_custom_call.1} parent=1 // pred_region
      _
    $region13: #{tpu_custom_call.1} parent=1 // pred_fallthru
      _
    // Predicated region
    $region14: #{tpu_custom_call.1} parent=1 // pred_check
      _
    $region15: #{tpu_custom_call.1} parent=1 // pred_check_branch
      %20 = sbr.rel (0) target = $region17
    $region16: #{tpu_custom_call.1} parent=1 // pred_region
      _
    $region17: #{tpu_custom_call.1} parent=1 // pred_fallthru
      _
    // Predicated region
    $region18: #{tpu_custom_call.1} parent=1 // pred_check
      _
    $region19: #{tpu_custom_call.1} parent=1 // pred_check_branch
      %22 = sbr.rel (0) target = $region21
    $region20: #{tpu_custom_call.1} parent=1 // pred_region
      _
    $region21: #{tpu_custom_call.1} parent=1 // pred_fallthru
      _
    // Predicated region
    $region22: #{tpu_custom_call.1} parent=1 // pred_check
      _
    $region23: #{tpu_custom_call.1} parent=1 // pred_check_branch
      %24 = sbr.rel (0) target = $region25
    $region24: #{tpu_custom_call.1} parent=1 // pred_region
      _
    $region25: #{tpu_custom_call.1} parent=1 // pred_fallthru
      _
    // Predicated region
    $region26: #{tpu_custom_call.1} parent=1 // pred_check
      _
    $region27: #{tpu_custom_call.1} parent=1 // pred_check_branch
      %26 = sbr.rel (0) target = $region29
    $region28: #{tpu_custom_call.1} parent=1 // pred_region
      _
    $region29: #{tpu_custom_call.1} parent=1 // pred_fallthru
      _
    %v28 = vld [vmem:[%s0] sm:$0xff]
    %v29 = vld [vmem:[%s0 + $0x8] sm:$0xff]
    %v30 = vld [vmem:[%s5] sm:$0xff]
    %v31 = vld [vmem:[%s5 + $0x8] sm:$0xff]
    %v32 = vld [vmem:[%s5 + $0x10] sm:$0x3]
    %v33 = vld [vmem:[%s6] sm:$0xff]
    %v34 = vld [vmem:[%s6 + $0x8] sm:$0xff]
    %v35 = vld [vmem:[%s6 + $0x10] sm:$0xff]
    %v36 = vld [vmem:[%s6 + $0x18] sm:$0xff]
    %v37 = vpack.c.bf16 %v29, %v28
    %v38 = vld [vmem:[%s1] sm:$0xf]
    %v39 = vld [vmem:[%s1 + $0x4] sm:$0xf]
    %v40 = vld [vmem:[%s1 + $0x8] sm:$0xf]
    %v41 = vld [vmem:[%s1 + $0xc] sm:$0xf]
    %v42 = vlaneseq
    %v43 = vshrl.u32 %v42, 7
    %v44 = vsub.s32 0, %v43
    %v45 = vrot.slane %v30, %v44
    %v50 = vunpack.c.l.b16 %v38
    %v51 = vunpack.c.l.b16 %v39
    %v52 = vunpack.c.l.b16 %v40
    %v53 = vunpack.c.l.b16 %v41
    %v54 = vpack.c.b16 %v51, %v50
    %v55 = vpack.c.b16 %v53, %v52
    %vm58 = vcmask 261120
    %v60 = vsel %vm58, %v37, 0
    %62 = vmatprep.subr.bf16.mxu0 0
    %63 = vmatpush1.bf16.msra.mxu0 0
    %64 = vmatprep.subr.bf16.mxu0 0
    %65 = vmatpush1.bf16.msra.mxu0 0
    %66 = vmatprep.subr.bf16.mxu0 0
    %67 = vmatpush1.bf16.msra.mxu0 0
    %68 = vmatprep.subr.bf16.mxu0 0
    %69 = vmatpush1.bf16.msra.mxu0 0
    %70 = vmatprep.subr.bf16.mxu0 0
    %71 = vmatpush1.bf16.msra.mxu0 0
    %72 = vmatprep.subr.bf16.mxu0 0
    %73 = vmatpush1.bf16.msra.mxu0 0
    %74 = vmatprep.subr.bf16.mxu0 0
    %75 = vmatpush1.bf16.msra.mxu0 %v55
    %76 = vmatprep.subr.bf16.mxu0 0
    %77 = vmatpush1.bf16.msra.mxu0 %v54
    %78 = vmatprep.subr.bf16.mxu0 0
    %79 = vmatpush2.bf16.msra.mxu0 0
    %80 = vmatprep.subr.bf16.mxu0 0
    %81 = vmatpush2.bf16.msra.mxu0 0
    %82 = vmatprep.subr.bf16.mxu0 0
    %83 = vmatpush2.bf16.msra.mxu0 0
    %84 = vmatprep.subr.bf16.mxu0 0
    %85 = vmatpush2.bf16.msra.mxu0 0
    %86 = vmatprep.subr.bf16.mxu0 0
    %87 = vmatpush2.bf16.msra.mxu0 0
    %88 = vmatprep.subr.bf16.mxu0 0
    %89 = vmatpush2.bf16.msra.mxu0 0
    %90 = vmatprep.subr.bf16.mxu0 0
    %91 = vmatpush2.bf16.msra.mxu0 0
    %92 = vmatprep.subr.bf16.mxu0 0
    %93 = vmatpush2.bf16.msra.mxu0 0
    %94 = vmatprep.mubr.bf16.mxu0 0
    %95 = vmatmul.mubr.bf16.gmra.mxu0 %v60
    %v96 = vpop.f32.mrf.mxu0
    %v97 = vadd.f32 %v45, %v96
    %v98 = vpop.f32.mrf.mxu0
    %v99 = vpop.f32.mrf.mxu0
    %v100 = vadd.f32 %v45, %v99
    %v101 = vpop.f32.mrf.mxu0
    %102 = vdwg.mxu0
    %v103 = vmul.f32 %v97, 0.35355338
    %v104 = vmul.f32 %v100, 0.35355338
    %s105 = scalar_lea.vmem %s1, 16
    %v106 = vld [vmem:[%s105] sm:$0xf]
    %v107 = vld [vmem:[%s105 + $0x4] sm:$0xf]
    %v108 = vld [vmem:[%s105 + $0x8] sm:$0xf]
    %v109 = vld [vmem:[%s105 + $0xc] sm:$0xf]
    %v110 = vlaneseq
    %v111 = vshrl.u32 %v110, 7
    %v112 = vsub.s32 1, %v111
    %v113 = vrot.slane %v30, %v112
    %v118 = vunpack.c.l.b16 %v106
    %v119 = vunpack.c.l.b16 %v107
    %v120 = vunpack.c.l.b16 %v108
    %v121 = vunpack.c.l.b16 %v109
    %v122 = vpack.c.b16 %v119, %v118
    %v123 = vpack.c.b16 %v121, %v120
    %126 = vmatprep.subr.bf16.mxu0 0
    %127 = vmatpush1.bf16.msra.mxu0 0
    %128 = vmatprep.subr.bf16.mxu0 0
    %129 = vmatpush1.bf16.msra.mxu0 0
    %130 = vmatprep.subr.bf16.mxu0 0
    %131 = vmatpush1.bf16.msra.mxu0 0
    %132 = vmatprep.subr.bf16.mxu0 0
    %133 = vmatpush1.bf16.msra.mxu0 0
    %134 = vmatprep.subr.bf16.mxu0 0
    %135 = vmatpush1.bf16.msra.mxu0 0
    %136 = vmatprep.subr.bf16.mxu0 0
    %137 = vmatpush1.bf16.msra.mxu0 0
    %138 = vmatprep.subr.bf16.mxu0 0
    %139 = vmatpush1.bf16.msra.mxu0 %v123
    %140 = vmatprep.subr.bf16.mxu0 0
    %141 = vmatpush1.bf16.msra.mxu0 %v122
    %142 = vmatprep.subr.bf16.mxu0 0
    %143 = vmatpush2.bf16.msra.mxu0 0
    %144 = vmatprep.subr.bf16.mxu0 0
    %145 = vmatpush2.bf16.msra.mxu0 0
    %146 = vmatprep.subr.bf16.mxu0 0
    %147 = vmatpush2.bf16.msra.mxu0 0
    %148 = vmatprep.subr.bf16.mxu0 0
    %149 = vmatpush2.bf16.msra.mxu0 0
    %150 = vmatprep.subr.bf16.mxu0 0
    %151 = vmatpush2.bf16.msra.mxu0 0
    %152 = vmatprep.subr.bf16.mxu0 0
    %153 = vmatpush2.bf16.msra.mxu0 0
    %154 = vmatprep.subr.bf16.mxu0 0
    %155 = vmatpush2.bf16.msra.mxu0 0
    %156 = vmatprep.subr.bf16.mxu0 0
    %157 = vmatpush2.bf16.msra.mxu0 0
    %158 = vmatprep.mubr.bf16.mxu0 0
    %159 = vmatmul.mubr.bf16.gmra.mxu0 %v60
    %v160 = vpop.f32.mrf.mxu0
    %v161 = vadd.f32 %v113, %v160
    %v162 = vpop.f32.mrf.mxu0
    %v163 = vpop.f32.mrf.mxu0
    %v164 = vadd.f32 %v113, %v163
    %v165 = vpop.f32.mrf.mxu0
    %166 = vdwg.mxu0
    %s167 = scalar_lea.vmem %s1, 32
    %v168 = vld [vmem:[%s167] sm:$0xf]
    %v169 = vld [vmem:[%s167 + $0x4] sm:$0xf]
    %v170 = vld [vmem:[%s167 + $0x8] sm:$0xf]
    %v171 = vld [vmem:[%s167 + $0xc] sm:$0xf]
    %v172 = vlaneseq
    %v173 = vshrl.u32 %v172, 7
    %v174 = vsub.s32 2, %v173
    %v175 = vrot.slane %v30, %v174
    %v180 = vunpack.c.l.b16 %v168
    %v181 = vunpack.c.l.b16 %v169
    %v182 = vunpack.c.l.b16 %v170
    %v183 = vunpack.c.l.b16 %v171
    %v184 = vpack.c.b16 %v181, %v180
    %v185 = vpack.c.b16 %v183, %v182
    %188 = vmatprep.subr.bf16.mxu0 0
    %189 = vmatpush1.bf16.msra.mxu0 0
    %190 = vmatprep.subr.bf16.mxu0 0
    %191 = vmatpush1.bf16.msra.mxu0 0
    %192 = vmatprep.subr.bf16.mxu0 0
    %193 = vmatpush1.bf16.msra.mxu0 0
    %194 = vmatprep.subr.bf16.mxu0 0
    %195 = vmatpush1.bf16.msra.mxu0 0
    %196 = vmatprep.subr.bf16.mxu0 0
    %197 = vmatpush1.bf16.msra.mxu0 0
    %198 = vmatprep.subr.bf16.mxu0 0
    %199 = vmatpush1.bf16.msra.mxu0 0
    %200 = vmatprep.subr.bf16.mxu0 0
    %201 = vmatpush1.bf16.msra.mxu0 %v185
    %202 = vmatprep.subr.bf16.mxu0 0
    %203 = vmatpush1.bf16.msra.mxu0 %v184
    %204 = vmatprep.subr.bf16.mxu0 0
    %205 = vmatpush2.bf16.msra.mxu0 0
    %206 = vmatprep.subr.bf16.mxu0 0
    %207 = vmatpush2.bf16.msra.mxu0 0
    %208 = vmatprep.subr.bf16.mxu0 0
    %209 = vmatpush2.bf16.msra.mxu0 0
    %210 = vmatprep.subr.bf16.mxu0 0
    %211 = vmatpush2.bf16.msra.mxu0 0
    %212 = vmatprep.subr.bf16.mxu0 0
    %213 = vmatpush2.bf16.msra.mxu0 0
    %214 = vmatprep.subr.bf16.mxu0 0
    %215 = vmatpush2.bf16.msra.mxu0 0
    %216 = vmatprep.subr.bf16.mxu0 0
    %217 = vmatpush2.bf16.msra.mxu0 0
    %218 = vmatprep.subr.bf16.mxu0 0
    %219 = vmatpush2.bf16.msra.mxu0 0
    %220 = vmatprep.mubr.bf16.mxu0 0
    %221 = vmatmul.mubr.bf16.gmra.mxu0 %v60
    %v222 = vpop.f32.mrf.mxu0
    %v223 = vadd.f32 %v175, %v222
    %v224 = vpop.f32.mrf.mxu0
    %v225 = vpop.f32.mrf.mxu0
    %v226 = vadd.f32 %v175, %v225
    %v227 = vpop.f32.mrf.mxu0
    %228 = vdwg.mxu0
    %231 = vrot.lane.b32.xlu0 %v103, 120
    %v232 = vpop.permute.xlu0 %231
    %233 = vrot.lane.b32.xlu0 %v104, 120
    %v234 = vpop.permute.xlu0 %233
    %237 = vrot.lane.b32.xlu0 %v103, 112
    %v238 = vpop.permute.xlu0 %237
    %239 = vrot.lane.b32.xlu0 %v104, 112
    %v240 = vpop.permute.xlu0 %239
    %243 = vrot.lane.b32.xlu0 %v103, 104
    %v244 = vpop.permute.xlu0 %243
    %245 = vrot.lane.b32.xlu0 %v104, 104
    %v246 = vpop.permute.xlu0 %245
    %v249 = vpack.c.bf16 %v103, %v103
    %v250 = vpack.c.bf16 %v104, %v104
    %v251 = vpack.c.bf16 %v232, %v232
    %v252 = vpack.c.bf16 %v234, %v234
    %v253 = vpack.c.bf16 %v238, %v238
    %v254 = vpack.c.bf16 %v240, %v240
    %v255 = vpack.c.bf16 %v244, %v244
    %v256 = vpack.c.bf16 %v246, %v246
    %259 = vrot.lane.b32.xlu0 %v161, 120
    %v260 = vpop.permute.xlu0 %259
    %261 = vrot.lane.b32.xlu0 %v164, 120
    %v262 = vpop.permute.xlu0 %261
    %265 = vrot.lane.b32.xlu0 %v161, 112
    %v266 = vpop.permute.xlu0 %265
    %267 = vrot.lane.b32.xlu0 %v164, 112
    %v268 = vpop.permute.xlu0 %267
    %271 = vrot.lane.b32.xlu0 %v161, 104
    %v272 = vpop.permute.xlu0 %271
    %273 = vrot.lane.b32.xlu0 %v164, 104
    %v274 = vpop.permute.xlu0 %273
    %v277 = vpack.c.bf16 %v161, %v161
    %v278 = vpack.c.bf16 %v164, %v164
    %v279 = vpack.c.bf16 %v260, %v260
    %v280 = vpack.c.bf16 %v262, %v262
    %v281 = vpack.c.bf16 %v266, %v266
    %v282 = vpack.c.bf16 %v268, %v268
    %v283 = vpack.c.bf16 %v272, %v272
    %v284 = vpack.c.bf16 %v274, %v274
    %287 = vrot.lane.b32.xlu0 %v223, 120
    %v288 = vpop.permute.xlu0 %287
    %289 = vrot.lane.b32.xlu0 %v226, 120
    %v290 = vpop.permute.xlu0 %289
    %293 = vrot.lane.b32.xlu0 %v223, 112
    %v294 = vpop.permute.xlu0 %293
    %295 = vrot.lane.b32.xlu0 %v226, 112
    %v296 = vpop.permute.xlu0 %295
    %299 = vrot.lane.b32.xlu0 %v223, 104
    %v300 = vpop.permute.xlu0 %299
    %301 = vrot.lane.b32.xlu0 %v226, 104
    %v302 = vpop.permute.xlu0 %301
    %v305 = vpack.c.bf16 %v223, %v223
    %v306 = vpack.c.bf16 %v226, %v226
    %v307 = vpack.c.bf16 %v288, %v288
    %v308 = vpack.c.bf16 %v290, %v290
    %v309 = vpack.c.bf16 %v294, %v294
    %v310 = vpack.c.bf16 %v296, %v296
    %v311 = vpack.c.bf16 %v300, %v300
    %v312 = vpack.c.bf16 %v302, %v302
    %vm313 = vcmask 64512
    %v315 = vsel %vm313, %v249, 0
    %v318 = vsel %vm313, %v277, 0
    %320 = vmatprep.subr.bf16.mxu0 0
    %321 = vmatpush1.bf16.xpose.msra.mxu0 0
    %322 = vmatprep.subr.bf16.mxu0 0
    %323 = vmatpush1.bf16.xpose.msra.mxu0 0
    %324 = vmatprep.subr.bf16.mxu0 0
    %325 = vmatpush1.bf16.xpose.msra.mxu0 0
    %326 = vmatprep.subr.bf16.mxu0 0
    %327 = vmatpush1.bf16.xpose.msra.mxu0 0
    %328 = vmatprep.subr.bf16.mxu0 0
    %329 = vmatpush1.bf16.xpose.msra.mxu0 0
    %330 = vmatprep.subr.bf16.mxu0 0
    %331 = vmatpush1.bf16.xpose.msra.mxu0 0
    %332 = vmatprep.subr.bf16.mxu0 0
    %333 = vmatpush1.bf16.xpose.msra.mxu0 0
    %334 = vmatprep.subr.bf16.mxu0 0
    %335 = vmatpush1.bf16.xpose.msra.mxu0 %v318
    %336 = vmatprep.subr.bf16.mxu0 0
    %337 = vmatpush2.bf16.xpose.msra.mxu0 0
    %338 = vmatprep.subr.bf16.mxu0 0
    %339 = vmatpush2.bf16.xpose.msra.mxu0 0
    %340 = vmatprep.subr.bf16.mxu0 0
    %341 = vmatpush2.bf16.xpose.msra.mxu0 0
    %342 = vmatprep.subr.bf16.mxu0 0
    %343 = vmatpush2.bf16.xpose.msra.mxu0 0
    %344 = vmatprep.subr.bf16.mxu0 0
    %345 = vmatpush2.bf16.xpose.msra.mxu0 0
    %346 = vmatprep.subr.bf16.mxu0 0
    %347 = vmatpush2.bf16.xpose.msra.mxu0 0
    %348 = vmatprep.subr.bf16.mxu0 0
    %349 = vmatpush2.bf16.xpose.msra.mxu0 0
    %350 = vmatprep.subr.bf16.mxu0 0
    %351 = vmatpush2.bf16.xpose.msra.mxu0 0
    %352 = vmatprep.mubr.bf16.mxu0 0
    %353 = vmatmul.mubr.bf16.gmra.mxu0 %v315
    %v354 = vpop.f32.mrf.mxu0
    %v355 = vadd.f32 0.0, %v354
    %v356 = vpop.f32.mrf.mxu0
    %v357 = vpop.f32.mrf.mxu0
    %v358 = vpop.f32.mrf.mxu0
    %359 = vdwg.mxu0
    %v361 = vsel %vm313, %v250, 0
    %v364 = vsel %vm313, %v278, 0
    %366 = vmatprep.subr.bf16.mxu0 0
    %367 = vmatpush1.bf16.xpose.msra.mxu0 0
    %368 = vmatprep.subr.bf16.mxu0 0
    %369 = vmatpush1.bf16.xpose.msra.mxu0 0
    %370 = vmatprep.subr.bf16.mxu0 0
    %371 = vmatpush1.bf16.xpose.msra.mxu0 0
    %372 = vmatprep.subr.bf16.mxu0 0
    %373 = vmatpush1.bf16.xpose.msra.mxu0 0
    %374 = vmatprep.subr.bf16.mxu0 0
    %375 = vmatpush1.bf16.xpose.msra.mxu0 0
    %376 = vmatprep.subr.bf16.mxu0 0
    %377 = vmatpush1.bf16.xpose.msra.mxu0 0
    %378 = vmatprep.subr.bf16.mxu0 0
    %379 = vmatpush1.bf16.xpose.msra.mxu0 0
    %380 = vmatprep.subr.bf16.mxu0 0
    %381 = vmatpush1.bf16.xpose.msra.mxu0 %v364
    %382 = vmatprep.subr.bf16.mxu0 0
    %383 = vmatpush2.bf16.xpose.msra.mxu0 0
    %384 = vmatprep.subr.bf16.mxu0 0
    %385 = vmatpush2.bf16.xpose.msra.mxu0 0
    %386 = vmatprep.subr.bf16.mxu0 0
    %387 = vmatpush2.bf16.xpose.msra.mxu0 0
    %388 = vmatprep.subr.bf16.mxu0 0
    %389 = vmatpush2.bf16.xpose.msra.mxu0 0
    %390 = vmatprep.subr.bf16.mxu0 0
    %391 = vmatpush2.bf16.xpose.msra.mxu0 0
    %392 = vmatprep.subr.bf16.mxu0 0
    %393 = vmatpush2.bf16.xpose.msra.mxu0 0
    %394 = vmatprep.subr.bf16.mxu0 0
    %395 = vmatpush2.bf16.xpose.msra.mxu0 0
    %396 = vmatprep.subr.bf16.mxu0 0
    %397 = vmatpush2.bf16.xpose.msra.mxu0 0
    %398 = vmatprep.mubr.bf16.mxu0 0
    %399 = vmatmul.mubr.bf16.gmra.mxu0 %v361
    %v400 = vpop.f32.mrf.mxu0
    %v401 = vadd.f32 0.0, %v400
    %v402 = vpop.f32.mrf.mxu0
    %v403 = vpop.f32.mrf.mxu0
    %v404 = vpop.f32.mrf.mxu0
    %405 = vdwg.mxu0
    %v407 = vsel %vm313, %v251, 0
    %v410 = vsel %vm313, %v279, 0
    %412 = vmatprep.subr.bf16.mxu0 0
    %413 = vmatpush1.bf16.xpose.msra.mxu0 0
    %414 = vmatprep.subr.bf16.mxu0 0
    %415 = vmatpush1.bf16.xpose.msra.mxu0 0
    %416 = vmatprep.subr.bf16.mxu0 0
    %417 = vmatpush1.bf16.xpose.msra.mxu0 0
    %418 = vmatprep.subr.bf16.mxu0 0
    %419 = vmatpush1.bf16.xpose.msra.mxu0 0
    %420 = vmatprep.subr.bf16.mxu0 0
    %421 = vmatpush1.bf16.xpose.msra.mxu0 0
    %422 = vmatprep.subr.bf16.mxu0 0
    %423 = vmatpush1.bf16.xpose.msra.mxu0 0
    %424 = vmatprep.subr.bf16.mxu0 0
    %425 = vmatpush1.bf16.xpose.msra.mxu0 0
    %426 = vmatprep.subr.bf16.mxu0 0
    %427 = vmatpush1.bf16.xpose.msra.mxu0 %v410
    %428 = vmatprep.subr.bf16.mxu0 0
    %429 = vmatpush2.bf16.xpose.msra.mxu0 0
    %430 = vmatprep.subr.bf16.mxu0 0
    %431 = vmatpush2.bf16.xpose.msra.mxu0 0
    %432 = vmatprep.subr.bf16.mxu0 0
    %433 = vmatpush2.bf16.xpose.msra.mxu0 0
    %434 = vmatprep.subr.bf16.mxu0 0
    %435 = vmatpush2.bf16.xpose.msra.mxu0 0
    %436 = vmatprep.subr.bf16.mxu0 0
    %437 = vmatpush2.bf16.xpose.msra.mxu0 0
    %438 = vmatprep.subr.bf16.mxu0 0
    %439 = vmatpush2.bf16.xpose.msra.mxu0 0
    %440 = vmatprep.subr.bf16.mxu0 0
    %441 = vmatpush2.bf16.xpose.msra.mxu0 0
    %442 = vmatprep.subr.bf16.mxu0 0
    %443 = vmatpush2.bf16.xpose.msra.mxu0 0
    %444 = vmatprep.mubr.bf16.mxu0 0
    %445 = vmatmul.mubr.bf16.gmra.mxu0 %v407
    %v446 = vpop.f32.mrf.mxu0
    %v447 = vadd.f32 0.0, %v446
    %v448 = vpop.f32.mrf.mxu0
    %v449 = vpop.f32.mrf.mxu0
    %v450 = vpop.f32.mrf.mxu0
    %451 = vdwg.mxu0
    %v453 = vsel %vm313, %v252, 0
    %v456 = vsel %vm313, %v280, 0
    %458 = vmatprep.subr.bf16.mxu0 0
    %459 = vmatpush1.bf16.xpose.msra.mxu0 0
    %460 = vmatprep.subr.bf16.mxu0 0
    %461 = vmatpush1.bf16.xpose.msra.mxu0 0
    %462 = vmatprep.subr.bf16.mxu0 0
    %463 = vmatpush1.bf16.xpose.msra.mxu0 0
    %464 = vmatprep.subr.bf16.mxu0 0
    %465 = vmatpush1.bf16.xpose.msra.mxu0 0
    %466 = vmatprep.subr.bf16.mxu0 0
    %467 = vmatpush1.bf16.xpose.msra.mxu0 0
    %468 = vmatprep.subr.bf16.mxu0 0
    %469 = vmatpush1.bf16.xpose.msra.mxu0 0
    %470 = vmatprep.subr.bf16.mxu0 0
    %471 = vmatpush1.bf16.xpose.msra.mxu0 0
    %472 = vmatprep.subr.bf16.mxu0 0
    %473 = vmatpush1.bf16.xpose.msra.mxu0 %v456
    %474 = vmatprep.subr.bf16.mxu0 0
    %475 = vmatpush2.bf16.xpose.msra.mxu0 0
    %476 = vmatprep.subr.bf16.mxu0 0
    %477 = vmatpush2.bf16.xpose.msra.mxu0 0
    %478 = vmatprep.subr.bf16.mxu0 0
    %479 = vmatpush2.bf16.xpose.msra.mxu0 0
    %480 = vmatprep.subr.bf16.mxu0 0
    %481 = vmatpush2.bf16.xpose.msra.mxu0 0
    %482 = vmatprep.subr.bf16.mxu0 0
    %483 = vmatpush2.bf16.xpose.msra.mxu0 0
    %484 = vmatprep.subr.bf16.mxu0 0
    %485 = vmatpush2.bf16.xpose.msra.mxu0 0
    %486 = vmatprep.subr.bf16.mxu0 0
    %487 = vmatpush2.bf16.xpose.msra.mxu0 0
    %488 = vmatprep.subr.bf16.mxu0 0
    %489 = vmatpush2.bf16.xpose.msra.mxu0 0
    %490 = vmatprep.mubr.bf16.mxu0 0
    %491 = vmatmul.mubr.bf16.gmra.mxu0 %v453
    %v492 = vpop.f32.mrf.mxu0
    %v493 = vadd.f32 0.0, %v492
    %v494 = vpop.f32.mrf.mxu0
    %v495 = vpop.f32.mrf.mxu0
    %v496 = vpop.f32.mrf.mxu0
    %497 = vdwg.mxu0
    %v499 = vsel %vm313, %v253, 0
    %v502 = vsel %vm313, %v281, 0
    %504 = vmatprep.subr.bf16.mxu0 0
    %505 = vmatpush1.bf16.xpose.msra.mxu0 0
    %506 = vmatprep.subr.bf16.mxu0 0
    %507 = vmatpush1.bf16.xpose.msra.mxu0 0
    %508 = vmatprep.subr.bf16.mxu0 0
    %509 = vmatpush1.bf16.xpose.msra.mxu0 0
    %510 = vmatprep.subr.bf16.mxu0 0
    %511 = vmatpush1.bf16.xpose.msra.mxu0 0
    %512 = vmatprep.subr.bf16.mxu0 0
    %513 = vmatpush1.bf16.xpose.msra.mxu0 0
    %514 = vmatprep.subr.bf16.mxu0 0
    %515 = vmatpush1.bf16.xpose.msra.mxu0 0
    %516 = vmatprep.subr.bf16.mxu0 0
    %517 = vmatpush1.bf16.xpose.msra.mxu0 0
    %518 = vmatprep.subr.bf16.mxu0 0
    %519 = vmatpush1.bf16.xpose.msra.mxu0 %v502
    %520 = vmatprep.subr.bf16.mxu0 0
    %521 = vmatpush2.bf16.xpose.msra.mxu0 0
    %522 = vmatprep.subr.bf16.mxu0 0
    %523 = vmatpush2.bf16.xpose.msra.mxu0 0
    %524 = vmatprep.subr.bf16.mxu0 0
    %525 = vmatpush2.bf16.xpose.msra.mxu0 0
    %526 = vmatprep.subr.bf16.mxu0 0
    %527 = vmatpush2.bf16.xpose.msra.mxu0 0
    %528 = vmatprep.subr.bf16.mxu0 0
    %529 = vmatpush2.bf16.xpose.msra.mxu0 0
    %530 = vmatprep.subr.bf16.mxu0 0
    %531 = vmatpush2.bf16.xpose.msra.mxu0 0
    %532 = vmatprep.subr.bf16.mxu0 0
    %533 = vmatpush2.bf16.xpose.msra.mxu0 0
    %534 = vmatprep.subr.bf16.mxu0 0
    %535 = vmatpush2.bf16.xpose.msra.mxu0 0
    %536 = vmatprep.mubr.bf16.mxu0 0
    %537 = vmatmul.mubr.bf16.gmra.mxu0 %v499
    %v538 = vpop.f32.mrf.mxu0
    %v539 = vadd.f32 0.0, %v538
    %v540 = vpop.f32.mrf.mxu0
    %v541 = vpop.f32.mrf.mxu0
    %v542 = vpop.f32.mrf.mxu0
    %543 = vdwg.mxu0
    %v545 = vsel %vm313, %v254, 0
    %v548 = vsel %vm313, %v282, 0
    %550 = vmatprep.subr.bf16.mxu0 0
    %551 = vmatpush1.bf16.xpose.msra.mxu0 0
    %552 = vmatprep.subr.bf16.mxu0 0
    %553 = vmatpush1.bf16.xpose.msra.mxu0 0
    %554 = vmatprep.subr.bf16.mxu0 0
    %555 = vmatpush1.bf16.xpose.msra.mxu0 0
    %556 = vmatprep.subr.bf16.mxu0 0
    %557 = vmatpush1.bf16.xpose.msra.mxu0 0
    %558 = vmatprep.subr.bf16.mxu0 0
    %559 = vmatpush1.bf16.xpose.msra.mxu0 0
    %560 = vmatprep.subr.bf16.mxu0 0
    %561 = vmatpush1.bf16.xpose.msra.mxu0 0
    %562 = vmatprep.subr.bf16.mxu0 0
    %563 = vmatpush1.bf16.xpose.msra.mxu0 0
    %564 = vmatprep.subr.bf16.mxu0 0
    %565 = vmatpush1.bf16.xpose.msra.mxu0 %v548
    %566 = vmatprep.subr.bf16.mxu0 0
    %567 = vmatpush2.bf16.xpose.msra.mxu0 0
    %568 = vmatprep.subr.bf16.mxu0 0
    %569 = vmatpush2.bf16.xpose.msra.mxu0 0
    %570 = vmatprep.subr.bf16.mxu0 0
    %571 = vmatpush2.bf16.xpose.msra.mxu0 0
    %572 = vmatprep.subr.bf16.mxu0 0
    %573 = vmatpush2.bf16.xpose.msra.mxu0 0
    %574 = vmatprep.subr.bf16.mxu0 0
    %575 = vmatpush2.bf16.xpose.msra.mxu0 0
    %576 = vmatprep.subr.bf16.mxu0 0
    %577 = vmatpush2.bf16.xpose.msra.mxu0 0
    %578 = vmatprep.subr.bf16.mxu0 0
    %579 = vmatpush2.bf16.xpose.msra.mxu0 0
    %580 = vmatprep.subr.bf16.mxu0 0
    %581 = vmatpush2.bf16.xpose.msra.mxu0 0
    %582 = vmatprep.mubr.bf16.mxu0 0
    %583 = vmatmul.mubr.bf16.gmra.mxu0 %v545
    %v584 = vpop.f32.mrf.mxu0
    %v585 = vadd.f32 0.0, %v584
    %v586 = vpop.f32.mrf.mxu0
    %v587 = vpop.f32.mrf.mxu0
    %v588 = vpop.f32.mrf.mxu0
    %589 = vdwg.mxu0
    %v591 = vsel %vm313, %v255, 0
    %v594 = vsel %vm313, %v283, 0
    %596 = vmatprep.subr.bf16.mxu0 0
    %597 = vmatpush1.bf16.xpose.msra.mxu0 0
    %598 = vmatprep.subr.bf16.mxu0 0
    %599 = vmatpush1.bf16.xpose.msra.mxu0 0
    %600 = vmatprep.subr.bf16.mxu0 0
    %601 = vmatpush1.bf16.xpose.msra.mxu0 0
    %602 = vmatprep.subr.bf16.mxu0 0
    %603 = vmatpush1.bf16.xpose.msra.mxu0 0
    %604 = vmatprep.subr.bf16.mxu0 0
    %605 = vmatpush1.bf16.xpose.msra.mxu0 0
    %606 = vmatprep.subr.bf16.mxu0 0
    %607 = vmatpush1.bf16.xpose.msra.mxu0 0
    %608 = vmatprep.subr.bf16.mxu0 0
    %609 = vmatpush1.bf16.xpose.msra.mxu0 0
    %610 = vmatprep.subr.bf16.mxu0 0
    %611 = vmatpush1.bf16.xpose.msra.mxu0 %v594
    %612 = vmatprep.subr.bf16.mxu0 0
    %613 = vmatpush2.bf16.xpose.msra.mxu0 0
    %614 = vmatprep.subr.bf16.mxu0 0
    %615 = vmatpush2.bf16.xpose.msra.mxu0 0
    %616 = vmatprep.subr.bf16.mxu0 0
    %617 = vmatpush2.bf16.xpose.msra.mxu0 0
    %618 = vmatprep.subr.bf16.mxu0 0
    %619 = vmatpush2.bf16.xpose.msra.mxu0 0
    %620 = vmatprep.subr.bf16.mxu0 0
    %621 = vmatpush2.bf16.xpose.msra.mxu0 0
    %622 = vmatprep.subr.bf16.mxu0 0
    %623 = vmatpush2.bf16.xpose.msra.mxu0 0
    %624 = vmatprep.subr.bf16.mxu0 0
    %625 = vmatpush2.bf16.xpose.msra.mxu0 0
    %626 = vmatprep.subr.bf16.mxu0 0
    %627 = vmatpush2.bf16.xpose.msra.mxu0 0
    %628 = vmatprep.mubr.bf16.mxu0 0
    %629 = vmatmul.mubr.bf16.gmra.mxu0 %v591
    %v630 = vpop.f32.mrf.mxu0
    %v631 = vadd.f32 0.0, %v630
    %v632 = vpop.f32.mrf.mxu0
    %v633 = vpop.f32.mrf.mxu0
    %v634 = vpop.f32.mrf.mxu0
    %635 = vdwg.mxu0
    %v637 = vsel %vm313, %v256, 0
    %v640 = vsel %vm313, %v284, 0
    %642 = vmatprep.subr.bf16.mxu0 0
    %643 = vmatpush1.bf16.xpose.msra.mxu0 0
    %644 = vmatprep.subr.bf16.mxu0 0
    %645 = vmatpush1.bf16.xpose.msra.mxu0 0
    %646 = vmatprep.subr.bf16.mxu0 0
    %647 = vmatpush1.bf16.xpose.msra.mxu0 0
    %648 = vmatprep.subr.bf16.mxu0 0
    %649 = vmatpush1.bf16.xpose.msra.mxu0 0
    %650 = vmatprep.subr.bf16.mxu0 0
    %651 = vmatpush1.bf16.xpose.msra.mxu0 0
    %652 = vmatprep.subr.bf16.mxu0 0
    %653 = vmatpush1.bf16.xpose.msra.mxu0 0
    %654 = vmatprep.subr.bf16.mxu0 0
    %655 = vmatpush1.bf16.xpose.msra.mxu0 0
    %656 = vmatprep.subr.bf16.mxu0 0
    %657 = vmatpush1.bf16.xpose.msra.mxu0 %v640
    %658 = vmatprep.subr.bf16.mxu0 0
    %659 = vmatpush2.bf16.xpose.msra.mxu0 0
    %660 = vmatprep.subr.bf16.mxu0 0
    %661 = vmatpush2.bf16.xpose.msra.mxu0 0
    %662 = vmatprep.subr.bf16.mxu0 0
    %663 = vmatpush2.bf16.xpose.msra.mxu0 0
    %664 = vmatprep.subr.bf16.mxu0 0
    %665 = vmatpush2.bf16.xpose.msra.mxu0 0
    %666 = vmatprep.subr.bf16.mxu0 0
    %667 = vmatpush2.bf16.xpose.msra.mxu0 0
    %668 = vmatprep.subr.bf16.mxu0 0
    %669 = vmatpush2.bf16.xpose.msra.mxu0 0
    %670 = vmatprep.subr.bf16.mxu0 0
    %671 = vmatpush2.bf16.xpose.msra.mxu0 0
    %672 = vmatprep.subr.bf16.mxu0 0
    %673 = vmatpush2.bf16.xpose.msra.mxu0 0
    %674 = vmatprep.mubr.bf16.mxu0 0
    %675 = vmatmul.mubr.bf16.gmra.mxu0 %v637
    %v676 = vpop.f32.mrf.mxu0
    %v677 = vadd.f32 0.0, %v676
    %v678 = vpop.f32.mrf.mxu0
    %v679 = vpop.f32.mrf.mxu0
    %v680 = vpop.f32.mrf.mxu0
    %681 = vdwg.mxu0
    %v682 = vsel %vm313, %v355, -inf
    %683 = vmax.xlane.f32.xlu0 %v682
    %v684 = vpop.xlane.xlu0 %683
    %v685 = vsel %vm313, %v401, -inf
    %686 = vmax.xlane.f32.xlu0 %v685
    %v687 = vpop.xlane.xlu0 %686
    %v688 = vsel %vm313, %v447, -inf
    %689 = vmax.xlane.f32.xlu0 %v688
    %v690 = vpop.xlane.xlu0 %689
    %v691 = vsel %vm313, %v493, -inf
    %692 = vmax.xlane.f32.xlu0 %v691
    %v693 = vpop.xlane.xlu0 %692
    %v694 = vsel %vm313, %v539, -inf
    %695 = vmax.xlane.f32.xlu0 %v694
    %v696 = vpop.xlane.xlu0 %695
    %v697 = vsel %vm313, %v585, -inf
    %698 = vmax.xlane.f32.xlu0 %v697
    %v699 = vpop.xlane.xlu0 %698
    %v700 = vsel %vm313, %v631, -inf
    %701 = vmax.xlane.f32.xlu0 %v700
    %v702 = vpop.xlane.xlu0 %701
    %v703 = vsel %vm313, %v677, -inf
    %704 = vmax.xlane.f32.xlu0 %v703
    %v705 = vpop.xlane.xlu0 %704
    %v706 = vsub.f32 %v355, %v684
    %v707 = vsub.f32 %v401, %v687
    %v708 = vsub.f32 %v447, %v690
    %v709 = vsub.f32 %v493, %v693
    %v710 = vsub.f32 %v539, %v696
    %v711 = vsub.f32 %v585, %v699
    %v712 = vsub.f32 %v631, %v702
    %v713 = vsub.f32 %v677, %v705
    %v714 = vmul.f32 %v706, 1.442695
    %v715 = vpow.pop %v714
    %v716 = vmul.f32 %v707, 1.442695
    %v717 = vpow.pop %v716
    %v718 = vmul.f32 %v708, 1.442695
    %v719 = vpow.pop %v718
    %v720 = vmul.f32 %v709, 1.442695
    %v721 = vpow.pop %v720
    %v722 = vmul.f32 %v710, 1.442695
    %v723 = vpow.pop %v722
    %v724 = vmul.f32 %v711, 1.442695
    %v725 = vpow.pop %v724
    %v726 = vmul.f32 %v712, 1.442695
    %v727 = vpow.pop %v726
    %v728 = vmul.f32 %v713, 1.442695
    %v729 = vpow.pop %v728
    %v730 = vsel %vm313, %v715, 0.0
    %731 = vadd.xlane.f32.xlu0 %v730
    %v732 = vpop.xlane.xlu0 %731
    %v733 = vsel %vm313, %v717, 0.0
    %734 = vadd.xlane.f32.xlu0 %v733
    %v735 = vpop.xlane.xlu0 %734
    %v736 = vsel %vm313, %v719, 0.0
    %737 = vadd.xlane.f32.xlu0 %v736
    %v738 = vpop.xlane.xlu0 %737
    %v739 = vsel %vm313, %v721, 0.0
    %740 = vadd.xlane.f32.xlu0 %v739
    %v741 = vpop.xlane.xlu0 %740
    %v742 = vsel %vm313, %v723, 0.0
    %743 = vadd.xlane.f32.xlu0 %v742
    %v744 = vpop.xlane.xlu0 %743
    %v745 = vsel %vm313, %v725, 0.0
    %746 = vadd.xlane.f32.xlu0 %v745
    %v747 = vpop.xlane.xlu0 %746
    %v748 = vsel %vm313, %v727, 0.0
    %749 = vadd.xlane.f32.xlu0 %v748
    %v750 = vpop.xlane.xlu0 %749
    %v751 = vsel %vm313, %v729, 0.0
    %752 = vadd.xlane.f32.xlu0 %v751
    %v753 = vpop.xlane.xlu0 %752
    %v754 = vrcp.pop %v732
    %v755 = vrcp.pop %v735
    %v756 = vrcp.pop %v738
    %v757 = vrcp.pop %v741
    %v758 = vrcp.pop %v744
    %v759 = vrcp.pop %v747
    %v760 = vrcp.pop %v750
    %v761 = vrcp.pop %v753
    %v762 = vmul.f32 %v715, %v754
    %v763 = vmul.f32 %v717, %v755
    %v764 = vmul.f32 %v719, %v756
    %v765 = vmul.f32 %v721, %v757
    %v766 = vmul.f32 %v723, %v758
    %v767 = vmul.f32 %v725, %v759
    %v768 = vmul.f32 %v727, %v760
    %v769 = vmul.f32 %v729, %v761
    %v770 = vpack.c.bf16 %v762, %v762
    %v771 = vpack.c.bf16 %v763, %v763
    %v772 = vpack.c.bf16 %v764, %v764
    %v773 = vpack.c.bf16 %v765, %v765
    %v774 = vpack.c.bf16 %v766, %v766
    %v775 = vpack.c.bf16 %v767, %v767
    %v776 = vpack.c.bf16 %v768, %v768
    %v777 = vpack.c.bf16 %v769, %v769
    %v779 = vsel %vm313, %v770, 0
    %vm781 = vcmask 1043456
    %v783 = vsel %vm781, %v305, 0
    %785 = vmatprep.subr.bf16.mxu0 0
    %786 = vmatpush1.bf16.msra.mxu0 0
    %787 = vmatprep.subr.bf16.mxu0 0
    %788 = vmatpush1.bf16.msra.mxu0 0
    %789 = vmatprep.subr.bf16.mxu0 0
    %790 = vmatpush1.bf16.msra.mxu0 0
    %791 = vmatprep.subr.bf16.mxu0 0
    %792 = vmatpush1.bf16.msra.mxu0 0
    %793 = vmatprep.subr.bf16.mxu0 0
    %794 = vmatpush1.bf16.msra.mxu0 0
    %795 = vmatprep.subr.bf16.mxu0 0
    %796 = vmatpush1.bf16.msra.mxu0 0
    %797 = vmatprep.subr.bf16.mxu0 0
    %798 = vmatpush1.bf16.msra.mxu0 0
    %799 = vmatprep.subr.bf16.mxu0 0
    %800 = vmatpush1.bf16.msra.mxu0 %v783
    %801 = vmatprep.subr.bf16.mxu0 0
    %802 = vmatpush2.bf16.msra.mxu0 0
    %803 = vmatprep.subr.bf16.mxu0 0
    %804 = vmatpush2.bf16.msra.mxu0 0
    %805 = vmatprep.subr.bf16.mxu0 0
    %806 = vmatpush2.bf16.msra.mxu0 0
    %807 = vmatprep.subr.bf16.mxu0 0
    %808 = vmatpush2.bf16.msra.mxu0 0
    %809 = vmatprep.subr.bf16.mxu0 0
    %810 = vmatpush2.bf16.msra.mxu0 0
    %811 = vmatprep.subr.bf16.mxu0 0
    %812 = vmatpush2.bf16.msra.mxu0 0
    %813 = vmatprep.subr.bf16.mxu0 0
    %814 = vmatpush2.bf16.msra.mxu0 0
    %815 = vmatprep.subr.bf16.mxu0 0
    %816 = vmatpush2.bf16.msra.mxu0 0
    %817 = vmatprep.mubr.bf16.mxu0 0
    %818 = vmatmul.mubr.bf16.gmra.mxu0 %v779
    %v819 = vpop.f32.mrf.mxu0
    %v820 = vadd.f32 0.0, %v819
    %v821 = vpop.f32.mrf.mxu0
    %v822 = vpop.f32.mrf.mxu0
    %v823 = vpop.f32.mrf.mxu0
    %824 = vdwg.mxu0
    %v826 = vsel %vm313, %v771, 0
    %v829 = vsel %vm781, %v306, 0
    %831 = vmatprep.subr.bf16.mxu0 0
    %832 = vmatpush1.bf16.msra.mxu0 0
    %833 = vmatprep.subr.bf16.mxu0 0
    %834 = vmatpush1.bf16.msra.mxu0 0
    %835 = vmatprep.subr.bf16.mxu0 0
    %836 = vmatpush1.bf16.msra.mxu0 0
    %837 = vmatprep.subr.bf16.mxu0 0
    %838 = vmatpush1.bf16.msra.mxu0 0
    %839 = vmatprep.subr.bf16.mxu0 0
    %840 = vmatpush1.bf16.msra.mxu0 0
    %841 = vmatprep.subr.bf16.mxu0 0
    %842 = vmatpush1.bf16.msra.mxu0 0
    %843 = vmatprep.subr.bf16.mxu0 0
    %844 = vmatpush1.bf16.msra.mxu0 0
    %845 = vmatprep.subr.bf16.mxu0 0
    %846 = vmatpush1.bf16.msra.mxu0 %v829
    %847 = vmatprep.subr.bf16.mxu0 0
    %848 = vmatpush2.bf16.msra.mxu0 0
    %849 = vmatprep.subr.bf16.mxu0 0
    %850 = vmatpush2.bf16.msra.mxu0 0
    %851 = vmatprep.subr.bf16.mxu0 0
    %852 = vmatpush2.bf16.msra.mxu0 0
    %853 = vmatprep.subr.bf16.mxu0 0
    %854 = vmatpush2.bf16.msra.mxu0 0
    %855 = vmatprep.subr.bf16.mxu0 0
    %856 = vmatpush2.bf16.msra.mxu0 0
    %857 = vmatprep.subr.bf16.mxu0 0
    %858 = vmatpush2.bf16.msra.mxu0 0
    %859 = vmatprep.subr.bf16.mxu0 0
    %860 = vmatpush2.bf16.msra.mxu0 0
    %861 = vmatprep.subr.bf16.mxu0 0
    %862 = vmatpush2.bf16.msra.mxu0 0
    %863 = vmatprep.mubr.bf16.mxu0 0
    %864 = vmatmul.mubr.bf16.gmra.mxu0 %v826
    %v865 = vpop.f32.mrf.mxu0
    %v866 = vadd.f32 0.0, %v865
    %v867 = vpop.f32.mrf.mxu0
    %v868 = vpop.f32.mrf.mxu0
    %v869 = vpop.f32.mrf.mxu0
    %870 = vdwg.mxu0
    %v872 = vsel %vm313, %v772, 0
    %v875 = vsel %vm781, %v307, 0
    %877 = vmatprep.subr.bf16.mxu0 0
    %878 = vmatpush1.bf16.msra.mxu0 0
    %879 = vmatprep.subr.bf16.mxu0 0
    %880 = vmatpush1.bf16.msra.mxu0 0
    %881 = vmatprep.subr.bf16.mxu0 0
    %882 = vmatpush1.bf16.msra.mxu0 0
    %883 = vmatprep.subr.bf16.mxu0 0
    %884 = vmatpush1.bf16.msra.mxu0 0
    %885 = vmatprep.subr.bf16.mxu0 0
    %886 = vmatpush1.bf16.msra.mxu0 0
    %887 = vmatprep.subr.bf16.mxu0 0
    %888 = vmatpush1.bf16.msra.mxu0 0
    %889 = vmatprep.subr.bf16.mxu0 0
    %890 = vmatpush1.bf16.msra.mxu0 0
    %891 = vmatprep.subr.bf16.mxu0 0
    %892 = vmatpush1.bf16.msra.mxu0 %v875
    %893 = vmatprep.subr.bf16.mxu0 0
    %894 = vmatpush2.bf16.msra.mxu0 0
    %895 = vmatprep.subr.bf16.mxu0 0
    %896 = vmatpush2.bf16.msra.mxu0 0
    %897 = vmatprep.subr.bf16.mxu0 0
    %898 = vmatpush2.bf16.msra.mxu0 0
    %899 = vmatprep.subr.bf16.mxu0 0
    %900 = vmatpush2.bf16.msra.mxu0 0
    %901 = vmatprep.subr.bf16.mxu0 0
    %902 = vmatpush2.bf16.msra.mxu0 0
    %903 = vmatprep.subr.bf16.mxu0 0
    %904 = vmatpush2.bf16.msra.mxu0 0
    %905 = vmatprep.subr.bf16.mxu0 0
    %906 = vmatpush2.bf16.msra.mxu0 0
    %907 = vmatprep.subr.bf16.mxu0 0
    %908 = vmatpush2.bf16.msra.mxu0 0
    %909 = vmatprep.mubr.bf16.mxu0 0
    %910 = vmatmul.mubr.bf16.gmra.mxu0 %v872
    %v911 = vpop.f32.mrf.mxu0
    %v912 = vadd.f32 0.0, %v911
    %v913 = vpop.f32.mrf.mxu0
    %v914 = vpop.f32.mrf.mxu0
    %v915 = vpop.f32.mrf.mxu0
    %916 = vdwg.mxu0
    %v918 = vsel %vm313, %v773, 0
    %v921 = vsel %vm781, %v308, 0
    %923 = vmatprep.subr.bf16.mxu0 0
    %924 = vmatpush1.bf16.msra.mxu0 0
    %925 = vmatprep.subr.bf16.mxu0 0
    %926 = vmatpush1.bf16.msra.mxu0 0
    %927 = vmatprep.subr.bf16.mxu0 0
    %928 = vmatpush1.bf16.msra.mxu0 0
    %929 = vmatprep.subr.bf16.mxu0 0
    %930 = vmatpush1.bf16.msra.mxu0 0
    %931 = vmatprep.subr.bf16.mxu0 0
    %932 = vmatpush1.bf16.msra.mxu0 0
    %933 = vmatprep.subr.bf16.mxu0 0
    %934 = vmatpush1.bf16.msra.mxu0 0
    %935 = vmatprep.subr.bf16.mxu0 0
    %936 = vmatpush1.bf16.msra.mxu0 0
    %937 = vmatprep.subr.bf16.mxu0 0
    %938 = vmatpush1.bf16.msra.mxu0 %v921
    %939 = vmatprep.subr.bf16.mxu0 0
    %940 = vmatpush2.bf16.msra.mxu0 0
    %941 = vmatprep.subr.bf16.mxu0 0
    %942 = vmatpush2.bf16.msra.mxu0 0
    %943 = vmatprep.subr.bf16.mxu0 0
    %944 = vmatpush2.bf16.msra.mxu0 0
    %945 = vmatprep.subr.bf16.mxu0 0
    %946 = vmatpush2.bf16.msra.mxu0 0
    %947 = vmatprep.subr.bf16.mxu0 0
    %948 = vmatpush2.bf16.msra.mxu0 0
    %949 = vmatprep.subr.bf16.mxu0 0
    %950 = vmatpush2.bf16.msra.mxu0 0
    %951 = vmatprep.subr.bf16.mxu0 0
    %952 = vmatpush2.bf16.msra.mxu0 0
    %953 = vmatprep.subr.bf16.mxu0 0
    %954 = vmatpush2.bf16.msra.mxu0 0
    %955 = vmatprep.mubr.bf16.mxu0 0
    %956 = vmatmul.mubr.bf16.gmra.mxu0 %v918
    %v957 = vpop.f32.mrf.mxu0
    %v958 = vadd.f32 0.0, %v957
    %v959 = vpop.f32.mrf.mxu0
    %v960 = vpop.f32.mrf.mxu0
    %v961 = vpop.f32.mrf.mxu0
    %962 = vdwg.mxu0
    %v964 = vsel %vm313, %v774, 0
    %v967 = vsel %vm781, %v309, 0
    %969 = vmatprep.subr.bf16.mxu0 0
    %970 = vmatpush1.bf16.msra.mxu0 0
    %971 = vmatprep.subr.bf16.mxu0 0
    %972 = vmatpush1.bf16.msra.mxu0 0
    %973 = vmatprep.subr.bf16.mxu0 0
    %974 = vmatpush1.bf16.msra.mxu0 0
    %975 = vmatprep.subr.bf16.mxu0 0
    %976 = vmatpush1.bf16.msra.mxu0 0
    %977 = vmatprep.subr.bf16.mxu0 0
    %978 = vmatpush1.bf16.msra.mxu0 0
    %979 = vmatprep.subr.bf16.mxu0 0
    %980 = vmatpush1.bf16.msra.mxu0 0
    %981 = vmatprep.subr.bf16.mxu0 0
    %982 = vmatpush1.bf16.msra.mxu0 0
    %983 = vmatprep.subr.bf16.mxu0 0
    %984 = vmatpush1.bf16.msra.mxu0 %v967
    %985 = vmatprep.subr.bf16.mxu0 0
    %986 = vmatpush2.bf16.msra.mxu0 0
    %987 = vmatprep.subr.bf16.mxu0 0
    %988 = vmatpush2.bf16.msra.mxu0 0
    %989 = vmatprep.subr.bf16.mxu0 0
    %990 = vmatpush2.bf16.msra.mxu0 0
    %991 = vmatprep.subr.bf16.mxu0 0
    %992 = vmatpush2.bf16.msra.mxu0 0
    %993 = vmatprep.subr.bf16.mxu0 0
    %994 = vmatpush2.bf16.msra.mxu0 0
    %995 = vmatprep.subr.bf16.mxu0 0
    %996 = vmatpush2.bf16.msra.mxu0 0
    %997 = vmatprep.subr.bf16.mxu0 0
    %998 = vmatpush2.bf16.msra.mxu0 0
    %999 = vmatprep.subr.bf16.mxu0 0
    %1000 = vmatpush2.bf16.msra.mxu0 0
    %1001 = vmatprep.mubr.bf16.mxu0 0
    %1002 = vmatmul.mubr.bf16.gmra.mxu0 %v964
    %v1003 = vpop.f32.mrf.mxu0
    %v1004 = vadd.f32 0.0, %v1003
    %v1005 = vpop.f32.mrf.mxu0
    %v1006 = vpop.f32.mrf.mxu0
    %v1007 = vpop.f32.mrf.mxu0
    %1008 = vdwg.mxu0
    %v1010 = vsel %vm313, %v775, 0
    %v1013 = vsel %vm781, %v310, 0
    %1015 = vmatprep.subr.bf16.mxu0 0
    %1016 = vmatpush1.bf16.msra.mxu0 0
    %1017 = vmatprep.subr.bf16.mxu0 0
    %1018 = vmatpush1.bf16.msra.mxu0 0
    %1019 = vmatprep.subr.bf16.mxu0 0
    %1020 = vmatpush1.bf16.msra.mxu0 0
    %1021 = vmatprep.subr.bf16.mxu0 0
    %1022 = vmatpush1.bf16.msra.mxu0 0
    %1023 = vmatprep.subr.bf16.mxu0 0
    %1024 = vmatpush1.bf16.msra.mxu0 0
    %1025 = vmatprep.subr.bf16.mxu0 0
    %1026 = vmatpush1.bf16.msra.mxu0 0
    %1027 = vmatprep.subr.bf16.mxu0 0
    %1028 = vmatpush1.bf16.msra.mxu0 0
    %1029 = vmatprep.subr.bf16.mxu0 0
    %1030 = vmatpush1.bf16.msra.mxu0 %v1013
    %1031 = vmatprep.subr.bf16.mxu0 0
    %1032 = vmatpush2.bf16.msra.mxu0 0
    %1033 = vmatprep.subr.bf16.mxu0 0
    %1034 = vmatpush2.bf16.msra.mxu0 0
    %1035 = vmatprep.subr.bf16.mxu0 0
    %1036 = vmatpush2.bf16.msra.mxu0 0
    %1037 = vmatprep.subr.bf16.mxu0 0
    %1038 = vmatpush2.bf16.msra.mxu0 0
    %1039 = vmatprep.subr.bf16.mxu0 0
    %1040 = vmatpush2.bf16.msra.mxu0 0
    %1041 = vmatprep.subr.bf16.mxu0 0
    %1042 = vmatpush2.bf16.msra.mxu0 0
    %1043 = vmatprep.subr.bf16.mxu0 0
    %1044 = vmatpush2.bf16.msra.mxu0 0
    %1045 = vmatprep.subr.bf16.mxu0 0
    %1046 = vmatpush2.bf16.msra.mxu0 0
    %1047 = vmatprep.mubr.bf16.mxu0 0
    %1048 = vmatmul.mubr.bf16.gmra.mxu0 %v1010
    %v1049 = vpop.f32.mrf.mxu0
    %v1050 = vadd.f32 0.0, %v1049
    %v1051 = vpop.f32.mrf.mxu0
    %v1052 = vpop.f32.mrf.mxu0
    %v1053 = vpop.f32.mrf.mxu0
    %1054 = vdwg.mxu0
    %v1056 = vsel %vm313, %v776, 0
    %v1059 = vsel %vm781, %v311, 0
    %1061 = vmatprep.subr.bf16.mxu0 0
    %1062 = vmatpush1.bf16.msra.mxu0 0
    %1063 = vmatprep.subr.bf16.mxu0 0
    %1064 = vmatpush1.bf16.msra.mxu0 0
    %1065 = vmatprep.subr.bf16.mxu0 0
    %1066 = vmatpush1.bf16.msra.mxu0 0
    %1067 = vmatprep.subr.bf16.mxu0 0
    %1068 = vmatpush1.bf16.msra.mxu0 0
    %1069 = vmatprep.subr.bf16.mxu0 0
    %1070 = vmatpush1.bf16.msra.mxu0 0
    %1071 = vmatprep.subr.bf16.mxu0 0
    %1072 = vmatpush1.bf16.msra.mxu0 0
    %1073 = vmatprep.subr.bf16.mxu0 0
    %1074 = vmatpush1.bf16.msra.mxu0 0
    %1075 = vmatprep.subr.bf16.mxu0 0
    %1076 = vmatpush1.bf16.msra.mxu0 %v1059
    %1077 = vmatprep.subr.bf16.mxu0 0
    %1078 = vmatpush2.bf16.msra.mxu0 0
    %1079 = vmatprep.subr.bf16.mxu0 0
    %1080 = vmatpush2.bf16.msra.mxu0 0
    %1081 = vmatprep.subr.bf16.mxu0 0
    %1082 = vmatpush2.bf16.msra.mxu0 0
    %1083 = vmatprep.subr.bf16.mxu0 0
    %1084 = vmatpush2.bf16.msra.mxu0 0
    %1085 = vmatprep.subr.bf16.mxu0 0
    %1086 = vmatpush2.bf16.msra.mxu0 0
    %1087 = vmatprep.subr.bf16.mxu0 0
    %1088 = vmatpush2.bf16.msra.mxu0 0
    %1089 = vmatprep.subr.bf16.mxu0 0
    %1090 = vmatpush2.bf16.msra.mxu0 0
    %1091 = vmatprep.subr.bf16.mxu0 0
    %1092 = vmatpush2.bf16.msra.mxu0 0
    %1093 = vmatprep.mubr.bf16.mxu0 0
    %1094 = vmatmul.mubr.bf16.gmra.mxu0 %v1056
    %v1095 = vpop.f32.mrf.mxu0
    %v1096 = vadd.f32 0.0, %v1095
    %v1097 = vpop.f32.mrf.mxu0
    %v1098 = vpop.f32.mrf.mxu0
    %v1099 = vpop.f32.mrf.mxu0
    %1100 = vdwg.mxu0
    %v1102 = vsel %vm313, %v777, 0
    %v1105 = vsel %vm781, %v312, 0
    %1107 = vmatprep.subr.bf16.mxu0 0
    %1108 = vmatpush1.bf16.msra.mxu0 0
    %1109 = vmatprep.subr.bf16.mxu0 0
    %1110 = vmatpush1.bf16.msra.mxu0 0
    %1111 = vmatprep.subr.bf16.mxu0 0
    %1112 = vmatpush1.bf16.msra.mxu0 0
    %1113 = vmatprep.subr.bf16.mxu0 0
    %1114 = vmatpush1.bf16.msra.mxu0 0
    %1115 = vmatprep.subr.bf16.mxu0 0
    %1116 = vmatpush1.bf16.msra.mxu0 0
    %1117 = vmatprep.subr.bf16.mxu0 0
    %1118 = vmatpush1.bf16.msra.mxu0 0
    %1119 = vmatprep.subr.bf16.mxu0 0
    %1120 = vmatpush1.bf16.msra.mxu0 0
    %1121 = vmatprep.subr.bf16.mxu0 0
    %1122 = vmatpush1.bf16.msra.mxu0 %v1105
    %1123 = vmatprep.subr.bf16.mxu0 0
    %1124 = vmatpush2.bf16.msra.mxu0 0
    %1125 = vmatprep.subr.bf16.mxu0 0
    %1126 = vmatpush2.bf16.msra.mxu0 0
    %1127 = vmatprep.subr.bf16.mxu0 0
    %1128 = vmatpush2.bf16.msra.mxu0 0
    %1129 = vmatprep.subr.bf16.mxu0 0
    %1130 = vmatpush2.bf16.msra.mxu0 0
    %1131 = vmatprep.subr.bf16.mxu0 0
    %1132 = vmatpush2.bf16.msra.mxu0 0
    %1133 = vmatprep.subr.bf16.mxu0 0
    %1134 = vmatpush2.bf16.msra.mxu0 0
    %1135 = vmatprep.subr.bf16.mxu0 0
    %1136 = vmatpush2.bf16.msra.mxu0 0
    %1137 = vmatprep.subr.bf16.mxu0 0
    %1138 = vmatpush2.bf16.msra.mxu0 0
    %1139 = vmatprep.mubr.bf16.mxu0 0
    %1140 = vmatmul.mubr.bf16.gmra.mxu0 %v1102
    %v1141 = vpop.f32.mrf.mxu0
    %v1142 = vadd.f32 0.0, %v1141
    %v1143 = vpop.f32.mrf.mxu0
    %v1144 = vpop.f32.mrf.mxu0
    %v1145 = vpop.f32.mrf.mxu0
    %1146 = vdwg.mxu0
    %1149 = vrot.lane.b32.xlu0 %v912, 8
    %v1150 = vpop.permute.xlu0 %1149
    %1151 = vrot.lane.b32.xlu0 %v958, 8
    %v1152 = vpop.permute.xlu0 %1151
    %1157 = vrot.lane.b32.xlu0 %v1004, 16
    %v1158 = vpop.permute.xlu0 %1157
    %1159 = vrot.lane.b32.xlu0 %v1050, 16
    %v1160 = vpop.permute.xlu0 %1159
    %1165 = vrot.lane.b32.xlu0 %v1096, 24
    %v1166 = vpop.permute.xlu0 %1165
    %1167 = vrot.lane.b32.xlu0 %v1142, 24
    %v1168 = vpop.permute.xlu0 %1167
    %v1171 = vsel %vm313, %v820, %v1150
    %v1172 = vsel %vm313, %v866, %v1152
    %vm1173 = vcmask 130048
    %v1174 = vsel %vm1173, %v1171, %v1158
    %v1175 = vsel %vm1173, %v1172, %v1160
    %vm1176 = vcmask 195584
    %v1177 = vsel %vm1176, %v1174, %v1166
    %v1178 = vsel %vm1176, %v1175, %v1168
    %v1179 = vpack.c.bf16 %v1178, %v1177
    %v1180 = vld [vmem:[%s2] sm:$0xf]
    %v1181 = vld [vmem:[%s2 + $0x4] sm:$0xf]
    %v1182 = vld [vmem:[%s2 + $0x8] sm:$0xf]
    %v1183 = vld [vmem:[%s2 + $0xc] sm:$0xf]
    %v1184 = vlaneseq
    %v1185 = vshrl.u32 %v1184, 7
    %v1186 = vsub.s32 3, %v1185
    %v1187 = vrot.slane %v30, %v1186
    %v1192 = vunpack.c.l.b16 %v1180
    %v1193 = vunpack.c.l.b16 %v1181
    %v1194 = vunpack.c.l.b16 %v1182
    %v1195 = vunpack.c.l.b16 %v1183
    %v1196 = vpack.c.b16 %v1193, %v1192
    %v1197 = vpack.c.b16 %v1195, %v1194
    %v1201 = vsel %vm58, %v1179, 0
    %1203 = vmatprep.subr.bf16.mxu0 0
    %1204 = vmatpush1.bf16.msra.mxu0 0
    %1205 = vmatprep.subr.bf16.mxu0 0
    %1206 = vmatpush1.bf16.msra.mxu0 0
    %1207 = vmatprep.subr.bf16.mxu0 0
    %1208 = vmatpush1.bf16.msra.mxu0 0
    %1209 = vmatprep.subr.bf16.mxu0 0
    %1210 = vmatpush1.bf16.msra.mxu0 0
    %1211 = vmatprep.subr.bf16.mxu0 0
    %1212 = vmatpush1.bf16.msra.mxu0 0
    %1213 = vmatprep.subr.bf16.mxu0 0
    %1214 = vmatpush1.bf16.msra.mxu0 0
    %1215 = vmatprep.subr.bf16.mxu0 0
    %1216 = vmatpush1.bf16.msra.mxu0 %v1197
    %1217 = vmatprep.subr.bf16.mxu0 0
    %1218 = vmatpush1.bf16.msra.mxu0 %v1196
    %1219 = vmatprep.subr.bf16.mxu0 0
    %1220 = vmatpush2.bf16.msra.mxu0 0
    %1221 = vmatprep.subr.bf16.mxu0 0
    %1222 = vmatpush2.bf16.msra.mxu0 0
    %1223 = vmatprep.subr.bf16.mxu0 0
    %1224 = vmatpush2.bf16.msra.mxu0 0
    %1225 = vmatprep.subr.bf16.mxu0 0
    %1226 = vmatpush2.bf16.msra.mxu0 0
    %1227 = vmatprep.subr.bf16.mxu0 0
    %1228 = vmatpush2.bf16.msra.mxu0 0
    %1229 = vmatprep.subr.bf16.mxu0 0
    %1230 = vmatpush2.bf16.msra.mxu0 0
    %1231 = vmatprep.subr.bf16.mxu0 0
    %1232 = vmatpush2.bf16.msra.mxu0 0
    %1233 = vmatprep.subr.bf16.mxu0 0
    %1234 = vmatpush2.bf16.msra.mxu0 0
    %1235 = vmatprep.mubr.bf16.mxu0 0
    %1236 = vmatmul.mubr.bf16.gmra.mxu0 %v1201
    %v1237 = vpop.f32.mrf.mxu0
    %v1238 = vadd.f32 %v1187, %v1237
    %v1239 = vpop.f32.mrf.mxu0
    %v1240 = vpop.f32.mrf.mxu0
    %v1241 = vadd.f32 %v1187, %v1240
    %v1242 = vpop.f32.mrf.mxu0
    %1243 = vdwg.mxu0
    %v1244 = vadd.f32 %v28, %v1238
    %v1245 = vadd.f32 %v29, %v1241
    %v1246 = vsel %vm58, %v1244, 0.0
    %1247 = vadd.xlane.f32.xlu0 %v1246
    %v1248 = vpop.xlane.xlu0 %1247
    %v1249 = vsel %vm58, %v1245, 0.0
    %1250 = vadd.xlane.f32.xlu0 %v1249
    %v1251 = vpop.xlane.xlu0 %1250
    %v1252 = vrcp.pop 32.0
    %v1253 = vmul.f32 %v1248, %v1252
    %v1254 = vmul.f32 %v1251, %v1252
    %v1255 = vsub.f32 %v1244, %v1253
    %v1256 = vsub.f32 %v1245, %v1254
    %v1257 = vmul.f32 %v1255, %v1255
    %v1258 = vmul.f32 %v1256, %v1256
    %v1259 = vsel %vm58, %v1257, 0.0
    %1260 = vadd.xlane.f32.xlu0 %v1259
    %v1261 = vpop.xlane.xlu0 %1260
    %v1262 = vsel %vm58, %v1258, 0.0
    %1263 = vadd.xlane.f32.xlu0 %v1262
    %v1264 = vpop.xlane.xlu0 %1263
    %v1265 = vmul.f32 %v1261, %v1252
    %v1266 = vmul.f32 %v1264, %v1252
    %v1267 = vadd.f32 %v1265, 1e-05
    %v1268 = vadd.f32 %v1266, 1e-05
    %v1269 = vrsqrt.pop %v1267
    %v1270 = vrsqrt.pop %v1268
    %v1271 = vmul.f32 %v1255, %v1269
    %v1272 = vmul.f32 %v1256, %v1270
    %v1273 = vlaneseq
    %v1274 = vshrl.u32 %v1273, 7
    %v1275 = vsub.s32 4, %v1274
    %v1276 = vrot.slane %v30, %v1275
    %v1277 = vmul.f32 %v1271, %v1276
    %v1278 = vmul.f32 %v1272, %v1276
    %v1279 = vlaneseq
    %v1280 = vshrl.u32 %v1279, 7
    %v1281 = vsub.s32 5, %v1280
    %v1282 = vrot.slane %v30, %v1281
    %v1283 = vadd.f32 %v1277, %v1282
    %v1284 = vadd.f32 %v1278, %v1282
    %v1285 = vpack.c.bf16 %v1284, %v1283
    %v1286 = vld [vmem:[%s3] sm:$0xff]
    %v1287 = vld [vmem:[%s3 + $0x8] sm:$0xff]
    %v1288 = vld [vmem:[%s3 + $0x10] sm:$0xff]
    %v1289 = vld [vmem:[%s3 + $0x18] sm:$0xff]
    %v1290 = vld [vmem:[%s3 + $0x20] sm:$0xff]
    %v1291 = vld [vmem:[%s3 + $0x28] sm:$0xff]
    %v1292 = vld [vmem:[%s3 + $0x30] sm:$0xff]
    %v1293 = vld [vmem:[%s3 + $0x38] sm:$0xff]
    %v1294 = vld [vmem:[%s3 + $0x40] sm:$0xff]
    %v1295 = vld [vmem:[%s3 + $0x48] sm:$0xff]
    %v1296 = vld [vmem:[%s3 + $0x50] sm:$0xff]
    %v1297 = vld [vmem:[%s3 + $0x58] sm:$0xff]
    %v1298 = vld [vmem:[%s3 + $0x60] sm:$0xff]
    %v1299 = vld [vmem:[%s3 + $0x68] sm:$0xff]
    %v1300 = vld [vmem:[%s3 + $0x70] sm:$0xff]
    %v1301 = vld [vmem:[%s3 + $0x78] sm:$0xff]
    %v1302 = vld [vmem:[%s3 + $0x80] sm:$0xff]
    %v1303 = vld [vmem:[%s3 + $0x88] sm:$0xff]
    %v1304 = vld [vmem:[%s3 + $0x90] sm:$0xff]
    %v1305 = vld [vmem:[%s3 + $0x98] sm:$0xff]
    %v1306 = vld [vmem:[%s3 + $0xa0] sm:$0xff]
    %v1307 = vld [vmem:[%s3 + $0xa8] sm:$0xff]
    %v1308 = vld [vmem:[%s3 + $0xb0] sm:$0xff]
    %v1309 = vld [vmem:[%s3 + $0xb8] sm:$0xff]
    %v1310 = vld [vmem:[%s3 + $0xc0] sm:$0xff]
    %v1311 = vld [vmem:[%s3 + $0xc8] sm:$0xff]
    %v1312 = vld [vmem:[%s3 + $0xd0] sm:$0xff]
    %v1313 = vld [vmem:[%s3 + $0xd8] sm:$0xff]
    %v1314 = vld [vmem:[%s3 + $0xe0] sm:$0xff]
    %v1315 = vld [vmem:[%s3 + $0xe8] sm:$0xff]
    %v1316 = vld [vmem:[%s3 + $0xf0] sm:$0xff]
    %v1317 = vld [vmem:[%s3 + $0xf8] sm:$0xff]
    %v1322 = vlaneseq
    %v1323 = vshrl.u32 %v1322, 7
    %v1324 = vsub.s32 0, %v1323
    %v1325 = vrot.slane %v33, %v1324
    %v1326 = vlaneseq
    %v1327 = vshrl.u32 %v1326, 7
    %v1328 = vsub.s32 2, %v1327
    %v1329 = vrot.slane %v33, %v1328
    %v1330 = vlaneseq
    %v1331 = vshrl.u32 %v1330, 7
    %v1332 = vsub.s32 4, %v1331
    %v1333 = vrot.slane %v33, %v1332
    %v1334 = vlaneseq
    %v1335 = vshrl.u32 %v1334, 7
    %v1336 = vsub.s32 6, %v1335
    %v1337 = vrot.slane %v33, %v1336
    %v1338 = vlaneseq
    %v1339 = vshrl.u32 %v1338, 7
    %v1340 = vsub.s32 0, %v1339
    %v1341 = vrot.slane %v34, %v1340
    %v1342 = vlaneseq
    %v1343 = vshrl.u32 %v1342, 7
    %v1344 = vsub.s32 2, %v1343
    %v1345 = vrot.slane %v34, %v1344
    %v1346 = vlaneseq
    %v1347 = vshrl.u32 %v1346, 7
    %v1348 = vsub.s32 4, %v1347
    %v1349 = vrot.slane %v34, %v1348
    %v1350 = vlaneseq
    %v1351 = vshrl.u32 %v1350, 7
    %v1352 = vsub.s32 6, %v1351
    %v1353 = vrot.slane %v34, %v1352
    %v1354 = vlaneseq
    %v1355 = vshrl.u32 %v1354, 7
    %v1356 = vsub.s32 0, %v1355
    %v1357 = vrot.slane %v35, %v1356
    %v1358 = vlaneseq
    %v1359 = vshrl.u32 %v1358, 7
    %v1360 = vsub.s32 2, %v1359
    %v1361 = vrot.slane %v35, %v1360
    %v1362 = vlaneseq
    %v1363 = vshrl.u32 %v1362, 7
    %v1364 = vsub.s32 4, %v1363
    %v1365 = vrot.slane %v35, %v1364
    %v1366 = vlaneseq
    %v1367 = vshrl.u32 %v1366, 7
    %v1368 = vsub.s32 6, %v1367
    %v1369 = vrot.slane %v35, %v1368
    %v1370 = vlaneseq
    %v1371 = vshrl.u32 %v1370, 7
    %v1372 = vsub.s32 0, %v1371
    %v1373 = vrot.slane %v36, %v1372
    %v1374 = vlaneseq
    %v1375 = vshrl.u32 %v1374, 7
    %v1376 = vsub.s32 2, %v1375
    %v1377 = vrot.slane %v36, %v1376
    %v1378 = vlaneseq
    %v1379 = vshrl.u32 %v1378, 7
    %v1380 = vsub.s32 4, %v1379
    %v1381 = vrot.slane %v36, %v1380
    %v1382 = vlaneseq
    %v1383 = vshrl.u32 %v1382, 7
    %v1384 = vsub.s32 6, %v1383
    %v1385 = vrot.slane %v36, %v1384
    %v1402 = vlaneseq
    %v1403 = vshrl.u32 %v1402, 7
    %v1404 = vsub.s32 0, %v1403
    %v1405 = vrot.slane %v1325, %v1404
    %v1406 = vlaneseq
    %v1407 = vshrl.u32 %v1406, 7
    %v1408 = vsub.s32 0, %v1407
    %v1409 = vrot.slane %v1329, %v1408
    %v1410 = vlaneseq
    %v1411 = vshrl.u32 %v1410, 7
    %v1412 = vsub.s32 0, %v1411
    %v1413 = vrot.slane %v1333, %v1412
    %v1414 = vlaneseq
    %v1415 = vshrl.u32 %v1414, 7
    %v1416 = vsub.s32 0, %v1415
    %v1417 = vrot.slane %v1337, %v1416
    %v1418 = vlaneseq
    %v1419 = vshrl.u32 %v1418, 7
    %v1420 = vsub.s32 0, %v1419
    %v1421 = vrot.slane %v1341, %v1420
    %v1422 = vlaneseq
    %v1423 = vshrl.u32 %v1422, 7
    %v1424 = vsub.s32 0, %v1423
    %v1425 = vrot.slane %v1345, %v1424
    %v1426 = vlaneseq
    %v1427 = vshrl.u32 %v1426, 7
    %v1428 = vsub.s32 0, %v1427
    %v1429 = vrot.slane %v1349, %v1428
    %v1430 = vlaneseq
    %v1431 = vshrl.u32 %v1430, 7
    %v1432 = vsub.s32 0, %v1431
    %v1433 = vrot.slane %v1353, %v1432
    %v1434 = vlaneseq
    %v1435 = vshrl.u32 %v1434, 7
    %v1436 = vsub.s32 0, %v1435
    %v1437 = vrot.slane %v1357, %v1436
    %v1438 = vlaneseq
    %v1439 = vshrl.u32 %v1438, 7
    %v1440 = vsub.s32 0, %v1439
    %v1441 = vrot.slane %v1361, %v1440
    %v1442 = vlaneseq
    %v1443 = vshrl.u32 %v1442, 7
    %v1444 = vsub.s32 0, %v1443
    %v1445 = vrot.slane %v1365, %v1444
    %v1446 = vlaneseq
    %v1447 = vshrl.u32 %v1446, 7
    %v1448 = vsub.s32 0, %v1447
    %v1449 = vrot.slane %v1369, %v1448
    %v1450 = vlaneseq
    %v1451 = vshrl.u32 %v1450, 7
    %v1452 = vsub.s32 0, %v1451
    %v1453 = vrot.slane %v1373, %v1452
    %v1454 = vlaneseq
    %v1455 = vshrl.u32 %v1454, 7
    %v1456 = vsub.s32 0, %v1455
    %v1457 = vrot.slane %v1377, %v1456
    %v1458 = vlaneseq
    %v1459 = vshrl.u32 %v1458, 7
    %v1460 = vsub.s32 0, %v1459
    %v1461 = vrot.slane %v1381, %v1460
    %v1462 = vlaneseq
    %v1463 = vshrl.u32 %v1462, 7
    %v1464 = vsub.s32 0, %v1463
    %v1465 = vrot.slane %v1385, %v1464
    %v1498 = vunpack.c.l.b16 %v1286
    %v1499 = vunpack.c.h.b16 %v1286
    %v1500 = vunpack.c.l.b16 %v1287
    %v1501 = vunpack.c.h.b16 %v1287
    %v1502 = vunpack.c.l.b16 %v1288
    %v1503 = vunpack.c.h.b16 %v1288
    %v1504 = vunpack.c.l.b16 %v1289
    %v1505 = vunpack.c.h.b16 %v1289
    %v1506 = vunpack.c.l.b16 %v1290
    %v1507 = vunpack.c.h.b16 %v1290
    %v1508 = vunpack.c.l.b16 %v1291
    %v1509 = vunpack.c.h.b16 %v1291
    %v1510 = vunpack.c.l.b16 %v1292
    %v1511 = vunpack.c.h.b16 %v1292
    %v1512 = vunpack.c.l.b16 %v1293
    %v1513 = vunpack.c.h.b16 %v1293
    %v1514 = vunpack.c.l.b16 %v1294
    %v1515 = vunpack.c.h.b16 %v1294
    %v1516 = vunpack.c.l.b16 %v1295
    %v1517 = vunpack.c.h.b16 %v1295
    %v1518 = vunpack.c.l.b16 %v1296
    %v1519 = vunpack.c.h.b16 %v1296
    %v1520 = vunpack.c.l.b16 %v1297
    %v1521 = vunpack.c.h.b16 %v1297
    %v1522 = vunpack.c.l.b16 %v1298
    %v1523 = vunpack.c.h.b16 %v1298
    %v1524 = vunpack.c.l.b16 %v1299
    %v1525 = vunpack.c.h.b16 %v1299
    %v1526 = vunpack.c.l.b16 %v1300
    %v1527 = vunpack.c.h.b16 %v1300
    %v1528 = vunpack.c.l.b16 %v1301
    %v1529 = vunpack.c.h.b16 %v1301
    %v1530 = vunpack.c.l.b16 %v1302
    %v1531 = vunpack.c.h.b16 %v1302
    %v1532 = vunpack.c.l.b16 %v1303
    %v1533 = vunpack.c.h.b16 %v1303
    %v1534 = vunpack.c.l.b16 %v1304
    %v1535 = vunpack.c.h.b16 %v1304
    %v1536 = vunpack.c.l.b16 %v1305
    %v1537 = vunpack.c.h.b16 %v1305
    %v1538 = vunpack.c.l.b16 %v1306
    %v1539 = vunpack.c.h.b16 %v1306
    %v1540 = vunpack.c.l.b16 %v1307
    %v1541 = vunpack.c.h.b16 %v1307
    %v1542 = vunpack.c.l.b16 %v1308
    %v1543 = vunpack.c.h.b16 %v1308
    %v1544 = vunpack.c.l.b16 %v1309
    %v1545 = vunpack.c.h.b16 %v1309
    %v1546 = vunpack.c.l.b16 %v1310
    %v1547 = vunpack.c.h.b16 %v1310
    %v1548 = vunpack.c.l.b16 %v1311
    %v1549 = vunpack.c.h.b16 %v1311
    %v1550 = vunpack.c.l.b16 %v1312
    %v1551 = vunpack.c.h.b16 %v1312
    %v1552 = vunpack.c.l.b16 %v1313
    %v1553 = vunpack.c.h.b16 %v1313
    %v1554 = vunpack.c.l.b16 %v1314
    %v1555 = vunpack.c.h.b16 %v1314
    %v1556 = vunpack.c.l.b16 %v1315
    %v1557 = vunpack.c.h.b16 %v1315
    %v1558 = vunpack.c.l.b16 %v1316
    %v1559 = vunpack.c.h.b16 %v1316
    %v1560 = vunpack.c.l.b16 %v1317
    %v1561 = vunpack.c.h.b16 %v1317
    %v1562 = vpack.c.b16 %v1514, %v1498
    %v1563 = vpack.c.b16 %v1515, %v1499
    %v1564 = vpack.c.b16 %v1516, %v1500
    %v1565 = vpack.c.b16 %v1517, %v1501
    %v1566 = vpack.c.b16 %v1518, %v1502
    %v1567 = vpack.c.b16 %v1519, %v1503
    %v1568 = vpack.c.b16 %v1520, %v1504
    %v1569 = vpack.c.b16 %v1521, %v1505
    %v1570 = vpack.c.b16 %v1522, %v1506
    %v1571 = vpack.c.b16 %v1523, %v1507
    %v1572 = vpack.c.b16 %v1524, %v1508
    %v1573 = vpack.c.b16 %v1525, %v1509
    %v1574 = vpack.c.b16 %v1526, %v1510
    %v1575 = vpack.c.b16 %v1527, %v1511
    %v1576 = vpack.c.b16 %v1528, %v1512
    %v1577 = vpack.c.b16 %v1529, %v1513
    %v1578 = vpack.c.b16 %v1546, %v1530
    %v1579 = vpack.c.b16 %v1547, %v1531
    %v1580 = vpack.c.b16 %v1548, %v1532
    %v1581 = vpack.c.b16 %v1549, %v1533
    %v1582 = vpack.c.b16 %v1550, %v1534
    %v1583 = vpack.c.b16 %v1551, %v1535
    %v1584 = vpack.c.b16 %v1552, %v1536
    %v1585 = vpack.c.b16 %v1553, %v1537
    %v1586 = vpack.c.b16 %v1554, %v1538
    %v1587 = vpack.c.b16 %v1555, %v1539
    %v1588 = vpack.c.b16 %v1556, %v1540
    %v1589 = vpack.c.b16 %v1557, %v1541
    %v1590 = vpack.c.b16 %v1558, %v1542
    %v1591 = vpack.c.b16 %v1559, %v1543
    %v1592 = vpack.c.b16 %v1560, %v1544
    %v1593 = vpack.c.b16 %v1561, %v1545
    %v1627 = vsel %vm58, %v1285, 0
    %1629 = vmatprep.subr.bf16.mxu0 0
    %1630 = vmatpush1.bf16.msra.mxu0 0
    %1631 = vmatprep.subr.bf16.mxu0 0
    %1632 = vmatpush1.bf16.msra.mxu0 0
    %1633 = vmatprep.subr.bf16.mxu0 0
    %1634 = vmatpush1.bf16.msra.mxu0 0
    %1635 = vmatprep.subr.bf16.mxu0 0
    %1636 = vmatpush1.bf16.msra.mxu0 0
    %1637 = vmatprep.subr.bf16.mxu0 0
    %1638 = vmatpush1.bf16.msra.mxu0 0
    %1639 = vmatprep.subr.bf16.mxu0 0
    %1640 = vmatpush1.bf16.msra.mxu0 0
    %1641 = vmatprep.subr.bf16.mxu0 %v1579
    %1642 = vmatpush1.bf16.msra.mxu0 %v1578
    %1643 = vmatprep.subr.bf16.mxu0 %v1563
    %1644 = vmatpush1.bf16.msra.mxu0 %v1562
    %1645 = vmatprep.subr.bf16.mxu0 0
    %1646 = vmatpush2.bf16.msra.mxu0 0
    %1647 = vmatprep.subr.bf16.mxu0 0
    %1648 = vmatpush2.bf16.msra.mxu0 0
    %1649 = vmatprep.subr.bf16.mxu0 0
    %1650 = vmatpush2.bf16.msra.mxu0 0
    %1651 = vmatprep.subr.bf16.mxu0 0
    %1652 = vmatpush2.bf16.msra.mxu0 0
    %1653 = vmatprep.subr.bf16.mxu0 0
    %1654 = vmatpush2.bf16.msra.mxu0 0
    %1655 = vmatprep.subr.bf16.mxu0 0
    %1656 = vmatpush2.bf16.msra.mxu0 0
    %1657 = vmatprep.subr.bf16.mxu0 0
    %1658 = vmatpush2.bf16.msra.mxu0 0
    %1659 = vmatprep.subr.bf16.mxu0 0
    %1660 = vmatpush2.bf16.msra.mxu0 0
    %1661 = vmatprep.mubr.bf16.mxu0 0
    %1662 = vmatmul.mubr.bf16.gmra.mxu0 %v1627
    %v1663 = vpop.f32.mrf.mxu0
    %v1664 = vadd.f32 %v1405, %v1663
    %v1665 = vpop.f32.mrf.mxu0
    %v1666 = vadd.f32 %v1409, %v1665
    %v1667 = vpop.f32.mrf.mxu0
    %v1668 = vadd.f32 %v1405, %v1667
    %v1669 = vpop.f32.mrf.mxu0
    %v1670 = vadd.f32 %v1409, %v1669
    %1671 = vdwg.mxu0
    %1672 = vmatprep.subr.bf16.mxu0 0
    %1673 = vmatpush1.bf16.msra.mxu0 0
    %1674 = vmatprep.subr.bf16.mxu0 0
    %1675 = vmatpush1.bf16.msra.mxu0 0
    %1676 = vmatprep.subr.bf16.mxu0 0
    %1677 = vmatpush1.bf16.msra.mxu0 0
    %1678 = vmatprep.subr.bf16.mxu0 0
    %1679 = vmatpush1.bf16.msra.mxu0 0
    %1680 = vmatprep.subr.bf16.mxu0 0
    %1681 = vmatpush1.bf16.msra.mxu0 0
    %1682 = vmatprep.subr.bf16.mxu0 0
    %1683 = vmatpush1.bf16.msra.mxu0 0
    %1684 = vmatprep.subr.bf16.mxu0 %v1581
    %1685 = vmatpush1.bf16.msra.mxu0 %v1580
    %1686 = vmatprep.subr.bf16.mxu0 %v1565
    %1687 = vmatpush1.bf16.msra.mxu0 %v1564
    %1688 = vmatprep.subr.bf16.mxu0 0
    %1689 = vmatpush2.bf16.msra.mxu0 0
    %1690 = vmatprep.subr.bf16.mxu0 0
    %1691 = vmatpush2.bf16.msra.mxu0 0
    %1692 = vmatprep.subr.bf16.mxu0 0
    %1693 = vmatpush2.bf16.msra.mxu0 0
    %1694 = vmatprep.subr.bf16.mxu0 0
    %1695 = vmatpush2.bf16.msra.mxu0 0
    %1696 = vmatprep.subr.bf16.mxu0 0
    %1697 = vmatpush2.bf16.msra.mxu0 0
    %1698 = vmatprep.subr.bf16.mxu0 0
    %1699 = vmatpush2.bf16.msra.mxu0 0
    %1700 = vmatprep.subr.bf16.mxu0 0
    %1701 = vmatpush2.bf16.msra.mxu0 0
    %1702 = vmatprep.subr.bf16.mxu0 0
    %1703 = vmatpush2.bf16.msra.mxu0 0
    %1704 = vmatprep.mubr.bf16.mxu0 0
    %1705 = vmatmul.mubr.bf16.gmra.mxu0 %v1627
    %v1706 = vpop.f32.mrf.mxu0
    %v1707 = vadd.f32 %v1413, %v1706
    %v1708 = vpop.f32.mrf.mxu0
    %v1709 = vadd.f32 %v1417, %v1708
    %v1710 = vpop.f32.mrf.mxu0
    %v1711 = vadd.f32 %v1413, %v1710
    %v1712 = vpop.f32.mrf.mxu0
    %v1713 = vadd.f32 %v1417, %v1712
    %1714 = vdwg.mxu0
    %1715 = vmatprep.subr.bf16.mxu0 0
    %1716 = vmatpush1.bf16.msra.mxu0 0
    %1717 = vmatprep.subr.bf16.mxu0 0
    %1718 = vmatpush1.bf16.msra.mxu0 0
    %1719 = vmatprep.subr.bf16.mxu0 0
    %1720 = vmatpush1.bf16.msra.mxu0 0
    %1721 = vmatprep.subr.bf16.mxu0 0
    %1722 = vmatpush1.bf16.msra.mxu0 0
    %1723 = vmatprep.subr.bf16.mxu0 0
    %1724 = vmatpush1.bf16.msra.mxu0 0
    %1725 = vmatprep.subr.bf16.mxu0 0
    %1726 = vmatpush1.bf16.msra.mxu0 0
    %1727 = vmatprep.subr.bf16.mxu0 %v1583
    %1728 = vmatpush1.bf16.msra.mxu0 %v1582
    %1729 = vmatprep.subr.bf16.mxu0 %v1567
    %1730 = vmatpush1.bf16.msra.mxu0 %v1566
    %1731 = vmatprep.subr.bf16.mxu0 0
    %1732 = vmatpush2.bf16.msra.mxu0 0
    %1733 = vmatprep.subr.bf16.mxu0 0
    %1734 = vmatpush2.bf16.msra.mxu0 0
    %1735 = vmatprep.subr.bf16.mxu0 0
    %1736 = vmatpush2.bf16.msra.mxu0 0
    %1737 = vmatprep.subr.bf16.mxu0 0
    %1738 = vmatpush2.bf16.msra.mxu0 0
    %1739 = vmatprep.subr.bf16.mxu0 0
    %1740 = vmatpush2.bf16.msra.mxu0 0
    %1741 = vmatprep.subr.bf16.mxu0 0
    %1742 = vmatpush2.bf16.msra.mxu0 0
    %1743 = vmatprep.subr.bf16.mxu0 0
    %1744 = vmatpush2.bf16.msra.mxu0 0
    %1745 = vmatprep.subr.bf16.mxu0 0
    %1746 = vmatpush2.bf16.msra.mxu0 0
    %1747 = vmatprep.mubr.bf16.mxu0 0
    %1748 = vmatmul.mubr.bf16.gmra.mxu0 %v1627
    %v1749 = vpop.f32.mrf.mxu0
    %v1750 = vadd.f32 %v1421, %v1749
    %v1751 = vpop.f32.mrf.mxu0
    %v1752 = vadd.f32 %v1425, %v1751
    %v1753 = vpop.f32.mrf.mxu0
    %v1754 = vadd.f32 %v1421, %v1753
    %v1755 = vpop.f32.mrf.mxu0
    %v1756 = vadd.f32 %v1425, %v1755
    %1757 = vdwg.mxu0
    %1758 = vmatprep.subr.bf16.mxu0 0
    %1759 = vmatpush1.bf16.msra.mxu0 0
    %1760 = vmatprep.subr.bf16.mxu0 0
    %1761 = vmatpush1.bf16.msra.mxu0 0
    %1762 = vmatprep.subr.bf16.mxu0 0
    %1763 = vmatpush1.bf16.msra.mxu0 0
    %1764 = vmatprep.subr.bf16.mxu0 0
    %1765 = vmatpush1.bf16.msra.mxu0 0
    %1766 = vmatprep.subr.bf16.mxu0 0
    %1767 = vmatpush1.bf16.msra.mxu0 0
    %1768 = vmatprep.subr.bf16.mxu0 0
    %1769 = vmatpush1.bf16.msra.mxu0 0
    %1770 = vmatprep.subr.bf16.mxu0 %v1585
    %1771 = vmatpush1.bf16.msra.mxu0 %v1584
    %1772 = vmatprep.subr.bf16.mxu0 %v1569
    %1773 = vmatpush1.bf16.msra.mxu0 %v1568
    %1774 = vmatprep.subr.bf16.mxu0 0
    %1775 = vmatpush2.bf16.msra.mxu0 0
    %1776 = vmatprep.subr.bf16.mxu0 0
    %1777 = vmatpush2.bf16.msra.mxu0 0
    %1778 = vmatprep.subr.bf16.mxu0 0
    %1779 = vmatpush2.bf16.msra.mxu0 0
    %1780 = vmatprep.subr.bf16.mxu0 0
    %1781 = vmatpush2.bf16.msra.mxu0 0
    %1782 = vmatprep.subr.bf16.mxu0 0
    %1783 = vmatpush2.bf16.msra.mxu0 0
    %1784 = vmatprep.subr.bf16.mxu0 0
    %1785 = vmatpush2.bf16.msra.mxu0 0
    %1786 = vmatprep.subr.bf16.mxu0 0
    %1787 = vmatpush2.bf16.msra.mxu0 0
    %1788 = vmatprep.subr.bf16.mxu0 0
    %1789 = vmatpush2.bf16.msra.mxu0 0
    %1790 = vmatprep.mubr.bf16.mxu0 0
    %1791 = vmatmul.mubr.bf16.gmra.mxu0 %v1627
    %v1792 = vpop.f32.mrf.mxu0
    %v1793 = vadd.f32 %v1429, %v1792
    %v1794 = vpop.f32.mrf.mxu0
    %v1795 = vadd.f32 %v1433, %v1794
    %v1796 = vpop.f32.mrf.mxu0
    %v1797 = vadd.f32 %v1429, %v1796
    %v1798 = vpop.f32.mrf.mxu0
    %v1799 = vadd.f32 %v1433, %v1798
    %1800 = vdwg.mxu0
    %1801 = vmatprep.subr.bf16.mxu0 0
    %1802 = vmatpush1.bf16.msra.mxu0 0
    %1803 = vmatprep.subr.bf16.mxu0 0
    %1804 = vmatpush1.bf16.msra.mxu0 0
    %1805 = vmatprep.subr.bf16.mxu0 0
    %1806 = vmatpush1.bf16.msra.mxu0 0
    %1807 = vmatprep.subr.bf16.mxu0 0
    %1808 = vmatpush1.bf16.msra.mxu0 0
    %1809 = vmatprep.subr.bf16.mxu0 0
    %1810 = vmatpush1.bf16.msra.mxu0 0
    %1811 = vmatprep.subr.bf16.mxu0 0
    %1812 = vmatpush1.bf16.msra.mxu0 0
    %1813 = vmatprep.subr.bf16.mxu0 %v1587
    %1814 = vmatpush1.bf16.msra.mxu0 %v1586
    %1815 = vmatprep.subr.bf16.mxu0 %v1571
    %1816 = vmatpush1.bf16.msra.mxu0 %v1570
    %1817 = vmatprep.subr.bf16.mxu0 0
    %1818 = vmatpush2.bf16.msra.mxu0 0
    %1819 = vmatprep.subr.bf16.mxu0 0
    %1820 = vmatpush2.bf16.msra.mxu0 0
    %1821 = vmatprep.subr.bf16.mxu0 0
    %1822 = vmatpush2.bf16.msra.mxu0 0
    %1823 = vmatprep.subr.bf16.mxu0 0
    %1824 = vmatpush2.bf16.msra.mxu0 0
    %1825 = vmatprep.subr.bf16.mxu0 0
    %1826 = vmatpush2.bf16.msra.mxu0 0
    %1827 = vmatprep.subr.bf16.mxu0 0
    %1828 = vmatpush2.bf16.msra.mxu0 0
    %1829 = vmatprep.subr.bf16.mxu0 0
    %1830 = vmatpush2.bf16.msra.mxu0 0
    %1831 = vmatprep.subr.bf16.mxu0 0
    %1832 = vmatpush2.bf16.msra.mxu0 0
    %1833 = vmatprep.mubr.bf16.mxu0 0
    %1834 = vmatmul.mubr.bf16.gmra.mxu0 %v1627
    %v1835 = vpop.f32.mrf.mxu0
    %v1836 = vadd.f32 %v1437, %v1835
    %v1837 = vpop.f32.mrf.mxu0
    %v1838 = vadd.f32 %v1441, %v1837
    %v1839 = vpop.f32.mrf.mxu0
    %v1840 = vadd.f32 %v1437, %v1839
    %v1841 = vpop.f32.mrf.mxu0
    %v1842 = vadd.f32 %v1441, %v1841
    %1843 = vdwg.mxu0
    %1844 = vmatprep.subr.bf16.mxu0 0
    %1845 = vmatpush1.bf16.msra.mxu0 0
    %1846 = vmatprep.subr.bf16.mxu0 0
    %1847 = vmatpush1.bf16.msra.mxu0 0
    %1848 = vmatprep.subr.bf16.mxu0 0
    %1849 = vmatpush1.bf16.msra.mxu0 0
    %1850 = vmatprep.subr.bf16.mxu0 0
    %1851 = vmatpush1.bf16.msra.mxu0 0
    %1852 = vmatprep.subr.bf16.mxu0 0
    %1853 = vmatpush1.bf16.msra.mxu0 0
    %1854 = vmatprep.subr.bf16.mxu0 0
    %1855 = vmatpush1.bf16.msra.mxu0 0
    %1856 = vmatprep.subr.bf16.mxu0 %v1589
    %1857 = vmatpush1.bf16.msra.mxu0 %v1588
    %1858 = vmatprep.subr.bf16.mxu0 %v1573
    %1859 = vmatpush1.bf16.msra.mxu0 %v1572
    %1860 = vmatprep.subr.bf16.mxu0 0
    %1861 = vmatpush2.bf16.msra.mxu0 0
    %1862 = vmatprep.subr.bf16.mxu0 0
    %1863 = vmatpush2.bf16.msra.mxu0 0
    %1864 = vmatprep.subr.bf16.mxu0 0
    %1865 = vmatpush2.bf16.msra.mxu0 0
    %1866 = vmatprep.subr.bf16.mxu0 0
    %1867 = vmatpush2.bf16.msra.mxu0 0
    %1868 = vmatprep.subr.bf16.mxu0 0
    %1869 = vmatpush2.bf16.msra.mxu0 0
    %1870 = vmatprep.subr.bf16.mxu0 0
    %1871 = vmatpush2.bf16.msra.mxu0 0
    %1872 = vmatprep.subr.bf16.mxu0 0
    %1873 = vmatpush2.bf16.msra.mxu0 0
    %1874 = vmatprep.subr.bf16.mxu0 0
    %1875 = vmatpush2.bf16.msra.mxu0 0
    %1876 = vmatprep.mubr.bf16.mxu0 0
    %1877 = vmatmul.mubr.bf16.gmra.mxu0 %v1627
    %v1878 = vpop.f32.mrf.mxu0
    %v1879 = vadd.f32 %v1445, %v1878
    %v1880 = vpop.f32.mrf.mxu0
    %v1881 = vadd.f32 %v1449, %v1880
    %v1882 = vpop.f32.mrf.mxu0
    %v1883 = vadd.f32 %v1445, %v1882
    %v1884 = vpop.f32.mrf.mxu0
    %v1885 = vadd.f32 %v1449, %v1884
    %1886 = vdwg.mxu0
    %1887 = vmatprep.subr.bf16.mxu0 0
    %1888 = vmatpush1.bf16.msra.mxu0 0
    %1889 = vmatprep.subr.bf16.mxu0 0
    %1890 = vmatpush1.bf16.msra.mxu0 0
    %1891 = vmatprep.subr.bf16.mxu0 0
    %1892 = vmatpush1.bf16.msra.mxu0 0
    %1893 = vmatprep.subr.bf16.mxu0 0
    %1894 = vmatpush1.bf16.msra.mxu0 0
    %1895 = vmatprep.subr.bf16.mxu0 0
    %1896 = vmatpush1.bf16.msra.mxu0 0
    %1897 = vmatprep.subr.bf16.mxu0 0
    %1898 = vmatpush1.bf16.msra.mxu0 0
    %1899 = vmatprep.subr.bf16.mxu0 %v1591
    %1900 = vmatpush1.bf16.msra.mxu0 %v1590
    %1901 = vmatprep.subr.bf16.mxu0 %v1575
    %1902 = vmatpush1.bf16.msra.mxu0 %v1574
    %1903 = vmatprep.subr.bf16.mxu0 0
    %1904 = vmatpush2.bf16.msra.mxu0 0
    %1905 = vmatprep.subr.bf16.mxu0 0
    %1906 = vmatpush2.bf16.msra.mxu0 0
    %1907 = vmatprep.subr.bf16.mxu0 0
    %1908 = vmatpush2.bf16.msra.mxu0 0
    %1909 = vmatprep.subr.bf16.mxu0 0
    %1910 = vmatpush2.bf16.msra.mxu0 0
    %1911 = vmatprep.subr.bf16.mxu0 0
    %1912 = vmatpush2.bf16.msra.mxu0 0
    %1913 = vmatprep.subr.bf16.mxu0 0
    %1914 = vmatpush2.bf16.msra.mxu0 0
    %1915 = vmatprep.subr.bf16.mxu0 0
    %1916 = vmatpush2.bf16.msra.mxu0 0
    %1917 = vmatprep.subr.bf16.mxu0 0
    %1918 = vmatpush2.bf16.msra.mxu0 0
    %1919 = vmatprep.mubr.bf16.mxu0 0
    %1920 = vmatmul.mubr.bf16.gmra.mxu0 %v1627
    %v1921 = vpop.f32.mrf.mxu0
    %v1922 = vadd.f32 %v1453, %v1921
    %v1923 = vpop.f32.mrf.mxu0
    %v1924 = vadd.f32 %v1457, %v1923
    %v1925 = vpop.f32.mrf.mxu0
    %v1926 = vadd.f32 %v1453, %v1925
    %v1927 = vpop.f32.mrf.mxu0
    %v1928 = vadd.f32 %v1457, %v1927
    %1929 = vdwg.mxu0
    %1930 = vmatprep.subr.bf16.mxu0 0
    %1931 = vmatpush1.bf16.msra.mxu0 0
    %1932 = vmatprep.subr.bf16.mxu0 0
    %1933 = vmatpush1.bf16.msra.mxu0 0
    %1934 = vmatprep.subr.bf16.mxu0 0
    %1935 = vmatpush1.bf16.msra.mxu0 0
    %1936 = vmatprep.subr.bf16.mxu0 0
    %1937 = vmatpush1.bf16.msra.mxu0 0
    %1938 = vmatprep.subr.bf16.mxu0 0
    %1939 = vmatpush1.bf16.msra.mxu0 0
    %1940 = vmatprep.subr.bf16.mxu0 0
    %1941 = vmatpush1.bf16.msra.mxu0 0
    %1942 = vmatprep.subr.bf16.mxu0 %v1593
    %1943 = vmatpush1.bf16.msra.mxu0 %v1592
    %1944 = vmatprep.subr.bf16.mxu0 %v1577
    %1945 = vmatpush1.bf16.msra.mxu0 %v1576
    %1946 = vmatprep.subr.bf16.mxu0 0
    %1947 = vmatpush2.bf16.msra.mxu0 0
    %1948 = vmatprep.subr.bf16.mxu0 0
    %1949 = vmatpush2.bf16.msra.mxu0 0
    %1950 = vmatprep.subr.bf16.mxu0 0
    %1951 = vmatpush2.bf16.msra.mxu0 0
    %1952 = vmatprep.subr.bf16.mxu0 0
    %1953 = vmatpush2.bf16.msra.mxu0 0
    %1954 = vmatprep.subr.bf16.mxu0 0
    %1955 = vmatpush2.bf16.msra.mxu0 0
    %1956 = vmatprep.subr.bf16.mxu0 0
    %1957 = vmatpush2.bf16.msra.mxu0 0
    %1958 = vmatprep.subr.bf16.mxu0 0
    %1959 = vmatpush2.bf16.msra.mxu0 0
    %1960 = vmatprep.subr.bf16.mxu0 0
    %1961 = vmatpush2.bf16.msra.mxu0 0
    %1962 = vmatprep.mubr.bf16.mxu0 0
    %1963 = vmatmul.mubr.bf16.gmra.mxu0 %v1627
    %v1964 = vpop.f32.mrf.mxu0
    %v1965 = vadd.f32 %v1461, %v1964
    %v1966 = vpop.f32.mrf.mxu0
    %v1967 = vadd.f32 %v1465, %v1966
    %v1968 = vpop.f32.mrf.mxu0
    %v1969 = vadd.f32 %v1461, %v1968
    %v1970 = vpop.f32.mrf.mxu0
    %v1971 = vadd.f32 %v1465, %v1970
    %1972 = vdwg.mxu0
    %v1973 = vmax.f32 %v1664, 0.0
    %v1974 = vmax.f32 %v1666, 0.0
    %v1975 = vmax.f32 %v1707, 0.0
    %v1976 = vmax.f32 %v1709, 0.0
    %v1977 = vmax.f32 %v1750, 0.0
    %v1978 = vmax.f32 %v1752, 0.0
    %v1979 = vmax.f32 %v1793, 0.0
    %v1980 = vmax.f32 %v1795, 0.0
    %v1981 = vmax.f32 %v1836, 0.0
    %v1982 = vmax.f32 %v1838, 0.0
    %v1983 = vmax.f32 %v1879, 0.0
    %v1984 = vmax.f32 %v1881, 0.0
    %v1985 = vmax.f32 %v1922, 0.0
    %v1986 = vmax.f32 %v1924, 0.0
    %v1987 = vmax.f32 %v1965, 0.0
    %v1988 = vmax.f32 %v1967, 0.0
    %v1989 = vmax.f32 %v1668, 0.0
    %v1990 = vmax.f32 %v1670, 0.0
    %v1991 = vmax.f32 %v1711, 0.0
    %v1992 = vmax.f32 %v1713, 0.0
    %v1993 = vmax.f32 %v1754, 0.0
    %v1994 = vmax.f32 %v1756, 0.0
    %v1995 = vmax.f32 %v1797, 0.0
    %v1996 = vmax.f32 %v1799, 0.0
    %v1997 = vmax.f32 %v1840, 0.0
    %v1998 = vmax.f32 %v1842, 0.0
    %v1999 = vmax.f32 %v1883, 0.0
    %v2000 = vmax.f32 %v1885, 0.0
    %v2001 = vmax.f32 %v1926, 0.0
    %v2002 = vmax.f32 %v1928, 0.0
    %v2003 = vmax.f32 %v1969, 0.0
    %v2004 = vmax.f32 %v1971, 0.0
    %v2005 = vpack.c.bf16 %v1989, %v1973
    %v2006 = vpack.c.bf16 %v1990, %v1974
    %v2007 = vpack.c.bf16 %v1991, %v1975
    %v2008 = vpack.c.bf16 %v1992, %v1976
    %v2009 = vpack.c.bf16 %v1993, %v1977
    %v2010 = vpack.c.bf16 %v1994, %v1978
    %v2011 = vpack.c.bf16 %v1995, %v1979
    %v2012 = vpack.c.bf16 %v1996, %v1980
    %v2013 = vpack.c.bf16 %v1997, %v1981
    %v2014 = vpack.c.bf16 %v1998, %v1982
    %v2015 = vpack.c.bf16 %v1999, %v1983
    %v2016 = vpack.c.bf16 %v2000, %v1984
    %v2017 = vpack.c.bf16 %v2001, %v1985
    %v2018 = vpack.c.bf16 %v2002, %v1986
    %v2019 = vpack.c.bf16 %v2003, %v1987
    %v2020 = vpack.c.bf16 %v2004, %v1988
    %v2021 = vld [vmem:[%s4] sm:$0xf]
    %v2022 = vld [vmem:[%s4 + $0x4] sm:$0xf]
    %v2023 = vld [vmem:[%s4 + $0x8] sm:$0xf]
    %v2024 = vld [vmem:[%s4 + $0xc] sm:$0xf]
    %v2025 = vld [vmem:[%s4 + $0x10] sm:$0xf]
    %v2026 = vld [vmem:[%s4 + $0x14] sm:$0xf]
    %v2027 = vld [vmem:[%s4 + $0x18] sm:$0xf]
    %v2028 = vld [vmem:[%s4 + $0x1c] sm:$0xf]
    %v2029 = vld [vmem:[%s4 + $0x20] sm:$0xf]
    %v2030 = vld [vmem:[%s4 + $0x24] sm:$0xf]
    %v2031 = vld [vmem:[%s4 + $0x28] sm:$0xf]
    %v2032 = vld [vmem:[%s4 + $0x2c] sm:$0xf]
    %v2033 = vld [vmem:[%s4 + $0x30] sm:$0xf]
    %v2034 = vld [vmem:[%s4 + $0x34] sm:$0xf]
    %v2035 = vld [vmem:[%s4 + $0x38] sm:$0xf]
    %v2036 = vld [vmem:[%s4 + $0x3c] sm:$0xf]
    %v2037 = vld [vmem:[%s4 + $0x40] sm:$0xf]
    %v2038 = vld [vmem:[%s4 + $0x44] sm:$0xf]
    %v2039 = vld [vmem:[%s4 + $0x48] sm:$0xf]
    %v2040 = vld [vmem:[%s4 + $0x4c] sm:$0xf]
    %v2041 = vld [vmem:[%s4 + $0x50] sm:$0xf]
    %v2042 = vld [vmem:[%s4 + $0x54] sm:$0xf]
    %v2043 = vld [vmem:[%s4 + $0x58] sm:$0xf]
    %v2044 = vld [vmem:[%s4 + $0x5c] sm:$0xf]
    %v2045 = vld [vmem:[%s4 + $0x60] sm:$0xf]
    %v2046 = vld [vmem:[%s4 + $0x64] sm:$0xf]
    %v2047 = vld [vmem:[%s4 + $0x68] sm:$0xf]
    %v2048 = vld [vmem:[%s4 + $0x6c] sm:$0xf]
    %v2049 = vld [vmem:[%s4 + $0x70] sm:$0xf]
    %v2050 = vld [vmem:[%s4 + $0x74] sm:$0xf]
    %v2051 = vld [vmem:[%s4 + $0x78] sm:$0xf]
    %v2052 = vld [vmem:[%s4 + $0x7c] sm:$0xf]
    %v2053 = vld [vmem:[%s4 + $0x80] sm:$0xf]
    %v2054 = vld [vmem:[%s4 + $0x84] sm:$0xf]
    %v2055 = vld [vmem:[%s4 + $0x88] sm:$0xf]
    %v2056 = vld [vmem:[%s4 + $0x8c] sm:$0xf]
    %v2057 = vld [vmem:[%s4 + $0x90] sm:$0xf]
    %v2058 = vld [vmem:[%s4 + $0x94] sm:$0xf]
    %v2059 = vld [vmem:[%s4 + $0x98] sm:$0xf]
    %v2060 = vld [vmem:[%s4 + $0x9c] sm:$0xf]
    %v2061 = vld [vmem:[%s4 + $0xa0] sm:$0xf]
    %v2062 = vld [vmem:[%s4 + $0xa4] sm:$0xf]
    %v2063 = vld [vmem:[%s4 + $0xa8] sm:$0xf]
    %v2064 = vld [vmem:[%s4 + $0xac] sm:$0xf]
    %v2065 = vld [vmem:[%s4 + $0xb0] sm:$0xf]
    %v2066 = vld [vmem:[%s4 + $0xb4] sm:$0xf]
    %v2067 = vld [vmem:[%s4 + $0xb8] sm:$0xf]
    %v2068 = vld [vmem:[%s4 + $0xbc] sm:$0xf]
    %v2069 = vld [vmem:[%s4 + $0xc0] sm:$0xf]
    %v2070 = vld [vmem:[%s4 + $0xc4] sm:$0xf]
    %v2071 = vld [vmem:[%s4 + $0xc8] sm:$0xf]
    %v2072 = vld [vmem:[%s4 + $0xcc] sm:$0xf]
    %v2073 = vld [vmem:[%s4 + $0xd0] sm:$0xf]
    %v2074 = vld [vmem:[%s4 + $0xd4] sm:$0xf]
    %v2075 = vld [vmem:[%s4 + $0xd8] sm:$0xf]
    %v2076 = vld [vmem:[%s4 + $0xdc] sm:$0xf]
    %v2077 = vld [vmem:[%s4 + $0xe0] sm:$0xf]
    %v2078 = vld [vmem:[%s4 + $0xe4] sm:$0xf]
    %v2079 = vld [vmem:[%s4 + $0xe8] sm:$0xf]
    %v2080 = vld [vmem:[%s4 + $0xec] sm:$0xf]
    %v2081 = vld [vmem:[%s4 + $0xf0] sm:$0xf]
    %v2082 = vld [vmem:[%s4 + $0xf4] sm:$0xf]
    %v2083 = vld [vmem:[%s4 + $0xf8] sm:$0xf]
    %v2084 = vld [vmem:[%s4 + $0xfc] sm:$0xf]
    %v2085 = vld [vmem:[%s4 + $0x100] sm:$0xf]
    %v2086 = vld [vmem:[%s4 + $0x104] sm:$0xf]
    %v2087 = vld [vmem:[%s4 + $0x108] sm:$0xf]
    %v2088 = vld [vmem:[%s4 + $0x10c] sm:$0xf]
    %v2089 = vld [vmem:[%s4 + $0x110] sm:$0xf]
    %v2090 = vld [vmem:[%s4 + $0x114] sm:$0xf]
    %v2091 = vld [vmem:[%s4 + $0x118] sm:$0xf]
    %v2092 = vld [vmem:[%s4 + $0x11c] sm:$0xf]
    %v2093 = vld [vmem:[%s4 + $0x120] sm:$0xf]
    %v2094 = vld [vmem:[%s4 + $0x124] sm:$0xf]
    %v2095 = vld [vmem:[%s4 + $0x128] sm:$0xf]
    %v2096 = vld [vmem:[%s4 + $0x12c] sm:$0xf]
    %v2097 = vld [vmem:[%s4 + $0x130] sm:$0xf]
    %v2098 = vld [vmem:[%s4 + $0x134] sm:$0xf]
    %v2099 = vld [vmem:[%s4 + $0x138] sm:$0xf]
    %v2100 = vld [vmem:[%s4 + $0x13c] sm:$0xf]
    %v2101 = vld [vmem:[%s4 + $0x140] sm:$0xf]
    %v2102 = vld [vmem:[%s4 + $0x144] sm:$0xf]
    %v2103 = vld [vmem:[%s4 + $0x148] sm:$0xf]
    %v2104 = vld [vmem:[%s4 + $0x14c] sm:$0xf]
    %v2105 = vld [vmem:[%s4 + $0x150] sm:$0xf]
    %v2106 = vld [vmem:[%s4 + $0x154] sm:$0xf]
    %v2107 = vld [vmem:[%s4 + $0x158] sm:$0xf]
    %v2108 = vld [vmem:[%s4 + $0x15c] sm:$0xf]
    %v2109 = vld [vmem:[%s4 + $0x160] sm:$0xf]
    %v2110 = vld [vmem:[%s4 + $0x164] sm:$0xf]
    %v2111 = vld [vmem:[%s4 + $0x168] sm:$0xf]
    %v2112 = vld [vmem:[%s4 + $0x16c] sm:$0xf]
    %v2113 = vld [vmem:[%s4 + $0x170] sm:$0xf]
    %v2114 = vld [vmem:[%s4 + $0x174] sm:$0xf]
    %v2115 = vld [vmem:[%s4 + $0x178] sm:$0xf]
    %v2116 = vld [vmem:[%s4 + $0x17c] sm:$0xf]
    %v2117 = vld [vmem:[%s4 + $0x180] sm:$0xf]
    %v2118 = vld [vmem:[%s4 + $0x184] sm:$0xf]
    %v2119 = vld [vmem:[%s4 + $0x188] sm:$0xf]
    %v2120 = vld [vmem:[%s4 + $0x18c] sm:$0xf]
    %v2121 = vld [vmem:[%s4 + $0x190] sm:$0xf]
    %v2122 = vld [vmem:[%s4 + $0x194] sm:$0xf]
    %v2123 = vld [vmem:[%s4 + $0x198] sm:$0xf]
    %v2124 = vld [vmem:[%s4 + $0x19c] sm:$0xf]
    %v2125 = vld [vmem:[%s4 + $0x1a0] sm:$0xf]
    %v2126 = vld [vmem:[%s4 + $0x1a4] sm:$0xf]
    %v2127 = vld [vmem:[%s4 + $0x1a8] sm:$0xf]
    %v2128 = vld [vmem:[%s4 + $0x1ac] sm:$0xf]
    %v2129 = vld [vmem:[%s4 + $0x1b0] sm:$0xf]
    %v2130 = vld [vmem:[%s4 + $0x1b4] sm:$0xf]
    %v2131 = vld [vmem:[%s4 + $0x1b8] sm:$0xf]
    %v2132 = vld [vmem:[%s4 + $0x1bc] sm:$0xf]
    %v2133 = vld [vmem:[%s4 + $0x1c0] sm:$0xf]
    %v2134 = vld [vmem:[%s4 + $0x1c4] sm:$0xf]
    %v2135 = vld [vmem:[%s4 + $0x1c8] sm:$0xf]
    %v2136 = vld [vmem:[%s4 + $0x1cc] sm:$0xf]
    %v2137 = vld [vmem:[%s4 + $0x1d0] sm:$0xf]
    %v2138 = vld [vmem:[%s4 + $0x1d4] sm:$0xf]
    %v2139 = vld [vmem:[%s4 + $0x1d8] sm:$0xf]
    %v2140 = vld [vmem:[%s4 + $0x1dc] sm:$0xf]
    %v2141 = vld [vmem:[%s4 + $0x1e0] sm:$0xf]
    %v2142 = vld [vmem:[%s4 + $0x1e4] sm:$0xf]
    %v2143 = vld [vmem:[%s4 + $0x1e8] sm:$0xf]
    %v2144 = vld [vmem:[%s4 + $0x1ec] sm:$0xf]
    %v2145 = vld [vmem:[%s4 + $0x1f0] sm:$0xf]
    %v2146 = vld [vmem:[%s4 + $0x1f4] sm:$0xf]
    %v2147 = vld [vmem:[%s4 + $0x1f8] sm:$0xf]
    %v2148 = vld [vmem:[%s4 + $0x1fc] sm:$0xf]
    %v2149 = vld [vmem:[%s4 + $0x200] sm:$0xf]
    %v2150 = vld [vmem:[%s4 + $0x204] sm:$0xf]
    %v2151 = vld [vmem:[%s4 + $0x208] sm:$0xf]
    %v2152 = vld [vmem:[%s4 + $0x20c] sm:$0xf]
    %v2153 = vld [vmem:[%s4 + $0x210] sm:$0xf]
    %v2154 = vld [vmem:[%s4 + $0x214] sm:$0xf]
    %v2155 = vld [vmem:[%s4 + $0x218] sm:$0xf]
    %v2156 = vld [vmem:[%s4 + $0x21c] sm:$0xf]
    %v2157 = vld [vmem:[%s4 + $0x220] sm:$0xf]
    %v2158 = vld [vmem:[%s4 + $0x224] sm:$0xf]
    %v2159 = vld [vmem:[%s4 + $0x228] sm:$0xf]
    %v2160 = vld [vmem:[%s4 + $0x22c] sm:$0xf]
    %v2161 = vld [vmem:[%s4 + $0x230] sm:$0xf]
    %v2162 = vld [vmem:[%s4 + $0x234] sm:$0xf]
    %v2163 = vld [vmem:[%s4 + $0x238] sm:$0xf]
    %v2164 = vld [vmem:[%s4 + $0x23c] sm:$0xf]
    %v2165 = vld [vmem:[%s4 + $0x240] sm:$0xf]
    %v2166 = vld [vmem:[%s4 + $0x244] sm:$0xf]
    %v2167 = vld [vmem:[%s4 + $0x248] sm:$0xf]
    %v2168 = vld [vmem:[%s4 + $0x24c] sm:$0xf]
    %v2169 = vld [vmem:[%s4 + $0x250] sm:$0xf]
    %v2170 = vld [vmem:[%s4 + $0x254] sm:$0xf]
    %v2171 = vld [vmem:[%s4 + $0x258] sm:$0xf]
    %v2172 = vld [vmem:[%s4 + $0x25c] sm:$0xf]
    %v2173 = vld [vmem:[%s4 + $0x260] sm:$0xf]
    %v2174 = vld [vmem:[%s4 + $0x264] sm:$0xf]
    %v2175 = vld [vmem:[%s4 + $0x268] sm:$0xf]
    %v2176 = vld [vmem:[%s4 + $0x26c] sm:$0xf]
    %v2177 = vld [vmem:[%s4 + $0x270] sm:$0xf]
    %v2178 = vld [vmem:[%s4 + $0x274] sm:$0xf]
    %v2179 = vld [vmem:[%s4 + $0x278] sm:$0xf]
    %v2180 = vld [vmem:[%s4 + $0x27c] sm:$0xf]
    %v2181 = vld [vmem:[%s4 + $0x280] sm:$0xf]
    %v2182 = vld [vmem:[%s4 + $0x284] sm:$0xf]
    %v2183 = vld [vmem:[%s4 + $0x288] sm:$0xf]
    %v2184 = vld [vmem:[%s4 + $0x28c] sm:$0xf]
    %v2185 = vld [vmem:[%s4 + $0x290] sm:$0xf]
    %v2186 = vld [vmem:[%s4 + $0x294] sm:$0xf]
    %v2187 = vld [vmem:[%s4 + $0x298] sm:$0xf]
    %v2188 = vld [vmem:[%s4 + $0x29c] sm:$0xf]
    %v2189 = vld [vmem:[%s4 + $0x2a0] sm:$0xf]
    %v2190 = vld [vmem:[%s4 + $0x2a4] sm:$0xf]
    %v2191 = vld [vmem:[%s4 + $0x2a8] sm:$0xf]
    %v2192 = vld [vmem:[%s4 + $0x2ac] sm:$0xf]
    %v2193 = vld [vmem:[%s4 + $0x2b0] sm:$0xf]
    %v2194 = vld [vmem:[%s4 + $0x2b4] sm:$0xf]
    %v2195 = vld [vmem:[%s4 + $0x2b8] sm:$0xf]
    %v2196 = vld [vmem:[%s4 + $0x2bc] sm:$0xf]
    %v2197 = vld [vmem:[%s4 + $0x2c0] sm:$0xf]
    %v2198 = vld [vmem:[%s4 + $0x2c4] sm:$0xf]
    %v2199 = vld [vmem:[%s4 + $0x2c8] sm:$0xf]
    %v2200 = vld [vmem:[%s4 + $0x2cc] sm:$0xf]
    %v2201 = vld [vmem:[%s4 + $0x2d0] sm:$0xf]
    %v2202 = vld [vmem:[%s4 + $0x2d4] sm:$0xf]
    %v2203 = vld [vmem:[%s4 + $0x2d8] sm:$0xf]
    %v2204 = vld [vmem:[%s4 + $0x2dc] sm:$0xf]
    %v2205 = vld [vmem:[%s4 + $0x2e0] sm:$0xf]
    %v2206 = vld [vmem:[%s4 + $0x2e4] sm:$0xf]
    %v2207 = vld [vmem:[%s4 + $0x2e8] sm:$0xf]
    %v2208 = vld [vmem:[%s4 + $0x2ec] sm:$0xf]
    %v2209 = vld [vmem:[%s4 + $0x2f0] sm:$0xf]
    %v2210 = vld [vmem:[%s4 + $0x2f4] sm:$0xf]
    %v2211 = vld [vmem:[%s4 + $0x2f8] sm:$0xf]
    %v2212 = vld [vmem:[%s4 + $0x2fc] sm:$0xf]
    %v2213 = vld [vmem:[%s4 + $0x300] sm:$0xf]
    %v2214 = vld [vmem:[%s4 + $0x304] sm:$0xf]
    %v2215 = vld [vmem:[%s4 + $0x308] sm:$0xf]
    %v2216 = vld [vmem:[%s4 + $0x30c] sm:$0xf]
    %v2217 = vld [vmem:[%s4 + $0x310] sm:$0xf]
    %v2218 = vld [vmem:[%s4 + $0x314] sm:$0xf]
    %v2219 = vld [vmem:[%s4 + $0x318] sm:$0xf]
    %v2220 = vld [vmem:[%s4 + $0x31c] sm:$0xf]
    %v2221 = vld [vmem:[%s4 + $0x320] sm:$0xf]
    %v2222 = vld [vmem:[%s4 + $0x324] sm:$0xf]
    %v2223 = vld [vmem:[%s4 + $0x328] sm:$0xf]
    %v2224 = vld [vmem:[%s4 + $0x32c] sm:$0xf]
    %v2225 = vld [vmem:[%s4 + $0x330] sm:$0xf]
    %v2226 = vld [vmem:[%s4 + $0x334] sm:$0xf]
    %v2227 = vld [vmem:[%s4 + $0x338] sm:$0xf]
    %v2228 = vld [vmem:[%s4 + $0x33c] sm:$0xf]
    %v2229 = vld [vmem:[%s4 + $0x340] sm:$0xf]
    %v2230 = vld [vmem:[%s4 + $0x344] sm:$0xf]
    %v2231 = vld [vmem:[%s4 + $0x348] sm:$0xf]
    %v2232 = vld [vmem:[%s4 + $0x34c] sm:$0xf]
    %v2233 = vld [vmem:[%s4 + $0x350] sm:$0xf]
    %v2234 = vld [vmem:[%s4 + $0x354] sm:$0xf]
    %v2235 = vld [vmem:[%s4 + $0x358] sm:$0xf]
    %v2236 = vld [vmem:[%s4 + $0x35c] sm:$0xf]
    %v2237 = vld [vmem:[%s4 + $0x360] sm:$0xf]
    %v2238 = vld [vmem:[%s4 + $0x364] sm:$0xf]
    %v2239 = vld [vmem:[%s4 + $0x368] sm:$0xf]
    %v2240 = vld [vmem:[%s4 + $0x36c] sm:$0xf]
    %v2241 = vld [vmem:[%s4 + $0x370] sm:$0xf]
    %v2242 = vld [vmem:[%s4 + $0x374] sm:$0xf]
    %v2243 = vld [vmem:[%s4 + $0x378] sm:$0xf]
    %v2244 = vld [vmem:[%s4 + $0x37c] sm:$0xf]
    %v2245 = vld [vmem:[%s4 + $0x380] sm:$0xf]
    %v2246 = vld [vmem:[%s4 + $0x384] sm:$0xf]
    %v2247 = vld [vmem:[%s4 + $0x388] sm:$0xf]
    %v2248 = vld [vmem:[%s4 + $0x38c] sm:$0xf]
    %v2249 = vld [vmem:[%s4 + $0x390] sm:$0xf]
    %v2250 = vld [vmem:[%s4 + $0x394] sm:$0xf]
    %v2251 = vld [vmem:[%s4 + $0x398] sm:$0xf]
    %v2252 = vld [vmem:[%s4 + $0x39c] sm:$0xf]
    %v2253 = vld [vmem:[%s4 + $0x3a0] sm:$0xf]
    %v2254 = vld [vmem:[%s4 + $0x3a4] sm:$0xf]
    %v2255 = vld [vmem:[%s4 + $0x3a8] sm:$0xf]
    %v2256 = vld [vmem:[%s4 + $0x3ac] sm:$0xf]
    %v2257 = vld [vmem:[%s4 + $0x3b0] sm:$0xf]
    %v2258 = vld [vmem:[%s4 + $0x3b4] sm:$0xf]
    %v2259 = vld [vmem:[%s4 + $0x3b8] sm:$0xf]
    %v2260 = vld [vmem:[%s4 + $0x3bc] sm:$0xf]
    %v2261 = vld [vmem:[%s4 + $0x3c0] sm:$0xf]
    %v2262 = vld [vmem:[%s4 + $0x3c4] sm:$0xf]
    %v2263 = vld [vmem:[%s4 + $0x3c8] sm:$0xf]
    %v2264 = vld [vmem:[%s4 + $0x3cc] sm:$0xf]
    %v2265 = vld [vmem:[%s4 + $0x3d0] sm:$0xf]
    %v2266 = vld [vmem:[%s4 + $0x3d4] sm:$0xf]
    %v2267 = vld [vmem:[%s4 + $0x3d8] sm:$0xf]
    %v2268 = vld [vmem:[%s4 + $0x3dc] sm:$0xf]
    %v2269 = vld [vmem:[%s4 + $0x3e0] sm:$0xf]
    %v2270 = vld [vmem:[%s4 + $0x3e4] sm:$0xf]
    %v2271 = vld [vmem:[%s4 + $0x3e8] sm:$0xf]
    %v2272 = vld [vmem:[%s4 + $0x3ec] sm:$0xf]
    %v2273 = vld [vmem:[%s4 + $0x3f0] sm:$0xf]
    %v2274 = vld [vmem:[%s4 + $0x3f4] sm:$0xf]
    %v2275 = vld [vmem:[%s4 + $0x3f8] sm:$0xf]
    %v2276 = vld [vmem:[%s4 + $0x3fc] sm:$0xf]
    %v2277 = vlaneseq
    %v2278 = vshrl.u32 %v2277, 7
    %v2279 = vsub.s32 6, %v2278
    %v2280 = vrot.slane %v30, %v2279
    %v2537 = vunpack.c.l.b16 %v2021
    %v2538 = vunpack.c.l.b16 %v2022
    %v2539 = vunpack.c.l.b16 %v2023
    %v2540 = vunpack.c.l.b16 %v2024
    %v2541 = vunpack.c.l.b16 %v2025
    %v2542 = vunpack.c.l.b16 %v2026
    %v2543 = vunpack.c.l.b16 %v2027
    %v2544 = vunpack.c.l.b16 %v2028
    %v2545 = vunpack.c.l.b16 %v2029
    %v2546 = vunpack.c.l.b16 %v2030
    %v2547 = vunpack.c.l.b16 %v2031
    %v2548 = vunpack.c.l.b16 %v2032
    %v2549 = vunpack.c.l.b16 %v2033
    %v2550 = vunpack.c.l.b16 %v2034
    %v2551 = vunpack.c.l.b16 %v2035
    %v2552 = vunpack.c.l.b16 %v2036
    %v2553 = vunpack.c.l.b16 %v2037
    %v2554 = vunpack.c.l.b16 %v2038
    %v2555 = vunpack.c.l.b16 %v2039
    %v2556 = vunpack.c.l.b16 %v2040
    %v2557 = vunpack.c.l.b16 %v2041
    %v2558 = vunpack.c.l.b16 %v2042
    %v2559 = vunpack.c.l.b16 %v2043
    %v2560 = vunpack.c.l.b16 %v2044
    %v2561 = vunpack.c.l.b16 %v2045
    %v2562 = vunpack.c.l.b16 %v2046
    %v2563 = vunpack.c.l.b16 %v2047
    %v2564 = vunpack.c.l.b16 %v2048
    %v2565 = vunpack.c.l.b16 %v2049
    %v2566 = vunpack.c.l.b16 %v2050
    %v2567 = vunpack.c.l.b16 %v2051
    %v2568 = vunpack.c.l.b16 %v2052
    %v2569 = vunpack.c.l.b16 %v2053
    %v2570 = vunpack.c.l.b16 %v2054
    %v2571 = vunpack.c.l.b16 %v2055
    %v2572 = vunpack.c.l.b16 %v2056
    %v2573 = vunpack.c.l.b16 %v2057
    %v2574 = vunpack.c.l.b16 %v2058
    %v2575 = vunpack.c.l.b16 %v2059
    %v2576 = vunpack.c.l.b16 %v2060
    %v2577 = vunpack.c.l.b16 %v2061
    %v2578 = vunpack.c.l.b16 %v2062
    %v2579 = vunpack.c.l.b16 %v2063
    %v2580 = vunpack.c.l.b16 %v2064
    %v2581 = vunpack.c.l.b16 %v2065
    %v2582 = vunpack.c.l.b16 %v2066
    %v2583 = vunpack.c.l.b16 %v2067
    %v2584 = vunpack.c.l.b16 %v2068
    %v2585 = vunpack.c.l.b16 %v2069
    %v2586 = vunpack.c.l.b16 %v2070
    %v2587 = vunpack.c.l.b16 %v2071
    %v2588 = vunpack.c.l.b16 %v2072
    %v2589 = vunpack.c.l.b16 %v2073
    %v2590 = vunpack.c.l.b16 %v2074
    %v2591 = vunpack.c.l.b16 %v2075
    %v2592 = vunpack.c.l.b16 %v2076
    %v2593 = vunpack.c.l.b16 %v2077
    %v2594 = vunpack.c.l.b16 %v2078
    %v2595 = vunpack.c.l.b16 %v2079
    %v2596 = vunpack.c.l.b16 %v2080
    %v2597 = vunpack.c.l.b16 %v2081
    %v2598 = vunpack.c.l.b16 %v2082
    %v2599 = vunpack.c.l.b16 %v2083
    %v2600 = vunpack.c.l.b16 %v2084
    %v2601 = vunpack.c.l.b16 %v2085
    %v2602 = vunpack.c.l.b16 %v2086
    %v2603 = vunpack.c.l.b16 %v2087
    %v2604 = vunpack.c.l.b16 %v2088
    %v2605 = vunpack.c.l.b16 %v2089
    %v2606 = vunpack.c.l.b16 %v2090
    %v2607 = vunpack.c.l.b16 %v2091
    %v2608 = vunpack.c.l.b16 %v2092
    %v2609 = vunpack.c.l.b16 %v2093
    %v2610 = vunpack.c.l.b16 %v2094
    %v2611 = vunpack.c.l.b16 %v2095
    %v2612 = vunpack.c.l.b16 %v2096
    %v2613 = vunpack.c.l.b16 %v2097
    %v2614 = vunpack.c.l.b16 %v2098
    %v2615 = vunpack.c.l.b16 %v2099
    %v2616 = vunpack.c.l.b16 %v2100
    %v2617 = vunpack.c.l.b16 %v2101
    %v2618 = vunpack.c.l.b16 %v2102
    %v2619 = vunpack.c.l.b16 %v2103
    %v2620 = vunpack.c.l.b16 %v2104
    %v2621 = vunpack.c.l.b16 %v2105
    %v2622 = vunpack.c.l.b16 %v2106
    %v2623 = vunpack.c.l.b16 %v2107
    %v2624 = vunpack.c.l.b16 %v2108
    %v2625 = vunpack.c.l.b16 %v2109
    %v2626 = vunpack.c.l.b16 %v2110
    %v2627 = vunpack.c.l.b16 %v2111
    %v2628 = vunpack.c.l.b16 %v2112
    %v2629 = vunpack.c.l.b16 %v2113
    %v2630 = vunpack.c.l.b16 %v2114
    %v2631 = vunpack.c.l.b16 %v2115
    %v2632 = vunpack.c.l.b16 %v2116
    %v2633 = vunpack.c.l.b16 %v2117
    %v2634 = vunpack.c.l.b16 %v2118
    %v2635 = vunpack.c.l.b16 %v2119
    %v2636 = vunpack.c.l.b16 %v2120
    %v2637 = vunpack.c.l.b16 %v2121
    %v2638 = vunpack.c.l.b16 %v2122
    %v2639 = vunpack.c.l.b16 %v2123
    %v2640 = vunpack.c.l.b16 %v2124
    %v2641 = vunpack.c.l.b16 %v2125
    %v2642 = vunpack.c.l.b16 %v2126
    %v2643 = vunpack.c.l.b16 %v2127
    %v2644 = vunpack.c.l.b16 %v2128
    %v2645 = vunpack.c.l.b16 %v2129
    %v2646 = vunpack.c.l.b16 %v2130
    %v2647 = vunpack.c.l.b16 %v2131
    %v2648 = vunpack.c.l.b16 %v2132
    %v2649 = vunpack.c.l.b16 %v2133
    %v2650 = vunpack.c.l.b16 %v2134
    %v2651 = vunpack.c.l.b16 %v2135
    %v2652 = vunpack.c.l.b16 %v2136
    %v2653 = vunpack.c.l.b16 %v2137
    %v2654 = vunpack.c.l.b16 %v2138
    %v2655 = vunpack.c.l.b16 %v2139
    %v2656 = vunpack.c.l.b16 %v2140
    %v2657 = vunpack.c.l.b16 %v2141
    %v2658 = vunpack.c.l.b16 %v2142
    %v2659 = vunpack.c.l.b16 %v2143
    %v2660 = vunpack.c.l.b16 %v2144
    %v2661 = vunpack.c.l.b16 %v2145
    %v2662 = vunpack.c.l.b16 %v2146
    %v2663 = vunpack.c.l.b16 %v2147
    %v2664 = vunpack.c.l.b16 %v2148
    %v2665 = vunpack.c.l.b16 %v2149
    %v2666 = vunpack.c.l.b16 %v2150
    %v2667 = vunpack.c.l.b16 %v2151
    %v2668 = vunpack.c.l.b16 %v2152
    %v2669 = vunpack.c.l.b16 %v2153
    %v2670 = vunpack.c.l.b16 %v2154
    %v2671 = vunpack.c.l.b16 %v2155
    %v2672 = vunpack.c.l.b16 %v2156
    %v2673 = vunpack.c.l.b16 %v2157
    %v2674 = vunpack.c.l.b16 %v2158
    %v2675 = vunpack.c.l.b16 %v2159
    %v2676 = vunpack.c.l.b16 %v2160
    %v2677 = vunpack.c.l.b16 %v2161
    %v2678 = vunpack.c.l.b16 %v2162
    %v2679 = vunpack.c.l.b16 %v2163
    %v2680 = vunpack.c.l.b16 %v2164
    %v2681 = vunpack.c.l.b16 %v2165
    %v2682 = vunpack.c.l.b16 %v2166
    %v2683 = vunpack.c.l.b16 %v2167
    %v2684 = vunpack.c.l.b16 %v2168
    %v2685 = vunpack.c.l.b16 %v2169
    %v2686 = vunpack.c.l.b16 %v2170
    %v2687 = vunpack.c.l.b16 %v2171
    %v2688 = vunpack.c.l.b16 %v2172
    %v2689 = vunpack.c.l.b16 %v2173
    %v2690 = vunpack.c.l.b16 %v2174
    %v2691 = vunpack.c.l.b16 %v2175
    %v2692 = vunpack.c.l.b16 %v2176
    %v2693 = vunpack.c.l.b16 %v2177
    %v2694 = vunpack.c.l.b16 %v2178
    %v2695 = vunpack.c.l.b16 %v2179
    %v2696 = vunpack.c.l.b16 %v2180
    %v2697 = vunpack.c.l.b16 %v2181
    %v2698 = vunpack.c.l.b16 %v2182
    %v2699 = vunpack.c.l.b16 %v2183
    %v2700 = vunpack.c.l.b16 %v2184
    %v2701 = vunpack.c.l.b16 %v2185
    %v2702 = vunpack.c.l.b16 %v2186
    %v2703 = vunpack.c.l.b16 %v2187
    %v2704 = vunpack.c.l.b16 %v2188
    %v2705 = vunpack.c.l.b16 %v2189
    %v2706 = vunpack.c.l.b16 %v2190
    %v2707 = vunpack.c.l.b16 %v2191
    %v2708 = vunpack.c.l.b16 %v2192
    %v2709 = vunpack.c.l.b16 %v2193
    %v2710 = vunpack.c.l.b16 %v2194
    %v2711 = vunpack.c.l.b16 %v2195
    %v2712 = vunpack.c.l.b16 %v2196
    %v2713 = vunpack.c.l.b16 %v2197
    %v2714 = vunpack.c.l.b16 %v2198
    %v2715 = vunpack.c.l.b16 %v2199
    %v2716 = vunpack.c.l.b16 %v2200
    %v2717 = vunpack.c.l.b16 %v2201
    %v2718 = vunpack.c.l.b16 %v2202
    %v2719 = vunpack.c.l.b16 %v2203
    %v2720 = vunpack.c.l.b16 %v2204
    %v2721 = vunpack.c.l.b16 %v2205
    %v2722 = vunpack.c.l.b16 %v2206
    %v2723 = vunpack.c.l.b16 %v2207
    %v2724 = vunpack.c.l.b16 %v2208
    %v2725 = vunpack.c.l.b16 %v2209
    %v2726 = vunpack.c.l.b16 %v2210
    %v2727 = vunpack.c.l.b16 %v2211
    %v2728 = vunpack.c.l.b16 %v2212
    %v2729 = vunpack.c.l.b16 %v2213
    %v2730 = vunpack.c.l.b16 %v2214
    %v2731 = vunpack.c.l.b16 %v2215
    %v2732 = vunpack.c.l.b16 %v2216
    %v2733 = vunpack.c.l.b16 %v2217
    %v2734 = vunpack.c.l.b16 %v2218
    %v2735 = vunpack.c.l.b16 %v2219
    %v2736 = vunpack.c.l.b16 %v2220
    %v2737 = vunpack.c.l.b16 %v2221
    %v2738 = vunpack.c.l.b16 %v2222
    %v2739 = vunpack.c.l.b16 %v2223
    %v2740 = vunpack.c.l.b16 %v2224
    %v2741 = vunpack.c.l.b16 %v2225
    %v2742 = vunpack.c.l.b16 %v2226
    %v2743 = vunpack.c.l.b16 %v2227
    %v2744 = vunpack.c.l.b16 %v2228
    %v2745 = vunpack.c.l.b16 %v2229
    %v2746 = vunpack.c.l.b16 %v2230
    %v2747 = vunpack.c.l.b16 %v2231
    %v2748 = vunpack.c.l.b16 %v2232
    %v2749 = vunpack.c.l.b16 %v2233
    %v2750 = vunpack.c.l.b16 %v2234
    %v2751 = vunpack.c.l.b16 %v2235
    %v2752 = vunpack.c.l.b16 %v2236
    %v2753 = vunpack.c.l.b16 %v2237
    %v2754 = vunpack.c.l.b16 %v2238
    %v2755 = vunpack.c.l.b16 %v2239
    %v2756 = vunpack.c.l.b16 %v2240
    %v2757 = vunpack.c.l.b16 %v2241
    %v2758 = vunpack.c.l.b16 %v2242
    %v2759 = vunpack.c.l.b16 %v2243
    %v2760 = vunpack.c.l.b16 %v2244
    %v2761 = vunpack.c.l.b16 %v2245
    %v2762 = vunpack.c.l.b16 %v2246
    %v2763 = vunpack.c.l.b16 %v2247
    %v2764 = vunpack.c.l.b16 %v2248
    %v2765 = vunpack.c.l.b16 %v2249
    %v2766 = vunpack.c.l.b16 %v2250
    %v2767 = vunpack.c.l.b16 %v2251
    %v2768 = vunpack.c.l.b16 %v2252
    %v2769 = vunpack.c.l.b16 %v2253
    %v2770 = vunpack.c.l.b16 %v2254
    %v2771 = vunpack.c.l.b16 %v2255
    %v2772 = vunpack.c.l.b16 %v2256
    %v2773 = vunpack.c.l.b16 %v2257
    %v2774 = vunpack.c.l.b16 %v2258
    %v2775 = vunpack.c.l.b16 %v2259
    %v2776 = vunpack.c.l.b16 %v2260
    %v2777 = vunpack.c.l.b16 %v2261
    %v2778 = vunpack.c.l.b16 %v2262
    %v2779 = vunpack.c.l.b16 %v2263
    %v2780 = vunpack.c.l.b16 %v2264
    %v2781 = vunpack.c.l.b16 %v2265
    %v2782 = vunpack.c.l.b16 %v2266
    %v2783 = vunpack.c.l.b16 %v2267
    %v2784 = vunpack.c.l.b16 %v2268
    %v2785 = vunpack.c.l.b16 %v2269
    %v2786 = vunpack.c.l.b16 %v2270
    %v2787 = vunpack.c.l.b16 %v2271
    %v2788 = vunpack.c.l.b16 %v2272
    %v2789 = vunpack.c.l.b16 %v2273
    %v2790 = vunpack.c.l.b16 %v2274
    %v2791 = vunpack.c.l.b16 %v2275
    %v2792 = vunpack.c.l.b16 %v2276
    %v2793 = vpack.c.b16 %v2538, %v2537
    %v2794 = vpack.c.b16 %v2540, %v2539
    %v2795 = vpack.c.b16 %v2542, %v2541
    %v2796 = vpack.c.b16 %v2544, %v2543
    %v2797 = vpack.c.b16 %v2546, %v2545
    %v2798 = vpack.c.b16 %v2548, %v2547
    %v2799 = vpack.c.b16 %v2550, %v2549
    %v2800 = vpack.c.b16 %v2552, %v2551
    %v2801 = vpack.c.b16 %v2554, %v2553
    %v2802 = vpack.c.b16 %v2556, %v2555
    %v2803 = vpack.c.b16 %v2558, %v2557
    %v2804 = vpack.c.b16 %v2560, %v2559
    %v2805 = vpack.c.b16 %v2562, %v2561
    %v2806 = vpack.c.b16 %v2564, %v2563
    %v2807 = vpack.c.b16 %v2566, %v2565
    %v2808 = vpack.c.b16 %v2568, %v2567
    %v2809 = vpack.c.b16 %v2570, %v2569
    %v2810 = vpack.c.b16 %v2572, %v2571
    %v2811 = vpack.c.b16 %v2574, %v2573
    %v2812 = vpack.c.b16 %v2576, %v2575
    %v2813 = vpack.c.b16 %v2578, %v2577
    %v2814 = vpack.c.b16 %v2580, %v2579
    %v2815 = vpack.c.b16 %v2582, %v2581
    %v2816 = vpack.c.b16 %v2584, %v2583
    %v2817 = vpack.c.b16 %v2586, %v2585
    %v2818 = vpack.c.b16 %v2588, %v2587
    %v2819 = vpack.c.b16 %v2590, %v2589
    %v2820 = vpack.c.b16 %v2592, %v2591
    %v2821 = vpack.c.b16 %v2594, %v2593
    %v2822 = vpack.c.b16 %v2596, %v2595
    %v2823 = vpack.c.b16 %v2598, %v2597
    %v2824 = vpack.c.b16 %v2600, %v2599
    %v2825 = vpack.c.b16 %v2602, %v2601
    %v2826 = vpack.c.b16 %v2604, %v2603
    %v2827 = vpack.c.b16 %v2606, %v2605
    %v2828 = vpack.c.b16 %v2608, %v2607
    %v2829 = vpack.c.b16 %v2610, %v2609
    %v2830 = vpack.c.b16 %v2612, %v2611
    %v2831 = vpack.c.b16 %v2614, %v2613
    %v2832 = vpack.c.b16 %v2616, %v2615
    %v2833 = vpack.c.b16 %v2618, %v2617
    %v2834 = vpack.c.b16 %v2620, %v2619
    %v2835 = vpack.c.b16 %v2622, %v2621
    %v2836 = vpack.c.b16 %v2624, %v2623
    %v2837 = vpack.c.b16 %v2626, %v2625
    %v2838 = vpack.c.b16 %v2628, %v2627
    %v2839 = vpack.c.b16 %v2630, %v2629
    %v2840 = vpack.c.b16 %v2632, %v2631
    %v2841 = vpack.c.b16 %v2634, %v2633
    %v2842 = vpack.c.b16 %v2636, %v2635
    %v2843 = vpack.c.b16 %v2638, %v2637
    %v2844 = vpack.c.b16 %v2640, %v2639
    %v2845 = vpack.c.b16 %v2642, %v2641
    %v2846 = vpack.c.b16 %v2644, %v2643
    %v2847 = vpack.c.b16 %v2646, %v2645
    %v2848 = vpack.c.b16 %v2648, %v2647
    %v2849 = vpack.c.b16 %v2650, %v2649
    %v2850 = vpack.c.b16 %v2652, %v2651
    %v2851 = vpack.c.b16 %v2654, %v2653
    %v2852 = vpack.c.b16 %v2656, %v2655
    %v2853 = vpack.c.b16 %v2658, %v2657
    %v2854 = vpack.c.b16 %v2660, %v2659
    %v2855 = vpack.c.b16 %v2662, %v2661
    %v2856 = vpack.c.b16 %v2664, %v2663
    %v2857 = vpack.c.b16 %v2666, %v2665
    %v2858 = vpack.c.b16 %v2668, %v2667
    %v2859 = vpack.c.b16 %v2670, %v2669
    %v2860 = vpack.c.b16 %v2672, %v2671
    %v2861 = vpack.c.b16 %v2674, %v2673
    %v2862 = vpack.c.b16 %v2676, %v2675
    %v2863 = vpack.c.b16 %v2678, %v2677
    %v2864 = vpack.c.b16 %v2680, %v2679
    %v2865 = vpack.c.b16 %v2682, %v2681
    %v2866 = vpack.c.b16 %v2684, %v2683
    %v2867 = vpack.c.b16 %v2686, %v2685
    %v2868 = vpack.c.b16 %v2688, %v2687
    %v2869 = vpack.c.b16 %v2690, %v2689
    %v2870 = vpack.c.b16 %v2692, %v2691
    %v2871 = vpack.c.b16 %v2694, %v2693
    %v2872 = vpack.c.b16 %v2696, %v2695
    %v2873 = vpack.c.b16 %v2698, %v2697
    %v2874 = vpack.c.b16 %v2700, %v2699
    %v2875 = vpack.c.b16 %v2702, %v2701
    %v2876 = vpack.c.b16 %v2704, %v2703
    %v2877 = vpack.c.b16 %v2706, %v2705
    %v2878 = vpack.c.b16 %v2708, %v2707
    %v2879 = vpack.c.b16 %v2710, %v2709
    %v2880 = vpack.c.b16 %v2712, %v2711
    %v2881 = vpack.c.b16 %v2714, %v2713
    %v2882 = vpack.c.b16 %v2716, %v2715
    %v2883 = vpack.c.b16 %v2718, %v2717
    %v2884 = vpack.c.b16 %v2720, %v2719
    %v2885 = vpack.c.b16 %v2722, %v2721
    %v2886 = vpack.c.b16 %v2724, %v2723
    %v2887 = vpack.c.b16 %v2726, %v2725
    %v2888 = vpack.c.b16 %v2728, %v2727
    %v2889 = vpack.c.b16 %v2730, %v2729
    %v2890 = vpack.c.b16 %v2732, %v2731
    %v2891 = vpack.c.b16 %v2734, %v2733
    %v2892 = vpack.c.b16 %v2736, %v2735
    %v2893 = vpack.c.b16 %v2738, %v2737
    %v2894 = vpack.c.b16 %v2740, %v2739
    %v2895 = vpack.c.b16 %v2742, %v2741
    %v2896 = vpack.c.b16 %v2744, %v2743
    %v2897 = vpack.c.b16 %v2746, %v2745
    %v2898 = vpack.c.b16 %v2748, %v2747
    %v2899 = vpack.c.b16 %v2750, %v2749
    %v2900 = vpack.c.b16 %v2752, %v2751
    %v2901 = vpack.c.b16 %v2754, %v2753
    %v2902 = vpack.c.b16 %v2756, %v2755
    %v2903 = vpack.c.b16 %v2758, %v2757
    %v2904 = vpack.c.b16 %v2760, %v2759
    %v2905 = vpack.c.b16 %v2762, %v2761
    %v2906 = vpack.c.b16 %v2764, %v2763
    %v2907 = vpack.c.b16 %v2766, %v2765
    %v2908 = vpack.c.b16 %v2768, %v2767
    %v2909 = vpack.c.b16 %v2770, %v2769
    %v2910 = vpack.c.b16 %v2772, %v2771
    %v2911 = vpack.c.b16 %v2774, %v2773
    %v2912 = vpack.c.b16 %v2776, %v2775
    %v2913 = vpack.c.b16 %v2778, %v2777
    %v2914 = vpack.c.b16 %v2780, %v2779
    %v2915 = vpack.c.b16 %v2782, %v2781
    %v2916 = vpack.c.b16 %v2784, %v2783
    %v2917 = vpack.c.b16 %v2786, %v2785
    %v2918 = vpack.c.b16 %v2788, %v2787
    %v2919 = vpack.c.b16 %v2790, %v2789
    %v2920 = vpack.c.b16 %v2792, %v2791
    %3049 = vmatprep.subr.bf16.mxu0 0
    %3050 = vmatpush1.bf16.msra.mxu0 %v2800
    %3051 = vmatprep.subr.bf16.mxu0 0
    %3052 = vmatpush1.bf16.msra.mxu0 %v2799
    %3053 = vmatprep.subr.bf16.mxu0 0
    %3054 = vmatpush1.bf16.msra.mxu0 %v2798
    %3055 = vmatprep.subr.bf16.mxu0 0
    %3056 = vmatpush1.bf16.msra.mxu0 %v2797
    %3057 = vmatprep.subr.bf16.mxu0 0
    %3058 = vmatpush1.bf16.msra.mxu0 %v2796
    %3059 = vmatprep.subr.bf16.mxu0 0
    %3060 = vmatpush1.bf16.msra.mxu0 %v2795
    %3061 = vmatprep.subr.bf16.mxu0 0
    %3062 = vmatpush1.bf16.msra.mxu0 %v2794
    %3063 = vmatprep.subr.bf16.mxu0 0
    %3064 = vmatpush1.bf16.msra.mxu0 %v2793
    %3065 = vmatprep.subr.bf16.mxu0 0
    %3066 = vmatpush2.bf16.msra.mxu0 %v2808
    %3067 = vmatprep.subr.bf16.mxu0 0
    %3068 = vmatpush2.bf16.msra.mxu0 %v2807
    %3069 = vmatprep.subr.bf16.mxu0 0
    %3070 = vmatpush2.bf16.msra.mxu0 %v2806
    %3071 = vmatprep.subr.bf16.mxu0 0
    %3072 = vmatpush2.bf16.msra.mxu0 %v2805
    %3073 = vmatprep.subr.bf16.mxu0 0
    %3074 = vmatpush2.bf16.msra.mxu0 %v2804
    %3075 = vmatprep.subr.bf16.mxu0 0
    %3076 = vmatpush2.bf16.msra.mxu0 %v2803
    %3077 = vmatprep.subr.bf16.mxu0 0
    %3078 = vmatpush2.bf16.msra.mxu0 %v2802
    %3079 = vmatprep.subr.bf16.mxu0 0
    %3080 = vmatpush2.bf16.msra.mxu0 %v2801
    %3081 = vmatprep.mubr.bf16.mxu0 %v2006
    %3082 = vmatmul.mubr.bf16.gmra.mxu0 %v2005
    %v3083 = vpop.f32.mrf.mxu0
    %v3084 = vadd.f32 %v2280, %v3083
    %v3085 = vpop.f32.mrf.mxu0
    %v3086 = vpop.f32.mrf.mxu0
    %v3087 = vadd.f32 %v2280, %v3086
    %v3088 = vpop.f32.mrf.mxu0
    %3089 = vdwg.mxu0
    %3090 = vmatprep.subr.bf16.mxu0 0
    %3091 = vmatpush1.bf16.msra.mxu0 %v2816
    %3092 = vmatprep.subr.bf16.mxu0 0
    %3093 = vmatpush1.bf16.msra.mxu0 %v2815
    %3094 = vmatprep.subr.bf16.mxu0 0
    %3095 = vmatpush1.bf16.msra.mxu0 %v2814
    %3096 = vmatprep.subr.bf16.mxu0 0
    %3097 = vmatpush1.bf16.msra.mxu0 %v2813
    %3098 = vmatprep.subr.bf16.mxu0 0
    %3099 = vmatpush1.bf16.msra.mxu0 %v2812
    %3100 = vmatprep.subr.bf16.mxu0 0
    %3101 = vmatpush1.bf16.msra.mxu0 %v2811
    %3102 = vmatprep.subr.bf16.mxu0 0
    %3103 = vmatpush1.bf16.msra.mxu0 %v2810
    %3104 = vmatprep.subr.bf16.mxu0 0
    %3105 = vmatpush1.bf16.msra.mxu0 %v2809
    %3106 = vmatprep.subr.bf16.mxu0 0
    %3107 = vmatpush2.bf16.msra.mxu0 %v2824
    %3108 = vmatprep.subr.bf16.mxu0 0
    %3109 = vmatpush2.bf16.msra.mxu0 %v2823
    %3110 = vmatprep.subr.bf16.mxu0 0
    %3111 = vmatpush2.bf16.msra.mxu0 %v2822
    %3112 = vmatprep.subr.bf16.mxu0 0
    %3113 = vmatpush2.bf16.msra.mxu0 %v2821
    %3114 = vmatprep.subr.bf16.mxu0 0
    %3115 = vmatpush2.bf16.msra.mxu0 %v2820
    %3116 = vmatprep.subr.bf16.mxu0 0
    %3117 = vmatpush2.bf16.msra.mxu0 %v2819
    %3118 = vmatprep.subr.bf16.mxu0 0
    %3119 = vmatpush2.bf16.msra.mxu0 %v2818
    %3120 = vmatprep.subr.bf16.mxu0 0
    %3121 = vmatpush2.bf16.msra.mxu0 %v2817
    %3122 = vmatprep.mubr.bf16.mxu0 %v2008
    %3123 = vmatmul.mubr.bf16.gmra.mxu0 %v2007
    %v3124 = vpop.f32.mrf.mxu0
    %v3125 = vadd.f32 %v3084, %v3124
    %v3126 = vpop.f32.mrf.mxu0
    %v3127 = vpop.f32.mrf.mxu0
    %v3128 = vadd.f32 %v3087, %v3127
    %v3129 = vpop.f32.mrf.mxu0
    %3130 = vdwg.mxu0
    %3131 = vmatprep.subr.bf16.mxu0 0
    %3132 = vmatpush1.bf16.msra.mxu0 %v2832
    %3133 = vmatprep.subr.bf16.mxu0 0
    %3134 = vmatpush1.bf16.msra.mxu0 %v2831
    %3135 = vmatprep.subr.bf16.mxu0 0
    %3136 = vmatpush1.bf16.msra.mxu0 %v2830
    %3137 = vmatprep.subr.bf16.mxu0 0
    %3138 = vmatpush1.bf16.msra.mxu0 %v2829
    %3139 = vmatprep.subr.bf16.mxu0 0
    %3140 = vmatpush1.bf16.msra.mxu0 %v2828
    %3141 = vmatprep.subr.bf16.mxu0 0
    %3142 = vmatpush1.bf16.msra.mxu0 %v2827
    %3143 = vmatprep.subr.bf16.mxu0 0
    %3144 = vmatpush1.bf16.msra.mxu0 %v2826
    %3145 = vmatprep.subr.bf16.mxu0 0
    %3146 = vmatpush1.bf16.msra.mxu0 %v2825
    %3147 = vmatprep.subr.bf16.mxu0 0
    %3148 = vmatpush2.bf16.msra.mxu0 %v2840
    %3149 = vmatprep.subr.bf16.mxu0 0
    %3150 = vmatpush2.bf16.msra.mxu0 %v2839
    %3151 = vmatprep.subr.bf16.mxu0 0
    %3152 = vmatpush2.bf16.msra.mxu0 %v2838
    %3153 = vmatprep.subr.bf16.mxu0 0
    %3154 = vmatpush2.bf16.msra.mxu0 %v2837
    %3155 = vmatprep.subr.bf16.mxu0 0
    %3156 = vmatpush2.bf16.msra.mxu0 %v2836
    %3157 = vmatprep.subr.bf16.mxu0 0
    %3158 = vmatpush2.bf16.msra.mxu0 %v2835
    %3159 = vmatprep.subr.bf16.mxu0 0
    %3160 = vmatpush2.bf16.msra.mxu0 %v2834
    %3161 = vmatprep.subr.bf16.mxu0 0
    %3162 = vmatpush2.bf16.msra.mxu0 %v2833
    %3163 = vmatprep.mubr.bf16.mxu0 %v2010
    %3164 = vmatmul.mubr.bf16.gmra.mxu0 %v2009
    %v3165 = vpop.f32.mrf.mxu0
    %v3166 = vadd.f32 %v3125, %v3165
    %v3167 = vpop.f32.mrf.mxu0
    %v3168 = vpop.f32.mrf.mxu0
    %v3169 = vadd.f32 %v3128, %v3168
    %v3170 = vpop.f32.mrf.mxu0
    %3171 = vdwg.mxu0
    %3172 = vmatprep.subr.bf16.mxu0 0
    %3173 = vmatpush1.bf16.msra.mxu0 %v2848
    %3174 = vmatprep.subr.bf16.mxu0 0
    %3175 = vmatpush1.bf16.msra.mxu0 %v2847
    %3176 = vmatprep.subr.bf16.mxu0 0
    %3177 = vmatpush1.bf16.msra.mxu0 %v2846
    %3178 = vmatprep.subr.bf16.mxu0 0
    %3179 = vmatpush1.bf16.msra.mxu0 %v2845
    %3180 = vmatprep.subr.bf16.mxu0 0
    %3181 = vmatpush1.bf16.msra.mxu0 %v2844
    %3182 = vmatprep.subr.bf16.mxu0 0
    %3183 = vmatpush1.bf16.msra.mxu0 %v2843
    %3184 = vmatprep.subr.bf16.mxu0 0
    %3185 = vmatpush1.bf16.msra.mxu0 %v2842
    %3186 = vmatprep.subr.bf16.mxu0 0
    %3187 = vmatpush1.bf16.msra.mxu0 %v2841
    %3188 = vmatprep.subr.bf16.mxu0 0
    %3189 = vmatpush2.bf16.msra.mxu0 %v2856
    %3190 = vmatprep.subr.bf16.mxu0 0
    %3191 = vmatpush2.bf16.msra.mxu0 %v2855
    %3192 = vmatprep.subr.bf16.mxu0 0
    %3193 = vmatpush2.bf16.msra.mxu0 %v2854
    %3194 = vmatprep.subr.bf16.mxu0 0
    %3195 = vmatpush2.bf16.msra.mxu0 %v2853
    %3196 = vmatprep.subr.bf16.mxu0 0
    %3197 = vmatpush2.bf16.msra.mxu0 %v2852
    %3198 = vmatprep.subr.bf16.mxu0 0
    %3199 = vmatpush2.bf16.msra.mxu0 %v2851
    %3200 = vmatprep.subr.bf16.mxu0 0
    %3201 = vmatpush2.bf16.msra.mxu0 %v2850
    %3202 = vmatprep.subr.bf16.mxu0 0
    %3203 = vmatpush2.bf16.msra.mxu0 %v2849
    %3204 = vmatprep.mubr.bf16.mxu0 %v2012
    %3205 = vmatmul.mubr.bf16.gmra.mxu0 %v2011
    %v3206 = vpop.f32.mrf.mxu0
    %v3207 = vadd.f32 %v3166, %v3206
    %v3208 = vpop.f32.mrf.mxu0
    %v3209 = vpop.f32.mrf.mxu0
    %v3210 = vadd.f32 %v3169, %v3209
    %v3211 = vpop.f32.mrf.mxu0
    %3212 = vdwg.mxu0
    %3213 = vmatprep.subr.bf16.mxu0 0
    %3214 = vmatpush1.bf16.msra.mxu0 %v2864
    %3215 = vmatprep.subr.bf16.mxu0 0
    %3216 = vmatpush1.bf16.msra.mxu0 %v2863
    %3217 = vmatprep.subr.bf16.mxu0 0
    %3218 = vmatpush1.bf16.msra.mxu0 %v2862
    %3219 = vmatprep.subr.bf16.mxu0 0
    %3220 = vmatpush1.bf16.msra.mxu0 %v2861
    %3221 = vmatprep.subr.bf16.mxu0 0
    %3222 = vmatpush1.bf16.msra.mxu0 %v2860
    %3223 = vmatprep.subr.bf16.mxu0 0
    %3224 = vmatpush1.bf16.msra.mxu0 %v2859
    %3225 = vmatprep.subr.bf16.mxu0 0
    %3226 = vmatpush1.bf16.msra.mxu0 %v2858
    %3227 = vmatprep.subr.bf16.mxu0 0
    %3228 = vmatpush1.bf16.msra.mxu0 %v2857
    %3229 = vmatprep.subr.bf16.mxu0 0
    %3230 = vmatpush2.bf16.msra.mxu0 %v2872
    %3231 = vmatprep.subr.bf16.mxu0 0
    %3232 = vmatpush2.bf16.msra.mxu0 %v2871
    %3233 = vmatprep.subr.bf16.mxu0 0
    %3234 = vmatpush2.bf16.msra.mxu0 %v2870
    %3235 = vmatprep.subr.bf16.mxu0 0
    %3236 = vmatpush2.bf16.msra.mxu0 %v2869
    %3237 = vmatprep.subr.bf16.mxu0 0
    %3238 = vmatpush2.bf16.msra.mxu0 %v2868
    %3239 = vmatprep.subr.bf16.mxu0 0
    %3240 = vmatpush2.bf16.msra.mxu0 %v2867
    %3241 = vmatprep.subr.bf16.mxu0 0
    %3242 = vmatpush2.bf16.msra.mxu0 %v2866
    %3243 = vmatprep.subr.bf16.mxu0 0
    %3244 = vmatpush2.bf16.msra.mxu0 %v2865
    %3245 = vmatprep.mubr.bf16.mxu0 %v2014
    %3246 = vmatmul.mubr.bf16.gmra.mxu0 %v2013
    %v3247 = vpop.f32.mrf.mxu0
    %v3248 = vadd.f32 %v3207, %v3247
    %v3249 = vpop.f32.mrf.mxu0
    %v3250 = vpop.f32.mrf.mxu0
    %v3251 = vadd.f32 %v3210, %v3250
    %v3252 = vpop.f32.mrf.mxu0
    %3253 = vdwg.mxu0
    %3254 = vmatprep.subr.bf16.mxu0 0
    %3255 = vmatpush1.bf16.msra.mxu0 %v2880
    %3256 = vmatprep.subr.bf16.mxu0 0
    %3257 = vmatpush1.bf16.msra.mxu0 %v2879
    %3258 = vmatprep.subr.bf16.mxu0 0
    %3259 = vmatpush1.bf16.msra.mxu0 %v2878
    %3260 = vmatprep.subr.bf16.mxu0 0
    %3261 = vmatpush1.bf16.msra.mxu0 %v2877
    %3262 = vmatprep.subr.bf16.mxu0 0
    %3263 = vmatpush1.bf16.msra.mxu0 %v2876
    %3264 = vmatprep.subr.bf16.mxu0 0
    %3265 = vmatpush1.bf16.msra.mxu0 %v2875
    %3266 = vmatprep.subr.bf16.mxu0 0
    %3267 = vmatpush1.bf16.msra.mxu0 %v2874
    %3268 = vmatprep.subr.bf16.mxu0 0
    %3269 = vmatpush1.bf16.msra.mxu0 %v2873
    %3270 = vmatprep.subr.bf16.mxu0 0
    %3271 = vmatpush2.bf16.msra.mxu0 %v2888
    %3272 = vmatprep.subr.bf16.mxu0 0
    %3273 = vmatpush2.bf16.msra.mxu0 %v2887
    %3274 = vmatprep.subr.bf16.mxu0 0
    %3275 = vmatpush2.bf16.msra.mxu0 %v2886
    %3276 = vmatprep.subr.bf16.mxu0 0
    %3277 = vmatpush2.bf16.msra.mxu0 %v2885
    %3278 = vmatprep.subr.bf16.mxu0 0
    %3279 = vmatpush2.bf16.msra.mxu0 %v2884
    %3280 = vmatprep.subr.bf16.mxu0 0
    %3281 = vmatpush2.bf16.msra.mxu0 %v2883
    %3282 = vmatprep.subr.bf16.mxu0 0
    %3283 = vmatpush2.bf16.msra.mxu0 %v2882
    %3284 = vmatprep.subr.bf16.mxu0 0
    %3285 = vmatpush2.bf16.msra.mxu0 %v2881
    %3286 = vmatprep.mubr.bf16.mxu0 %v2016
    %3287 = vmatmul.mubr.bf16.gmra.mxu0 %v2015
    %v3288 = vpop.f32.mrf.mxu0
    %v3289 = vadd.f32 %v3248, %v3288
    %v3290 = vpop.f32.mrf.mxu0
    %v3291 = vpop.f32.mrf.mxu0
    %v3292 = vadd.f32 %v3251, %v3291
    %v3293 = vpop.f32.mrf.mxu0
    %3294 = vdwg.mxu0
    %3295 = vmatprep.subr.bf16.mxu0 0
    %3296 = vmatpush1.bf16.msra.mxu0 %v2896
    %3297 = vmatprep.subr.bf16.mxu0 0
    %3298 = vmatpush1.bf16.msra.mxu0 %v2895
    %3299 = vmatprep.subr.bf16.mxu0 0
    %3300 = vmatpush1.bf16.msra.mxu0 %v2894
    %3301 = vmatprep.subr.bf16.mxu0 0
    %3302 = vmatpush1.bf16.msra.mxu0 %v2893
    %3303 = vmatprep.subr.bf16.mxu0 0
    %3304 = vmatpush1.bf16.msra.mxu0 %v2892
    %3305 = vmatprep.subr.bf16.mxu0 0
    %3306 = vmatpush1.bf16.msra.mxu0 %v2891
    %3307 = vmatprep.subr.bf16.mxu0 0
    %3308 = vmatpush1.bf16.msra.mxu0 %v2890
    %3309 = vmatprep.subr.bf16.mxu0 0
    %3310 = vmatpush1.bf16.msra.mxu0 %v2889
    %3311 = vmatprep.subr.bf16.mxu0 0
    %3312 = vmatpush2.bf16.msra.mxu0 %v2904
    %3313 = vmatprep.subr.bf16.mxu0 0
    %3314 = vmatpush2.bf16.msra.mxu0 %v2903
    %3315 = vmatprep.subr.bf16.mxu0 0
    %3316 = vmatpush2.bf16.msra.mxu0 %v2902
    %3317 = vmatprep.subr.bf16.mxu0 0
    %3318 = vmatpush2.bf16.msra.mxu0 %v2901
    %3319 = vmatprep.subr.bf16.mxu0 0
    %3320 = vmatpush2.bf16.msra.mxu0 %v2900
    %3321 = vmatprep.subr.bf16.mxu0 0
    %3322 = vmatpush2.bf16.msra.mxu0 %v2899
    %3323 = vmatprep.subr.bf16.mxu0 0
    %3324 = vmatpush2.bf16.msra.mxu0 %v2898
    %3325 = vmatprep.subr.bf16.mxu0 0
    %3326 = vmatpush2.bf16.msra.mxu0 %v2897
    %3327 = vmatprep.mubr.bf16.mxu0 %v2018
    %3328 = vmatmul.mubr.bf16.gmra.mxu0 %v2017
    %v3329 = vpop.f32.mrf.mxu0
    %v3330 = vadd.f32 %v3289, %v3329
    %v3331 = vpop.f32.mrf.mxu0
    %v3332 = vpop.f32.mrf.mxu0
    %v3333 = vadd.f32 %v3292, %v3332
    %v3334 = vpop.f32.mrf.mxu0
    %3335 = vdwg.mxu0
    %3336 = vmatprep.subr.bf16.mxu0 0
    %3337 = vmatpush1.bf16.msra.mxu0 %v2912
    %3338 = vmatprep.subr.bf16.mxu0 0
    %3339 = vmatpush1.bf16.msra.mxu0 %v2911
    %3340 = vmatprep.subr.bf16.mxu0 0
    %3341 = vmatpush1.bf16.msra.mxu0 %v2910
    %3342 = vmatprep.subr.bf16.mxu0 0
    %3343 = vmatpush1.bf16.msra.mxu0 %v2909
    %3344 = vmatprep.subr.bf16.mxu0 0
    %3345 = vmatpush1.bf16.msra.mxu0 %v2908
    %3346 = vmatprep.subr.bf16.mxu0 0
    %3347 = vmatpush1.bf16.msra.mxu0 %v2907
    %3348 = vmatprep.subr.bf16.mxu0 0
    %3349 = vmatpush1.bf16.msra.mxu0 %v2906
    %3350 = vmatprep.subr.bf16.mxu0 0
    %3351 = vmatpush1.bf16.msra.mxu0 %v2905
    %3352 = vmatprep.subr.bf16.mxu0 0
    %3353 = vmatpush2.bf16.msra.mxu0 %v2920
    %3354 = vmatprep.subr.bf16.mxu0 0
    %3355 = vmatpush2.bf16.msra.mxu0 %v2919
    %3356 = vmatprep.subr.bf16.mxu0 0
    %3357 = vmatpush2.bf16.msra.mxu0 %v2918
    %3358 = vmatprep.subr.bf16.mxu0 0
    %3359 = vmatpush2.bf16.msra.mxu0 %v2917
    %3360 = vmatprep.subr.bf16.mxu0 0
    %3361 = vmatpush2.bf16.msra.mxu0 %v2916
    %3362 = vmatprep.subr.bf16.mxu0 0
    %3363 = vmatpush2.bf16.msra.mxu0 %v2915
    %3364 = vmatprep.subr.bf16.mxu0 0
    %3365 = vmatpush2.bf16.msra.mxu0 %v2914
    %3366 = vmatprep.subr.bf16.mxu0 0
    %3367 = vmatpush2.bf16.msra.mxu0 %v2913
    %3368 = vmatprep.mubr.bf16.mxu0 %v2020
    %3369 = vmatmul.mubr.bf16.gmra.mxu0 %v2019
    %v3370 = vpop.f32.mrf.mxu0
    %v3371 = vadd.f32 %v3330, %v3370
    %v3372 = vpop.f32.mrf.mxu0
    %v3373 = vpop.f32.mrf.mxu0
    %v3374 = vadd.f32 %v3333, %v3373
    %v3375 = vpop.f32.mrf.mxu0
    %3376 = vdwg.mxu0
    %v3377 = vadd.f32 %v1283, %v3371
    %v3378 = vadd.f32 %v1284, %v3374
    %v3379 = vsel %vm58, %v3377, 0.0
    %3380 = vadd.xlane.f32.xlu0 %v3379
    %v3381 = vpop.xlane.xlu0 %3380
    %v3382 = vsel %vm58, %v3378, 0.0
    %3383 = vadd.xlane.f32.xlu0 %v3382
    %v3384 = vpop.xlane.xlu0 %3383
    %v3385 = vmul.f32 %v3381, %v1252
    %v3386 = vmul.f32 %v3384, %v1252
    %v3387 = vsub.f32 %v3377, %v3385
    %v3388 = vsub.f32 %v3378, %v3386
    %v3389 = vmul.f32 %v3387, %v3387
    %v3390 = vmul.f32 %v3388, %v3388
    %v3391 = vsel %vm58, %v3389, 0.0
    %3392 = vadd.xlane.f32.xlu0 %v3391
    %v3393 = vpop.xlane.xlu0 %3392
    %v3394 = vsel %vm58, %v3390, 0.0
    %3395 = vadd.xlane.f32.xlu0 %v3394
    %v3396 = vpop.xlane.xlu0 %3395
    %v3397 = vmul.f32 %v3393, %v1252
    %v3398 = vmul.f32 %v3396, %v1252
    %v3399 = vadd.f32 %v3397, 1e-05
    %v3400 = vadd.f32 %v3398, 1e-05
    %v3401 = vrsqrt.pop %v3399
    %v3402 = vrsqrt.pop %v3400
    %v3403 = vmul.f32 %v3387, %v3401
    %v3404 = vmul.f32 %v3388, %v3402
    %v3405 = vlaneseq
    %v3406 = vshrl.u32 %v3405, 7
    %v3407 = vsub.s32 7, %v3406
    %v3408 = vrot.slane %v30, %v3407
    %v3409 = vmul.f32 %v3403, %v3408
    %v3410 = vmul.f32 %v3404, %v3408
    %v3411 = vlaneseq
    %v3412 = vshrl.u32 %v3411, 7
    %v3413 = vsub.s32 0, %v3412
    %v3414 = vrot.slane %v31, %v3413
    %v3415 = vadd.f32 %v3409, %v3414
    %v3416 = vadd.f32 %v3410, %v3414
    %v3417 = vpack.c.bf16 %v3416, %v3415
    %s3418 = scalar_lea.vmem %s1, 48
    %v3419 = vld [vmem:[%s3418] sm:$0xf]
    %v3420 = vld [vmem:[%s3418 + $0x4] sm:$0xf]
    %v3421 = vld [vmem:[%s3418 + $0x8] sm:$0xf]
    %v3422 = vld [vmem:[%s3418 + $0xc] sm:$0xf]
    %v3423 = vlaneseq
    %v3424 = vshrl.u32 %v3423, 7
    %v3425 = vsub.s32 1, %v3424
    %v3426 = vrot.slane %v31, %v3425
    %v3431 = vunpack.c.l.b16 %v3419
    %v3432 = vunpack.c.l.b16 %v3420
    %v3433 = vunpack.c.l.b16 %v3421
    %v3434 = vunpack.c.l.b16 %v3422
    %v3435 = vpack.c.b16 %v3432, %v3431
    %v3436 = vpack.c.b16 %v3434, %v3433
    %v3440 = vsel %vm58, %v3417, 0
    %3442 = vmatprep.subr.bf16.mxu0 0
    %3443 = vmatpush1.bf16.msra.mxu0 0
    %3444 = vmatprep.subr.bf16.mxu0 0
    %3445 = vmatpush1.bf16.msra.mxu0 0
    %3446 = vmatprep.subr.bf16.mxu0 0
    %3447 = vmatpush1.bf16.msra.mxu0 0
    %3448 = vmatprep.subr.bf16.mxu0 0
    %3449 = vmatpush1.bf16.msra.mxu0 0
    %3450 = vmatprep.subr.bf16.mxu0 0
    %3451 = vmatpush1.bf16.msra.mxu0 0
    %3452 = vmatprep.subr.bf16.mxu0 0
    %3453 = vmatpush1.bf16.msra.mxu0 0
    %3454 = vmatprep.subr.bf16.mxu0 0
    %3455 = vmatpush1.bf16.msra.mxu0 %v3436
    %3456 = vmatprep.subr.bf16.mxu0 0
    %3457 = vmatpush1.bf16.msra.mxu0 %v3435
    %3458 = vmatprep.subr.bf16.mxu0 0
    %3459 = vmatpush2.bf16.msra.mxu0 0
    %3460 = vmatprep.subr.bf16.mxu0 0
    %3461 = vmatpush2.bf16.msra.mxu0 0
    %3462 = vmatprep.subr.bf16.mxu0 0
    %3463 = vmatpush2.bf16.msra.mxu0 0
    %3464 = vmatprep.subr.bf16.mxu0 0
    %3465 = vmatpush2.bf16.msra.mxu0 0
    %3466 = vmatprep.subr.bf16.mxu0 0
    %3467 = vmatpush2.bf16.msra.mxu0 0
    %3468 = vmatprep.subr.bf16.mxu0 0
    %3469 = vmatpush2.bf16.msra.mxu0 0
    %3470 = vmatprep.subr.bf16.mxu0 0
    %3471 = vmatpush2.bf16.msra.mxu0 0
    %3472 = vmatprep.subr.bf16.mxu0 0
    %3473 = vmatpush2.bf16.msra.mxu0 0
    %3474 = vmatprep.mubr.bf16.mxu0 0
    %3475 = vmatmul.mubr.bf16.gmra.mxu0 %v3440
    %v3476 = vpop.f32.mrf.mxu0
    %v3477 = vadd.f32 %v3426, %v3476
    %v3478 = vpop.f32.mrf.mxu0
    %v3479 = vpop.f32.mrf.mxu0
    %v3480 = vadd.f32 %v3426, %v3479
    %v3481 = vpop.f32.mrf.mxu0
    %3482 = vdwg.mxu0
    %v3483 = vmul.f32 %v3477, 0.35355338
    %v3484 = vmul.f32 %v3480, 0.35355338
    %s3485 = scalar_lea.vmem %s1, 64
    %v3486 = vld [vmem:[%s3485] sm:$0xf]
    %v3487 = vld [vmem:[%s3485 + $0x4] sm:$0xf]
    %v3488 = vld [vmem:[%s3485 + $0x8] sm:$0xf]
    %v3489 = vld [vmem:[%s3485 + $0xc] sm:$0xf]
    %v3490 = vlaneseq
    %v3491 = vshrl.u32 %v3490, 7
    %v3492 = vsub.s32 2, %v3491
    %v3493 = vrot.slane %v31, %v3492
    %v3498 = vunpack.c.l.b16 %v3486
    %v3499 = vunpack.c.l.b16 %v3487
    %v3500 = vunpack.c.l.b16 %v3488
    %v3501 = vunpack.c.l.b16 %v3489
    %v3502 = vpack.c.b16 %v3499, %v3498
    %v3503 = vpack.c.b16 %v3501, %v3500
    %3506 = vmatprep.subr.bf16.mxu0 0
    %3507 = vmatpush1.bf16.msra.mxu0 0
    %3508 = vmatprep.subr.bf16.mxu0 0
    %3509 = vmatpush1.bf16.msra.mxu0 0
    %3510 = vmatprep.subr.bf16.mxu0 0
    %3511 = vmatpush1.bf16.msra.mxu0 0
    %3512 = vmatprep.subr.bf16.mxu0 0
    %3513 = vmatpush1.bf16.msra.mxu0 0
    %3514 = vmatprep.subr.bf16.mxu0 0
    %3515 = vmatpush1.bf16.msra.mxu0 0
    %3516 = vmatprep.subr.bf16.mxu0 0
    %3517 = vmatpush1.bf16.msra.mxu0 0
    %3518 = vmatprep.subr.bf16.mxu0 0
    %3519 = vmatpush1.bf16.msra.mxu0 %v3503
    %3520 = vmatprep.subr.bf16.mxu0 0
    %3521 = vmatpush1.bf16.msra.mxu0 %v3502
    %3522 = vmatprep.subr.bf16.mxu0 0
    %3523 = vmatpush2.bf16.msra.mxu0 0
    %3524 = vmatprep.subr.bf16.mxu0 0
    %3525 = vmatpush2.bf16.msra.mxu0 0
    %3526 = vmatprep.subr.bf16.mxu0 0
    %3527 = vmatpush2.bf16.msra.mxu0 0
    %3528 = vmatprep.subr.bf16.mxu0 0
    %3529 = vmatpush2.bf16.msra.mxu0 0
    %3530 = vmatprep.subr.bf16.mxu0 0
    %3531 = vmatpush2.bf16.msra.mxu0 0
    %3532 = vmatprep.subr.bf16.mxu0 0
    %3533 = vmatpush2.bf16.msra.mxu0 0
    %3534 = vmatprep.subr.bf16.mxu0 0
    %3535 = vmatpush2.bf16.msra.mxu0 0
    %3536 = vmatprep.subr.bf16.mxu0 0
    %3537 = vmatpush2.bf16.msra.mxu0 0
    %3538 = vmatprep.mubr.bf16.mxu0 0
    %3539 = vmatmul.mubr.bf16.gmra.mxu0 %v3440
    %v3540 = vpop.f32.mrf.mxu0
    %v3541 = vadd.f32 %v3493, %v3540
    %v3542 = vpop.f32.mrf.mxu0
    %v3543 = vpop.f32.mrf.mxu0
    %v3544 = vadd.f32 %v3493, %v3543
    %v3545 = vpop.f32.mrf.mxu0
    %3546 = vdwg.mxu0
    %s3547 = scalar_lea.vmem %s1, 80
    %v3548 = vld [vmem:[%s3547] sm:$0xf]
    %v3549 = vld [vmem:[%s3547 + $0x4] sm:$0xf]
    %v3550 = vld [vmem:[%s3547 + $0x8] sm:$0xf]
    %v3551 = vld [vmem:[%s3547 + $0xc] sm:$0xf]
    %v3552 = vlaneseq
    %v3553 = vshrl.u32 %v3552, 7
    %v3554 = vsub.s32 3, %v3553
    %v3555 = vrot.slane %v31, %v3554
    %v3560 = vunpack.c.l.b16 %v3548
    %v3561 = vunpack.c.l.b16 %v3549
    %v3562 = vunpack.c.l.b16 %v3550
    %v3563 = vunpack.c.l.b16 %v3551
    %v3564 = vpack.c.b16 %v3561, %v3560
    %v3565 = vpack.c.b16 %v3563, %v3562
    %3568 = vmatprep.subr.bf16.mxu0 0
    %3569 = vmatpush1.bf16.msra.mxu0 0
    %3570 = vmatprep.subr.bf16.mxu0 0
    %3571 = vmatpush1.bf16.msra.mxu0 0
    %3572 = vmatprep.subr.bf16.mxu0 0
    %3573 = vmatpush1.bf16.msra.mxu0 0
    %3574 = vmatprep.subr.bf16.mxu0 0
    %3575 = vmatpush1.bf16.msra.mxu0 0
    %3576 = vmatprep.subr.bf16.mxu0 0
    %3577 = vmatpush1.bf16.msra.mxu0 0
    %3578 = vmatprep.subr.bf16.mxu0 0
    %3579 = vmatpush1.bf16.msra.mxu0 0
    %3580 = vmatprep.subr.bf16.mxu0 0
    %3581 = vmatpush1.bf16.msra.mxu0 %v3565
    %3582 = vmatprep.subr.bf16.mxu0 0
    %3583 = vmatpush1.bf16.msra.mxu0 %v3564
    %3584 = vmatprep.subr.bf16.mxu0 0
    %3585 = vmatpush2.bf16.msra.mxu0 0
    %3586 = vmatprep.subr.bf16.mxu0 0
    %3587 = vmatpush2.bf16.msra.mxu0 0
    %3588 = vmatprep.subr.bf16.mxu0 0
    %3589 = vmatpush2.bf16.msra.mxu0 0
    %3590 = vmatprep.subr.bf16.mxu0 0
    %3591 = vmatpush2.bf16.msra.mxu0 0
    %3592 = vmatprep.subr.bf16.mxu0 0
    %3593 = vmatpush2.bf16.msra.mxu0 0
    %3594 = vmatprep.subr.bf16.mxu0 0
    %3595 = vmatpush2.bf16.msra.mxu0 0
    %3596 = vmatprep.subr.bf16.mxu0 0
    %3597 = vmatpush2.bf16.msra.mxu0 0
    %3598 = vmatprep.subr.bf16.mxu0 0
    %3599 = vmatpush2.bf16.msra.mxu0 0
    %3600 = vmatprep.mubr.bf16.mxu0 0
    %3601 = vmatmul.mubr.bf16.gmra.mxu0 %v3440
    %v3602 = vpop.f32.mrf.mxu0
    %v3603 = vadd.f32 %v3555, %v3602
    %v3604 = vpop.f32.mrf.mxu0
    %v3605 = vpop.f32.mrf.mxu0
    %v3606 = vadd.f32 %v3555, %v3605
    %v3607 = vpop.f32.mrf.mxu0
    %3608 = vdwg.mxu0
    %3611 = vrot.lane.b32.xlu0 %v3483, 120
    %v3612 = vpop.permute.xlu0 %3611
    %3613 = vrot.lane.b32.xlu0 %v3484, 120
    %v3614 = vpop.permute.xlu0 %3613
    %3617 = vrot.lane.b32.xlu0 %v3483, 112
    %v3618 = vpop.permute.xlu0 %3617
    %3619 = vrot.lane.b32.xlu0 %v3484, 112
    %v3620 = vpop.permute.xlu0 %3619
    %3623 = vrot.lane.b32.xlu0 %v3483, 104
    %v3624 = vpop.permute.xlu0 %3623
    %3625 = vrot.lane.b32.xlu0 %v3484, 104
    %v3626 = vpop.permute.xlu0 %3625
    %v3629 = vpack.c.bf16 %v3483, %v3483
    %v3630 = vpack.c.bf16 %v3484, %v3484
    %v3631 = vpack.c.bf16 %v3612, %v3612
    %v3632 = vpack.c.bf16 %v3614, %v3614
    %v3633 = vpack.c.bf16 %v3618, %v3618
    %v3634 = vpack.c.bf16 %v3620, %v3620
    %v3635 = vpack.c.bf16 %v3624, %v3624
    %v3636 = vpack.c.bf16 %v3626, %v3626
    %3639 = vrot.lane.b32.xlu0 %v3541, 120
    %v3640 = vpop.permute.xlu0 %3639
    %3641 = vrot.lane.b32.xlu0 %v3544, 120
    %v3642 = vpop.permute.xlu0 %3641
    %3645 = vrot.lane.b32.xlu0 %v3541, 112
    %v3646 = vpop.permute.xlu0 %3645
    %3647 = vrot.lane.b32.xlu0 %v3544, 112
    %v3648 = vpop.permute.xlu0 %3647
    %3651 = vrot.lane.b32.xlu0 %v3541, 104
    %v3652 = vpop.permute.xlu0 %3651
    %3653 = vrot.lane.b32.xlu0 %v3544, 104
    %v3654 = vpop.permute.xlu0 %3653
    %v3657 = vpack.c.bf16 %v3541, %v3541
    %v3658 = vpack.c.bf16 %v3544, %v3544
    %v3659 = vpack.c.bf16 %v3640, %v3640
    %v3660 = vpack.c.bf16 %v3642, %v3642
    %v3661 = vpack.c.bf16 %v3646, %v3646
    %v3662 = vpack.c.bf16 %v3648, %v3648
    %v3663 = vpack.c.bf16 %v3652, %v3652
    %v3664 = vpack.c.bf16 %v3654, %v3654
    %3667 = vrot.lane.b32.xlu0 %v3603, 120
    %v3668 = vpop.permute.xlu0 %3667
    %3669 = vrot.lane.b32.xlu0 %v3606, 120
    %v3670 = vpop.permute.xlu0 %3669
    %3673 = vrot.lane.b32.xlu0 %v3603, 112
    %v3674 = vpop.permute.xlu0 %3673
    %3675 = vrot.lane.b32.xlu0 %v3606, 112
    %v3676 = vpop.permute.xlu0 %3675
    %3679 = vrot.lane.b32.xlu0 %v3603, 104
    %v3680 = vpop.permute.xlu0 %3679
    %3681 = vrot.lane.b32.xlu0 %v3606, 104
    %v3682 = vpop.permute.xlu0 %3681
    %v3685 = vpack.c.bf16 %v3603, %v3603
    %v3686 = vpack.c.bf16 %v3606, %v3606
    %v3687 = vpack.c.bf16 %v3668, %v3668
    %v3688 = vpack.c.bf16 %v3670, %v3670
    %v3689 = vpack.c.bf16 %v3674, %v3674
    %v3690 = vpack.c.bf16 %v3676, %v3676
    %v3691 = vpack.c.bf16 %v3680, %v3680
    %v3692 = vpack.c.bf16 %v3682, %v3682
    %v3694 = vsel %vm313, %v3629, 0
    %v3697 = vsel %vm313, %v3657, 0
    %3699 = vmatprep.subr.bf16.mxu0 0
    %3700 = vmatpush1.bf16.xpose.msra.mxu0 0
    %3701 = vmatprep.subr.bf16.mxu0 0
    %3702 = vmatpush1.bf16.xpose.msra.mxu0 0
    %3703 = vmatprep.subr.bf16.mxu0 0
    %3704 = vmatpush1.bf16.xpose.msra.mxu0 0
    %3705 = vmatprep.subr.bf16.mxu0 0
    %3706 = vmatpush1.bf16.xpose.msra.mxu0 0
    %3707 = vmatprep.subr.bf16.mxu0 0
    %3708 = vmatpush1.bf16.xpose.msra.mxu0 0
    %3709 = vmatprep.subr.bf16.mxu0 0
    %3710 = vmatpush1.bf16.xpose.msra.mxu0 0
    %3711 = vmatprep.subr.bf16.mxu0 0
    %3712 = vmatpush1.bf16.xpose.msra.mxu0 0
    %3713 = vmatprep.subr.bf16.mxu0 0
    %3714 = vmatpush1.bf16.xpose.msra.mxu0 %v3697
    %3715 = vmatprep.subr.bf16.mxu0 0
    %3716 = vmatpush2.bf16.xpose.msra.mxu0 0
    %3717 = vmatprep.subr.bf16.mxu0 0
    %3718 = vmatpush2.bf16.xpose.msra.mxu0 0
    %3719 = vmatprep.subr.bf16.mxu0 0
    %3720 = vmatpush2.bf16.xpose.msra.mxu0 0
    %3721 = vmatprep.subr.bf16.mxu0 0
    %3722 = vmatpush2.bf16.xpose.msra.mxu0 0
    %3723 = vmatprep.subr.bf16.mxu0 0
    %3724 = vmatpush2.bf16.xpose.msra.mxu0 0
    %3725 = vmatprep.subr.bf16.mxu0 0
    %3726 = vmatpush2.bf16.xpose.msra.mxu0 0
    %3727 = vmatprep.subr.bf16.mxu0 0
    %3728 = vmatpush2.bf16.xpose.msra.mxu0 0
    %3729 = vmatprep.subr.bf16.mxu0 0
    %3730 = vmatpush2.bf16.xpose.msra.mxu0 0
    %3731 = vmatprep.mubr.bf16.mxu0 0
    %3732 = vmatmul.mubr.bf16.gmra.mxu0 %v3694
    %v3733 = vpop.f32.mrf.mxu0
    %v3734 = vadd.f32 0.0, %v3733
    %v3735 = vpop.f32.mrf.mxu0
    %v3736 = vpop.f32.mrf.mxu0
    %v3737 = vpop.f32.mrf.mxu0
    %3738 = vdwg.mxu0
    %v3740 = vsel %vm313, %v3630, 0
    %v3743 = vsel %vm313, %v3658, 0
    %3745 = vmatprep.subr.bf16.mxu0 0
    %3746 = vmatpush1.bf16.xpose.msra.mxu0 0
    %3747 = vmatprep.subr.bf16.mxu0 0
    %3748 = vmatpush1.bf16.xpose.msra.mxu0 0
    %3749 = vmatprep.subr.bf16.mxu0 0
    %3750 = vmatpush1.bf16.xpose.msra.mxu0 0
    %3751 = vmatprep.subr.bf16.mxu0 0
    %3752 = vmatpush1.bf16.xpose.msra.mxu0 0
    %3753 = vmatprep.subr.bf16.mxu0 0
    %3754 = vmatpush1.bf16.xpose.msra.mxu0 0
    %3755 = vmatprep.subr.bf16.mxu0 0
    %3756 = vmatpush1.bf16.xpose.msra.mxu0 0
    %3757 = vmatprep.subr.bf16.mxu0 0
    %3758 = vmatpush1.bf16.xpose.msra.mxu0 0
    %3759 = vmatprep.subr.bf16.mxu0 0
    %3760 = vmatpush1.bf16.xpose.msra.mxu0 %v3743
    %3761 = vmatprep.subr.bf16.mxu0 0
    %3762 = vmatpush2.bf16.xpose.msra.mxu0 0
    %3763 = vmatprep.subr.bf16.mxu0 0
    %3764 = vmatpush2.bf16.xpose.msra.mxu0 0
    %3765 = vmatprep.subr.bf16.mxu0 0
    %3766 = vmatpush2.bf16.xpose.msra.mxu0 0
    %3767 = vmatprep.subr.bf16.mxu0 0
    %3768 = vmatpush2.bf16.xpose.msra.mxu0 0
    %3769 = vmatprep.subr.bf16.mxu0 0
    %3770 = vmatpush2.bf16.xpose.msra.mxu0 0
    %3771 = vmatprep.subr.bf16.mxu0 0
    %3772 = vmatpush2.bf16.xpose.msra.mxu0 0
    %3773 = vmatprep.subr.bf16.mxu0 0
    %3774 = vmatpush2.bf16.xpose.msra.mxu0 0
    %3775 = vmatprep.subr.bf16.mxu0 0
    %3776 = vmatpush2.bf16.xpose.msra.mxu0 0
    %3777 = vmatprep.mubr.bf16.mxu0 0
    %3778 = vmatmul.mubr.bf16.gmra.mxu0 %v3740
    %v3779 = vpop.f32.mrf.mxu0
    %v3780 = vadd.f32 0.0, %v3779
    %v3781 = vpop.f32.mrf.mxu0
    %v3782 = vpop.f32.mrf.mxu0
    %v3783 = vpop.f32.mrf.mxu0
    %3784 = vdwg.mxu0
    %v3786 = vsel %vm313, %v3631, 0
    %v3789 = vsel %vm313, %v3659, 0
    %3791 = vmatprep.subr.bf16.mxu0 0
    %3792 = vmatpush1.bf16.xpose.msra.mxu0 0
    %3793 = vmatprep.subr.bf16.mxu0 0
    %3794 = vmatpush1.bf16.xpose.msra.mxu0 0
    %3795 = vmatprep.subr.bf16.mxu0 0
    %3796 = vmatpush1.bf16.xpose.msra.mxu0 0
    %3797 = vmatprep.subr.bf16.mxu0 0
    %3798 = vmatpush1.bf16.xpose.msra.mxu0 0
    %3799 = vmatprep.subr.bf16.mxu0 0
    %3800 = vmatpush1.bf16.xpose.msra.mxu0 0
    %3801 = vmatprep.subr.bf16.mxu0 0
    %3802 = vmatpush1.bf16.xpose.msra.mxu0 0
    %3803 = vmatprep.subr.bf16.mxu0 0
    %3804 = vmatpush1.bf16.xpose.msra.mxu0 0
    %3805 = vmatprep.subr.bf16.mxu0 0
    %3806 = vmatpush1.bf16.xpose.msra.mxu0 %v3789
    %3807 = vmatprep.subr.bf16.mxu0 0
    %3808 = vmatpush2.bf16.xpose.msra.mxu0 0
    %3809 = vmatprep.subr.bf16.mxu0 0
    %3810 = vmatpush2.bf16.xpose.msra.mxu0 0
    %3811 = vmatprep.subr.bf16.mxu0 0
    %3812 = vmatpush2.bf16.xpose.msra.mxu0 0
    %3813 = vmatprep.subr.bf16.mxu0 0
    %3814 = vmatpush2.bf16.xpose.msra.mxu0 0
    %3815 = vmatprep.subr.bf16.mxu0 0
    %3816 = vmatpush2.bf16.xpose.msra.mxu0 0
    %3817 = vmatprep.subr.bf16.mxu0 0
    %3818 = vmatpush2.bf16.xpose.msra.mxu0 0
    %3819 = vmatprep.subr.bf16.mxu0 0
    %3820 = vmatpush2.bf16.xpose.msra.mxu0 0
    %3821 = vmatprep.subr.bf16.mxu0 0
    %3822 = vmatpush2.bf16.xpose.msra.mxu0 0
    %3823 = vmatprep.mubr.bf16.mxu0 0
    %3824 = vmatmul.mubr.bf16.gmra.mxu0 %v3786
    %v3825 = vpop.f32.mrf.mxu0
    %v3826 = vadd.f32 0.0, %v3825
    %v3827 = vpop.f32.mrf.mxu0
    %v3828 = vpop.f32.mrf.mxu0
    %v3829 = vpop.f32.mrf.mxu0
    %3830 = vdwg.mxu0
    %v3832 = vsel %vm313, %v3632, 0
    %v3835 = vsel %vm313, %v3660, 0
    %3837 = vmatprep.subr.bf16.mxu0 0
    %3838 = vmatpush1.bf16.xpose.msra.mxu0 0
    %3839 = vmatprep.subr.bf16.mxu0 0
    %3840 = vmatpush1.bf16.xpose.msra.mxu0 0
    %3841 = vmatprep.subr.bf16.mxu0 0
    %3842 = vmatpush1.bf16.xpose.msra.mxu0 0
    %3843 = vmatprep.subr.bf16.mxu0 0
    %3844 = vmatpush1.bf16.xpose.msra.mxu0 0
    %3845 = vmatprep.subr.bf16.mxu0 0
    %3846 = vmatpush1.bf16.xpose.msra.mxu0 0
    %3847 = vmatprep.subr.bf16.mxu0 0
    %3848 = vmatpush1.bf16.xpose.msra.mxu0 0
    %3849 = vmatprep.subr.bf16.mxu0 0
    %3850 = vmatpush1.bf16.xpose.msra.mxu0 0
    %3851 = vmatprep.subr.bf16.mxu0 0
    %3852 = vmatpush1.bf16.xpose.msra.mxu0 %v3835
    %3853 = vmatprep.subr.bf16.mxu0 0
    %3854 = vmatpush2.bf16.xpose.msra.mxu0 0
    %3855 = vmatprep.subr.bf16.mxu0 0
    %3856 = vmatpush2.bf16.xpose.msra.mxu0 0
    %3857 = vmatprep.subr.bf16.mxu0 0
    %3858 = vmatpush2.bf16.xpose.msra.mxu0 0
    %3859 = vmatprep.subr.bf16.mxu0 0
    %3860 = vmatpush2.bf16.xpose.msra.mxu0 0
    %3861 = vmatprep.subr.bf16.mxu0 0
    %3862 = vmatpush2.bf16.xpose.msra.mxu0 0
    %3863 = vmatprep.subr.bf16.mxu0 0
    %3864 = vmatpush2.bf16.xpose.msra.mxu0 0
    %3865 = vmatprep.subr.bf16.mxu0 0
    %3866 = vmatpush2.bf16.xpose.msra.mxu0 0
    %3867 = vmatprep.subr.bf16.mxu0 0
    %3868 = vmatpush2.bf16.xpose.msra.mxu0 0
    %3869 = vmatprep.mubr.bf16.mxu0 0
    %3870 = vmatmul.mubr.bf16.gmra.mxu0 %v3832
    %v3871 = vpop.f32.mrf.mxu0
    %v3872 = vadd.f32 0.0, %v3871
    %v3873 = vpop.f32.mrf.mxu0
    %v3874 = vpop.f32.mrf.mxu0
    %v3875 = vpop.f32.mrf.mxu0
    %3876 = vdwg.mxu0
    %v3878 = vsel %vm313, %v3633, 0
    %v3881 = vsel %vm313, %v3661, 0
    %3883 = vmatprep.subr.bf16.mxu0 0
    %3884 = vmatpush1.bf16.xpose.msra.mxu0 0
    %3885 = vmatprep.subr.bf16.mxu0 0
    %3886 = vmatpush1.bf16.xpose.msra.mxu0 0
    %3887 = vmatprep.subr.bf16.mxu0 0
    %3888 = vmatpush1.bf16.xpose.msra.mxu0 0
    %3889 = vmatprep.subr.bf16.mxu0 0
    %3890 = vmatpush1.bf16.xpose.msra.mxu0 0
    %3891 = vmatprep.subr.bf16.mxu0 0
    %3892 = vmatpush1.bf16.xpose.msra.mxu0 0
    %3893 = vmatprep.subr.bf16.mxu0 0
    %3894 = vmatpush1.bf16.xpose.msra.mxu0 0
    %3895 = vmatprep.subr.bf16.mxu0 0
    %3896 = vmatpush1.bf16.xpose.msra.mxu0 0
    %3897 = vmatprep.subr.bf16.mxu0 0
    %3898 = vmatpush1.bf16.xpose.msra.mxu0 %v3881
    %3899 = vmatprep.subr.bf16.mxu0 0
    %3900 = vmatpush2.bf16.xpose.msra.mxu0 0
    %3901 = vmatprep.subr.bf16.mxu0 0
    %3902 = vmatpush2.bf16.xpose.msra.mxu0 0
    %3903 = vmatprep.subr.bf16.mxu0 0
    %3904 = vmatpush2.bf16.xpose.msra.mxu0 0
    %3905 = vmatprep.subr.bf16.mxu0 0
    %3906 = vmatpush2.bf16.xpose.msra.mxu0 0
    %3907 = vmatprep.subr.bf16.mxu0 0
    %3908 = vmatpush2.bf16.xpose.msra.mxu0 0
    %3909 = vmatprep.subr.bf16.mxu0 0
    %3910 = vmatpush2.bf16.xpose.msra.mxu0 0
    %3911 = vmatprep.subr.bf16.mxu0 0
    %3912 = vmatpush2.bf16.xpose.msra.mxu0 0
    %3913 = vmatprep.subr.bf16.mxu0 0
    %3914 = vmatpush2.bf16.xpose.msra.mxu0 0
    %3915 = vmatprep.mubr.bf16.mxu0 0
    %3916 = vmatmul.mubr.bf16.gmra.mxu0 %v3878
    %v3917 = vpop.f32.mrf.mxu0
    %v3918 = vadd.f32 0.0, %v3917
    %v3919 = vpop.f32.mrf.mxu0
    %v3920 = vpop.f32.mrf.mxu0
    %v3921 = vpop.f32.mrf.mxu0
    %3922 = vdwg.mxu0
    %v3924 = vsel %vm313, %v3634, 0
    %v3927 = vsel %vm313, %v3662, 0
    %3929 = vmatprep.subr.bf16.mxu0 0
    %3930 = vmatpush1.bf16.xpose.msra.mxu0 0
    %3931 = vmatprep.subr.bf16.mxu0 0
    %3932 = vmatpush1.bf16.xpose.msra.mxu0 0
    %3933 = vmatprep.subr.bf16.mxu0 0
    %3934 = vmatpush1.bf16.xpose.msra.mxu0 0
    %3935 = vmatprep.subr.bf16.mxu0 0
    %3936 = vmatpush1.bf16.xpose.msra.mxu0 0
    %3937 = vmatprep.subr.bf16.mxu0 0
    %3938 = vmatpush1.bf16.xpose.msra.mxu0 0
    %3939 = vmatprep.subr.bf16.mxu0 0
    %3940 = vmatpush1.bf16.xpose.msra.mxu0 0
    %3941 = vmatprep.subr.bf16.mxu0 0
    %3942 = vmatpush1.bf16.xpose.msra.mxu0 0
    %3943 = vmatprep.subr.bf16.mxu0 0
    %3944 = vmatpush1.bf16.xpose.msra.mxu0 %v3927
    %3945 = vmatprep.subr.bf16.mxu0 0
    %3946 = vmatpush2.bf16.xpose.msra.mxu0 0
    %3947 = vmatprep.subr.bf16.mxu0 0
    %3948 = vmatpush2.bf16.xpose.msra.mxu0 0
    %3949 = vmatprep.subr.bf16.mxu0 0
    %3950 = vmatpush2.bf16.xpose.msra.mxu0 0
    %3951 = vmatprep.subr.bf16.mxu0 0
    %3952 = vmatpush2.bf16.xpose.msra.mxu0 0
    %3953 = vmatprep.subr.bf16.mxu0 0
    %3954 = vmatpush2.bf16.xpose.msra.mxu0 0
    %3955 = vmatprep.subr.bf16.mxu0 0
    %3956 = vmatpush2.bf16.xpose.msra.mxu0 0
    %3957 = vmatprep.subr.bf16.mxu0 0
    %3958 = vmatpush2.bf16.xpose.msra.mxu0 0
    %3959 = vmatprep.subr.bf16.mxu0 0
    %3960 = vmatpush2.bf16.xpose.msra.mxu0 0
    %3961 = vmatprep.mubr.bf16.mxu0 0
    %3962 = vmatmul.mubr.bf16.gmra.mxu0 %v3924
    %v3963 = vpop.f32.mrf.mxu0
    %v3964 = vadd.f32 0.0, %v3963
    %v3965 = vpop.f32.mrf.mxu0
    %v3966 = vpop.f32.mrf.mxu0
    %v3967 = vpop.f32.mrf.mxu0
    %3968 = vdwg.mxu0
    %v3970 = vsel %vm313, %v3635, 0
    %v3973 = vsel %vm313, %v3663, 0
    %3975 = vmatprep.subr.bf16.mxu0 0
    %3976 = vmatpush1.bf16.xpose.msra.mxu0 0
    %3977 = vmatprep.subr.bf16.mxu0 0
    %3978 = vmatpush1.bf16.xpose.msra.mxu0 0
    %3979 = vmatprep.subr.bf16.mxu0 0
    %3980 = vmatpush1.bf16.xpose.msra.mxu0 0
    %3981 = vmatprep.subr.bf16.mxu0 0
    %3982 = vmatpush1.bf16.xpose.msra.mxu0 0
    %3983 = vmatprep.subr.bf16.mxu0 0
    %3984 = vmatpush1.bf16.xpose.msra.mxu0 0
    %3985 = vmatprep.subr.bf16.mxu0 0
    %3986 = vmatpush1.bf16.xpose.msra.mxu0 0
    %3987 = vmatprep.subr.bf16.mxu0 0
    %3988 = vmatpush1.bf16.xpose.msra.mxu0 0
    %3989 = vmatprep.subr.bf16.mxu0 0
    %3990 = vmatpush1.bf16.xpose.msra.mxu0 %v3973
    %3991 = vmatprep.subr.bf16.mxu0 0
    %3992 = vmatpush2.bf16.xpose.msra.mxu0 0
    %3993 = vmatprep.subr.bf16.mxu0 0
    %3994 = vmatpush2.bf16.xpose.msra.mxu0 0
    %3995 = vmatprep.subr.bf16.mxu0 0
    %3996 = vmatpush2.bf16.xpose.msra.mxu0 0
    %3997 = vmatprep.subr.bf16.mxu0 0
    %3998 = vmatpush2.bf16.xpose.msra.mxu0 0
    %3999 = vmatprep.subr.bf16.mxu0 0
    %4000 = vmatpush2.bf16.xpose.msra.mxu0 0
    %4001 = vmatprep.subr.bf16.mxu0 0
    %4002 = vmatpush2.bf16.xpose.msra.mxu0 0
    %4003 = vmatprep.subr.bf16.mxu0 0
    %4004 = vmatpush2.bf16.xpose.msra.mxu0 0
    %4005 = vmatprep.subr.bf16.mxu0 0
    %4006 = vmatpush2.bf16.xpose.msra.mxu0 0
    %4007 = vmatprep.mubr.bf16.mxu0 0
    %4008 = vmatmul.mubr.bf16.gmra.mxu0 %v3970
    %v4009 = vpop.f32.mrf.mxu0
    %v4010 = vadd.f32 0.0, %v4009
    %v4011 = vpop.f32.mrf.mxu0
    %v4012 = vpop.f32.mrf.mxu0
    %v4013 = vpop.f32.mrf.mxu0
    %4014 = vdwg.mxu0
    %v4016 = vsel %vm313, %v3636, 0
    %v4019 = vsel %vm313, %v3664, 0
    %4021 = vmatprep.subr.bf16.mxu0 0
    %4022 = vmatpush1.bf16.xpose.msra.mxu0 0
    %4023 = vmatprep.subr.bf16.mxu0 0
    %4024 = vmatpush1.bf16.xpose.msra.mxu0 0
    %4025 = vmatprep.subr.bf16.mxu0 0
    %4026 = vmatpush1.bf16.xpose.msra.mxu0 0
    %4027 = vmatprep.subr.bf16.mxu0 0
    %4028 = vmatpush1.bf16.xpose.msra.mxu0 0
    %4029 = vmatprep.subr.bf16.mxu0 0
    %4030 = vmatpush1.bf16.xpose.msra.mxu0 0
    %4031 = vmatprep.subr.bf16.mxu0 0
    %4032 = vmatpush1.bf16.xpose.msra.mxu0 0
    %4033 = vmatprep.subr.bf16.mxu0 0
    %4034 = vmatpush1.bf16.xpose.msra.mxu0 0
    %4035 = vmatprep.subr.bf16.mxu0 0
    %4036 = vmatpush1.bf16.xpose.msra.mxu0 %v4019
    %4037 = vmatprep.subr.bf16.mxu0 0
    %4038 = vmatpush2.bf16.xpose.msra.mxu0 0
    %4039 = vmatprep.subr.bf16.mxu0 0
    %4040 = vmatpush2.bf16.xpose.msra.mxu0 0
    %4041 = vmatprep.subr.bf16.mxu0 0
    %4042 = vmatpush2.bf16.xpose.msra.mxu0 0
    %4043 = vmatprep.subr.bf16.mxu0 0
    %4044 = vmatpush2.bf16.xpose.msra.mxu0 0
    %4045 = vmatprep.subr.bf16.mxu0 0
    %4046 = vmatpush2.bf16.xpose.msra.mxu0 0
    %4047 = vmatprep.subr.bf16.mxu0 0
    %4048 = vmatpush2.bf16.xpose.msra.mxu0 0
    %4049 = vmatprep.subr.bf16.mxu0 0
    %4050 = vmatpush2.bf16.xpose.msra.mxu0 0
    %4051 = vmatprep.subr.bf16.mxu0 0
    %4052 = vmatpush2.bf16.xpose.msra.mxu0 0
    %4053 = vmatprep.mubr.bf16.mxu0 0
    %4054 = vmatmul.mubr.bf16.gmra.mxu0 %v4016
    %v4055 = vpop.f32.mrf.mxu0
    %v4056 = vadd.f32 0.0, %v4055
    %v4057 = vpop.f32.mrf.mxu0
    %v4058 = vpop.f32.mrf.mxu0
    %v4059 = vpop.f32.mrf.mxu0
    %4060 = vdwg.mxu0
    %v4061 = vsel %vm313, %v3734, -inf
    %4062 = vmax.xlane.f32.xlu0 %v4061
    %v4063 = vpop.xlane.xlu0 %4062
    %v4064 = vsel %vm313, %v3780, -inf
    %4065 = vmax.xlane.f32.xlu0 %v4064
    %v4066 = vpop.xlane.xlu0 %4065
    %v4067 = vsel %vm313, %v3826, -inf
    %4068 = vmax.xlane.f32.xlu0 %v4067
    %v4069 = vpop.xlane.xlu0 %4068
    %v4070 = vsel %vm313, %v3872, -inf
    %4071 = vmax.xlane.f32.xlu0 %v4070
    %v4072 = vpop.xlane.xlu0 %4071
    %v4073 = vsel %vm313, %v3918, -inf
    %4074 = vmax.xlane.f32.xlu0 %v4073
    %v4075 = vpop.xlane.xlu0 %4074
    %v4076 = vsel %vm313, %v3964, -inf
    %4077 = vmax.xlane.f32.xlu0 %v4076
    %v4078 = vpop.xlane.xlu0 %4077
    %v4079 = vsel %vm313, %v4010, -inf
    %4080 = vmax.xlane.f32.xlu0 %v4079
    %v4081 = vpop.xlane.xlu0 %4080
    %v4082 = vsel %vm313, %v4056, -inf
    %4083 = vmax.xlane.f32.xlu0 %v4082
    %v4084 = vpop.xlane.xlu0 %4083
    %v4085 = vsub.f32 %v3734, %v4063
    %v4086 = vsub.f32 %v3780, %v4066
    %v4087 = vsub.f32 %v3826, %v4069
    %v4088 = vsub.f32 %v3872, %v4072
    %v4089 = vsub.f32 %v3918, %v4075
    %v4090 = vsub.f32 %v3964, %v4078
    %v4091 = vsub.f32 %v4010, %v4081
    %v4092 = vsub.f32 %v4056, %v4084
    %v4093 = vmul.f32 %v4085, 1.442695
    %v4094 = vpow.pop %v4093
    %v4095 = vmul.f32 %v4086, 1.442695
    %v4096 = vpow.pop %v4095
    %v4097 = vmul.f32 %v4087, 1.442695
    %v4098 = vpow.pop %v4097
    %v4099 = vmul.f32 %v4088, 1.442695
    %v4100 = vpow.pop %v4099
    %v4101 = vmul.f32 %v4089, 1.442695
    %v4102 = vpow.pop %v4101
    %v4103 = vmul.f32 %v4090, 1.442695
    %v4104 = vpow.pop %v4103
    %v4105 = vmul.f32 %v4091, 1.442695
    %v4106 = vpow.pop %v4105
    %v4107 = vmul.f32 %v4092, 1.442695
    %v4108 = vpow.pop %v4107
    %v4109 = vsel %vm313, %v4094, 0.0
    %4110 = vadd.xlane.f32.xlu0 %v4109
    %v4111 = vpop.xlane.xlu0 %4110
    %v4112 = vsel %vm313, %v4096, 0.0
    %4113 = vadd.xlane.f32.xlu0 %v4112
    %v4114 = vpop.xlane.xlu0 %4113
    %v4115 = vsel %vm313, %v4098, 0.0
    %4116 = vadd.xlane.f32.xlu0 %v4115
    %v4117 = vpop.xlane.xlu0 %4116
    %v4118 = vsel %vm313, %v4100, 0.0
    %4119 = vadd.xlane.f32.xlu0 %v4118
    %v4120 = vpop.xlane.xlu0 %4119
    %v4121 = vsel %vm313, %v4102, 0.0
    %4122 = vadd.xlane.f32.xlu0 %v4121
    %v4123 = vpop.xlane.xlu0 %4122
    %v4124 = vsel %vm313, %v4104, 0.0
    %4125 = vadd.xlane.f32.xlu0 %v4124
    %v4126 = vpop.xlane.xlu0 %4125
    %v4127 = vsel %vm313, %v4106, 0.0
    %4128 = vadd.xlane.f32.xlu0 %v4127
    %v4129 = vpop.xlane.xlu0 %4128
    %v4130 = vsel %vm313, %v4108, 0.0
    %4131 = vadd.xlane.f32.xlu0 %v4130
    %v4132 = vpop.xlane.xlu0 %4131
    %v4133 = vrcp.pop %v4111
    %v4134 = vrcp.pop %v4114
    %v4135 = vrcp.pop %v4117
    %v4136 = vrcp.pop %v4120
    %v4137 = vrcp.pop %v4123
    %v4138 = vrcp.pop %v4126
    %v4139 = vrcp.pop %v4129
    %v4140 = vrcp.pop %v4132
    %v4141 = vmul.f32 %v4094, %v4133
    %v4142 = vmul.f32 %v4096, %v4134
    %v4143 = vmul.f32 %v4098, %v4135
    %v4144 = vmul.f32 %v4100, %v4136
    %v4145 = vmul.f32 %v4102, %v4137
    %v4146 = vmul.f32 %v4104, %v4138
    %v4147 = vmul.f32 %v4106, %v4139
    %v4148 = vmul.f32 %v4108, %v4140
    %v4149 = vpack.c.bf16 %v4141, %v4141
    %v4150 = vpack.c.bf16 %v4142, %v4142
    %v4151 = vpack.c.bf16 %v4143, %v4143
    %v4152 = vpack.c.bf16 %v4144, %v4144
    %v4153 = vpack.c.bf16 %v4145, %v4145
    %v4154 = vpack.c.bf16 %v4146, %v4146
    %v4155 = vpack.c.bf16 %v4147, %v4147
    %v4156 = vpack.c.bf16 %v4148, %v4148
    %v4158 = vsel %vm313, %v4149, 0
    %v4161 = vsel %vm781, %v3685, 0
    %4163 = vmatprep.subr.bf16.mxu0 0
    %4164 = vmatpush1.bf16.msra.mxu0 0
    %4165 = vmatprep.subr.bf16.mxu0 0
    %4166 = vmatpush1.bf16.msra.mxu0 0
    %4167 = vmatprep.subr.bf16.mxu0 0
    %4168 = vmatpush1.bf16.msra.mxu0 0
    %4169 = vmatprep.subr.bf16.mxu0 0
    %4170 = vmatpush1.bf16.msra.mxu0 0
    %4171 = vmatprep.subr.bf16.mxu0 0
    %4172 = vmatpush1.bf16.msra.mxu0 0
    %4173 = vmatprep.subr.bf16.mxu0 0
    %4174 = vmatpush1.bf16.msra.mxu0 0
    %4175 = vmatprep.subr.bf16.mxu0 0
    %4176 = vmatpush1.bf16.msra.mxu0 0
    %4177 = vmatprep.subr.bf16.mxu0 0
    %4178 = vmatpush1.bf16.msra.mxu0 %v4161
    %4179 = vmatprep.subr.bf16.mxu0 0
    %4180 = vmatpush2.bf16.msra.mxu0 0
    %4181 = vmatprep.subr.bf16.mxu0 0
    %4182 = vmatpush2.bf16.msra.mxu0 0
    %4183 = vmatprep.subr.bf16.mxu0 0
    %4184 = vmatpush2.bf16.msra.mxu0 0
    %4185 = vmatprep.subr.bf16.mxu0 0
    %4186 = vmatpush2.bf16.msra.mxu0 0
    %4187 = vmatprep.subr.bf16.mxu0 0
    %4188 = vmatpush2.bf16.msra.mxu0 0
    %4189 = vmatprep.subr.bf16.mxu0 0
    %4190 = vmatpush2.bf16.msra.mxu0 0
    %4191 = vmatprep.subr.bf16.mxu0 0
    %4192 = vmatpush2.bf16.msra.mxu0 0
    %4193 = vmatprep.subr.bf16.mxu0 0
    %4194 = vmatpush2.bf16.msra.mxu0 0
    %4195 = vmatprep.mubr.bf16.mxu0 0
    %4196 = vmatmul.mubr.bf16.gmra.mxu0 %v4158
    %v4197 = vpop.f32.mrf.mxu0
    %v4198 = vadd.f32 0.0, %v4197
    %v4199 = vpop.f32.mrf.mxu0
    %v4200 = vpop.f32.mrf.mxu0
    %v4201 = vpop.f32.mrf.mxu0
    %4202 = vdwg.mxu0
    %v4204 = vsel %vm313, %v4150, 0
    %v4207 = vsel %vm781, %v3686, 0
    %4209 = vmatprep.subr.bf16.mxu0 0
    %4210 = vmatpush1.bf16.msra.mxu0 0
    %4211 = vmatprep.subr.bf16.mxu0 0
    %4212 = vmatpush1.bf16.msra.mxu0 0
    %4213 = vmatprep.subr.bf16.mxu0 0
    %4214 = vmatpush1.bf16.msra.mxu0 0
    %4215 = vmatprep.subr.bf16.mxu0 0
    %4216 = vmatpush1.bf16.msra.mxu0 0
    %4217 = vmatprep.subr.bf16.mxu0 0
    %4218 = vmatpush1.bf16.msra.mxu0 0
    %4219 = vmatprep.subr.bf16.mxu0 0
    %4220 = vmatpush1.bf16.msra.mxu0 0
    %4221 = vmatprep.subr.bf16.mxu0 0
    %4222 = vmatpush1.bf16.msra.mxu0 0
    %4223 = vmatprep.subr.bf16.mxu0 0
    %4224 = vmatpush1.bf16.msra.mxu0 %v4207
    %4225 = vmatprep.subr.bf16.mxu0 0
    %4226 = vmatpush2.bf16.msra.mxu0 0
    %4227 = vmatprep.subr.bf16.mxu0 0
    %4228 = vmatpush2.bf16.msra.mxu0 0
    %4229 = vmatprep.subr.bf16.mxu0 0
    %4230 = vmatpush2.bf16.msra.mxu0 0
    %4231 = vmatprep.subr.bf16.mxu0 0
    %4232 = vmatpush2.bf16.msra.mxu0 0
    %4233 = vmatprep.subr.bf16.mxu0 0
    %4234 = vmatpush2.bf16.msra.mxu0 0
    %4235 = vmatprep.subr.bf16.mxu0 0
    %4236 = vmatpush2.bf16.msra.mxu0 0
    %4237 = vmatprep.subr.bf16.mxu0 0
    %4238 = vmatpush2.bf16.msra.mxu0 0
    %4239 = vmatprep.subr.bf16.mxu0 0
    %4240 = vmatpush2.bf16.msra.mxu0 0
    %4241 = vmatprep.mubr.bf16.mxu0 0
    %4242 = vmatmul.mubr.bf16.gmra.mxu0 %v4204
    %v4243 = vpop.f32.mrf.mxu0
    %v4244 = vadd.f32 0.0, %v4243
    %v4245 = vpop.f32.mrf.mxu0
    %v4246 = vpop.f32.mrf.mxu0
    %v4247 = vpop.f32.mrf.mxu0
    %4248 = vdwg.mxu0
    %v4250 = vsel %vm313, %v4151, 0
    %v4253 = vsel %vm781, %v3687, 0
    %4255 = vmatprep.subr.bf16.mxu0 0
    %4256 = vmatpush1.bf16.msra.mxu0 0
    %4257 = vmatprep.subr.bf16.mxu0 0
    %4258 = vmatpush1.bf16.msra.mxu0 0
    %4259 = vmatprep.subr.bf16.mxu0 0
    %4260 = vmatpush1.bf16.msra.mxu0 0
    %4261 = vmatprep.subr.bf16.mxu0 0
    %4262 = vmatpush1.bf16.msra.mxu0 0
    %4263 = vmatprep.subr.bf16.mxu0 0
    %4264 = vmatpush1.bf16.msra.mxu0 0
    %4265 = vmatprep.subr.bf16.mxu0 0
    %4266 = vmatpush1.bf16.msra.mxu0 0
    %4267 = vmatprep.subr.bf16.mxu0 0
    %4268 = vmatpush1.bf16.msra.mxu0 0
    %4269 = vmatprep.subr.bf16.mxu0 0
    %4270 = vmatpush1.bf16.msra.mxu0 %v4253
    %4271 = vmatprep.subr.bf16.mxu0 0
    %4272 = vmatpush2.bf16.msra.mxu0 0
    %4273 = vmatprep.subr.bf16.mxu0 0
    %4274 = vmatpush2.bf16.msra.mxu0 0
    %4275 = vmatprep.subr.bf16.mxu0 0
    %4276 = vmatpush2.bf16.msra.mxu0 0
    %4277 = vmatprep.subr.bf16.mxu0 0
    %4278 = vmatpush2.bf16.msra.mxu0 0
    %4279 = vmatprep.subr.bf16.mxu0 0
    %4280 = vmatpush2.bf16.msra.mxu0 0
    %4281 = vmatprep.subr.bf16.mxu0 0
    %4282 = vmatpush2.bf16.msra.mxu0 0
    %4283 = vmatprep.subr.bf16.mxu0 0
    %4284 = vmatpush2.bf16.msra.mxu0 0
    %4285 = vmatprep.subr.bf16.mxu0 0
    %4286 = vmatpush2.bf16.msra.mxu0 0
    %4287 = vmatprep.mubr.bf16.mxu0 0
    %4288 = vmatmul.mubr.bf16.gmra.mxu0 %v4250
    %v4289 = vpop.f32.mrf.mxu0
    %v4290 = vadd.f32 0.0, %v4289
    %v4291 = vpop.f32.mrf.mxu0
    %v4292 = vpop.f32.mrf.mxu0
    %v4293 = vpop.f32.mrf.mxu0
    %4294 = vdwg.mxu0
    %v4296 = vsel %vm313, %v4152, 0
    %v4299 = vsel %vm781, %v3688, 0
    %4301 = vmatprep.subr.bf16.mxu0 0
    %4302 = vmatpush1.bf16.msra.mxu0 0
    %4303 = vmatprep.subr.bf16.mxu0 0
    %4304 = vmatpush1.bf16.msra.mxu0 0
    %4305 = vmatprep.subr.bf16.mxu0 0
    %4306 = vmatpush1.bf16.msra.mxu0 0
    %4307 = vmatprep.subr.bf16.mxu0 0
    %4308 = vmatpush1.bf16.msra.mxu0 0
    %4309 = vmatprep.subr.bf16.mxu0 0
    %4310 = vmatpush1.bf16.msra.mxu0 0
    %4311 = vmatprep.subr.bf16.mxu0 0
    %4312 = vmatpush1.bf16.msra.mxu0 0
    %4313 = vmatprep.subr.bf16.mxu0 0
    %4314 = vmatpush1.bf16.msra.mxu0 0
    %4315 = vmatprep.subr.bf16.mxu0 0
    %4316 = vmatpush1.bf16.msra.mxu0 %v4299
    %4317 = vmatprep.subr.bf16.mxu0 0
    %4318 = vmatpush2.bf16.msra.mxu0 0
    %4319 = vmatprep.subr.bf16.mxu0 0
    %4320 = vmatpush2.bf16.msra.mxu0 0
    %4321 = vmatprep.subr.bf16.mxu0 0
    %4322 = vmatpush2.bf16.msra.mxu0 0
    %4323 = vmatprep.subr.bf16.mxu0 0
    %4324 = vmatpush2.bf16.msra.mxu0 0
    %4325 = vmatprep.subr.bf16.mxu0 0
    %4326 = vmatpush2.bf16.msra.mxu0 0
    %4327 = vmatprep.subr.bf16.mxu0 0
    %4328 = vmatpush2.bf16.msra.mxu0 0
    %4329 = vmatprep.subr.bf16.mxu0 0
    %4330 = vmatpush2.bf16.msra.mxu0 0
    %4331 = vmatprep.subr.bf16.mxu0 0
    %4332 = vmatpush2.bf16.msra.mxu0 0
    %4333 = vmatprep.mubr.bf16.mxu0 0
    %4334 = vmatmul.mubr.bf16.gmra.mxu0 %v4296
    %v4335 = vpop.f32.mrf.mxu0
    %v4336 = vadd.f32 0.0, %v4335
    %v4337 = vpop.f32.mrf.mxu0
    %v4338 = vpop.f32.mrf.mxu0
    %v4339 = vpop.f32.mrf.mxu0
    %4340 = vdwg.mxu0
    %v4342 = vsel %vm313, %v4153, 0
    %v4345 = vsel %vm781, %v3689, 0
    %4347 = vmatprep.subr.bf16.mxu0 0
    %4348 = vmatpush1.bf16.msra.mxu0 0
    %4349 = vmatprep.subr.bf16.mxu0 0
    %4350 = vmatpush1.bf16.msra.mxu0 0
    %4351 = vmatprep.subr.bf16.mxu0 0
    %4352 = vmatpush1.bf16.msra.mxu0 0
    %4353 = vmatprep.subr.bf16.mxu0 0
    %4354 = vmatpush1.bf16.msra.mxu0 0
    %4355 = vmatprep.subr.bf16.mxu0 0
    %4356 = vmatpush1.bf16.msra.mxu0 0
    %4357 = vmatprep.subr.bf16.mxu0 0
    %4358 = vmatpush1.bf16.msra.mxu0 0
    %4359 = vmatprep.subr.bf16.mxu0 0
    %4360 = vmatpush1.bf16.msra.mxu0 0
    %4361 = vmatprep.subr.bf16.mxu0 0
    %4362 = vmatpush1.bf16.msra.mxu0 %v4345
    %4363 = vmatprep.subr.bf16.mxu0 0
    %4364 = vmatpush2.bf16.msra.mxu0 0
    %4365 = vmatprep.subr.bf16.mxu0 0
    %4366 = vmatpush2.bf16.msra.mxu0 0
    %4367 = vmatprep.subr.bf16.mxu0 0
    %4368 = vmatpush2.bf16.msra.mxu0 0
    %4369 = vmatprep.subr.bf16.mxu0 0
    %4370 = vmatpush2.bf16.msra.mxu0 0
    %4371 = vmatprep.subr.bf16.mxu0 0
    %4372 = vmatpush2.bf16.msra.mxu0 0
    %4373 = vmatprep.subr.bf16.mxu0 0
    %4374 = vmatpush2.bf16.msra.mxu0 0
    %4375 = vmatprep.subr.bf16.mxu0 0
    %4376 = vmatpush2.bf16.msra.mxu0 0
    %4377 = vmatprep.subr.bf16.mxu0 0
    %4378 = vmatpush2.bf16.msra.mxu0 0
    %4379 = vmatprep.mubr.bf16.mxu0 0
    %4380 = vmatmul.mubr.bf16.gmra.mxu0 %v4342
    %v4381 = vpop.f32.mrf.mxu0
    %v4382 = vadd.f32 0.0, %v4381
    %v4383 = vpop.f32.mrf.mxu0
    %v4384 = vpop.f32.mrf.mxu0
    %v4385 = vpop.f32.mrf.mxu0
    %4386 = vdwg.mxu0
    %v4388 = vsel %vm313, %v4154, 0
    %v4391 = vsel %vm781, %v3690, 0
    %4393 = vmatprep.subr.bf16.mxu0 0
    %4394 = vmatpush1.bf16.msra.mxu0 0
    %4395 = vmatprep.subr.bf16.mxu0 0
    %4396 = vmatpush1.bf16.msra.mxu0 0
    %4397 = vmatprep.subr.bf16.mxu0 0
    %4398 = vmatpush1.bf16.msra.mxu0 0
    %4399 = vmatprep.subr.bf16.mxu0 0
    %4400 = vmatpush1.bf16.msra.mxu0 0
    %4401 = vmatprep.subr.bf16.mxu0 0
    %4402 = vmatpush1.bf16.msra.mxu0 0
    %4403 = vmatprep.subr.bf16.mxu0 0
    %4404 = vmatpush1.bf16.msra.mxu0 0
    %4405 = vmatprep.subr.bf16.mxu0 0
    %4406 = vmatpush1.bf16.msra.mxu0 0
    %4407 = vmatprep.subr.bf16.mxu0 0
    %4408 = vmatpush1.bf16.msra.mxu0 %v4391
    %4409 = vmatprep.subr.bf16.mxu0 0
    %4410 = vmatpush2.bf16.msra.mxu0 0
    %4411 = vmatprep.subr.bf16.mxu0 0
    %4412 = vmatpush2.bf16.msra.mxu0 0
    %4413 = vmatprep.subr.bf16.mxu0 0
    %4414 = vmatpush2.bf16.msra.mxu0 0
    %4415 = vmatprep.subr.bf16.mxu0 0
    %4416 = vmatpush2.bf16.msra.mxu0 0
    %4417 = vmatprep.subr.bf16.mxu0 0
    %4418 = vmatpush2.bf16.msra.mxu0 0
    %4419 = vmatprep.subr.bf16.mxu0 0
    %4420 = vmatpush2.bf16.msra.mxu0 0
    %4421 = vmatprep.subr.bf16.mxu0 0
    %4422 = vmatpush2.bf16.msra.mxu0 0
    %4423 = vmatprep.subr.bf16.mxu0 0
    %4424 = vmatpush2.bf16.msra.mxu0 0
    %4425 = vmatprep.mubr.bf16.mxu0 0
    %4426 = vmatmul.mubr.bf16.gmra.mxu0 %v4388
    %v4427 = vpop.f32.mrf.mxu0
    %v4428 = vadd.f32 0.0, %v4427
    %v4429 = vpop.f32.mrf.mxu0
    %v4430 = vpop.f32.mrf.mxu0
    %v4431 = vpop.f32.mrf.mxu0
    %4432 = vdwg.mxu0
    %v4434 = vsel %vm313, %v4155, 0
    %v4437 = vsel %vm781, %v3691, 0
    %4439 = vmatprep.subr.bf16.mxu0 0
    %4440 = vmatpush1.bf16.msra.mxu0 0
    %4441 = vmatprep.subr.bf16.mxu0 0
    %4442 = vmatpush1.bf16.msra.mxu0 0
    %4443 = vmatprep.subr.bf16.mxu0 0
    %4444 = vmatpush1.bf16.msra.mxu0 0
    %4445 = vmatprep.subr.bf16.mxu0 0
    %4446 = vmatpush1.bf16.msra.mxu0 0
    %4447 = vmatprep.subr.bf16.mxu0 0
    %4448 = vmatpush1.bf16.msra.mxu0 0
    %4449 = vmatprep.subr.bf16.mxu0 0
    %4450 = vmatpush1.bf16.msra.mxu0 0
    %4451 = vmatprep.subr.bf16.mxu0 0
    %4452 = vmatpush1.bf16.msra.mxu0 0
    %4453 = vmatprep.subr.bf16.mxu0 0
    %4454 = vmatpush1.bf16.msra.mxu0 %v4437
    %4455 = vmatprep.subr.bf16.mxu0 0
    %4456 = vmatpush2.bf16.msra.mxu0 0
    %4457 = vmatprep.subr.bf16.mxu0 0
    %4458 = vmatpush2.bf16.msra.mxu0 0
    %4459 = vmatprep.subr.bf16.mxu0 0
    %4460 = vmatpush2.bf16.msra.mxu0 0
    %4461 = vmatprep.subr.bf16.mxu0 0
    %4462 = vmatpush2.bf16.msra.mxu0 0
    %4463 = vmatprep.subr.bf16.mxu0 0
    %4464 = vmatpush2.bf16.msra.mxu0 0
    %4465 = vmatprep.subr.bf16.mxu0 0
    %4466 = vmatpush2.bf16.msra.mxu0 0
    %4467 = vmatprep.subr.bf16.mxu0 0
    %4468 = vmatpush2.bf16.msra.mxu0 0
    %4469 = vmatprep.subr.bf16.mxu0 0
    %4470 = vmatpush2.bf16.msra.mxu0 0
    %4471 = vmatprep.mubr.bf16.mxu0 0
    %4472 = vmatmul.mubr.bf16.gmra.mxu0 %v4434
    %v4473 = vpop.f32.mrf.mxu0
    %v4474 = vadd.f32 0.0, %v4473
    %v4475 = vpop.f32.mrf.mxu0
    %v4476 = vpop.f32.mrf.mxu0
    %v4477 = vpop.f32.mrf.mxu0
    %4478 = vdwg.mxu0
    %v4480 = vsel %vm313, %v4156, 0
    %v4483 = vsel %vm781, %v3692, 0
    %4485 = vmatprep.subr.bf16.mxu0 0
    %4486 = vmatpush1.bf16.msra.mxu0 0
    %4487 = vmatprep.subr.bf16.mxu0 0
    %4488 = vmatpush1.bf16.msra.mxu0 0
    %4489 = vmatprep.subr.bf16.mxu0 0
    %4490 = vmatpush1.bf16.msra.mxu0 0
    %4491 = vmatprep.subr.bf16.mxu0 0
    %4492 = vmatpush1.bf16.msra.mxu0 0
    %4493 = vmatprep.subr.bf16.mxu0 0
    %4494 = vmatpush1.bf16.msra.mxu0 0
    %4495 = vmatprep.subr.bf16.mxu0 0
    %4496 = vmatpush1.bf16.msra.mxu0 0
    %4497 = vmatprep.subr.bf16.mxu0 0
    %4498 = vmatpush1.bf16.msra.mxu0 0
    %4499 = vmatprep.subr.bf16.mxu0 0
    %4500 = vmatpush1.bf16.msra.mxu0 %v4483
    %4501 = vmatprep.subr.bf16.mxu0 0
    %4502 = vmatpush2.bf16.msra.mxu0 0
    %4503 = vmatprep.subr.bf16.mxu0 0
    %4504 = vmatpush2.bf16.msra.mxu0 0
    %4505 = vmatprep.subr.bf16.mxu0 0
    %4506 = vmatpush2.bf16.msra.mxu0 0
    %4507 = vmatprep.subr.bf16.mxu0 0
    %4508 = vmatpush2.bf16.msra.mxu0 0
    %4509 = vmatprep.subr.bf16.mxu0 0
    %4510 = vmatpush2.bf16.msra.mxu0 0
    %4511 = vmatprep.subr.bf16.mxu0 0
    %4512 = vmatpush2.bf16.msra.mxu0 0
    %4513 = vmatprep.subr.bf16.mxu0 0
    %4514 = vmatpush2.bf16.msra.mxu0 0
    %4515 = vmatprep.subr.bf16.mxu0 0
    %4516 = vmatpush2.bf16.msra.mxu0 0
    %4517 = vmatprep.mubr.bf16.mxu0 0
    %4518 = vmatmul.mubr.bf16.gmra.mxu0 %v4480
    %v4519 = vpop.f32.mrf.mxu0
    %v4520 = vadd.f32 0.0, %v4519
    %v4521 = vpop.f32.mrf.mxu0
    %v4522 = vpop.f32.mrf.mxu0
    %v4523 = vpop.f32.mrf.mxu0
    %4524 = vdwg.mxu0
    %4527 = vrot.lane.b32.xlu0 %v4290, 8
    %v4528 = vpop.permute.xlu0 %4527
    %4529 = vrot.lane.b32.xlu0 %v4336, 8
    %v4530 = vpop.permute.xlu0 %4529
    %4535 = vrot.lane.b32.xlu0 %v4382, 16
    %v4536 = vpop.permute.xlu0 %4535
    %4537 = vrot.lane.b32.xlu0 %v4428, 16
    %v4538 = vpop.permute.xlu0 %4537
    %4543 = vrot.lane.b32.xlu0 %v4474, 24
    %v4544 = vpop.permute.xlu0 %4543
    %4545 = vrot.lane.b32.xlu0 %v4520, 24
    %v4546 = vpop.permute.xlu0 %4545
    %v4549 = vsel %vm313, %v4198, %v4528
    %v4550 = vsel %vm313, %v4244, %v4530
    %v4551 = vsel %vm1173, %v4549, %v4536
    %v4552 = vsel %vm1173, %v4550, %v4538
    %v4553 = vsel %vm1176, %v4551, %v4544
    %v4554 = vsel %vm1176, %v4552, %v4546
    %v4555 = vpack.c.bf16 %v4554, %v4553
    %s4556 = scalar_lea.vmem %s2, 16
    %v4557 = vld [vmem:[%s4556] sm:$0xf]
    %v4558 = vld [vmem:[%s4556 + $0x4] sm:$0xf]
    %v4559 = vld [vmem:[%s4556 + $0x8] sm:$0xf]
    %v4560 = vld [vmem:[%s4556 + $0xc] sm:$0xf]
    %v4561 = vlaneseq
    %v4562 = vshrl.u32 %v4561, 7
    %v4563 = vsub.s32 4, %v4562
    %v4564 = vrot.slane %v31, %v4563
    %v4569 = vunpack.c.l.b16 %v4557
    %v4570 = vunpack.c.l.b16 %v4558
    %v4571 = vunpack.c.l.b16 %v4559
    %v4572 = vunpack.c.l.b16 %v4560
    %v4573 = vpack.c.b16 %v4570, %v4569
    %v4574 = vpack.c.b16 %v4572, %v4571
    %v4578 = vsel %vm58, %v4555, 0
    %4580 = vmatprep.subr.bf16.mxu0 0
    %4581 = vmatpush1.bf16.msra.mxu0 0
    %4582 = vmatprep.subr.bf16.mxu0 0
    %4583 = vmatpush1.bf16.msra.mxu0 0
    %4584 = vmatprep.subr.bf16.mxu0 0
    %4585 = vmatpush1.bf16.msra.mxu0 0
    %4586 = vmatprep.subr.bf16.mxu0 0
    %4587 = vmatpush1.bf16.msra.mxu0 0
    %4588 = vmatprep.subr.bf16.mxu0 0
    %4589 = vmatpush1.bf16.msra.mxu0 0
    %4590 = vmatprep.subr.bf16.mxu0 0
    %4591 = vmatpush1.bf16.msra.mxu0 0
    %4592 = vmatprep.subr.bf16.mxu0 0
    %4593 = vmatpush1.bf16.msra.mxu0 %v4574
    %4594 = vmatprep.subr.bf16.mxu0 0
    %4595 = vmatpush1.bf16.msra.mxu0 %v4573
    %4596 = vmatprep.subr.bf16.mxu0 0
    %4597 = vmatpush2.bf16.msra.mxu0 0
    %4598 = vmatprep.subr.bf16.mxu0 0
    %4599 = vmatpush2.bf16.msra.mxu0 0
    %4600 = vmatprep.subr.bf16.mxu0 0
    %4601 = vmatpush2.bf16.msra.mxu0 0
    %4602 = vmatprep.subr.bf16.mxu0 0
    %4603 = vmatpush2.bf16.msra.mxu0 0
    %4604 = vmatprep.subr.bf16.mxu0 0
    %4605 = vmatpush2.bf16.msra.mxu0 0
    %4606 = vmatprep.subr.bf16.mxu0 0
    %4607 = vmatpush2.bf16.msra.mxu0 0
    %4608 = vmatprep.subr.bf16.mxu0 0
    %4609 = vmatpush2.bf16.msra.mxu0 0
    %4610 = vmatprep.subr.bf16.mxu0 0
    %4611 = vmatpush2.bf16.msra.mxu0 0
    %4612 = vmatprep.mubr.bf16.mxu0 0
    %4613 = vmatmul.mubr.bf16.gmra.mxu0 %v4578
    %v4614 = vpop.f32.mrf.mxu0
    %v4615 = vadd.f32 %v4564, %v4614
    %v4616 = vpop.f32.mrf.mxu0
    %v4617 = vpop.f32.mrf.mxu0
    %v4618 = vadd.f32 %v4564, %v4617
    %v4619 = vpop.f32.mrf.mxu0
    %4620 = vdwg.mxu0
    %v4621 = vadd.f32 %v3415, %v4615
    %v4622 = vadd.f32 %v3416, %v4618
    %v4623 = vsel %vm58, %v4621, 0.0
    %4624 = vadd.xlane.f32.xlu0 %v4623
    %v4625 = vpop.xlane.xlu0 %4624
    %v4626 = vsel %vm58, %v4622, 0.0
    %4627 = vadd.xlane.f32.xlu0 %v4626
    %v4628 = vpop.xlane.xlu0 %4627
    %v4629 = vmul.f32 %v4625, %v1252
    %v4630 = vmul.f32 %v4628, %v1252
    %v4631 = vsub.f32 %v4621, %v4629
    %v4632 = vsub.f32 %v4622, %v4630
    %v4633 = vmul.f32 %v4631, %v4631
    %v4634 = vmul.f32 %v4632, %v4632
    %v4635 = vsel %vm58, %v4633, 0.0
    %4636 = vadd.xlane.f32.xlu0 %v4635
    %v4637 = vpop.xlane.xlu0 %4636
    %v4638 = vsel %vm58, %v4634, 0.0
    %4639 = vadd.xlane.f32.xlu0 %v4638
    %v4640 = vpop.xlane.xlu0 %4639
    %v4641 = vmul.f32 %v4637, %v1252
    %v4642 = vmul.f32 %v4640, %v1252
    %v4643 = vadd.f32 %v4641, 1e-05
    %v4644 = vadd.f32 %v4642, 1e-05
    %v4645 = vrsqrt.pop %v4643
    %v4646 = vrsqrt.pop %v4644
    %v4647 = vmul.f32 %v4631, %v4645
    %v4648 = vmul.f32 %v4632, %v4646
    %v4649 = vlaneseq
    %v4650 = vshrl.u32 %v4649, 7
    %v4651 = vsub.s32 5, %v4650
    %v4652 = vrot.slane %v31, %v4651
    %v4653 = vmul.f32 %v4647, %v4652
    %v4654 = vmul.f32 %v4648, %v4652
    %v4655 = vlaneseq
    %v4656 = vshrl.u32 %v4655, 7
    %v4657 = vsub.s32 6, %v4656
    %v4658 = vrot.slane %v31, %v4657
    %v4659 = vadd.f32 %v4653, %v4658
    %v4660 = vadd.f32 %v4654, %v4658
    %v4661 = vpack.c.bf16 %v4660, %v4659
    %s4662 = scalar_lea.vmem %s3, 256
    %v4663 = vld [vmem:[%s4662] sm:$0xff]
    %v4664 = vld [vmem:[%s4662 + $0x8] sm:$0xff]
    %v4665 = vld [vmem:[%s4662 + $0x10] sm:$0xff]
    %v4666 = vld [vmem:[%s4662 + $0x18] sm:$0xff]
    %v4667 = vld [vmem:[%s4662 + $0x20] sm:$0xff]
    %v4668 = vld [vmem:[%s4662 + $0x28] sm:$0xff]
    %v4669 = vld [vmem:[%s4662 + $0x30] sm:$0xff]
    %v4670 = vld [vmem:[%s4662 + $0x38] sm:$0xff]
    %v4671 = vld [vmem:[%s4662 + $0x40] sm:$0xff]
    %v4672 = vld [vmem:[%s4662 + $0x48] sm:$0xff]
    %v4673 = vld [vmem:[%s4662 + $0x50] sm:$0xff]
    %v4674 = vld [vmem:[%s4662 + $0x58] sm:$0xff]
    %v4675 = vld [vmem:[%s4662 + $0x60] sm:$0xff]
    %v4676 = vld [vmem:[%s4662 + $0x68] sm:$0xff]
    %v4677 = vld [vmem:[%s4662 + $0x70] sm:$0xff]
    %v4678 = vld [vmem:[%s4662 + $0x78] sm:$0xff]
    %v4679 = vld [vmem:[%s4662 + $0x80] sm:$0xff]
    %v4680 = vld [vmem:[%s4662 + $0x88] sm:$0xff]
    %v4681 = vld [vmem:[%s4662 + $0x90] sm:$0xff]
    %v4682 = vld [vmem:[%s4662 + $0x98] sm:$0xff]
    %v4683 = vld [vmem:[%s4662 + $0xa0] sm:$0xff]
    %v4684 = vld [vmem:[%s4662 + $0xa8] sm:$0xff]
    %v4685 = vld [vmem:[%s4662 + $0xb0] sm:$0xff]
    %v4686 = vld [vmem:[%s4662 + $0xb8] sm:$0xff]
    %v4687 = vld [vmem:[%s4662 + $0xc0] sm:$0xff]
    %v4688 = vld [vmem:[%s4662 + $0xc8] sm:$0xff]
    %v4689 = vld [vmem:[%s4662 + $0xd0] sm:$0xff]
    %v4690 = vld [vmem:[%s4662 + $0xd8] sm:$0xff]
    %v4691 = vld [vmem:[%s4662 + $0xe0] sm:$0xff]
    %v4692 = vld [vmem:[%s4662 + $0xe8] sm:$0xff]
    %v4693 = vld [vmem:[%s4662 + $0xf0] sm:$0xff]
    %v4694 = vld [vmem:[%s4662 + $0xf8] sm:$0xff]
    %v4695 = vlaneseq
    %v4696 = vshrl.u32 %v4695, 7
    %v4697 = vsub.s32 1, %v4696
    %v4698 = vrot.slane %v33, %v4697
    %v4699 = vlaneseq
    %v4700 = vshrl.u32 %v4699, 7
    %v4701 = vsub.s32 3, %v4700
    %v4702 = vrot.slane %v33, %v4701
    %v4703 = vlaneseq
    %v4704 = vshrl.u32 %v4703, 7
    %v4705 = vsub.s32 5, %v4704
    %v4706 = vrot.slane %v33, %v4705
    %v4707 = vlaneseq
    %v4708 = vshrl.u32 %v4707, 7
    %v4709 = vsub.s32 7, %v4708
    %v4710 = vrot.slane %v33, %v4709
    %v4711 = vlaneseq
    %v4712 = vshrl.u32 %v4711, 7
    %v4713 = vsub.s32 1, %v4712
    %v4714 = vrot.slane %v34, %v4713
    %v4715 = vlaneseq
    %v4716 = vshrl.u32 %v4715, 7
    %v4717 = vsub.s32 3, %v4716
    %v4718 = vrot.slane %v34, %v4717
    %v4719 = vlaneseq
    %v4720 = vshrl.u32 %v4719, 7
    %v4721 = vsub.s32 5, %v4720
    %v4722 = vrot.slane %v34, %v4721
    %v4723 = vlaneseq
    %v4724 = vshrl.u32 %v4723, 7
    %v4725 = vsub.s32 7, %v4724
    %v4726 = vrot.slane %v34, %v4725
    %v4727 = vlaneseq
    %v4728 = vshrl.u32 %v4727, 7
    %v4729 = vsub.s32 1, %v4728
    %v4730 = vrot.slane %v35, %v4729
    %v4731 = vlaneseq
    %v4732 = vshrl.u32 %v4731, 7
    %v4733 = vsub.s32 3, %v4732
    %v4734 = vrot.slane %v35, %v4733
    %v4735 = vlaneseq
    %v4736 = vshrl.u32 %v4735, 7
    %v4737 = vsub.s32 5, %v4736
    %v4738 = vrot.slane %v35, %v4737
    %v4739 = vlaneseq
    %v4740 = vshrl.u32 %v4739, 7
    %v4741 = vsub.s32 7, %v4740
    %v4742 = vrot.slane %v35, %v4741
    %v4743 = vlaneseq
    %v4744 = vshrl.u32 %v4743, 7
    %v4745 = vsub.s32 1, %v4744
    %v4746 = vrot.slane %v36, %v4745
    %v4747 = vlaneseq
    %v4748 = vshrl.u32 %v4747, 7
    %v4749 = vsub.s32 3, %v4748
    %v4750 = vrot.slane %v36, %v4749
    %v4751 = vlaneseq
    %v4752 = vshrl.u32 %v4751, 7
    %v4753 = vsub.s32 5, %v4752
    %v4754 = vrot.slane %v36, %v4753
    %v4755 = vlaneseq
    %v4756 = vshrl.u32 %v4755, 7
    %v4757 = vsub.s32 7, %v4756
    %v4758 = vrot.slane %v36, %v4757
    %v4775 = vlaneseq
    %v4776 = vshrl.u32 %v4775, 7
    %v4777 = vsub.s32 1, %v4776
    %v4778 = vrot.slane %v4698, %v4777
    %v4779 = vlaneseq
    %v4780 = vshrl.u32 %v4779, 7
    %v4781 = vsub.s32 1, %v4780
    %v4782 = vrot.slane %v4702, %v4781
    %v4783 = vlaneseq
    %v4784 = vshrl.u32 %v4783, 7
    %v4785 = vsub.s32 1, %v4784
    %v4786 = vrot.slane %v4706, %v4785
    %v4787 = vlaneseq
    %v4788 = vshrl.u32 %v4787, 7
    %v4789 = vsub.s32 1, %v4788
    %v4790 = vrot.slane %v4710, %v4789
    %v4791 = vlaneseq
    %v4792 = vshrl.u32 %v4791, 7
    %v4793 = vsub.s32 1, %v4792
    %v4794 = vrot.slane %v4714, %v4793
    %v4795 = vlaneseq
    %v4796 = vshrl.u32 %v4795, 7
    %v4797 = vsub.s32 1, %v4796
    %v4798 = vrot.slane %v4718, %v4797
    %v4799 = vlaneseq
    %v4800 = vshrl.u32 %v4799, 7
    %v4801 = vsub.s32 1, %v4800
    %v4802 = vrot.slane %v4722, %v4801
    %v4803 = vlaneseq
    %v4804 = vshrl.u32 %v4803, 7
    %v4805 = vsub.s32 1, %v4804
    %v4806 = vrot.slane %v4726, %v4805
    %v4807 = vlaneseq
    %v4808 = vshrl.u32 %v4807, 7
    %v4809 = vsub.s32 1, %v4808
    %v4810 = vrot.slane %v4730, %v4809
    %v4811 = vlaneseq
    %v4812 = vshrl.u32 %v4811, 7
    %v4813 = vsub.s32 1, %v4812
    %v4814 = vrot.slane %v4734, %v4813
    %v4815 = vlaneseq
    %v4816 = vshrl.u32 %v4815, 7
    %v4817 = vsub.s32 1, %v4816
    %v4818 = vrot.slane %v4738, %v4817
    %v4819 = vlaneseq
    %v4820 = vshrl.u32 %v4819, 7
    %v4821 = vsub.s32 1, %v4820
    %v4822 = vrot.slane %v4742, %v4821
    %v4823 = vlaneseq
    %v4824 = vshrl.u32 %v4823, 7
    %v4825 = vsub.s32 1, %v4824
    %v4826 = vrot.slane %v4746, %v4825
    %v4827 = vlaneseq
    %v4828 = vshrl.u32 %v4827, 7
    %v4829 = vsub.s32 1, %v4828
    %v4830 = vrot.slane %v4750, %v4829
    %v4831 = vlaneseq
    %v4832 = vshrl.u32 %v4831, 7
    %v4833 = vsub.s32 1, %v4832
    %v4834 = vrot.slane %v4754, %v4833
    %v4835 = vlaneseq
    %v4836 = vshrl.u32 %v4835, 7
    %v4837 = vsub.s32 1, %v4836
    %v4838 = vrot.slane %v4758, %v4837
    %v4871 = vunpack.c.l.b16 %v4663
    %v4872 = vunpack.c.h.b16 %v4663
    %v4873 = vunpack.c.l.b16 %v4664
    %v4874 = vunpack.c.h.b16 %v4664
    %v4875 = vunpack.c.l.b16 %v4665
    %v4876 = vunpack.c.h.b16 %v4665
    %v4877 = vunpack.c.l.b16 %v4666
    %v4878 = vunpack.c.h.b16 %v4666
    %v4879 = vunpack.c.l.b16 %v4667
    %v4880 = vunpack.c.h.b16 %v4667
    %v4881 = vunpack.c.l.b16 %v4668
    %v4882 = vunpack.c.h.b16 %v4668
    %v4883 = vunpack.c.l.b16 %v4669
    %v4884 = vunpack.c.h.b16 %v4669
    %v4885 = vunpack.c.l.b16 %v4670
    %v4886 = vunpack.c.h.b16 %v4670
    %v4887 = vunpack.c.l.b16 %v4671
    %v4888 = vunpack.c.h.b16 %v4671
    %v4889 = vunpack.c.l.b16 %v4672
    %v4890 = vunpack.c.h.b16 %v4672
    %v4891 = vunpack.c.l.b16 %v4673
    %v4892 = vunpack.c.h.b16 %v4673
    %v4893 = vunpack.c.l.b16 %v4674
    %v4894 = vunpack.c.h.b16 %v4674
    %v4895 = vunpack.c.l.b16 %v4675
    %v4896 = vunpack.c.h.b16 %v4675
    %v4897 = vunpack.c.l.b16 %v4676
    %v4898 = vunpack.c.h.b16 %v4676
    %v4899 = vunpack.c.l.b16 %v4677
    %v4900 = vunpack.c.h.b16 %v4677
    %v4901 = vunpack.c.l.b16 %v4678
    %v4902 = vunpack.c.h.b16 %v4678
    %v4903 = vunpack.c.l.b16 %v4679
    %v4904 = vunpack.c.h.b16 %v4679
    %v4905 = vunpack.c.l.b16 %v4680
    %v4906 = vunpack.c.h.b16 %v4680
    %v4907 = vunpack.c.l.b16 %v4681
    %v4908 = vunpack.c.h.b16 %v4681
    %v4909 = vunpack.c.l.b16 %v4682
    %v4910 = vunpack.c.h.b16 %v4682
    %v4911 = vunpack.c.l.b16 %v4683
    %v4912 = vunpack.c.h.b16 %v4683
    %v4913 = vunpack.c.l.b16 %v4684
    %v4914 = vunpack.c.h.b16 %v4684
    %v4915 = vunpack.c.l.b16 %v4685
    %v4916 = vunpack.c.h.b16 %v4685
    %v4917 = vunpack.c.l.b16 %v4686
    %v4918 = vunpack.c.h.b16 %v4686
    %v4919 = vunpack.c.l.b16 %v4687
    %v4920 = vunpack.c.h.b16 %v4687
    %v4921 = vunpack.c.l.b16 %v4688
    %v4922 = vunpack.c.h.b16 %v4688
    %v4923 = vunpack.c.l.b16 %v4689
    %v4924 = vunpack.c.h.b16 %v4689
    %v4925 = vunpack.c.l.b16 %v4690
    %v4926 = vunpack.c.h.b16 %v4690
    %v4927 = vunpack.c.l.b16 %v4691
    %v4928 = vunpack.c.h.b16 %v4691
    %v4929 = vunpack.c.l.b16 %v4692
    %v4930 = vunpack.c.h.b16 %v4692
    %v4931 = vunpack.c.l.b16 %v4693
    %v4932 = vunpack.c.h.b16 %v4693
    %v4933 = vunpack.c.l.b16 %v4694
    %v4934 = vunpack.c.h.b16 %v4694
    %v4935 = vpack.c.b16 %v4887, %v4871
    %v4936 = vpack.c.b16 %v4888, %v4872
    %v4937 = vpack.c.b16 %v4889, %v4873
    %v4938 = vpack.c.b16 %v4890, %v4874
    %v4939 = vpack.c.b16 %v4891, %v4875
    %v4940 = vpack.c.b16 %v4892, %v4876
    %v4941 = vpack.c.b16 %v4893, %v4877
    %v4942 = vpack.c.b16 %v4894, %v4878
    %v4943 = vpack.c.b16 %v4895, %v4879
    %v4944 = vpack.c.b16 %v4896, %v4880
    %v4945 = vpack.c.b16 %v4897, %v4881
    %v4946 = vpack.c.b16 %v4898, %v4882
    %v4947 = vpack.c.b16 %v4899, %v4883
    %v4948 = vpack.c.b16 %v4900, %v4884
    %v4949 = vpack.c.b16 %v4901, %v4885
    %v4950 = vpack.c.b16 %v4902, %v4886
    %v4951 = vpack.c.b16 %v4919, %v4903
    %v4952 = vpack.c.b16 %v4920, %v4904
    %v4953 = vpack.c.b16 %v4921, %v4905
    %v4954 = vpack.c.b16 %v4922, %v4906
    %v4955 = vpack.c.b16 %v4923, %v4907
    %v4956 = vpack.c.b16 %v4924, %v4908
    %v4957 = vpack.c.b16 %v4925, %v4909
    %v4958 = vpack.c.b16 %v4926, %v4910
    %v4959 = vpack.c.b16 %v4927, %v4911
    %v4960 = vpack.c.b16 %v4928, %v4912
    %v4961 = vpack.c.b16 %v4929, %v4913
    %v4962 = vpack.c.b16 %v4930, %v4914
    %v4963 = vpack.c.b16 %v4931, %v4915
    %v4964 = vpack.c.b16 %v4932, %v4916
    %v4965 = vpack.c.b16 %v4933, %v4917
    %v4966 = vpack.c.b16 %v4934, %v4918
    %v5000 = vsel %vm58, %v4661, 0
    %5002 = vmatprep.subr.bf16.mxu0 0
    %5003 = vmatpush1.bf16.msra.mxu0 0
    %5004 = vmatprep.subr.bf16.mxu0 0
    %5005 = vmatpush1.bf16.msra.mxu0 0
    %5006 = vmatprep.subr.bf16.mxu0 0
    %5007 = vmatpush1.bf16.msra.mxu0 0
    %5008 = vmatprep.subr.bf16.mxu0 0
    %5009 = vmatpush1.bf16.msra.mxu0 0
    %5010 = vmatprep.subr.bf16.mxu0 0
    %5011 = vmatpush1.bf16.msra.mxu0 0
    %5012 = vmatprep.subr.bf16.mxu0 0
    %5013 = vmatpush1.bf16.msra.mxu0 0
    %5014 = vmatprep.subr.bf16.mxu0 %v4952
    %5015 = vmatpush1.bf16.msra.mxu0 %v4951
    %5016 = vmatprep.subr.bf16.mxu0 %v4936
    %5017 = vmatpush1.bf16.msra.mxu0 %v4935
    %5018 = vmatprep.subr.bf16.mxu0 0
    %5019 = vmatpush2.bf16.msra.mxu0 0
    %5020 = vmatprep.subr.bf16.mxu0 0
    %5021 = vmatpush2.bf16.msra.mxu0 0
    %5022 = vmatprep.subr.bf16.mxu0 0
    %5023 = vmatpush2.bf16.msra.mxu0 0
    %5024 = vmatprep.subr.bf16.mxu0 0
    %5025 = vmatpush2.bf16.msra.mxu0 0
    %5026 = vmatprep.subr.bf16.mxu0 0
    %5027 = vmatpush2.bf16.msra.mxu0 0
    %5028 = vmatprep.subr.bf16.mxu0 0
    %5029 = vmatpush2.bf16.msra.mxu0 0
    %5030 = vmatprep.subr.bf16.mxu0 0
    %5031 = vmatpush2.bf16.msra.mxu0 0
    %5032 = vmatprep.subr.bf16.mxu0 0
    %5033 = vmatpush2.bf16.msra.mxu0 0
    %5034 = vmatprep.mubr.bf16.mxu0 0
    %5035 = vmatmul.mubr.bf16.gmra.mxu0 %v5000
    %v5036 = vpop.f32.mrf.mxu0
    %v5037 = vadd.f32 %v4778, %v5036
    %v5038 = vpop.f32.mrf.mxu0
    %v5039 = vadd.f32 %v4782, %v5038
    %v5040 = vpop.f32.mrf.mxu0
    %v5041 = vadd.f32 %v4778, %v5040
    %v5042 = vpop.f32.mrf.mxu0
    %v5043 = vadd.f32 %v4782, %v5042
    %5044 = vdwg.mxu0
    %5045 = vmatprep.subr.bf16.mxu0 0
    %5046 = vmatpush1.bf16.msra.mxu0 0
    %5047 = vmatprep.subr.bf16.mxu0 0
    %5048 = vmatpush1.bf16.msra.mxu0 0
    %5049 = vmatprep.subr.bf16.mxu0 0
    %5050 = vmatpush1.bf16.msra.mxu0 0
    %5051 = vmatprep.subr.bf16.mxu0 0
    %5052 = vmatpush1.bf16.msra.mxu0 0
    %5053 = vmatprep.subr.bf16.mxu0 0
    %5054 = vmatpush1.bf16.msra.mxu0 0
    %5055 = vmatprep.subr.bf16.mxu0 0
    %5056 = vmatpush1.bf16.msra.mxu0 0
    %5057 = vmatprep.subr.bf16.mxu0 %v4954
    %5058 = vmatpush1.bf16.msra.mxu0 %v4953
    %5059 = vmatprep.subr.bf16.mxu0 %v4938
    %5060 = vmatpush1.bf16.msra.mxu0 %v4937
    %5061 = vmatprep.subr.bf16.mxu0 0
    %5062 = vmatpush2.bf16.msra.mxu0 0
    %5063 = vmatprep.subr.bf16.mxu0 0
    %5064 = vmatpush2.bf16.msra.mxu0 0
    %5065 = vmatprep.subr.bf16.mxu0 0
    %5066 = vmatpush2.bf16.msra.mxu0 0
    %5067 = vmatprep.subr.bf16.mxu0 0
    %5068 = vmatpush2.bf16.msra.mxu0 0
    %5069 = vmatprep.subr.bf16.mxu0 0
    %5070 = vmatpush2.bf16.msra.mxu0 0
    %5071 = vmatprep.subr.bf16.mxu0 0
    %5072 = vmatpush2.bf16.msra.mxu0 0
    %5073 = vmatprep.subr.bf16.mxu0 0
    %5074 = vmatpush2.bf16.msra.mxu0 0
    %5075 = vmatprep.subr.bf16.mxu0 0
    %5076 = vmatpush2.bf16.msra.mxu0 0
    %5077 = vmatprep.mubr.bf16.mxu0 0
    %5078 = vmatmul.mubr.bf16.gmra.mxu0 %v5000
    %v5079 = vpop.f32.mrf.mxu0
    %v5080 = vadd.f32 %v4786, %v5079
    %v5081 = vpop.f32.mrf.mxu0
    %v5082 = vadd.f32 %v4790, %v5081
    %v5083 = vpop.f32.mrf.mxu0
    %v5084 = vadd.f32 %v4786, %v5083
    %v5085 = vpop.f32.mrf.mxu0
    %v5086 = vadd.f32 %v4790, %v5085
    %5087 = vdwg.mxu0
    %5088 = vmatprep.subr.bf16.mxu0 0
    %5089 = vmatpush1.bf16.msra.mxu0 0
    %5090 = vmatprep.subr.bf16.mxu0 0
    %5091 = vmatpush1.bf16.msra.mxu0 0
    %5092 = vmatprep.subr.bf16.mxu0 0
    %5093 = vmatpush1.bf16.msra.mxu0 0
    %5094 = vmatprep.subr.bf16.mxu0 0
    %5095 = vmatpush1.bf16.msra.mxu0 0
    %5096 = vmatprep.subr.bf16.mxu0 0
    %5097 = vmatpush1.bf16.msra.mxu0 0
    %5098 = vmatprep.subr.bf16.mxu0 0
    %5099 = vmatpush1.bf16.msra.mxu0 0
    %5100 = vmatprep.subr.bf16.mxu0 %v4956
    %5101 = vmatpush1.bf16.msra.mxu0 %v4955
    %5102 = vmatprep.subr.bf16.mxu0 %v4940
    %5103 = vmatpush1.bf16.msra.mxu0 %v4939
    %5104 = vmatprep.subr.bf16.mxu0 0
    %5105 = vmatpush2.bf16.msra.mxu0 0
    %5106 = vmatprep.subr.bf16.mxu0 0
    %5107 = vmatpush2.bf16.msra.mxu0 0
    %5108 = vmatprep.subr.bf16.mxu0 0
    %5109 = vmatpush2.bf16.msra.mxu0 0
    %5110 = vmatprep.subr.bf16.mxu0 0
    %5111 = vmatpush2.bf16.msra.mxu0 0
    %5112 = vmatprep.subr.bf16.mxu0 0
    %5113 = vmatpush2.bf16.msra.mxu0 0
    %5114 = vmatprep.subr.bf16.mxu0 0
    %5115 = vmatpush2.bf16.msra.mxu0 0
    %5116 = vmatprep.subr.bf16.mxu0 0
    %5117 = vmatpush2.bf16.msra.mxu0 0
    %5118 = vmatprep.subr.bf16.mxu0 0
    %5119 = vmatpush2.bf16.msra.mxu0 0
    %5120 = vmatprep.mubr.bf16.mxu0 0
    %5121 = vmatmul.mubr.bf16.gmra.mxu0 %v5000
    %v5122 = vpop.f32.mrf.mxu0
    %v5123 = vadd.f32 %v4794, %v5122
    %v5124 = vpop.f32.mrf.mxu0
    %v5125 = vadd.f32 %v4798, %v5124
    %v5126 = vpop.f32.mrf.mxu0
    %v5127 = vadd.f32 %v4794, %v5126
    %v5128 = vpop.f32.mrf.mxu0
    %v5129 = vadd.f32 %v4798, %v5128
    %5130 = vdwg.mxu0
    %5131 = vmatprep.subr.bf16.mxu0 0
    %5132 = vmatpush1.bf16.msra.mxu0 0
    %5133 = vmatprep.subr.bf16.mxu0 0
    %5134 = vmatpush1.bf16.msra.mxu0 0
    %5135 = vmatprep.subr.bf16.mxu0 0
    %5136 = vmatpush1.bf16.msra.mxu0 0
    %5137 = vmatprep.subr.bf16.mxu0 0
    %5138 = vmatpush1.bf16.msra.mxu0 0
    %5139 = vmatprep.subr.bf16.mxu0 0
    %5140 = vmatpush1.bf16.msra.mxu0 0
    %5141 = vmatprep.subr.bf16.mxu0 0
    %5142 = vmatpush1.bf16.msra.mxu0 0
    %5143 = vmatprep.subr.bf16.mxu0 %v4958
    %5144 = vmatpush1.bf16.msra.mxu0 %v4957
    %5145 = vmatprep.subr.bf16.mxu0 %v4942
    %5146 = vmatpush1.bf16.msra.mxu0 %v4941
    %5147 = vmatprep.subr.bf16.mxu0 0
    %5148 = vmatpush2.bf16.msra.mxu0 0
    %5149 = vmatprep.subr.bf16.mxu0 0
    %5150 = vmatpush2.bf16.msra.mxu0 0
    %5151 = vmatprep.subr.bf16.mxu0 0
    %5152 = vmatpush2.bf16.msra.mxu0 0
    %5153 = vmatprep.subr.bf16.mxu0 0
    %5154 = vmatpush2.bf16.msra.mxu0 0
    %5155 = vmatprep.subr.bf16.mxu0 0
    %5156 = vmatpush2.bf16.msra.mxu0 0
    %5157 = vmatprep.subr.bf16.mxu0 0
    %5158 = vmatpush2.bf16.msra.mxu0 0
    %5159 = vmatprep.subr.bf16.mxu0 0
    %5160 = vmatpush2.bf16.msra.mxu0 0
    %5161 = vmatprep.subr.bf16.mxu0 0
    %5162 = vmatpush2.bf16.msra.mxu0 0
    %5163 = vmatprep.mubr.bf16.mxu0 0
    %5164 = vmatmul.mubr.bf16.gmra.mxu0 %v5000
    %v5165 = vpop.f32.mrf.mxu0
    %v5166 = vadd.f32 %v4802, %v5165
    %v5167 = vpop.f32.mrf.mxu0
    %v5168 = vadd.f32 %v4806, %v5167
    %v5169 = vpop.f32.mrf.mxu0
    %v5170 = vadd.f32 %v4802, %v5169
    %v5171 = vpop.f32.mrf.mxu0
    %v5172 = vadd.f32 %v4806, %v5171
    %5173 = vdwg.mxu0
    %5174 = vmatprep.subr.bf16.mxu0 0
    %5175 = vmatpush1.bf16.msra.mxu0 0
    %5176 = vmatprep.subr.bf16.mxu0 0
    %5177 = vmatpush1.bf16.msra.mxu0 0
    %5178 = vmatprep.subr.bf16.mxu0 0
    %5179 = vmatpush1.bf16.msra.mxu0 0
    %5180 = vmatprep.subr.bf16.mxu0 0
    %5181 = vmatpush1.bf16.msra.mxu0 0
    %5182 = vmatprep.subr.bf16.mxu0 0
    %5183 = vmatpush1.bf16.msra.mxu0 0
    %5184 = vmatprep.subr.bf16.mxu0 0
    %5185 = vmatpush1.bf16.msra.mxu0 0
    %5186 = vmatprep.subr.bf16.mxu0 %v4960
    %5187 = vmatpush1.bf16.msra.mxu0 %v4959
    %5188 = vmatprep.subr.bf16.mxu0 %v4944
    %5189 = vmatpush1.bf16.msra.mxu0 %v4943
    %5190 = vmatprep.subr.bf16.mxu0 0
    %5191 = vmatpush2.bf16.msra.mxu0 0
    %5192 = vmatprep.subr.bf16.mxu0 0
    %5193 = vmatpush2.bf16.msra.mxu0 0
    %5194 = vmatprep.subr.bf16.mxu0 0
    %5195 = vmatpush2.bf16.msra.mxu0 0
    %5196 = vmatprep.subr.bf16.mxu0 0
    %5197 = vmatpush2.bf16.msra.mxu0 0
    %5198 = vmatprep.subr.bf16.mxu0 0
    %5199 = vmatpush2.bf16.msra.mxu0 0
    %5200 = vmatprep.subr.bf16.mxu0 0
    %5201 = vmatpush2.bf16.msra.mxu0 0
    %5202 = vmatprep.subr.bf16.mxu0 0
    %5203 = vmatpush2.bf16.msra.mxu0 0
    %5204 = vmatprep.subr.bf16.mxu0 0
    %5205 = vmatpush2.bf16.msra.mxu0 0
    %5206 = vmatprep.mubr.bf16.mxu0 0
    %5207 = vmatmul.mubr.bf16.gmra.mxu0 %v5000
    %v5208 = vpop.f32.mrf.mxu0
    %v5209 = vadd.f32 %v4810, %v5208
    %v5210 = vpop.f32.mrf.mxu0
    %v5211 = vadd.f32 %v4814, %v5210
    %v5212 = vpop.f32.mrf.mxu0
    %v5213 = vadd.f32 %v4810, %v5212
    %v5214 = vpop.f32.mrf.mxu0
    %v5215 = vadd.f32 %v4814, %v5214
    %5216 = vdwg.mxu0
    %5217 = vmatprep.subr.bf16.mxu0 0
    %5218 = vmatpush1.bf16.msra.mxu0 0
    %5219 = vmatprep.subr.bf16.mxu0 0
    %5220 = vmatpush1.bf16.msra.mxu0 0
    %5221 = vmatprep.subr.bf16.mxu0 0
    %5222 = vmatpush1.bf16.msra.mxu0 0
    %5223 = vmatprep.subr.bf16.mxu0 0
    %5224 = vmatpush1.bf16.msra.mxu0 0
    %5225 = vmatprep.subr.bf16.mxu0 0
    %5226 = vmatpush1.bf16.msra.mxu0 0
    %5227 = vmatprep.subr.bf16.mxu0 0
    %5228 = vmatpush1.bf16.msra.mxu0 0
    %5229 = vmatprep.subr.bf16.mxu0 %v4962
    %5230 = vmatpush1.bf16.msra.mxu0 %v4961
    %5231 = vmatprep.subr.bf16.mxu0 %v4946
    %5232 = vmatpush1.bf16.msra.mxu0 %v4945
    %5233 = vmatprep.subr.bf16.mxu0 0
    %5234 = vmatpush2.bf16.msra.mxu0 0
    %5235 = vmatprep.subr.bf16.mxu0 0
    %5236 = vmatpush2.bf16.msra.mxu0 0
    %5237 = vmatprep.subr.bf16.mxu0 0
    %5238 = vmatpush2.bf16.msra.mxu0 0
    %5239 = vmatprep.subr.bf16.mxu0 0
    %5240 = vmatpush2.bf16.msra.mxu0 0
    %5241 = vmatprep.subr.bf16.mxu0 0
    %5242 = vmatpush2.bf16.msra.mxu0 0
    %5243 = vmatprep.subr.bf16.mxu0 0
    %5244 = vmatpush2.bf16.msra.mxu0 0
    %5245 = vmatprep.subr.bf16.mxu0 0
    %5246 = vmatpush2.bf16.msra.mxu0 0
    %5247 = vmatprep.subr.bf16.mxu0 0
    %5248 = vmatpush2.bf16.msra.mxu0 0
    %5249 = vmatprep.mubr.bf16.mxu0 0
    %5250 = vmatmul.mubr.bf16.gmra.mxu0 %v5000
    %v5251 = vpop.f32.mrf.mxu0
    %v5252 = vadd.f32 %v4818, %v5251
    %v5253 = vpop.f32.mrf.mxu0
    %v5254 = vadd.f32 %v4822, %v5253
    %v5255 = vpop.f32.mrf.mxu0
    %v5256 = vadd.f32 %v4818, %v5255
    %v5257 = vpop.f32.mrf.mxu0
    %v5258 = vadd.f32 %v4822, %v5257
    %5259 = vdwg.mxu0
    %5260 = vmatprep.subr.bf16.mxu0 0
    %5261 = vmatpush1.bf16.msra.mxu0 0
    %5262 = vmatprep.subr.bf16.mxu0 0
    %5263 = vmatpush1.bf16.msra.mxu0 0
    %5264 = vmatprep.subr.bf16.mxu0 0
    %5265 = vmatpush1.bf16.msra.mxu0 0
    %5266 = vmatprep.subr.bf16.mxu0 0
    %5267 = vmatpush1.bf16.msra.mxu0 0
    %5268 = vmatprep.subr.bf16.mxu0 0
    %5269 = vmatpush1.bf16.msra.mxu0 0
    %5270 = vmatprep.subr.bf16.mxu0 0
    %5271 = vmatpush1.bf16.msra.mxu0 0
    %5272 = vmatprep.subr.bf16.mxu0 %v4964
    %5273 = vmatpush1.bf16.msra.mxu0 %v4963
    %5274 = vmatprep.subr.bf16.mxu0 %v4948
    %5275 = vmatpush1.bf16.msra.mxu0 %v4947
    %5276 = vmatprep.subr.bf16.mxu0 0
    %5277 = vmatpush2.bf16.msra.mxu0 0
    %5278 = vmatprep.subr.bf16.mxu0 0
    %5279 = vmatpush2.bf16.msra.mxu0 0
    %5280 = vmatprep.subr.bf16.mxu0 0
    %5281 = vmatpush2.bf16.msra.mxu0 0
    %5282 = vmatprep.subr.bf16.mxu0 0
    %5283 = vmatpush2.bf16.msra.mxu0 0
    %5284 = vmatprep.subr.bf16.mxu0 0
    %5285 = vmatpush2.bf16.msra.mxu0 0
    %5286 = vmatprep.subr.bf16.mxu0 0
    %5287 = vmatpush2.bf16.msra.mxu0 0
    %5288 = vmatprep.subr.bf16.mxu0 0
    %5289 = vmatpush2.bf16.msra.mxu0 0
    %5290 = vmatprep.subr.bf16.mxu0 0
    %5291 = vmatpush2.bf16.msra.mxu0 0
    %5292 = vmatprep.mubr.bf16.mxu0 0
    %5293 = vmatmul.mubr.bf16.gmra.mxu0 %v5000
    %v5294 = vpop.f32.mrf.mxu0
    %v5295 = vadd.f32 %v4826, %v5294
    %v5296 = vpop.f32.mrf.mxu0
    %v5297 = vadd.f32 %v4830, %v5296
    %v5298 = vpop.f32.mrf.mxu0
    %v5299 = vadd.f32 %v4826, %v5298
    %v5300 = vpop.f32.mrf.mxu0
    %v5301 = vadd.f32 %v4830, %v5300
    %5302 = vdwg.mxu0
    %5303 = vmatprep.subr.bf16.mxu0 0
    %5304 = vmatpush1.bf16.msra.mxu0 0
    %5305 = vmatprep.subr.bf16.mxu0 0
    %5306 = vmatpush1.bf16.msra.mxu0 0
    %5307 = vmatprep.subr.bf16.mxu0 0
    %5308 = vmatpush1.bf16.msra.mxu0 0
    %5309 = vmatprep.subr.bf16.mxu0 0
    %5310 = vmatpush1.bf16.msra.mxu0 0
    %5311 = vmatprep.subr.bf16.mxu0 0
    %5312 = vmatpush1.bf16.msra.mxu0 0
    %5313 = vmatprep.subr.bf16.mxu0 0
    %5314 = vmatpush1.bf16.msra.mxu0 0
    %5315 = vmatprep.subr.bf16.mxu0 %v4966
    %5316 = vmatpush1.bf16.msra.mxu0 %v4965
    %5317 = vmatprep.subr.bf16.mxu0 %v4950
    %5318 = vmatpush1.bf16.msra.mxu0 %v4949
    %5319 = vmatprep.subr.bf16.mxu0 0
    %5320 = vmatpush2.bf16.msra.mxu0 0
    %5321 = vmatprep.subr.bf16.mxu0 0
    %5322 = vmatpush2.bf16.msra.mxu0 0
    %5323 = vmatprep.subr.bf16.mxu0 0
    %5324 = vmatpush2.bf16.msra.mxu0 0
    %5325 = vmatprep.subr.bf16.mxu0 0
    %5326 = vmatpush2.bf16.msra.mxu0 0
    %5327 = vmatprep.subr.bf16.mxu0 0
    %5328 = vmatpush2.bf16.msra.mxu0 0
    %5329 = vmatprep.subr.bf16.mxu0 0
    %5330 = vmatpush2.bf16.msra.mxu0 0
    %5331 = vmatprep.subr.bf16.mxu0 0
    %5332 = vmatpush2.bf16.msra.mxu0 0
    %5333 = vmatprep.subr.bf16.mxu0 0
    %5334 = vmatpush2.bf16.msra.mxu0 0
    %5335 = vmatprep.mubr.bf16.mxu0 0
    %5336 = vmatmul.mubr.bf16.gmra.mxu0 %v5000
    %v5337 = vpop.f32.mrf.mxu0
    %v5338 = vadd.f32 %v4834, %v5337
    %v5339 = vpop.f32.mrf.mxu0
    %v5340 = vadd.f32 %v4838, %v5339
    %v5341 = vpop.f32.mrf.mxu0
    %v5342 = vadd.f32 %v4834, %v5341
    %v5343 = vpop.f32.mrf.mxu0
    %v5344 = vadd.f32 %v4838, %v5343
    %5345 = vdwg.mxu0
    %v5346 = vmax.f32 %v5037, 0.0
    %v5347 = vmax.f32 %v5039, 0.0
    %v5348 = vmax.f32 %v5080, 0.0
    %v5349 = vmax.f32 %v5082, 0.0
    %v5350 = vmax.f32 %v5123, 0.0
    %v5351 = vmax.f32 %v5125, 0.0
    %v5352 = vmax.f32 %v5166, 0.0
    %v5353 = vmax.f32 %v5168, 0.0
    %v5354 = vmax.f32 %v5209, 0.0
    %v5355 = vmax.f32 %v5211, 0.0
    %v5356 = vmax.f32 %v5252, 0.0
    %v5357 = vmax.f32 %v5254, 0.0
    %v5358 = vmax.f32 %v5295, 0.0
    %v5359 = vmax.f32 %v5297, 0.0
    %v5360 = vmax.f32 %v5338, 0.0
    %v5361 = vmax.f32 %v5340, 0.0
    %v5362 = vmax.f32 %v5041, 0.0
    %v5363 = vmax.f32 %v5043, 0.0
    %v5364 = vmax.f32 %v5084, 0.0
    %v5365 = vmax.f32 %v5086, 0.0
    %v5366 = vmax.f32 %v5127, 0.0
    %v5367 = vmax.f32 %v5129, 0.0
    %v5368 = vmax.f32 %v5170, 0.0
    %v5369 = vmax.f32 %v5172, 0.0
    %v5370 = vmax.f32 %v5213, 0.0
    %v5371 = vmax.f32 %v5215, 0.0
    %v5372 = vmax.f32 %v5256, 0.0
    %v5373 = vmax.f32 %v5258, 0.0
    %v5374 = vmax.f32 %v5299, 0.0
    %v5375 = vmax.f32 %v5301, 0.0
    %v5376 = vmax.f32 %v5342, 0.0
    %v5377 = vmax.f32 %v5344, 0.0
    %v5378 = vpack.c.bf16 %v5362, %v5346
    %v5379 = vpack.c.bf16 %v5363, %v5347
    %v5380 = vpack.c.bf16 %v5364, %v5348
    %v5381 = vpack.c.bf16 %v5365, %v5349
    %v5382 = vpack.c.bf16 %v5366, %v5350
    %v5383 = vpack.c.bf16 %v5367, %v5351
    %v5384 = vpack.c.bf16 %v5368, %v5352
    %v5385 = vpack.c.bf16 %v5369, %v5353
    %v5386 = vpack.c.bf16 %v5370, %v5354
    %v5387 = vpack.c.bf16 %v5371, %v5355
    %v5388 = vpack.c.bf16 %v5372, %v5356
    %v5389 = vpack.c.bf16 %v5373, %v5357
    %v5390 = vpack.c.bf16 %v5374, %v5358
    %v5391 = vpack.c.bf16 %v5375, %v5359
    %v5392 = vpack.c.bf16 %v5376, %v5360
    %v5393 = vpack.c.bf16 %v5377, %v5361
    %s5394 = scalar_lea.vmem %s4, 1024
    %v5395 = vld [vmem:[%s5394] sm:$0xf]
    %v5396 = vld [vmem:[%s5394 + $0x4] sm:$0xf]
    %v5397 = vld [vmem:[%s5394 + $0x8] sm:$0xf]
    %v5398 = vld [vmem:[%s5394 + $0xc] sm:$0xf]
    %v5399 = vld [vmem:[%s5394 + $0x10] sm:$0xf]
    %v5400 = vld [vmem:[%s5394 + $0x14] sm:$0xf]
    %v5401 = vld [vmem:[%s5394 + $0x18] sm:$0xf]
    %v5402 = vld [vmem:[%s5394 + $0x1c] sm:$0xf]
    %v5403 = vld [vmem:[%s5394 + $0x20] sm:$0xf]
    %v5404 = vld [vmem:[%s5394 + $0x24] sm:$0xf]
    %v5405 = vld [vmem:[%s5394 + $0x28] sm:$0xf]
    %v5406 = vld [vmem:[%s5394 + $0x2c] sm:$0xf]
    %v5407 = vld [vmem:[%s5394 + $0x30] sm:$0xf]
    %v5408 = vld [vmem:[%s5394 + $0x34] sm:$0xf]
    %v5409 = vld [vmem:[%s5394 + $0x38] sm:$0xf]
    %v5410 = vld [vmem:[%s5394 + $0x3c] sm:$0xf]
    %v5411 = vld [vmem:[%s5394 + $0x40] sm:$0xf]
    %v5412 = vld [vmem:[%s5394 + $0x44] sm:$0xf]
    %v5413 = vld [vmem:[%s5394 + $0x48] sm:$0xf]
    %v5414 = vld [vmem:[%s5394 + $0x4c] sm:$0xf]
    %v5415 = vld [vmem:[%s5394 + $0x50] sm:$0xf]
    %v5416 = vld [vmem:[%s5394 + $0x54] sm:$0xf]
    %v5417 = vld [vmem:[%s5394 + $0x58] sm:$0xf]
    %v5418 = vld [vmem:[%s5394 + $0x5c] sm:$0xf]
    %v5419 = vld [vmem:[%s5394 + $0x60] sm:$0xf]
    %v5420 = vld [vmem:[%s5394 + $0x64] sm:$0xf]
    %v5421 = vld [vmem:[%s5394 + $0x68] sm:$0xf]
    %v5422 = vld [vmem:[%s5394 + $0x6c] sm:$0xf]
    %v5423 = vld [vmem:[%s5394 + $0x70] sm:$0xf]
    %v5424 = vld [vmem:[%s5394 + $0x74] sm:$0xf]
    %v5425 = vld [vmem:[%s5394 + $0x78] sm:$0xf]
    %v5426 = vld [vmem:[%s5394 + $0x7c] sm:$0xf]
    %v5427 = vld [vmem:[%s5394 + $0x80] sm:$0xf]
    %v5428 = vld [vmem:[%s5394 + $0x84] sm:$0xf]
    %v5429 = vld [vmem:[%s5394 + $0x88] sm:$0xf]
    %v5430 = vld [vmem:[%s5394 + $0x8c] sm:$0xf]
    %v5431 = vld [vmem:[%s5394 + $0x90] sm:$0xf]
    %v5432 = vld [vmem:[%s5394 + $0x94] sm:$0xf]
    %v5433 = vld [vmem:[%s5394 + $0x98] sm:$0xf]
    %v5434 = vld [vmem:[%s5394 + $0x9c] sm:$0xf]
    %v5435 = vld [vmem:[%s5394 + $0xa0] sm:$0xf]
    %v5436 = vld [vmem:[%s5394 + $0xa4] sm:$0xf]
    %v5437 = vld [vmem:[%s5394 + $0xa8] sm:$0xf]
    %v5438 = vld [vmem:[%s5394 + $0xac] sm:$0xf]
    %v5439 = vld [vmem:[%s5394 + $0xb0] sm:$0xf]
    %v5440 = vld [vmem:[%s5394 + $0xb4] sm:$0xf]
    %v5441 = vld [vmem:[%s5394 + $0xb8] sm:$0xf]
    %v5442 = vld [vmem:[%s5394 + $0xbc] sm:$0xf]
    %v5443 = vld [vmem:[%s5394 + $0xc0] sm:$0xf]
    %v5444 = vld [vmem:[%s5394 + $0xc4] sm:$0xf]
    %v5445 = vld [vmem:[%s5394 + $0xc8] sm:$0xf]
    %v5446 = vld [vmem:[%s5394 + $0xcc] sm:$0xf]
    %v5447 = vld [vmem:[%s5394 + $0xd0] sm:$0xf]
    %v5448 = vld [vmem:[%s5394 + $0xd4] sm:$0xf]
    %v5449 = vld [vmem:[%s5394 + $0xd8] sm:$0xf]
    %v5450 = vld [vmem:[%s5394 + $0xdc] sm:$0xf]
    %v5451 = vld [vmem:[%s5394 + $0xe0] sm:$0xf]
    %v5452 = vld [vmem:[%s5394 + $0xe4] sm:$0xf]
    %v5453 = vld [vmem:[%s5394 + $0xe8] sm:$0xf]
    %v5454 = vld [vmem:[%s5394 + $0xec] sm:$0xf]
    %v5455 = vld [vmem:[%s5394 + $0xf0] sm:$0xf]
    %v5456 = vld [vmem:[%s5394 + $0xf4] sm:$0xf]
    %v5457 = vld [vmem:[%s5394 + $0xf8] sm:$0xf]
    %v5458 = vld [vmem:[%s5394 + $0xfc] sm:$0xf]
    %v5459 = vld [vmem:[%s5394 + $0x100] sm:$0xf]
    %v5460 = vld [vmem:[%s5394 + $0x104] sm:$0xf]
    %v5461 = vld [vmem:[%s5394 + $0x108] sm:$0xf]
    %v5462 = vld [vmem:[%s5394 + $0x10c] sm:$0xf]
    %v5463 = vld [vmem:[%s5394 + $0x110] sm:$0xf]
    %v5464 = vld [vmem:[%s5394 + $0x114] sm:$0xf]
    %v5465 = vld [vmem:[%s5394 + $0x118] sm:$0xf]
    %v5466 = vld [vmem:[%s5394 + $0x11c] sm:$0xf]
    %v5467 = vld [vmem:[%s5394 + $0x120] sm:$0xf]
    %v5468 = vld [vmem:[%s5394 + $0x124] sm:$0xf]
    %v5469 = vld [vmem:[%s5394 + $0x128] sm:$0xf]
    %v5470 = vld [vmem:[%s5394 + $0x12c] sm:$0xf]
    %v5471 = vld [vmem:[%s5394 + $0x130] sm:$0xf]
    %v5472 = vld [vmem:[%s5394 + $0x134] sm:$0xf]
    %v5473 = vld [vmem:[%s5394 + $0x138] sm:$0xf]
    %v5474 = vld [vmem:[%s5394 + $0x13c] sm:$0xf]
    %v5475 = vld [vmem:[%s5394 + $0x140] sm:$0xf]
    %v5476 = vld [vmem:[%s5394 + $0x144] sm:$0xf]
    %v5477 = vld [vmem:[%s5394 + $0x148] sm:$0xf]
    %v5478 = vld [vmem:[%s5394 + $0x14c] sm:$0xf]
    %v5479 = vld [vmem:[%s5394 + $0x150] sm:$0xf]
    %v5480 = vld [vmem:[%s5394 + $0x154] sm:$0xf]
    %v5481 = vld [vmem:[%s5394 + $0x158] sm:$0xf]
    %v5482 = vld [vmem:[%s5394 + $0x15c] sm:$0xf]
    %v5483 = vld [vmem:[%s5394 + $0x160] sm:$0xf]
    %v5484 = vld [vmem:[%s5394 + $0x164] sm:$0xf]
    %v5485 = vld [vmem:[%s5394 + $0x168] sm:$0xf]
    %v5486 = vld [vmem:[%s5394 + $0x16c] sm:$0xf]
    %v5487 = vld [vmem:[%s5394 + $0x170] sm:$0xf]
    %v5488 = vld [vmem:[%s5394 + $0x174] sm:$0xf]
    %v5489 = vld [vmem:[%s5394 + $0x178] sm:$0xf]
    %v5490 = vld [vmem:[%s5394 + $0x17c] sm:$0xf]
    %v5491 = vld [vmem:[%s5394 + $0x180] sm:$0xf]
    %v5492 = vld [vmem:[%s5394 + $0x184] sm:$0xf]
    %v5493 = vld [vmem:[%s5394 + $0x188] sm:$0xf]
    %v5494 = vld [vmem:[%s5394 + $0x18c] sm:$0xf]
    %v5495 = vld [vmem:[%s5394 + $0x190] sm:$0xf]
    %v5496 = vld [vmem:[%s5394 + $0x194] sm:$0xf]
    %v5497 = vld [vmem:[%s5394 + $0x198] sm:$0xf]
    %v5498 = vld [vmem:[%s5394 + $0x19c] sm:$0xf]
    %v5499 = vld [vmem:[%s5394 + $0x1a0] sm:$0xf]
    %v5500 = vld [vmem:[%s5394 + $0x1a4] sm:$0xf]
    %v5501 = vld [vmem:[%s5394 + $0x1a8] sm:$0xf]
    %v5502 = vld [vmem:[%s5394 + $0x1ac] sm:$0xf]
    %v5503 = vld [vmem:[%s5394 + $0x1b0] sm:$0xf]
    %v5504 = vld [vmem:[%s5394 + $0x1b4] sm:$0xf]
    %v5505 = vld [vmem:[%s5394 + $0x1b8] sm:$0xf]
    %v5506 = vld [vmem:[%s5394 + $0x1bc] sm:$0xf]
    %v5507 = vld [vmem:[%s5394 + $0x1c0] sm:$0xf]
    %v5508 = vld [vmem:[%s5394 + $0x1c4] sm:$0xf]
    %v5509 = vld [vmem:[%s5394 + $0x1c8] sm:$0xf]
    %v5510 = vld [vmem:[%s5394 + $0x1cc] sm:$0xf]
    %v5511 = vld [vmem:[%s5394 + $0x1d0] sm:$0xf]
    %v5512 = vld [vmem:[%s5394 + $0x1d4] sm:$0xf]
    %v5513 = vld [vmem:[%s5394 + $0x1d8] sm:$0xf]
    %v5514 = vld [vmem:[%s5394 + $0x1dc] sm:$0xf]
    %v5515 = vld [vmem:[%s5394 + $0x1e0] sm:$0xf]
    %v5516 = vld [vmem:[%s5394 + $0x1e4] sm:$0xf]
    %v5517 = vld [vmem:[%s5394 + $0x1e8] sm:$0xf]
    %v5518 = vld [vmem:[%s5394 + $0x1ec] sm:$0xf]
    %v5519 = vld [vmem:[%s5394 + $0x1f0] sm:$0xf]
    %v5520 = vld [vmem:[%s5394 + $0x1f4] sm:$0xf]
    %v5521 = vld [vmem:[%s5394 + $0x1f8] sm:$0xf]
    %v5522 = vld [vmem:[%s5394 + $0x1fc] sm:$0xf]
    %v5523 = vld [vmem:[%s5394 + $0x200] sm:$0xf]
    %v5524 = vld [vmem:[%s5394 + $0x204] sm:$0xf]
    %v5525 = vld [vmem:[%s5394 + $0x208] sm:$0xf]
    %v5526 = vld [vmem:[%s5394 + $0x20c] sm:$0xf]
    %v5527 = vld [vmem:[%s5394 + $0x210] sm:$0xf]
    %v5528 = vld [vmem:[%s5394 + $0x214] sm:$0xf]
    %v5529 = vld [vmem:[%s5394 + $0x218] sm:$0xf]
    %v5530 = vld [vmem:[%s5394 + $0x21c] sm:$0xf]
    %v5531 = vld [vmem:[%s5394 + $0x220] sm:$0xf]
    %v5532 = vld [vmem:[%s5394 + $0x224] sm:$0xf]
    %v5533 = vld [vmem:[%s5394 + $0x228] sm:$0xf]
    %v5534 = vld [vmem:[%s5394 + $0x22c] sm:$0xf]
    %v5535 = vld [vmem:[%s5394 + $0x230] sm:$0xf]
    %v5536 = vld [vmem:[%s5394 + $0x234] sm:$0xf]
    %v5537 = vld [vmem:[%s5394 + $0x238] sm:$0xf]
    %v5538 = vld [vmem:[%s5394 + $0x23c] sm:$0xf]
    %v5539 = vld [vmem:[%s5394 + $0x240] sm:$0xf]
    %v5540 = vld [vmem:[%s5394 + $0x244] sm:$0xf]
    %v5541 = vld [vmem:[%s5394 + $0x248] sm:$0xf]
    %v5542 = vld [vmem:[%s5394 + $0x24c] sm:$0xf]
    %v5543 = vld [vmem:[%s5394 + $0x250] sm:$0xf]
    %v5544 = vld [vmem:[%s5394 + $0x254] sm:$0xf]
    %v5545 = vld [vmem:[%s5394 + $0x258] sm:$0xf]
    %v5546 = vld [vmem:[%s5394 + $0x25c] sm:$0xf]
    %v5547 = vld [vmem:[%s5394 + $0x260] sm:$0xf]
    %v5548 = vld [vmem:[%s5394 + $0x264] sm:$0xf]
    %v5549 = vld [vmem:[%s5394 + $0x268] sm:$0xf]
    %v5550 = vld [vmem:[%s5394 + $0x26c] sm:$0xf]
    %v5551 = vld [vmem:[%s5394 + $0x270] sm:$0xf]
    %v5552 = vld [vmem:[%s5394 + $0x274] sm:$0xf]
    %v5553 = vld [vmem:[%s5394 + $0x278] sm:$0xf]
    %v5554 = vld [vmem:[%s5394 + $0x27c] sm:$0xf]
    %v5555 = vld [vmem:[%s5394 + $0x280] sm:$0xf]
    %v5556 = vld [vmem:[%s5394 + $0x284] sm:$0xf]
    %v5557 = vld [vmem:[%s5394 + $0x288] sm:$0xf]
    %v5558 = vld [vmem:[%s5394 + $0x28c] sm:$0xf]
    %v5559 = vld [vmem:[%s5394 + $0x290] sm:$0xf]
    %v5560 = vld [vmem:[%s5394 + $0x294] sm:$0xf]
    %v5561 = vld [vmem:[%s5394 + $0x298] sm:$0xf]
    %v5562 = vld [vmem:[%s5394 + $0x29c] sm:$0xf]
    %v5563 = vld [vmem:[%s5394 + $0x2a0] sm:$0xf]
    %v5564 = vld [vmem:[%s5394 + $0x2a4] sm:$0xf]
    %v5565 = vld [vmem:[%s5394 + $0x2a8] sm:$0xf]
    %v5566 = vld [vmem:[%s5394 + $0x2ac] sm:$0xf]
    %v5567 = vld [vmem:[%s5394 + $0x2b0] sm:$0xf]
    %v5568 = vld [vmem:[%s5394 + $0x2b4] sm:$0xf]
    %v5569 = vld [vmem:[%s5394 + $0x2b8] sm:$0xf]
    %v5570 = vld [vmem:[%s5394 + $0x2bc] sm:$0xf]
    %v5571 = vld [vmem:[%s5394 + $0x2c0] sm:$0xf]
    %v5572 = vld [vmem:[%s5394 + $0x2c4] sm:$0xf]
    %v5573 = vld [vmem:[%s5394 + $0x2c8] sm:$0xf]
    %v5574 = vld [vmem:[%s5394 + $0x2cc] sm:$0xf]
    %v5575 = vld [vmem:[%s5394 + $0x2d0] sm:$0xf]
    %v5576 = vld [vmem:[%s5394 + $0x2d4] sm:$0xf]
    %v5577 = vld [vmem:[%s5394 + $0x2d8] sm:$0xf]
    %v5578 = vld [vmem:[%s5394 + $0x2dc] sm:$0xf]
    %v5579 = vld [vmem:[%s5394 + $0x2e0] sm:$0xf]
    %v5580 = vld [vmem:[%s5394 + $0x2e4] sm:$0xf]
    %v5581 = vld [vmem:[%s5394 + $0x2e8] sm:$0xf]
    %v5582 = vld [vmem:[%s5394 + $0x2ec] sm:$0xf]
    %v5583 = vld [vmem:[%s5394 + $0x2f0] sm:$0xf]
    %v5584 = vld [vmem:[%s5394 + $0x2f4] sm:$0xf]
    %v5585 = vld [vmem:[%s5394 + $0x2f8] sm:$0xf]
    %v5586 = vld [vmem:[%s5394 + $0x2fc] sm:$0xf]
    %v5587 = vld [vmem:[%s5394 + $0x300] sm:$0xf]
    %v5588 = vld [vmem:[%s5394 + $0x304] sm:$0xf]
    %v5589 = vld [vmem:[%s5394 + $0x308] sm:$0xf]
    %v5590 = vld [vmem:[%s5394 + $0x30c] sm:$0xf]
    %v5591 = vld [vmem:[%s5394 + $0x310] sm:$0xf]
    %v5592 = vld [vmem:[%s5394 + $0x314] sm:$0xf]
    %v5593 = vld [vmem:[%s5394 + $0x318] sm:$0xf]
    %v5594 = vld [vmem:[%s5394 + $0x31c] sm:$0xf]
    %v5595 = vld [vmem:[%s5394 + $0x320] sm:$0xf]
    %v5596 = vld [vmem:[%s5394 + $0x324] sm:$0xf]
    %v5597 = vld [vmem:[%s5394 + $0x328] sm:$0xf]
    %v5598 = vld [vmem:[%s5394 + $0x32c] sm:$0xf]
    %v5599 = vld [vmem:[%s5394 + $0x330] sm:$0xf]
    %v5600 = vld [vmem:[%s5394 + $0x334] sm:$0xf]
    %v5601 = vld [vmem:[%s5394 + $0x338] sm:$0xf]
    %v5602 = vld [vmem:[%s5394 + $0x33c] sm:$0xf]
    %v5603 = vld [vmem:[%s5394 + $0x340] sm:$0xf]
    %v5604 = vld [vmem:[%s5394 + $0x344] sm:$0xf]
    %v5605 = vld [vmem:[%s5394 + $0x348] sm:$0xf]
    %v5606 = vld [vmem:[%s5394 + $0x34c] sm:$0xf]
    %v5607 = vld [vmem:[%s5394 + $0x350] sm:$0xf]
    %v5608 = vld [vmem:[%s5394 + $0x354] sm:$0xf]
    %v5609 = vld [vmem:[%s5394 + $0x358] sm:$0xf]
    %v5610 = vld [vmem:[%s5394 + $0x35c] sm:$0xf]
    %v5611 = vld [vmem:[%s5394 + $0x360] sm:$0xf]
    %v5612 = vld [vmem:[%s5394 + $0x364] sm:$0xf]
    %v5613 = vld [vmem:[%s5394 + $0x368] sm:$0xf]
    %v5614 = vld [vmem:[%s5394 + $0x36c] sm:$0xf]
    %v5615 = vld [vmem:[%s5394 + $0x370] sm:$0xf]
    %v5616 = vld [vmem:[%s5394 + $0x374] sm:$0xf]
    %v5617 = vld [vmem:[%s5394 + $0x378] sm:$0xf]
    %v5618 = vld [vmem:[%s5394 + $0x37c] sm:$0xf]
    %v5619 = vld [vmem:[%s5394 + $0x380] sm:$0xf]
    %v5620 = vld [vmem:[%s5394 + $0x384] sm:$0xf]
    %v5621 = vld [vmem:[%s5394 + $0x388] sm:$0xf]
    %v5622 = vld [vmem:[%s5394 + $0x38c] sm:$0xf]
    %v5623 = vld [vmem:[%s5394 + $0x390] sm:$0xf]
    %v5624 = vld [vmem:[%s5394 + $0x394] sm:$0xf]
    %v5625 = vld [vmem:[%s5394 + $0x398] sm:$0xf]
    %v5626 = vld [vmem:[%s5394 + $0x39c] sm:$0xf]
    %v5627 = vld [vmem:[%s5394 + $0x3a0] sm:$0xf]
    %v5628 = vld [vmem:[%s5394 + $0x3a4] sm:$0xf]
    %v5629 = vld [vmem:[%s5394 + $0x3a8] sm:$0xf]
    %v5630 = vld [vmem:[%s5394 + $0x3ac] sm:$0xf]
    %v5631 = vld [vmem:[%s5394 + $0x3b0] sm:$0xf]
    %v5632 = vld [vmem:[%s5394 + $0x3b4] sm:$0xf]
    %v5633 = vld [vmem:[%s5394 + $0x3b8] sm:$0xf]
    %v5634 = vld [vmem:[%s5394 + $0x3bc] sm:$0xf]
    %v5635 = vld [vmem:[%s5394 + $0x3c0] sm:$0xf]
    %v5636 = vld [vmem:[%s5394 + $0x3c4] sm:$0xf]
    %v5637 = vld [vmem:[%s5394 + $0x3c8] sm:$0xf]
    %v5638 = vld [vmem:[%s5394 + $0x3cc] sm:$0xf]
    %v5639 = vld [vmem:[%s5394 + $0x3d0] sm:$0xf]
    %v5640 = vld [vmem:[%s5394 + $0x3d4] sm:$0xf]
    %v5641 = vld [vmem:[%s5394 + $0x3d8] sm:$0xf]
    %v5642 = vld [vmem:[%s5394 + $0x3dc] sm:$0xf]
    %v5643 = vld [vmem:[%s5394 + $0x3e0] sm:$0xf]
    %v5644 = vld [vmem:[%s5394 + $0x3e4] sm:$0xf]
    %v5645 = vld [vmem:[%s5394 + $0x3e8] sm:$0xf]
    %v5646 = vld [vmem:[%s5394 + $0x3ec] sm:$0xf]
    %v5647 = vld [vmem:[%s5394 + $0x3f0] sm:$0xf]
    %v5648 = vld [vmem:[%s5394 + $0x3f4] sm:$0xf]
    %v5649 = vld [vmem:[%s5394 + $0x3f8] sm:$0xf]
    %v5650 = vld [vmem:[%s5394 + $0x3fc] sm:$0xf]
    %v5651 = vlaneseq
    %v5652 = vshrl.u32 %v5651, 7
    %v5653 = vsub.s32 7, %v5652
    %v5654 = vrot.slane %v31, %v5653
    %v5911 = vunpack.c.l.b16 %v5395
    %v5912 = vunpack.c.l.b16 %v5396
    %v5913 = vunpack.c.l.b16 %v5397
    %v5914 = vunpack.c.l.b16 %v5398
    %v5915 = vunpack.c.l.b16 %v5399
    %v5916 = vunpack.c.l.b16 %v5400
    %v5917 = vunpack.c.l.b16 %v5401
    %v5918 = vunpack.c.l.b16 %v5402
    %v5919 = vunpack.c.l.b16 %v5403
    %v5920 = vunpack.c.l.b16 %v5404
    %v5921 = vunpack.c.l.b16 %v5405
    %v5922 = vunpack.c.l.b16 %v5406
    %v5923 = vunpack.c.l.b16 %v5407
    %v5924 = vunpack.c.l.b16 %v5408
    %v5925 = vunpack.c.l.b16 %v5409
    %v5926 = vunpack.c.l.b16 %v5410
    %v5927 = vunpack.c.l.b16 %v5411
    %v5928 = vunpack.c.l.b16 %v5412
    %v5929 = vunpack.c.l.b16 %v5413
    %v5930 = vunpack.c.l.b16 %v5414
    %v5931 = vunpack.c.l.b16 %v5415
    %v5932 = vunpack.c.l.b16 %v5416
    %v5933 = vunpack.c.l.b16 %v5417
    %v5934 = vunpack.c.l.b16 %v5418
    %v5935 = vunpack.c.l.b16 %v5419
    %v5936 = vunpack.c.l.b16 %v5420
    %v5937 = vunpack.c.l.b16 %v5421
    %v5938 = vunpack.c.l.b16 %v5422
    %v5939 = vunpack.c.l.b16 %v5423
    %v5940 = vunpack.c.l.b16 %v5424
    %v5941 = vunpack.c.l.b16 %v5425
    %v5942 = vunpack.c.l.b16 %v5426
    %v5943 = vunpack.c.l.b16 %v5427
    %v5944 = vunpack.c.l.b16 %v5428
    %v5945 = vunpack.c.l.b16 %v5429
    %v5946 = vunpack.c.l.b16 %v5430
    %v5947 = vunpack.c.l.b16 %v5431
    %v5948 = vunpack.c.l.b16 %v5432
    %v5949 = vunpack.c.l.b16 %v5433
    %v5950 = vunpack.c.l.b16 %v5434
    %v5951 = vunpack.c.l.b16 %v5435
    %v5952 = vunpack.c.l.b16 %v5436
    %v5953 = vunpack.c.l.b16 %v5437
    %v5954 = vunpack.c.l.b16 %v5438
    %v5955 = vunpack.c.l.b16 %v5439
    %v5956 = vunpack.c.l.b16 %v5440
    %v5957 = vunpack.c.l.b16 %v5441
    %v5958 = vunpack.c.l.b16 %v5442
    %v5959 = vunpack.c.l.b16 %v5443
    %v5960 = vunpack.c.l.b16 %v5444
    %v5961 = vunpack.c.l.b16 %v5445
    %v5962 = vunpack.c.l.b16 %v5446
    %v5963 = vunpack.c.l.b16 %v5447
    %v5964 = vunpack.c.l.b16 %v5448
    %v5965 = vunpack.c.l.b16 %v5449
    %v5966 = vunpack.c.l.b16 %v5450
    %v5967 = vunpack.c.l.b16 %v5451
    %v5968 = vunpack.c.l.b16 %v5452
    %v5969 = vunpack.c.l.b16 %v5453
    %v5970 = vunpack.c.l.b16 %v5454
    %v5971 = vunpack.c.l.b16 %v5455
    %v5972 = vunpack.c.l.b16 %v5456
    %v5973 = vunpack.c.l.b16 %v5457
    %v5974 = vunpack.c.l.b16 %v5458
    %v5975 = vunpack.c.l.b16 %v5459
    %v5976 = vunpack.c.l.b16 %v5460
    %v5977 = vunpack.c.l.b16 %v5461
    %v5978 = vunpack.c.l.b16 %v5462
    %v5979 = vunpack.c.l.b16 %v5463
    %v5980 = vunpack.c.l.b16 %v5464
    %v5981 = vunpack.c.l.b16 %v5465
    %v5982 = vunpack.c.l.b16 %v5466
    %v5983 = vunpack.c.l.b16 %v5467
    %v5984 = vunpack.c.l.b16 %v5468
    %v5985 = vunpack.c.l.b16 %v5469
    %v5986 = vunpack.c.l.b16 %v5470
    %v5987 = vunpack.c.l.b16 %v5471
    %v5988 = vunpack.c.l.b16 %v5472
    %v5989 = vunpack.c.l.b16 %v5473
    %v5990 = vunpack.c.l.b16 %v5474
    %v5991 = vunpack.c.l.b16 %v5475
    %v5992 = vunpack.c.l.b16 %v5476
    %v5993 = vunpack.c.l.b16 %v5477
    %v5994 = vunpack.c.l.b16 %v5478
    %v5995 = vunpack.c.l.b16 %v5479
    %v5996 = vunpack.c.l.b16 %v5480
    %v5997 = vunpack.c.l.b16 %v5481
    %v5998 = vunpack.c.l.b16 %v5482
    %v5999 = vunpack.c.l.b16 %v5483
    %v6000 = vunpack.c.l.b16 %v5484
    %v6001 = vunpack.c.l.b16 %v5485
    %v6002 = vunpack.c.l.b16 %v5486
    %v6003 = vunpack.c.l.b16 %v5487
    %v6004 = vunpack.c.l.b16 %v5488
    %v6005 = vunpack.c.l.b16 %v5489
    %v6006 = vunpack.c.l.b16 %v5490
    %v6007 = vunpack.c.l.b16 %v5491
    %v6008 = vunpack.c.l.b16 %v5492
    %v6009 = vunpack.c.l.b16 %v5493
    %v6010 = vunpack.c.l.b16 %v5494
    %v6011 = vunpack.c.l.b16 %v5495
    %v6012 = vunpack.c.l.b16 %v5496
    %v6013 = vunpack.c.l.b16 %v5497
    %v6014 = vunpack.c.l.b16 %v5498
    %v6015 = vunpack.c.l.b16 %v5499
    %v6016 = vunpack.c.l.b16 %v5500
    %v6017 = vunpack.c.l.b16 %v5501
    %v6018 = vunpack.c.l.b16 %v5502
    %v6019 = vunpack.c.l.b16 %v5503
    %v6020 = vunpack.c.l.b16 %v5504
    %v6021 = vunpack.c.l.b16 %v5505
    %v6022 = vunpack.c.l.b16 %v5506
    %v6023 = vunpack.c.l.b16 %v5507
    %v6024 = vunpack.c.l.b16 %v5508
    %v6025 = vunpack.c.l.b16 %v5509
    %v6026 = vunpack.c.l.b16 %v5510
    %v6027 = vunpack.c.l.b16 %v5511
    %v6028 = vunpack.c.l.b16 %v5512
    %v6029 = vunpack.c.l.b16 %v5513
    %v6030 = vunpack.c.l.b16 %v5514
    %v6031 = vunpack.c.l.b16 %v5515
    %v6032 = vunpack.c.l.b16 %v5516
    %v6033 = vunpack.c.l.b16 %v5517
    %v6034 = vunpack.c.l.b16 %v5518
    %v6035 = vunpack.c.l.b16 %v5519
    %v6036 = vunpack.c.l.b16 %v5520
    %v6037 = vunpack.c.l.b16 %v5521
    %v6038 = vunpack.c.l.b16 %v5522
    %v6039 = vunpack.c.l.b16 %v5523
    %v6040 = vunpack.c.l.b16 %v5524
    %v6041 = vunpack.c.l.b16 %v5525
    %v6042 = vunpack.c.l.b16 %v5526
    %v6043 = vunpack.c.l.b16 %v5527
    %v6044 = vunpack.c.l.b16 %v5528
    %v6045 = vunpack.c.l.b16 %v5529
    %v6046 = vunpack.c.l.b16 %v5530
    %v6047 = vunpack.c.l.b16 %v5531
    %v6048 = vunpack.c.l.b16 %v5532
    %v6049 = vunpack.c.l.b16 %v5533
    %v6050 = vunpack.c.l.b16 %v5534
    %v6051 = vunpack.c.l.b16 %v5535
    %v6052 = vunpack.c.l.b16 %v5536
    %v6053 = vunpack.c.l.b16 %v5537
    %v6054 = vunpack.c.l.b16 %v5538
    %v6055 = vunpack.c.l.b16 %v5539
    %v6056 = vunpack.c.l.b16 %v5540
    %v6057 = vunpack.c.l.b16 %v5541
    %v6058 = vunpack.c.l.b16 %v5542
    %v6059 = vunpack.c.l.b16 %v5543
    %v6060 = vunpack.c.l.b16 %v5544
    %v6061 = vunpack.c.l.b16 %v5545
    %v6062 = vunpack.c.l.b16 %v5546
    %v6063 = vunpack.c.l.b16 %v5547
    %v6064 = vunpack.c.l.b16 %v5548
    %v6065 = vunpack.c.l.b16 %v5549
    %v6066 = vunpack.c.l.b16 %v5550
    %v6067 = vunpack.c.l.b16 %v5551
    %v6068 = vunpack.c.l.b16 %v5552
    %v6069 = vunpack.c.l.b16 %v5553
    %v6070 = vunpack.c.l.b16 %v5554
    %v6071 = vunpack.c.l.b16 %v5555
    %v6072 = vunpack.c.l.b16 %v5556
    %v6073 = vunpack.c.l.b16 %v5557
    %v6074 = vunpack.c.l.b16 %v5558
    %v6075 = vunpack.c.l.b16 %v5559
    %v6076 = vunpack.c.l.b16 %v5560
    %v6077 = vunpack.c.l.b16 %v5561
    %v6078 = vunpack.c.l.b16 %v5562
    %v6079 = vunpack.c.l.b16 %v5563
    %v6080 = vunpack.c.l.b16 %v5564
    %v6081 = vunpack.c.l.b16 %v5565
    %v6082 = vunpack.c.l.b16 %v5566
    %v6083 = vunpack.c.l.b16 %v5567
    %v6084 = vunpack.c.l.b16 %v5568
    %v6085 = vunpack.c.l.b16 %v5569
    %v6086 = vunpack.c.l.b16 %v5570
    %v6087 = vunpack.c.l.b16 %v5571
    %v6088 = vunpack.c.l.b16 %v5572
    %v6089 = vunpack.c.l.b16 %v5573
    %v6090 = vunpack.c.l.b16 %v5574
    %v6091 = vunpack.c.l.b16 %v5575
    %v6092 = vunpack.c.l.b16 %v5576
    %v6093 = vunpack.c.l.b16 %v5577
    %v6094 = vunpack.c.l.b16 %v5578
    %v6095 = vunpack.c.l.b16 %v5579
    %v6096 = vunpack.c.l.b16 %v5580
    %v6097 = vunpack.c.l.b16 %v5581
    %v6098 = vunpack.c.l.b16 %v5582
    %v6099 = vunpack.c.l.b16 %v5583
    %v6100 = vunpack.c.l.b16 %v5584
    %v6101 = vunpack.c.l.b16 %v5585
    %v6102 = vunpack.c.l.b16 %v5586
    %v6103 = vunpack.c.l.b16 %v5587
    %v6104 = vunpack.c.l.b16 %v5588
    %v6105 = vunpack.c.l.b16 %v5589
    %v6106 = vunpack.c.l.b16 %v5590
    %v6107 = vunpack.c.l.b16 %v5591
    %v6108 = vunpack.c.l.b16 %v5592
    %v6109 = vunpack.c.l.b16 %v5593
    %v6110 = vunpack.c.l.b16 %v5594
    %v6111 = vunpack.c.l.b16 %v5595
    %v6112 = vunpack.c.l.b16 %v5596
    %v6113 = vunpack.c.l.b16 %v5597
    %v6114 = vunpack.c.l.b16 %v5598
    %v6115 = vunpack.c.l.b16 %v5599
    %v6116 = vunpack.c.l.b16 %v5600
    %v6117 = vunpack.c.l.b16 %v5601
    %v6118 = vunpack.c.l.b16 %v5602
    %v6119 = vunpack.c.l.b16 %v5603
    %v6120 = vunpack.c.l.b16 %v5604
    %v6121 = vunpack.c.l.b16 %v5605
    %v6122 = vunpack.c.l.b16 %v5606
    %v6123 = vunpack.c.l.b16 %v5607
    %v6124 = vunpack.c.l.b16 %v5608
    %v6125 = vunpack.c.l.b16 %v5609
    %v6126 = vunpack.c.l.b16 %v5610
    %v6127 = vunpack.c.l.b16 %v5611
    %v6128 = vunpack.c.l.b16 %v5612
    %v6129 = vunpack.c.l.b16 %v5613
    %v6130 = vunpack.c.l.b16 %v5614
    %v6131 = vunpack.c.l.b16 %v5615
    %v6132 = vunpack.c.l.b16 %v5616
    %v6133 = vunpack.c.l.b16 %v5617
    %v6134 = vunpack.c.l.b16 %v5618
    %v6135 = vunpack.c.l.b16 %v5619
    %v6136 = vunpack.c.l.b16 %v5620
    %v6137 = vunpack.c.l.b16 %v5621
    %v6138 = vunpack.c.l.b16 %v5622
    %v6139 = vunpack.c.l.b16 %v5623
    %v6140 = vunpack.c.l.b16 %v5624
    %v6141 = vunpack.c.l.b16 %v5625
    %v6142 = vunpack.c.l.b16 %v5626
    %v6143 = vunpack.c.l.b16 %v5627
    %v6144 = vunpack.c.l.b16 %v5628
    %v6145 = vunpack.c.l.b16 %v5629
    %v6146 = vunpack.c.l.b16 %v5630
    %v6147 = vunpack.c.l.b16 %v5631
    %v6148 = vunpack.c.l.b16 %v5632
    %v6149 = vunpack.c.l.b16 %v5633
    %v6150 = vunpack.c.l.b16 %v5634
    %v6151 = vunpack.c.l.b16 %v5635
    %v6152 = vunpack.c.l.b16 %v5636
    %v6153 = vunpack.c.l.b16 %v5637
    %v6154 = vunpack.c.l.b16 %v5638
    %v6155 = vunpack.c.l.b16 %v5639
    %v6156 = vunpack.c.l.b16 %v5640
    %v6157 = vunpack.c.l.b16 %v5641
    %v6158 = vunpack.c.l.b16 %v5642
    %v6159 = vunpack.c.l.b16 %v5643
    %v6160 = vunpack.c.l.b16 %v5644
    %v6161 = vunpack.c.l.b16 %v5645
    %v6162 = vunpack.c.l.b16 %v5646
    %v6163 = vunpack.c.l.b16 %v5647
    %v6164 = vunpack.c.l.b16 %v5648
    %v6165 = vunpack.c.l.b16 %v5649
    %v6166 = vunpack.c.l.b16 %v5650
    %v6167 = vpack.c.b16 %v5912, %v5911
    %v6168 = vpack.c.b16 %v5914, %v5913
    %v6169 = vpack.c.b16 %v5916, %v5915
    %v6170 = vpack.c.b16 %v5918, %v5917
    %v6171 = vpack.c.b16 %v5920, %v5919
    %v6172 = vpack.c.b16 %v5922, %v5921
    %v6173 = vpack.c.b16 %v5924, %v5923
    %v6174 = vpack.c.b16 %v5926, %v5925
    %v6175 = vpack.c.b16 %v5928, %v5927
    %v6176 = vpack.c.b16 %v5930, %v5929
    %v6177 = vpack.c.b16 %v5932, %v5931
    %v6178 = vpack.c.b16 %v5934, %v5933
    %v6179 = vpack.c.b16 %v5936, %v5935
    %v6180 = vpack.c.b16 %v5938, %v5937
    %v6181 = vpack.c.b16 %v5940, %v5939
    %v6182 = vpack.c.b16 %v5942, %v5941
    %v6183 = vpack.c.b16 %v5944, %v5943
    %v6184 = vpack.c.b16 %v5946, %v5945
    %v6185 = vpack.c.b16 %v5948, %v5947
    %v6186 = vpack.c.b16 %v5950, %v5949
    %v6187 = vpack.c.b16 %v5952, %v5951
    %v6188 = vpack.c.b16 %v5954, %v5953
    %v6189 = vpack.c.b16 %v5956, %v5955
    %v6190 = vpack.c.b16 %v5958, %v5957
    %v6191 = vpack.c.b16 %v5960, %v5959
    %v6192 = vpack.c.b16 %v5962, %v5961
    %v6193 = vpack.c.b16 %v5964, %v5963
    %v6194 = vpack.c.b16 %v5966, %v5965
    %v6195 = vpack.c.b16 %v5968, %v5967
    %v6196 = vpack.c.b16 %v5970, %v5969
    %v6197 = vpack.c.b16 %v5972, %v5971
    %v6198 = vpack.c.b16 %v5974, %v5973
    %v6199 = vpack.c.b16 %v5976, %v5975
    %v6200 = vpack.c.b16 %v5978, %v5977
    %v6201 = vpack.c.b16 %v5980, %v5979
    %v6202 = vpack.c.b16 %v5982, %v5981
    %v6203 = vpack.c.b16 %v5984, %v5983
    %v6204 = vpack.c.b16 %v5986, %v5985
    %v6205 = vpack.c.b16 %v5988, %v5987
    %v6206 = vpack.c.b16 %v5990, %v5989
    %v6207 = vpack.c.b16 %v5992, %v5991
    %v6208 = vpack.c.b16 %v5994, %v5993
    %v6209 = vpack.c.b16 %v5996, %v5995
    %v6210 = vpack.c.b16 %v5998, %v5997
    %v6211 = vpack.c.b16 %v6000, %v5999
    %v6212 = vpack.c.b16 %v6002, %v6001
    %v6213 = vpack.c.b16 %v6004, %v6003
    %v6214 = vpack.c.b16 %v6006, %v6005
    %v6215 = vpack.c.b16 %v6008, %v6007
    %v6216 = vpack.c.b16 %v6010, %v6009
    %v6217 = vpack.c.b16 %v6012, %v6011
    %v6218 = vpack.c.b16 %v6014, %v6013
    %v6219 = vpack.c.b16 %v6016, %v6015
    %v6220 = vpack.c.b16 %v6018, %v6017
    %v6221 = vpack.c.b16 %v6020, %v6019
    %v6222 = vpack.c.b16 %v6022, %v6021
    %v6223 = vpack.c.b16 %v6024, %v6023
    %v6224 = vpack.c.b16 %v6026, %v6025
    %v6225 = vpack.c.b16 %v6028, %v6027
    %v6226 = vpack.c.b16 %v6030, %v6029
    %v6227 = vpack.c.b16 %v6032, %v6031
    %v6228 = vpack.c.b16 %v6034, %v6033
    %v6229 = vpack.c.b16 %v6036, %v6035
    %v6230 = vpack.c.b16 %v6038, %v6037
    %v6231 = vpack.c.b16 %v6040, %v6039
    %v6232 = vpack.c.b16 %v6042, %v6041
    %v6233 = vpack.c.b16 %v6044, %v6043
    %v6234 = vpack.c.b16 %v6046, %v6045
    %v6235 = vpack.c.b16 %v6048, %v6047
    %v6236 = vpack.c.b16 %v6050, %v6049
    %v6237 = vpack.c.b16 %v6052, %v6051
    %v6238 = vpack.c.b16 %v6054, %v6053
    %v6239 = vpack.c.b16 %v6056, %v6055
    %v6240 = vpack.c.b16 %v6058, %v6057
    %v6241 = vpack.c.b16 %v6060, %v6059
    %v6242 = vpack.c.b16 %v6062, %v6061
    %v6243 = vpack.c.b16 %v6064, %v6063
    %v6244 = vpack.c.b16 %v6066, %v6065
    %v6245 = vpack.c.b16 %v6068, %v6067
    %v6246 = vpack.c.b16 %v6070, %v6069
    %v6247 = vpack.c.b16 %v6072, %v6071
    %v6248 = vpack.c.b16 %v6074, %v6073
    %v6249 = vpack.c.b16 %v6076, %v6075
    %v6250 = vpack.c.b16 %v6078, %v6077
    %v6251 = vpack.c.b16 %v6080, %v6079
    %v6252 = vpack.c.b16 %v6082, %v6081
    %v6253 = vpack.c.b16 %v6084, %v6083
    %v6254 = vpack.c.b16 %v6086, %v6085
    %v6255 = vpack.c.b16 %v6088, %v6087
    %v6256 = vpack.c.b16 %v6090, %v6089
    %v6257 = vpack.c.b16 %v6092, %v6091
    %v6258 = vpack.c.b16 %v6094, %v6093
    %v6259 = vpack.c.b16 %v6096, %v6095
    %v6260 = vpack.c.b16 %v6098, %v6097
    %v6261 = vpack.c.b16 %v6100, %v6099
    %v6262 = vpack.c.b16 %v6102, %v6101
    %v6263 = vpack.c.b16 %v6104, %v6103
    %v6264 = vpack.c.b16 %v6106, %v6105
    %v6265 = vpack.c.b16 %v6108, %v6107
    %v6266 = vpack.c.b16 %v6110, %v6109
    %v6267 = vpack.c.b16 %v6112, %v6111
    %v6268 = vpack.c.b16 %v6114, %v6113
    %v6269 = vpack.c.b16 %v6116, %v6115
    %v6270 = vpack.c.b16 %v6118, %v6117
    %v6271 = vpack.c.b16 %v6120, %v6119
    %v6272 = vpack.c.b16 %v6122, %v6121
    %v6273 = vpack.c.b16 %v6124, %v6123
    %v6274 = vpack.c.b16 %v6126, %v6125
    %v6275 = vpack.c.b16 %v6128, %v6127
    %v6276 = vpack.c.b16 %v6130, %v6129
    %v6277 = vpack.c.b16 %v6132, %v6131
    %v6278 = vpack.c.b16 %v6134, %v6133
    %v6279 = vpack.c.b16 %v6136, %v6135
    %v6280 = vpack.c.b16 %v6138, %v6137
    %v6281 = vpack.c.b16 %v6140, %v6139
    %v6282 = vpack.c.b16 %v6142, %v6141
    %v6283 = vpack.c.b16 %v6144, %v6143
    %v6284 = vpack.c.b16 %v6146, %v6145
    %v6285 = vpack.c.b16 %v6148, %v6147
    %v6286 = vpack.c.b16 %v6150, %v6149
    %v6287 = vpack.c.b16 %v6152, %v6151
    %v6288 = vpack.c.b16 %v6154, %v6153
    %v6289 = vpack.c.b16 %v6156, %v6155
    %v6290 = vpack.c.b16 %v6158, %v6157
    %v6291 = vpack.c.b16 %v6160, %v6159
    %v6292 = vpack.c.b16 %v6162, %v6161
    %v6293 = vpack.c.b16 %v6164, %v6163
    %v6294 = vpack.c.b16 %v6166, %v6165
    %6423 = vmatprep.subr.bf16.mxu0 0
    %6424 = vmatpush1.bf16.msra.mxu0 %v6174
    %6425 = vmatprep.subr.bf16.mxu0 0
    %6426 = vmatpush1.bf16.msra.mxu0 %v6173
    %6427 = vmatprep.subr.bf16.mxu0 0
    %6428 = vmatpush1.bf16.msra.mxu0 %v6172
    %6429 = vmatprep.subr.bf16.mxu0 0
    %6430 = vmatpush1.bf16.msra.mxu0 %v6171
    %6431 = vmatprep.subr.bf16.mxu0 0
    %6432 = vmatpush1.bf16.msra.mxu0 %v6170
    %6433 = vmatprep.subr.bf16.mxu0 0
    %6434 = vmatpush1.bf16.msra.mxu0 %v6169
    %6435 = vmatprep.subr.bf16.mxu0 0
    %6436 = vmatpush1.bf16.msra.mxu0 %v6168
    %6437 = vmatprep.subr.bf16.mxu0 0
    %6438 = vmatpush1.bf16.msra.mxu0 %v6167
    %6439 = vmatprep.subr.bf16.mxu0 0
    %6440 = vmatpush2.bf16.msra.mxu0 %v6182
    %6441 = vmatprep.subr.bf16.mxu0 0
    %6442 = vmatpush2.bf16.msra.mxu0 %v6181
    %6443 = vmatprep.subr.bf16.mxu0 0
    %6444 = vmatpush2.bf16.msra.mxu0 %v6180
    %6445 = vmatprep.subr.bf16.mxu0 0
    %6446 = vmatpush2.bf16.msra.mxu0 %v6179
    %6447 = vmatprep.subr.bf16.mxu0 0
    %6448 = vmatpush2.bf16.msra.mxu0 %v6178
    %6449 = vmatprep.subr.bf16.mxu0 0
    %6450 = vmatpush2.bf16.msra.mxu0 %v6177
    %6451 = vmatprep.subr.bf16.mxu0 0
    %6452 = vmatpush2.bf16.msra.mxu0 %v6176
    %6453 = vmatprep.subr.bf16.mxu0 0
    %6454 = vmatpush2.bf16.msra.mxu0 %v6175
    %6455 = vmatprep.mubr.bf16.mxu0 %v5379
    %6456 = vmatmul.mubr.bf16.gmra.mxu0 %v5378
    %v6457 = vpop.f32.mrf.mxu0
    %v6458 = vadd.f32 %v5654, %v6457
    %v6459 = vpop.f32.mrf.mxu0
    %v6460 = vpop.f32.mrf.mxu0
    %v6461 = vadd.f32 %v5654, %v6460
    %v6462 = vpop.f32.mrf.mxu0
    %6463 = vdwg.mxu0
    %6464 = vmatprep.subr.bf16.mxu0 0
    %6465 = vmatpush1.bf16.msra.mxu0 %v6190
    %6466 = vmatprep.subr.bf16.mxu0 0
    %6467 = vmatpush1.bf16.msra.mxu0 %v6189
    %6468 = vmatprep.subr.bf16.mxu0 0
    %6469 = vmatpush1.bf16.msra.mxu0 %v6188
    %6470 = vmatprep.subr.bf16.mxu0 0
    %6471 = vmatpush1.bf16.msra.mxu0 %v6187
    %6472 = vmatprep.subr.bf16.mxu0 0
    %6473 = vmatpush1.bf16.msra.mxu0 %v6186
    %6474 = vmatprep.subr.bf16.mxu0 0
    %6475 = vmatpush1.bf16.msra.mxu0 %v6185
    %6476 = vmatprep.subr.bf16.mxu0 0
    %6477 = vmatpush1.bf16.msra.mxu0 %v6184
    %6478 = vmatprep.subr.bf16.mxu0 0
    %6479 = vmatpush1.bf16.msra.mxu0 %v6183
    %6480 = vmatprep.subr.bf16.mxu0 0
    %6481 = vmatpush2.bf16.msra.mxu0 %v6198
    %6482 = vmatprep.subr.bf16.mxu0 0
    %6483 = vmatpush2.bf16.msra.mxu0 %v6197
    %6484 = vmatprep.subr.bf16.mxu0 0
    %6485 = vmatpush2.bf16.msra.mxu0 %v6196
    %6486 = vmatprep.subr.bf16.mxu0 0
    %6487 = vmatpush2.bf16.msra.mxu0 %v6195
    %6488 = vmatprep.subr.bf16.mxu0 0
    %6489 = vmatpush2.bf16.msra.mxu0 %v6194
    %6490 = vmatprep.subr.bf16.mxu0 0
    %6491 = vmatpush2.bf16.msra.mxu0 %v6193
    %6492 = vmatprep.subr.bf16.mxu0 0
    %6493 = vmatpush2.bf16.msra.mxu0 %v6192
    %6494 = vmatprep.subr.bf16.mxu0 0
    %6495 = vmatpush2.bf16.msra.mxu0 %v6191
    %6496 = vmatprep.mubr.bf16.mxu0 %v5381
    %6497 = vmatmul.mubr.bf16.gmra.mxu0 %v5380
    %v6498 = vpop.f32.mrf.mxu0
    %v6499 = vadd.f32 %v6458, %v6498
    %v6500 = vpop.f32.mrf.mxu0
    %v6501 = vpop.f32.mrf.mxu0
    %v6502 = vadd.f32 %v6461, %v6501
    %v6503 = vpop.f32.mrf.mxu0
    %6504 = vdwg.mxu0
    %6505 = vmatprep.subr.bf16.mxu0 0
    %6506 = vmatpush1.bf16.msra.mxu0 %v6206
    %6507 = vmatprep.subr.bf16.mxu0 0
    %6508 = vmatpush1.bf16.msra.mxu0 %v6205
    %6509 = vmatprep.subr.bf16.mxu0 0
    %6510 = vmatpush1.bf16.msra.mxu0 %v6204
    %6511 = vmatprep.subr.bf16.mxu0 0
    %6512 = vmatpush1.bf16.msra.mxu0 %v6203
    %6513 = vmatprep.subr.bf16.mxu0 0
    %6514 = vmatpush1.bf16.msra.mxu0 %v6202
    %6515 = vmatprep.subr.bf16.mxu0 0
    %6516 = vmatpush1.bf16.msra.mxu0 %v6201
    %6517 = vmatprep.subr.bf16.mxu0 0
    %6518 = vmatpush1.bf16.msra.mxu0 %v6200
    %6519 = vmatprep.subr.bf16.mxu0 0
    %6520 = vmatpush1.bf16.msra.mxu0 %v6199
    %6521 = vmatprep.subr.bf16.mxu0 0
    %6522 = vmatpush2.bf16.msra.mxu0 %v6214
    %6523 = vmatprep.subr.bf16.mxu0 0
    %6524 = vmatpush2.bf16.msra.mxu0 %v6213
    %6525 = vmatprep.subr.bf16.mxu0 0
    %6526 = vmatpush2.bf16.msra.mxu0 %v6212
    %6527 = vmatprep.subr.bf16.mxu0 0
    %6528 = vmatpush2.bf16.msra.mxu0 %v6211
    %6529 = vmatprep.subr.bf16.mxu0 0
    %6530 = vmatpush2.bf16.msra.mxu0 %v6210
    %6531 = vmatprep.subr.bf16.mxu0 0
    %6532 = vmatpush2.bf16.msra.mxu0 %v6209
    %6533 = vmatprep.subr.bf16.mxu0 0
    %6534 = vmatpush2.bf16.msra.mxu0 %v6208
    %6535 = vmatprep.subr.bf16.mxu0 0
    %6536 = vmatpush2.bf16.msra.mxu0 %v6207
    %6537 = vmatprep.mubr.bf16.mxu0 %v5383
    %6538 = vmatmul.mubr.bf16.gmra.mxu0 %v5382
    %v6539 = vpop.f32.mrf.mxu0
    %v6540 = vadd.f32 %v6499, %v6539
    %v6541 = vpop.f32.mrf.mxu0
    %v6542 = vpop.f32.mrf.mxu0
    %v6543 = vadd.f32 %v6502, %v6542
    %v6544 = vpop.f32.mrf.mxu0
    %6545 = vdwg.mxu0
    %6546 = vmatprep.subr.bf16.mxu0 0
    %6547 = vmatpush1.bf16.msra.mxu0 %v6222
    %6548 = vmatprep.subr.bf16.mxu0 0
    %6549 = vmatpush1.bf16.msra.mxu0 %v6221
    %6550 = vmatprep.subr.bf16.mxu0 0
    %6551 = vmatpush1.bf16.msra.mxu0 %v6220
    %6552 = vmatprep.subr.bf16.mxu0 0
    %6553 = vmatpush1.bf16.msra.mxu0 %v6219
    %6554 = vmatprep.subr.bf16.mxu0 0
    %6555 = vmatpush1.bf16.msra.mxu0 %v6218
    %6556 = vmatprep.subr.bf16.mxu0 0
    %6557 = vmatpush1.bf16.msra.mxu0 %v6217
    %6558 = vmatprep.subr.bf16.mxu0 0
    %6559 = vmatpush1.bf16.msra.mxu0 %v6216
    %6560 = vmatprep.subr.bf16.mxu0 0
    %6561 = vmatpush1.bf16.msra.mxu0 %v6215
    %6562 = vmatprep.subr.bf16.mxu0 0
    %6563 = vmatpush2.bf16.msra.mxu0 %v6230
    %6564 = vmatprep.subr.bf16.mxu0 0
    %6565 = vmatpush2.bf16.msra.mxu0 %v6229
    %6566 = vmatprep.subr.bf16.mxu0 0
    %6567 = vmatpush2.bf16.msra.mxu0 %v6228
    %6568 = vmatprep.subr.bf16.mxu0 0
    %6569 = vmatpush2.bf16.msra.mxu0 %v6227
    %6570 = vmatprep.subr.bf16.mxu0 0
    %6571 = vmatpush2.bf16.msra.mxu0 %v6226
    %6572 = vmatprep.subr.bf16.mxu0 0
    %6573 = vmatpush2.bf16.msra.mxu0 %v6225
    %6574 = vmatprep.subr.bf16.mxu0 0
    %6575 = vmatpush2.bf16.msra.mxu0 %v6224
    %6576 = vmatprep.subr.bf16.mxu0 0
    %6577 = vmatpush2.bf16.msra.mxu0 %v6223
    %6578 = vmatprep.mubr.bf16.mxu0 %v5385
    %6579 = vmatmul.mubr.bf16.gmra.mxu0 %v5384
    %v6580 = vpop.f32.mrf.mxu0
    %v6581 = vadd.f32 %v6540, %v6580
    %v6582 = vpop.f32.mrf.mxu0
    %v6583 = vpop.f32.mrf.mxu0
    %v6584 = vadd.f32 %v6543, %v6583
    %v6585 = vpop.f32.mrf.mxu0
    %6586 = vdwg.mxu0
    %6587 = vmatprep.subr.bf16.mxu0 0
    %6588 = vmatpush1.bf16.msra.mxu0 %v6238
    %6589 = vmatprep.subr.bf16.mxu0 0
    %6590 = vmatpush1.bf16.msra.mxu0 %v6237
    %6591 = vmatprep.subr.bf16.mxu0 0
    %6592 = vmatpush1.bf16.msra.mxu0 %v6236
    %6593 = vmatprep.subr.bf16.mxu0 0
    %6594 = vmatpush1.bf16.msra.mxu0 %v6235
    %6595 = vmatprep.subr.bf16.mxu0 0
    %6596 = vmatpush1.bf16.msra.mxu0 %v6234
    %6597 = vmatprep.subr.bf16.mxu0 0
    %6598 = vmatpush1.bf16.msra.mxu0 %v6233
    %6599 = vmatprep.subr.bf16.mxu0 0
    %6600 = vmatpush1.bf16.msra.mxu0 %v6232
    %6601 = vmatprep.subr.bf16.mxu0 0
    %6602 = vmatpush1.bf16.msra.mxu0 %v6231
    %6603 = vmatprep.subr.bf16.mxu0 0
    %6604 = vmatpush2.bf16.msra.mxu0 %v6246
    %6605 = vmatprep.subr.bf16.mxu0 0
    %6606 = vmatpush2.bf16.msra.mxu0 %v6245
    %6607 = vmatprep.subr.bf16.mxu0 0
    %6608 = vmatpush2.bf16.msra.mxu0 %v6244
    %6609 = vmatprep.subr.bf16.mxu0 0
    %6610 = vmatpush2.bf16.msra.mxu0 %v6243
    %6611 = vmatprep.subr.bf16.mxu0 0
    %6612 = vmatpush2.bf16.msra.mxu0 %v6242
    %6613 = vmatprep.subr.bf16.mxu0 0
    %6614 = vmatpush2.bf16.msra.mxu0 %v6241
    %6615 = vmatprep.subr.bf16.mxu0 0
    %6616 = vmatpush2.bf16.msra.mxu0 %v6240
    %6617 = vmatprep.subr.bf16.mxu0 0
    %6618 = vmatpush2.bf16.msra.mxu0 %v6239
    %6619 = vmatprep.mubr.bf16.mxu0 %v5387
    %6620 = vmatmul.mubr.bf16.gmra.mxu0 %v5386
    %v6621 = vpop.f32.mrf.mxu0
    %v6622 = vadd.f32 %v6581, %v6621
    %v6623 = vpop.f32.mrf.mxu0
    %v6624 = vpop.f32.mrf.mxu0
    %v6625 = vadd.f32 %v6584, %v6624
    %v6626 = vpop.f32.mrf.mxu0
    %6627 = vdwg.mxu0
    %6628 = vmatprep.subr.bf16.mxu0 0
    %6629 = vmatpush1.bf16.msra.mxu0 %v6254
    %6630 = vmatprep.subr.bf16.mxu0 0
    %6631 = vmatpush1.bf16.msra.mxu0 %v6253
    %6632 = vmatprep.subr.bf16.mxu0 0
    %6633 = vmatpush1.bf16.msra.mxu0 %v6252
    %6634 = vmatprep.subr.bf16.mxu0 0
    %6635 = vmatpush1.bf16.msra.mxu0 %v6251
    %6636 = vmatprep.subr.bf16.mxu0 0
    %6637 = vmatpush1.bf16.msra.mxu0 %v6250
    %6638 = vmatprep.subr.bf16.mxu0 0
    %6639 = vmatpush1.bf16.msra.mxu0 %v6249
    %6640 = vmatprep.subr.bf16.mxu0 0
    %6641 = vmatpush1.bf16.msra.mxu0 %v6248
    %6642 = vmatprep.subr.bf16.mxu0 0
    %6643 = vmatpush1.bf16.msra.mxu0 %v6247
    %6644 = vmatprep.subr.bf16.mxu0 0
    %6645 = vmatpush2.bf16.msra.mxu0 %v6262
    %6646 = vmatprep.subr.bf16.mxu0 0
    %6647 = vmatpush2.bf16.msra.mxu0 %v6261
    %6648 = vmatprep.subr.bf16.mxu0 0
    %6649 = vmatpush2.bf16.msra.mxu0 %v6260
    %6650 = vmatprep.subr.bf16.mxu0 0
    %6651 = vmatpush2.bf16.msra.mxu0 %v6259
    %6652 = vmatprep.subr.bf16.mxu0 0
    %6653 = vmatpush2.bf16.msra.mxu0 %v6258
    %6654 = vmatprep.subr.bf16.mxu0 0
    %6655 = vmatpush2.bf16.msra.mxu0 %v6257
    %6656 = vmatprep.subr.bf16.mxu0 0
    %6657 = vmatpush2.bf16.msra.mxu0 %v6256
    %6658 = vmatprep.subr.bf16.mxu0 0
    %6659 = vmatpush2.bf16.msra.mxu0 %v6255
    %6660 = vmatprep.mubr.bf16.mxu0 %v5389
    %6661 = vmatmul.mubr.bf16.gmra.mxu0 %v5388
    %v6662 = vpop.f32.mrf.mxu0
    %v6663 = vadd.f32 %v6622, %v6662
    %v6664 = vpop.f32.mrf.mxu0
    %v6665 = vpop.f32.mrf.mxu0
    %v6666 = vadd.f32 %v6625, %v6665
    %v6667 = vpop.f32.mrf.mxu0
    %6668 = vdwg.mxu0
    %6669 = vmatprep.subr.bf16.mxu0 0
    %6670 = vmatpush1.bf16.msra.mxu0 %v6270
    %6671 = vmatprep.subr.bf16.mxu0 0
    %6672 = vmatpush1.bf16.msra.mxu0 %v6269
    %6673 = vmatprep.subr.bf16.mxu0 0
    %6674 = vmatpush1.bf16.msra.mxu0 %v6268
    %6675 = vmatprep.subr.bf16.mxu0 0
    %6676 = vmatpush1.bf16.msra.mxu0 %v6267
    %6677 = vmatprep.subr.bf16.mxu0 0
    %6678 = vmatpush1.bf16.msra.mxu0 %v6266
    %6679 = vmatprep.subr.bf16.mxu0 0
    %6680 = vmatpush1.bf16.msra.mxu0 %v6265
    %6681 = vmatprep.subr.bf16.mxu0 0
    %6682 = vmatpush1.bf16.msra.mxu0 %v6264
    %6683 = vmatprep.subr.bf16.mxu0 0
    %6684 = vmatpush1.bf16.msra.mxu0 %v6263
    %6685 = vmatprep.subr.bf16.mxu0 0
    %6686 = vmatpush2.bf16.msra.mxu0 %v6278
    %6687 = vmatprep.subr.bf16.mxu0 0
    %6688 = vmatpush2.bf16.msra.mxu0 %v6277
    %6689 = vmatprep.subr.bf16.mxu0 0
    %6690 = vmatpush2.bf16.msra.mxu0 %v6276
    %6691 = vmatprep.subr.bf16.mxu0 0
    %6692 = vmatpush2.bf16.msra.mxu0 %v6275
    %6693 = vmatprep.subr.bf16.mxu0 0
    %6694 = vmatpush2.bf16.msra.mxu0 %v6274
    %6695 = vmatprep.subr.bf16.mxu0 0
    %6696 = vmatpush2.bf16.msra.mxu0 %v6273
    %6697 = vmatprep.subr.bf16.mxu0 0
    %6698 = vmatpush2.bf16.msra.mxu0 %v6272
    %6699 = vmatprep.subr.bf16.mxu0 0
    %6700 = vmatpush2.bf16.msra.mxu0 %v6271
    %6701 = vmatprep.mubr.bf16.mxu0 %v5391
    %6702 = vmatmul.mubr.bf16.gmra.mxu0 %v5390
    %v6703 = vpop.f32.mrf.mxu0
    %v6704 = vadd.f32 %v6663, %v6703
    %v6705 = vpop.f32.mrf.mxu0
    %v6706 = vpop.f32.mrf.mxu0
    %v6707 = vadd.f32 %v6666, %v6706
    %v6708 = vpop.f32.mrf.mxu0
    %6709 = vdwg.mxu0
    %6710 = vmatprep.subr.bf16.mxu0 0
    %6711 = vmatpush1.bf16.msra.mxu0 %v6286
    %6712 = vmatprep.subr.bf16.mxu0 0
    %6713 = vmatpush1.bf16.msra.mxu0 %v6285
    %6714 = vmatprep.subr.bf16.mxu0 0
    %6715 = vmatpush1.bf16.msra.mxu0 %v6284
    %6716 = vmatprep.subr.bf16.mxu0 0
    %6717 = vmatpush1.bf16.msra.mxu0 %v6283
    %6718 = vmatprep.subr.bf16.mxu0 0
    %6719 = vmatpush1.bf16.msra.mxu0 %v6282
    %6720 = vmatprep.subr.bf16.mxu0 0
    %6721 = vmatpush1.bf16.msra.mxu0 %v6281
    %6722 = vmatprep.subr.bf16.mxu0 0
    %6723 = vmatpush1.bf16.msra.mxu0 %v6280
    %6724 = vmatprep.subr.bf16.mxu0 0
    %6725 = vmatpush1.bf16.msra.mxu0 %v6279
    %6726 = vmatprep.subr.bf16.mxu0 0
    %6727 = vmatpush2.bf16.msra.mxu0 %v6294
    %6728 = vmatprep.subr.bf16.mxu0 0
    %6729 = vmatpush2.bf16.msra.mxu0 %v6293
    %6730 = vmatprep.subr.bf16.mxu0 0
    %6731 = vmatpush2.bf16.msra.mxu0 %v6292
    %6732 = vmatprep.subr.bf16.mxu0 0
    %6733 = vmatpush2.bf16.msra.mxu0 %v6291
    %6734 = vmatprep.subr.bf16.mxu0 0
    %6735 = vmatpush2.bf16.msra.mxu0 %v6290
    %6736 = vmatprep.subr.bf16.mxu0 0
    %6737 = vmatpush2.bf16.msra.mxu0 %v6289
    %6738 = vmatprep.subr.bf16.mxu0 0
    %6739 = vmatpush2.bf16.msra.mxu0 %v6288
    %6740 = vmatprep.subr.bf16.mxu0 0
    %6741 = vmatpush2.bf16.msra.mxu0 %v6287
    %6742 = vmatprep.mubr.bf16.mxu0 %v5393
    %6743 = vmatmul.mubr.bf16.gmra.mxu0 %v5392
    %v6744 = vpop.f32.mrf.mxu0
    %v6745 = vadd.f32 %v6704, %v6744
    %v6746 = vpop.f32.mrf.mxu0
    %v6747 = vpop.f32.mrf.mxu0
    %v6748 = vadd.f32 %v6707, %v6747
    %v6749 = vpop.f32.mrf.mxu0
    %6750 = vdwg.mxu0
    %v6751 = vadd.f32 %v4659, %v6745
    %v6752 = vadd.f32 %v4660, %v6748
    %v6753 = vsel %vm58, %v6751, 0.0
    %6754 = vadd.xlane.f32.xlu0 %v6753
    %v6755 = vpop.xlane.xlu0 %6754
    %v6756 = vsel %vm58, %v6752, 0.0
    %6757 = vadd.xlane.f32.xlu0 %v6756
    %v6758 = vpop.xlane.xlu0 %6757
    %v6759 = vmul.f32 %v6755, %v1252
    %v6760 = vmul.f32 %v6758, %v1252
    %v6761 = vsub.f32 %v6751, %v6759
    %v6762 = vsub.f32 %v6752, %v6760
    %v6763 = vmul.f32 %v6761, %v6761
    %v6764 = vmul.f32 %v6762, %v6762
    %v6765 = vsel %vm58, %v6763, 0.0
    %6766 = vadd.xlane.f32.xlu0 %v6765
    %v6767 = vpop.xlane.xlu0 %6766
    %v6768 = vsel %vm58, %v6764, 0.0
    %6769 = vadd.xlane.f32.xlu0 %v6768
    %v6770 = vpop.xlane.xlu0 %6769
    %v6771 = vmul.f32 %v6767, %v1252
    %v6772 = vmul.f32 %v6770, %v1252
    %v6773 = vadd.f32 %v6771, 1e-05
    %v6774 = vadd.f32 %v6772, 1e-05
    %v6775 = vrsqrt.pop %v6773
    %v6776 = vrsqrt.pop %v6774
    %v6777 = vmul.f32 %v6761, %v6775
    %v6778 = vmul.f32 %v6762, %v6776
    %v6779 = vlaneseq
    %v6780 = vshrl.u32 %v6779, 7
    %v6781 = vsub.s32 0, %v6780
    %v6782 = vrot.slane %v32, %v6781
    %v6783 = vmul.f32 %v6777, %v6782
    %v6784 = vmul.f32 %v6778, %v6782
    %v6785 = vlaneseq
    %v6786 = vshrl.u32 %v6785, 7
    %v6787 = vsub.s32 1, %v6786
    %v6788 = vrot.slane %v32, %v6787
    %v6789 = vadd.f32 %v6783, %v6788
    %v6790 = vadd.f32 %v6784, %v6788
    %6791 = vst.msk [vmem:[#allocation2] sm:$0xff] %vm58, %v6789
    %6792 = vst.msk [vmem:[#allocation2 + $0x8] sm:$0xff] %vm58, %v6790
    // Predicated region
    $region30: #{tpu_custom_call.1} parent=1 // pred_check
      _
    $region31: #{tpu_custom_call.1} parent=1 // pred_check_branch
      %6794 = sbr.rel (0) target = $region33
    $region32: #{tpu_custom_call.1} parent=1 // pred_region
      %s6796 = ssub.s32 256, 256
      %6797 = vsyncadd [#allocation3], %s6796
      %s6798 = sshll.u32 [#allocation2], 4
      %s6799 = int_to_ptr.vmem [resolvable:$true] %s6798
      %6804 = dma.vmem_to_hbm [thread:$0]  %s6799, 256, %s7, [#allocation3], 128, 128, 8
    $region33: #{tpu_custom_call.1} parent=1 // pred_fallthru
      _
    // Predicated region
    $region34: #{tpu_custom_call.1} parent=1 // pred_check
      _
    $region35: #{tpu_custom_call.1} parent=1 // pred_check_branch
      %6806 = sbr.rel (0) target = $region37
    $region36: #{tpu_custom_call.1} parent=1 // pred_region
      %6807 = dma.done [#allocation3], 256
    $region37: #{tpu_custom_call.1} parent=1 // pred_fallthru
      _
    %6808 = vsyncpa [#allocation3], 1

</llo_original>
